<compile_context>
chip_gen: v6e
topology: v6e:2x2x1
jax: 0.10.0
libtpu: 0.0.40
codegen_flags: <defaults>
</compile_context>

<pallas_src>
import functools
import math

import numpy as np
import jax
import jax.numpy as jnp
from jax import lax
from jax.experimental import pallas as pl
from jax.experimental.pallas import tpu as pltpu

LRELU_SLOPE = 0.1
LANE = 128


def _rup(n, m=LANE):
    return ((n + m - 1) // m) * m


# ----------------------------------------------------------------------------
# pallas_call helper: grid over batch, one block per batch element
# ----------------------------------------------------------------------------
def _pc(kernel, args, batched, out_shape):
    B = None
    for a, f in zip(args, batched):
        if f:
            B = a.shape[0]
            break
    in_specs = []
    for a, f in zip(args, batched):
        if f:
            rest = a.shape[1:]
            in_specs.append(pl.BlockSpec((1,) + rest,
                                         lambda b, n=len(rest): (b,) + (0,) * n))
        else:
            in_specs.append(pl.BlockSpec(a.shape,
                                         lambda b, n=a.ndim: (0,) * n))
    multi = isinstance(out_shape, (tuple, list))
    outs = tuple(out_shape) if multi else (out_shape,)
    out_specs = tuple(pl.BlockSpec((1,) + o.shape[1:],
                                   lambda b, n=len(o.shape) - 1: (b,) + (0,) * n)
                      for o in outs)
    return pl.pallas_call(
        kernel,
        grid=(B,),
        in_specs=in_specs,
        out_specs=out_specs if multi else out_specs[0],
        out_shape=outs if multi else outs[0],
        compiler_params=pltpu.CompilerParams(
            dimension_semantics=("parallel",)),
    )(*args)


# ----------------------------------------------------------------------------
# Kernels
# ----------------------------------------------------------------------------
def _conv_kernel(*refs, K, dil, pleft, TL_out, t_in, act, pre_slope, in_scale,
                 use_in_mask, use_res, use_out_mask, use_bias):
    """1-D conv as K accumulating per-tap matmuls, with fused in-mask / scale /
    pre-activation / bias / aligned residual / activation / out-mask."""
    it = iter(refs)
    x_ref = next(it)                         # (1, Cin, TLx)  f32
    w_ref = next(it)                         # (K, Cout, Cin) bf16
    b_ref = next(it) if use_bias else None   # (Cout, 1)      f32
    im_ref = next(it) if use_in_mask else None
    r_ref = next(it) if use_res else None    # (1, Cout, >=TL_out)
    om_ref = next(it) if use_out_mask else None
    o_ref = next(it)                         # (1, Cout, TL_out)

    x = x_ref[0]
    Cin, TLx = x.shape
    if t_in < TLx:                           # zero bias-garbage beyond valid length
        lane = lax.broadcasted_iota(jnp.int32, (Cin, TLx), 1)
        x = jnp.where(lane < t_in, x, 0.0)
    if use_in_mask:
        x = x * im_ref[0][:, :TLx]
    if in_scale is not None:
        x = x * in_scale
    if pre_slope is not None:
        x = jnp.where(x >= 0, x, pre_slope * x)
    xb = x.astype(jnp.bfloat16)

    if K == 1 and pleft == 0:
        acc = jnp.dot(w_ref[0], xb[:, :TL_out],
                      preferred_element_type=jnp.float32)
    else:
        rpad = max(0, (K - 1) * dil - pleft + TL_out - TLx)
        xp = jnp.pad(xb, ((0, 0), (pleft, rpad)))
        acc = None
        for k in range(K):
            c = jnp.dot(w_ref[k], xp[:, k * dil:k * dil + TL_out],
                        preferred_element_type=jnp.float32)
            acc = c if acc is None else acc + c

    y = acc
    if use_bias:
        y = y + b_ref[...]
    if use_res:
        y = y + r_ref[0][:, :TL_out]
    if act == 'relu':
        y = jnp.maximum(y, 0.0)
    elif act == 'tanh':
        y = jnp.tanh(y)
    if use_out_mask:
        y = y * om_ref[0][:, :TL_out]
    o_ref[0] = y


def _convT_kernel(x_ref, w_ref, b_ref, o_ref, *, s, J, offs, TLq, t_in,
                  pre_slope, in_scale):
    """Polyphase ConvTranspose1d: per phase, J accumulating per-tap matmuls."""
    x = x_ref[0]                              # (Cin, TLx)
    Cin, TLx = x.shape
    if t_in < TLx:
        lane = lax.broadcasted_iota(jnp.int32, (Cin, TLx), 1)
        x = jnp.where(lane < t_in, x, 0.0)
    if in_scale is not None:
        x = x * in_scale
    if pre_slope is not None:
        x = jnp.where(x >= 0, x, pre_slope * x)
    xb = x.astype(jnp.bfloat16)
    lpad = J - 1
    maxoff = max(max(o) for o in offs)
    rpad = max(0, maxoff + TLq - TLx)
    xp = jnp.pad(xb, ((0, 0), (lpad, rpad)))
    b = b_ref[...]
    for r in range(s):
        acc = None
        for j in range(J):
            start = lpad + offs[r][j]
            c = jnp.dot(w_ref[r, j], xp[:, start:start + TLq],
                        preferred_element_type=jnp.float32)
            acc = c if acc is None else acc + c
        # TODO(synk): emit the phase interleave in-kernel (strided stores) so
        # the wrapper-side transpose/reshape HBM round trip disappears.
        o_ref[0, r] = acc + b


def _wn_stack_kernel(x_ref, m_ref, win_ref, bin_ref, wrs_ref, brs_ref, o_ref,
                     *, L, K, H, TL, pad):
    """Full WaveNet stack in one kernel: L x (dilated conv -> tanh*sigmoid gate
    -> 1x1 conv -> residual / skip update).  x and skip stay resident across
    layers.  TODO(synk): dilation_rate > 1 not handled (VITS uses 1)."""
    m = m_ref[0]                              # (1, TL)

    def body(l, carry):
        x, skip = carry
        xp = jnp.pad(x.astype(jnp.bfloat16), ((0, 0), (pad, pad)))
        pre = None
        for k in range(K):
            c = jnp.dot(win_ref[l * K + k], xp[:, k:k + TL],
                        preferred_element_type=jnp.float32)
            pre = c if pre is None else pre + c
        pre = pre + bin_ref[l]
        gate = jnp.tanh(pre[:H]) * jax.nn.sigmoid(pre[H:])
        rs = jnp.dot(wrs_ref[l], gate.astype(jnp.bfloat16),
                     preferred_element_type=jnp.float32) + brs_ref[l]
        x = (x + rs[:H]) * m
        skip = skip + rs[H:]
        return (x, skip)

    x0 = x_ref[0]
    skip0 = jnp.zeros((H, TL), jnp.float32)
    _, skip = lax.fori_loop(0, L, body, (x0, skip0))
    o_ref[0] = skip * m


def _attn_block_kernel(x_ref, m_ref, wqkv_ref, bqkv_ref, woh_ref, bo_ref,
                       g_ref, bln_ref, o_ref, *, H, nh, Dh, scale, eps):
    """Fused: qkv 1x1 conv + multi-head self-attention + per-head-accumulated
    output projection + residual + channel LayerNorm.
    TODO(synk): VITS relative-position attention bias (window_size) omitted."""
    x = x_ref[0]                              # (H, TL) f32
    m = m_ref[0]                              # (1, TL) f32  (key-dim mask)
    xb = x.astype(jnp.bfloat16)
    qkv = jnp.dot(wqkv_ref[...], xb,
                  preferred_element_type=jnp.float32) + bqkv_ref[...]
    kmask = m > 0
    y = None
    for h in range(nh):
        q = qkv[h * Dh:(h + 1) * Dh].astype(jnp.bfloat16)
        k = qkv[H + h * Dh:H + (h + 1) * Dh].astype(jnp.bfloat16)
        v = qkv[2 * H + h * Dh:2 * H + (h + 1) * Dh].astype(jnp.bfloat16)
        s = lax.dot_general(q, k, (((0,), (0,)), ((), ())),
                            preferred_element_type=jnp.float32) * scale
        s = jnp.where(kmask, s, -1e4)
        s = s - jnp.max(s, axis=-1, keepdims=True)
        e = jnp.exp(s)
        p = e * pl.reciprocal(jnp.sum(e, axis=-1, keepdims=True), approx=True)
        head = lax.dot_general(v, p.astype(jnp.bfloat16),
                               (((1,), (1,)), ((), ())),
                               preferred_element_type=jnp.float32)   # (Dh, TL)
        c = jnp.dot(woh_ref[h], head.astype(jnp.bfloat16),
                    preferred_element_type=jnp.float32)
        y = c if y is None else y + c
    y = y + bo_ref[...]
    v2 = x + y
    mean = jnp.mean(v2, axis=0, keepdims=True)
    cdev = v2 - mean
    var = jnp.mean(cdev * cdev, axis=0, keepdims=True)
    o_ref[0] = cdev * lax.rsqrt(var + eps) * g_ref[...] + bln_ref[...]


def _ffn_block_kernel(x_ref, m_ref, w1_ref, b1_ref, w2_ref, b2_ref, g_ref,
                      bln_ref, o_ref, *, K, pad, TL, eps):
    """Fused FFN: conv1 + relu + conv2 + mask + residual + channel LayerNorm."""
    x = x_ref[0]                              # (H, TL) f32
    m = m_ref[0]                              # (1, TL)
    xp = jnp.pad((x * m).astype(jnp.bfloat16), ((0, 0), (pad, pad)))
    h = None
    for k in range(K):
        c = jnp.dot(w1_ref[k], xp[:, k:k + TL],
                    preferred_element_type=jnp.float32)
        h = c if h is None else h + c
    h = jnp.maximum(h + b1_ref[...], 0.0)
    hp2 = jnp.pad((h * m).astype(jnp.bfloat16), ((0, 0), (pad, pad)))
    y = None
    for k in range(K):
        c = jnp.dot(w2_ref[k], hp2[:, k:k + TL],
                    preferred_element_type=jnp.float32)
        y = c if y is None else y + c
    y = (y + b2_ref[...]) * m
    v = x + y
    mean = jnp.mean(v, axis=0, keepdims=True)
    cdev = v - mean
    var = jnp.mean(cdev * cdev, axis=0, keepdims=True)
    o_ref[0] = cdev * lax.rsqrt(var + eps) * g_ref[...] + bln_ref[...]


def _lognorm_kernel(mu_ref, lv_ref, z_ref, o_ref):
    """Gaussian log-likelihood matrix for MAS (4 terms, 2 matmuls, fused)."""
    mu = mu_ref[0]
    lv = lv_ref[0]
    z = z_ref[0]
    sqr = jnp.exp(-2.0 * lv)
    neg1 = jnp.sum(-0.5 * math.log(2 * math.pi) - lv, axis=0, keepdims=True)
    neg4 = jnp.sum(-0.5 * mu * mu * sqr, axis=0, keepdims=True)
    n2 = lax.dot_general(-0.5 * z * z, sqr, (((0,), (0,)), ((), ())),
                         preferred_element_type=jnp.float32)
    n3 = lax.dot_general(z, mu * sqr, (((0,), (0,)), ((), ())),
                         preferred_element_type=jnp.float32)
    o_ref[0] = neg1 + n2 + n3 + neg4


def _align_kernel(attn_ref, mu_ref, lv_ref, mo_ref, lo_ref):
    a = attn_ref[0]                           # (TLy, TLx)
    mo_ref[0] = lax.dot_general(mu_ref[0], a, (((1,), (1,)), ((), ())),
                                preferred_element_type=jnp.float32)
    lo_ref[0] = lax.dot_general(lv_ref[0], a, (((1,), (1,)), ((), ())),
                                preferred_element_type=jnp.float32)


# ----------------------------------------------------------------------------
# Kernel wrappers
# ----------------------------------------------------------------------------
def conv1d(x, t, p, *, padding=0, dilation=1, act=None, pre_slope=None,
           in_scale=None, in_mask=None, out_mask=None, res=None):
    wt, b, K = p['wt'], p['b'], p['k']
    B, Cin, TLx = x.shape
    Cout = wt.shape[1]
    t_out = t + 2 * padding - dilation * (K - 1)
    TL_out = _rup(t_out)
    args, flags = [x, wt], [True, False]
    if b is not None:
        args.append(b); flags.append(False)
    if in_mask is not None:
        args.append(in_mask); flags.append(True)
    if res is not None:
        args.append(res); flags.append(True)
    if out_mask is not None:
        args.append(out_mask); flags.append(True)
    kern = functools.partial(
        _conv_kernel, K=K, dil=dilation, pleft=padding, TL_out=TL_out,
        t_in=min(t, TLx), act=act, pre_slope=pre_slope, in_scale=in_scale,
        use_in_mask=in_mask is not None, use_res=res is not None,
        use_out_mask=out_mask is not None, use_bias=b is not None)
    y = _pc(kern, args, flags,
            jax.ShapeDtypeStruct((B, Cout, TL_out), jnp.float32))
    return y, t_out


def conv_transpose1d(x, t, p, *, pre_slope=None, in_scale=None):
    wt, b = p['wt'], p['b']
    s, J, K, offs = p['stride'], p['J'], p['k'], p['offs']
    B, Cin, TLx = x.shape
    Cout = wt.shape[2]
    t_out = (t - 1) * s - 2 * p['padding'] + K
    TLq = _rup(-(-t_out // s))
    kern = functools.partial(_convT_kernel, s=s, J=J, offs=offs, TLq=TLq,
                             t_in=min(t, TLx), pre_slope=pre_slope,
                             in_scale=in_scale)
    y4 = _pc(kern, [x, wt, b], [True, False, False],
             jax.ShapeDtypeStruct((B, s, Cout, TLq), jnp.float32))
    y = jnp.transpose(y4, (0, 2, 3, 1)).reshape(B, Cout, TLq * s)
    return y, t_out


def wn_stack(x, mask, wnp, H):
    B, _, TL = x.shape
    L, K = wnp['n_layers'], wnp['k']
    kern = functools.partial(_wn_stack_kernel, L=L, K=K, H=H, TL=TL,
                             pad=(K - 1) // 2)
    return _pc(kern,
               [x, mask, wnp['w_in'], wnp['b_in'], wnp['w_rs'], wnp['b_rs']],
               [True, True, False, False, False, False],
               jax.ShapeDtypeStruct((B, H, TL), jnp.float32))


def attn_block(x, mask, lp, hp):
    B, H, TL = x.shape
    nh = hp['n_heads']
    Dh = H // nh
    kern = functools.partial(_attn_block_kernel, H=H, nh=nh, Dh=Dh,
                             scale=Dh ** -0.5, eps=1e-5)
    return _pc(kern,
               [x, mask, lp['wqkv'], lp['bqkv'], lp['wo_h'], lp['bo'],
                lp['ln1_g'], lp['ln1_b']],
               [True, True, False, False, False, False, False, False],
               jax.ShapeDtypeStruct((B, H, TL), jnp.float32))


def ffn_block(x, mask, lp, hp):
    B, H, TL = x.shape
    K = hp['kernel_size']
    kern = functools.partial(_ffn_block_kernel, K=K, pad=(K - 1) // 2, TL=TL,
                             eps=1e-5)
    return _pc(kern,
               [x, mask, lp['w1'], lp['b1'], lp['w2'], lp['b2'],
                lp['ln2_g'], lp['ln2_b']],
               [True, True, False, False, False, False, False, False],
               jax.ShapeDtypeStruct((B, H, TL), jnp.float32))


def log_likelihood(p_mu, p_log_var, p_z):
    B, _, TLx = p_mu.shape
    TLy = p_z.shape[2]
    return _pc(_lognorm_kernel, [p_mu, p_log_var, p_z], [True, True, True],
               jax.ShapeDtypeStruct((B, TLy, TLx), jnp.float32))


def align_stats(attn, p_mu, p_log_var):
    B, C, _ = p_mu.shape
    TLy = attn.shape[1]
    return _pc(_align_kernel, [attn, p_mu, p_log_var], [True, True, True],
               (jax.ShapeDtypeStruct((B, C, TLy), jnp.float32),
                jax.ShapeDtypeStruct((B, C, TLy), jnp.float32)))


# ----------------------------------------------------------------------------
# Plain-JAX / numpy glue
# ----------------------------------------------------------------------------
def sequence_mask(lengths, max_len):
    return (jnp.arange(max_len)[None, :] < lengths[:, None]).astype(jnp.float32)


def rand_slice_segments(x, lengths, segment_size, key):
    B, C, _ = x.shape
    ids_max = jnp.maximum(lengths - segment_size + 1, 1).astype(jnp.float32)
    ids = (jax.random.uniform(key, (B,)) * ids_max).astype(jnp.int32)
    slices = jax.vmap(
        lambda xb, i: lax.dynamic_slice(xb, (0, i), (C, segment_size)))(x, ids)
    return slices, ids


def maximum_path_np(value, mask, max_neg=-1e9):
    """Monotonic alignment search (torch.no_grad block).  Row-vectorized DP:
    each row depends only on the previous row, so the inner x-loop is numpy
    vectorized; only the O(t_y) row loop and backtracking stay scalar.
    TODO(synk): move to an on-device lax.scan for very long sequences."""
    B, t_y_max, t_x_max = value.shape
    paths = np.zeros((B, t_y_max, t_x_max), dtype=np.float32)
    for b in range(B):
        t_y = int(mask[b, :, 0].sum())
        t_x = int(mask[b, 0, :].sum())
        val = np.array(value[b, :t_y, :t_x], dtype=np.float64)
        xs = np.arange(t_x)
        for y in range(t_y):
            lo, hi = max(0, t_x + y - t_y), min(t_x, y + 1)
            if y == 0:
                v_prev = np.where(xs == 0, 0.0, max_neg)
                v_cur = np.full(t_x, max_neg)
            else:
                row = val[y - 1]
                v_cur = np.where(xs == y, max_neg, row)
                v_prev = np.empty(t_x)
                v_prev[0] = max_neg
                v_prev[1:] = row[:-1]
            upd = val[y] + np.maximum(v_prev, v_cur)
            band = (xs >= lo) & (xs < hi)
            val[y] = np.where(band, upd, val[y])
        index = t_x - 1
        path = np.zeros((t_y, t_x), dtype=np.float32)
        for y in range(t_y - 1, -1, -1):
            path[y, index] = 1.0
            if index != 0 and (index == y or
                               val[y - 1, index] < val[y - 1, index - 1]):
                index -= 1
        paths[b, :t_y, :t_x] = path
    return paths


# ----------------------------------------------------------------------------
# Parameters (deterministic synthetic init, kernel-ready layouts)
# ----------------------------------------------------------------------------
class ParamGen:
    def __init__(self, seed=0):
        self._key = jax.random.PRNGKey(seed)

    def take(self):
        self._key, sub = jax.random.split(self._key)
        return sub

    def normal(self, shape, std=1.0):
        return std * jax.random.normal(self.take(), shape, jnp.float32)

    def conv(self, cout, cin, k, bias=True, scale=0.1):
        w = self.normal((cout, cin, k), std=scale)
        wt = jnp.transpose(w, (2, 0, 1)).astype(jnp.bfloat16)   # (K, Cout, Cin)
        b = self.normal((cout,), std=scale).reshape(cout, 1) if bias else None
        return {'wt': wt, 'b': b, 'k': k}

    def convt(self, cin, cout, k, stride, padding, scale=0.01):
        wt_t = self.normal((cin, cout, k), std=scale)   # torch ConvT layout
        b = self.normal((cout,), std=scale).reshape(cout, 1)
        s = stride
        assert k % s == 0
        J = k // s
        phase_w, offs = [], []
        for r in range(s):
            base = (r + padding) % s
            D = (r + padding) // s
            taps = [jnp.transpose(wt_t[:, :, base + (J - 1 - j) * s])
                    for j in range(J)]                          # (cout, cin)
            phase_w.append(jnp.stack(taps, 0))                  # (J, cout, cin)
            offs.append(tuple(D + j - (J - 1) for j in range(J)))
        wt = jnp.stack(phase_w, 0).astype(jnp.bfloat16)         # (s,J,cout,cin)
        return {'wt': wt, 'b': b, 'k': k, 'stride': s, 'padding': padding,
                'J': J, 'offs': tuple(offs)}

    def wn(self, H, K, n_layers, scale=0.1):
        w_in = self.normal((n_layers, K, 2 * H, H), std=scale)
        w_in = w_in.reshape(n_layers * K, 2 * H, H).astype(jnp.bfloat16)
        b_in = self.normal((n_layers, 2 * H), std=scale).reshape(n_layers, 2 * H, 1)
        w_rs, b_rs = [], []
        for i in range(n_layers):
            if i < n_layers - 1:
                w = self.normal((2 * H, H), std=scale)
                b = self.normal((2 * H,), std=scale)
            else:  # last layer: skip-only (pad residual rows with zeros)
                w = jnp.concatenate([jnp.zeros((H, H), jnp.float32),
                                     self.normal((H, H), std=scale)], 0)
                b = jnp.concatenate([jnp.zeros((H,), jnp.float32),
                                     self.normal((H,), std=scale)], 0)
            w_rs.append(w)
            b_rs.append(b)
        return {'w_in': w_in, 'b_in': b_in,
                'w_rs': jnp.stack(w_rs, 0).astype(jnp.bfloat16),
                'b_rs': jnp.stack(b_rs, 0).reshape(n_layers, 2 * H, 1),
                'k': K, 'n_layers': n_layers}

    def tx_layer(self, H, F_, K, nh, scale=0.1):
        Dh = H // nh
        wo = self.normal((H, H), std=scale)
        wo_h = jnp.stack([wo[:, h * Dh:(h + 1) * Dh] for h in range(nh)],
                         0).astype(jnp.bfloat16)                 # (nh, H, Dh)
        return {
            'wqkv': self.normal((3 * H, H), std=scale).astype(jnp.bfloat16),
            'bqkv': self.normal((3 * H,), std=scale).reshape(3 * H, 1),
            'wo_h': wo_h,
            'bo': self.normal((H,), std=scale).reshape(H, 1),
            'ln1_g': jnp.ones((H, 1), jnp.float32),
            'ln1_b': jnp.zeros((H, 1), jnp.float32),
            'w1': jnp.transpose(self.normal((F_, H, K), std=scale),
                                (2, 0, 1)).astype(jnp.bfloat16),
            'b1': self.normal((F_,), std=scale).reshape(F_, 1),
            'w2': jnp.transpose(self.normal((H, F_, K), std=scale),
                                (2, 0, 1)).astype(jnp.bfloat16),
            'b2': self.normal((H,), std=scale).reshape(H, 1),
            'ln2_g': jnp.ones((H, 1), jnp.float32),
            'ln2_b': jnp.zeros((H, 1), jnp.float32),
        }


def build_params(hp):
    pg = ParamGen(0)
    H, I, F_ = hp['hidden_channels'], hp['inter_channels'], hp['filter_channels']
    ks, nh = hp['kernel_size'], hp['n_heads']
    P = {}
    P['prior'] = {
        'emb': pg.normal((hp['n_vocab'], H), std=H ** -0.5),
        'layers': [pg.tx_layer(H, F_, ks, nh) for _ in range(hp['n_layers'])],
        'proj': pg.conv(2 * I, H, 1),
    }
    P['posterior'] = {'pre': pg.conv(H, hp['spec_channels'], 1),
                      'wn': pg.wn(H, 5, 16),
                      'proj': pg.conv(2 * I, H, 1)}
    P['flow'] = [{'pre': pg.conv(H, I // 2, 1), 'wn': pg.wn(H, 5, 4),
                  'post': pg.conv(I // 2, H, 1)} for _ in range(4)]
    U = hp['upsample_initial_channel']
    dec = {'pre': pg.conv(U, I, 7), 'ups': [], 'res': []}
    for i, (u, k) in enumerate(zip(hp['upsample_rates'], hp['upsample_kernel_sizes'])):
        cin, cout = U // (2 ** i), U // (2 ** (i + 1))
        dec['ups'].append(pg.convt(cin, cout, k, u, (k - u) // 2))
    for i in range(len(hp['upsample_rates'])):
        ch = U // (2 ** (i + 1))
        for k, ds in zip(hp['resblock_kernel_sizes'], hp['resblock_dilation_sizes']):
            # TODO(synk): ResBlock1 (resblock='1') not implemented; hp uses '2'.
            dec['res'].append({'k': k, 'ds': tuple(ds),
                               'convs': [pg.conv(ch, ch, k) for _ in ds]})
    ch_last = U // (2 ** len(hp['upsample_rates']))
    dec['post'] = pg.conv(1, ch_last, 7, bias=False)
    P['decoder'] = dec
    return P


# ----------------------------------------------------------------------------
# Module forwards
# ----------------------------------------------------------------------------
def prior_encoder(tokens, x_len, pp, hp):
    H, I = hp['hidden_channels'], hp['inter_channels']
    B, Tx = tokens.shape
    TLx = _rup(Tx)
    e = jnp.take(pp['emb'], tokens, axis=0) * math.sqrt(H)      # (B, Tx, H)
    x = jnp.transpose(e, (0, 2, 1))
    x = jnp.pad(x, ((0, 0), (0, 0), (0, TLx - Tx)))
    x_mask = sequence_mask(x_len, TLx)[:, None, :]
    x = x * x_mask
    for lp in pp['layers']:
        x = attn_block(x, x_mask, lp, hp)
        x = ffn_block(x, x_mask, lp, hp)
    stats, _ = conv1d(x, Tx, pp['proj'], in_mask=x_mask, out_mask=x_mask)
    return stats[:, :I], stats[:, I:], x_mask


def posterior_encoder(y, y_len, pp, hp, key):
    I, H = hp['inter_channels'], hp['hidden_channels']
    B, _, Ty = y.shape
    TLy = _rup(Ty)
    yp = jnp.pad(y, ((0, 0), (0, 0), (0, TLy - Ty)))
    y_mask = sequence_mask(y_len, TLy)[:, None, :]
    x, _ = conv1d(yp, Ty, pp['pre'], out_mask=y_mask)
    x = wn_stack(x, y_mask, pp['wn'], H)
    stats, _ = conv1d(x, Ty, pp['proj'], out_mask=y_mask)
    mu, log_var = stats[:, :I], stats[:, I:]
    eps = jax.random.normal(key, mu.shape, jnp.float32)
    z = (mu + eps * jnp.exp(0.5 * log_var)) * y_mask             # re-parameterize
    return z, mu, log_var, y_mask


def flow_forward(x, t, x_mask, flow_p, hp):
    I, H = hp['inter_channels'], hp['hidden_channels']
    half = I // 2
    for fp in flow_p:          # forward: coupling (mean_only) + Flip
        x0, x1 = x[:, :half], x[:, half:]
        h, _ = conv1d(x0, t, fp['pre'], out_mask=x_mask)
        h = wn_stack(h, x_mask, fp['wn'], H)
        # x1_new = (post(h) + x1) * mask  (fused bias/res/mask epilogue)
        x1n, _ = conv1d(h, t, fp['post'], res=x1, out_mask=x_mask)
        x = jnp.flip(jnp.concatenate([x0, x1n], axis=1), axis=1)
    return x


def resblock2(x, t, rp):
    k = rp['k']
    for cp, d in zip(rp['convs'], rp['ds']):
        # fused: x = conv(leaky_relu(x)) + x   (residual passed 0-aligned)
        x, _ = conv1d(x, t, cp, padding=(k * d - d) // 2, dilation=d,
                      pre_slope=LRELU_SLOPE, res=x)
    return x


def decoder_forward(z, t, dec_p, hp):
    nk = len(hp['resblock_kernel_sizes'])
    x, t = conv1d(z, t, dec_p['pre'], padding=3)
    for i in range(len(hp['upsample_rates'])):
        scale = None if i == 0 else 1.0 / nk      # fold xs/nk into next stage
        x, t = conv_transpose1d(x, t, dec_p['ups'][i],
                                pre_slope=LRELU_SLOPE, in_scale=scale)
        xs = None
        for j in range(nk):
            r = resblock2(x, t, dec_p['res'][i * nk + j])
            xs = r if xs is None else xs + r
        x = xs
    # leaky_relu(x/nk, 0.01) -> conv_post -> tanh, fused in one kernel
    y, t = conv1d(x, t, dec_p['post'], padding=3,
                  pre_slope=0.01, act='tanh', in_scale=1.0 / nk)
    return y, t


def generator_forward(params, hp, x_tokens, x_len, y, y_len, speaker_id=None):
    B, Tx = x_tokens.shape
    Ty = y.shape[2]
    TLx, TLy = _rup(Tx), _rup(Ty)
    seg = hp['segment_size']

    def phase1(x_tokens, x_len, y, y_len):
        p_mu, p_log_var, x_mask = prior_encoder(x_tokens, x_len,
                                                params['prior'], hp)
        q_z, q_mu, q_log_var, y_mask = posterior_encoder(
            y, y_len, params['posterior'], hp, jax.random.PRNGKey(1))
        p_z = flow_forward(q_z, Ty, y_mask, params['flow'], hp)
        log_N = log_likelihood(p_mu, p_log_var, p_z)             # (B,TLy,TLx)
        z_slice, ids_slice = rand_slice_segments(
            q_z, y_len, seg, jax.random.PRNGKey(2))
        return (p_mu, p_log_var, x_mask, q_z, q_mu, q_log_var, y_mask, p_z,
                log_N, z_slice, ids_slice)

    def phase_dec(z_slice):
        zp = jnp.pad(z_slice, ((0, 0), (0, 0), (0, _rup(seg) - seg)))
        wav, _ = decoder_forward(zp, seg, params['decoder'], hp)
        return wav

    (p_mu, p_log_var, x_mask, q_z, q_mu, q_log_var, y_mask, p_z,
     log_N, z_slice, ids_slice) = jax.jit(phase1)(x_tokens, x_len, y, y_len)

    # Dispatch the decoder BEFORE the host-side MAS sync so it overlaps the DP.
    target_wav = jax.jit(phase_dec)(z_slice)
    t_wav = seg
    for u, k in zip(hp['upsample_rates'], hp['upsample_kernel_sizes']):
        t_wav = (t_wav - 1) * u - 2 * ((k - u) // 2) + k

    # --- monotonic alignment search (torch.no_grad block, host) ---
    attn_mask = y_mask[:, 0, :Ty, None] * x_mask[:, 0, None, :Tx]
    attn_np = maximum_path_np(np.asarray(log_N[:, :Ty, :Tx]),
                              np.asarray(attn_mask))
    attn = jnp.zeros((B, TLy, TLx), jnp.float32).at[:, :Ty, :Tx].set(
        jnp.asarray(attn_np))
    p_mu_al, p_log_var_al = jax.jit(align_stats)(attn, p_mu, p_log_var)

    return ((target_wav[:, :, :t_wav], ids_slice),
            (x_mask[:, :, :Tx], y_mask[:, :, :Ty]),
            (q_z[:, :, :Ty], p_z[:, :, :Ty],
             p_mu_al[:, :, :Ty], p_log_var_al[:, :, :Ty],
             q_mu[:, :, :Ty], q_log_var[:, :, :Ty]))


# ----------------------------------------------------------------------------
# main
# ----------------------------------------------------------------------------
if __name__ == "__main__":
    hp = dict(
        n_vocab=40, spec_channels=16, segment_size=8,
        inter_channels=8, hidden_channels=16, filter_channels=32,
        n_heads=2, n_layers=2, kernel_size=3, p_dropout=0.0,
        resblock='2', resblock_kernel_sizes=[3, 5],
        resblock_dilation_sizes=[[1, 3], [1, 3]],
        upsample_rates=[2, 2], upsample_initial_channel=16,
        upsample_kernel_sizes=[4, 4],
        n_speakers=0, gin_channels=0, use_sdp=True,
    )
    params = build_params(hp)

    key = jax.random.PRNGKey(0)
    k1, k2 = jax.random.split(key)
    B, T_x, T_y = 2, 12, 16
    x_tokens = jax.random.randint(k1, (B, T_x), 0, hp['n_vocab'], dtype=jnp.int32)
    x_len = jnp.array([12, 9], jnp.int32)
    y = jax.random.normal(k2, (B, hp['spec_channels'], T_y), jnp.float32)
    y_len = jnp.array([16, 12], jnp.int32)

    out = generator_forward(params, hp, x_tokens, x_len, y, y_len)
    jax.block_until_ready(out)
    print("KERNEL_OK")
</pallas_src>

<mosaic_0001>
module attributes {stable_mosaic.version = 11 : i64} {
  func.func @_attn_block_kernel(%arg0: i32, %arg1: memref<1x16x128xf32, #tpu.memory_space<vmem>>, %arg2: memref<1x1x128xf32, #tpu.memory_space<vmem>>, %arg3: memref<48x16xbf16, #tpu.memory_space<vmem>>, %arg4: memref<48x1xf32, #tpu.memory_space<vmem>>, %arg5: memref<2x16x8xbf16, #tpu.memory_space<vmem>>, %arg6: memref<16x1xf32, #tpu.memory_space<vmem>>, %arg7: memref<16x1xf32, #tpu.memory_space<vmem>>, %arg8: memref<16x1xf32, #tpu.memory_space<vmem>>, %arg9: memref<1x16x128xf32, #tpu.memory_space<vmem>>) attributes {dimension_semantics = [#tpu.dimension_semantics<parallel>], iteration_bounds = array<i64: 2>, scalar_prefetch = 0 : i64, scratch_operands = 0 : i64, tpu.core_type = #tpu.core_type<tc>, window_params = [{transform_indices = @transform_0, window_bounds = array<i64: 1, 16, 128>}, {transform_indices = @transform_1, window_bounds = array<i64: 1, 1, 128>}, {pipeline_mode = #tpu.pipeline_mode<synchronous>, transform_indices = @transform_2, window_bounds = array<i64: 48, 16>}, {pipeline_mode = #tpu.pipeline_mode<synchronous>, transform_indices = @transform_3, window_bounds = array<i64: 48, 1>}, {pipeline_mode = #tpu.pipeline_mode<synchronous>, transform_indices = @transform_4, window_bounds = array<i64: 2, 16, 8>}, {pipeline_mode = #tpu.pipeline_mode<synchronous>, transform_indices = @transform_5, window_bounds = array<i64: 16, 1>}, {pipeline_mode = #tpu.pipeline_mode<synchronous>, transform_indices = @transform_6, window_bounds = array<i64: 16, 1>}, {pipeline_mode = #tpu.pipeline_mode<synchronous>, transform_indices = @transform_7, window_bounds = array<i64: 16, 1>}, {transform_indices = @transform_8, window_bounds = array<i64: 1, 16, 128>}]} {
    %c0 = arith.constant 0 : index
    %c0_0 = arith.constant 0 : index
    %c0_1 = arith.constant 0 : index
    %0 = vector.load %arg1[%c0, %c0_0, %c0_1] : memref<1x16x128xf32, #tpu.memory_space<vmem>>, vector<1x16x128xf32>
    %1 = vector.shape_cast %0 : vector<1x16x128xf32> to vector<16x128xf32>
    %c0_2 = arith.constant 0 : index
    %c0_3 = arith.constant 0 : index
    %c0_4 = arith.constant 0 : index
    %2 = vector.load %arg2[%c0_2, %c0_3, %c0_4] : memref<1x1x128xf32, #tpu.memory_space<vmem>>, vector<1x1x128xf32>
    %3 = vector.shape_cast %2 : vector<1x1x128xf32> to vector<1x128xf32>
    %4 = arith.truncf %1 : vector<16x128xf32> to vector<16x128xbf16>
    %c0_5 = arith.constant 0 : index
    %c0_6 = arith.constant 0 : index
    %5 = vector.load %arg3[%c0_5, %c0_6] : memref<48x16xbf16, #tpu.memory_space<vmem>>, vector<48x16xbf16>
    %cst = arith.constant dense<0.000000e+00> : vector<48x128xf32>
    %6 = tpu.matmul %5, %4, %cst {dimension_numbers = #tpu.dot_dimension_numbers<[1], [0], [0], [1], [0, 0, 1, 1], [], []>} : vector<48x16xbf16>, vector<16x128xbf16>, vector<48x128xf32> -> vector<48x128xf32>
    %c0_7 = arith.constant 0 : index
    %c0_8 = arith.constant 0 : index
    %7 = vector.load %arg4[%c0_7, %c0_8] : memref<48x1xf32, #tpu.memory_space<vmem>>, vector<48x1xf32>
    %8 = vector.broadcast %7 : vector<48x1xf32> to vector<48x128xf32>
    %9 = arith.addf %6, %8 : vector<48x128xf32>
    %cst_9 = arith.constant 0.000000e+00 : f32
    %10 = vector.broadcast %cst_9 : f32 to vector<1x128xf32>
    %11 = arith.cmpf ogt, %3, %10 : vector<1x128xf32>
    %12 = vector.extract_strided_slice %9 {offsets = [0, 0], sizes = [8, 128], strides = [1, 1]} : vector<48x128xf32> to vector<8x128xf32>
    %13 = arith.truncf %12 : vector<8x128xf32> to vector<8x128xbf16>
    %14 = vector.extract_strided_slice %9 {offsets = [16, 0], sizes = [8, 128], strides = [1, 1]} : vector<48x128xf32> to vector<8x128xf32>
    %15 = arith.truncf %14 : vector<8x128xf32> to vector<8x128xbf16>
    %16 = vector.extract_strided_slice %9 {offsets = [32, 0], sizes = [8, 128], strides = [1, 1]} : vector<48x128xf32> to vector<8x128xf32>
    %17 = arith.truncf %16 : vector<8x128xf32> to vector<8x128xbf16>
    %cst_10 = arith.constant dense<0.000000e+00> : vector<128x128xf32>
    %18 = tpu.matmul %13, %15, %cst_10 {dimension_numbers = #tpu.dot_dimension_numbers<[0], [0], [1], [1], [0, 1, 1, 1], [], []>} : vector<8x128xbf16>, vector<8x128xbf16>, vector<128x128xf32> -> vector<128x128xf32>
    %cst_11 = arith.constant 0.353553385 : f32
    %19 = vector.broadcast %cst_11 : f32 to vector<128x128xf32>
    %20 = arith.mulf %18, %19 : vector<128x128xf32>
    %cst_12 = arith.constant -1.000000e+04 : f32
    %21 = vector.shape_cast %11 : vector<1x128xi1> to vector<1x128xi1>
    %22 = vector.broadcast %21 : vector<1x128xi1> to vector<128x128xi1>
    %23 = vector.broadcast %cst_12 : f32 to vector<128x128xf32>
    %24 = arith.select %22, %20, %23 : vector<128x128xi1>, vector<128x128xf32>
    %cst_13 = arith.constant dense<0xFF800000> : vector<128xf32>
    %25 = vector.multi_reduction <maximumf>, %24, %cst_13 [1] : vector<128x128xf32> to vector<128xf32>
    %26 = vector.shape_cast %25 : vector<128xf32> to vector<128x1xf32>
    %27 = vector.broadcast %26 : vector<128x1xf32> to vector<128x128xf32>
    %28 = arith.subf %24, %27 : vector<128x128xf32>
    %29 = math.exp %28 : vector<128x128xf32>
    %cst_14 = arith.constant dense<0.000000e+00> : vector<128xf32>
    %30 = vector.multi_reduction <add>, %29, %cst_14 [1] : vector<128x128xf32> to vector<128xf32>
    %31 = vector.shape_cast %30 : vector<128xf32> to vector<128x1xf32>
    %32 = tpu.reciprocal %31 {approx = true} : vector<128x1xf32> -> vector<128x1xf32>
    %33 = vector.broadcast %32 : vector<128x1xf32> to vector<128x128xf32>
    %34 = arith.mulf %29, %33 : vector<128x128xf32>
    %35 = arith.truncf %34 : vector<128x128xf32> to vector<128x128xbf16>
    %cst_15 = arith.constant dense<0.000000e+00> : vector<8x128xf32>
    %36 = tpu.matmul %17, %35, %cst_15 {dimension_numbers = #tpu.dot_dimension_numbers<[1], [1], [0], [0], [0, 0, 1, 0], [], []>} : vector<8x128xbf16>, vector<128x128xbf16>, vector<8x128xf32> -> vector<8x128xf32>
    %c0_16 = arith.constant 0 : index
    %c0_17 = arith.constant 0 : index
    %c0_18 = arith.constant 0 : index
    %37 = vector.load %arg5[%c0_16, %c0_17, %c0_18] : memref<2x16x8xbf16, #tpu.memory_space<vmem>>, vector<1x16x8xbf16>
    %38 = vector.shape_cast %37 : vector<1x16x8xbf16> to vector<16x8xbf16>
    %39 = arith.truncf %36 : vector<8x128xf32> to vector<8x128xbf16>
    %cst_19 = arith.constant dense<0.000000e+00> : vector<16x128xf32>
    %40 = tpu.matmul %38, %39, %cst_19 {dimension_numbers = #tpu.dot_dimension_numbers<[1], [0], [0], [1], [0, 0, 1, 1], [], []>} : vector<16x8xbf16>, vector<8x128xbf16>, vector<16x128xf32> -> vector<16x128xf32>
    %41 = vector.extract_strided_slice %9 {offsets = [8, 0], sizes = [8, 128], strides = [1, 1]} : vector<48x128xf32> to vector<8x128xf32>
    %42 = arith.truncf %41 : vector<8x128xf32> to vector<8x128xbf16>
    %43 = vector.extract_strided_slice %9 {offsets = [24, 0], sizes = [8, 128], strides = [1, 1]} : vector<48x128xf32> to vector<8x128xf32>
    %44 = arith.truncf %43 : vector<8x128xf32> to vector<8x128xbf16>
    %45 = vector.extract_strided_slice %9 {offsets = [40, 0], sizes = [8, 128], strides = [1, 1]} : vector<48x128xf32> to vector<8x128xf32>
    %46 = arith.truncf %45 : vector<8x128xf32> to vector<8x128xbf16>
    %cst_20 = arith.constant dense<0.000000e+00> : vector<128x128xf32>
    %47 = tpu.matmul %42, %44, %cst_20 {dimension_numbers = #tpu.dot_dimension_numbers<[0], [0], [1], [1], [0, 1, 1, 1], [], []>} : vector<8x128xbf16>, vector<8x128xbf16>, vector<128x128xf32> -> vector<128x128xf32>
    %cst_21 = arith.constant 0.353553385 : f32
    %48 = vector.broadcast %cst_21 : f32 to vector<128x128xf32>
    %49 = arith.mulf %47, %48 : vector<128x128xf32>
    %cst_22 = arith.constant -1.000000e+04 : f32
    %50 = vector.shape_cast %11 : vector<1x128xi1> to vector<1x128xi1>
    %51 = vector.broadcast %50 : vector<1x128xi1> to vector<128x128xi1>
    %52 = vector.broadcast %cst_22 : f32 to vector<128x128xf32>
    %53 = arith.select %51, %49, %52 : vector<128x128xi1>, vector<128x128xf32>
    %cst_23 = arith.constant dense<0xFF800000> : vector<128xf32>
    %54 = vector.multi_reduction <maximumf>, %53, %cst_23 [1] : vector<128x128xf32> to vector<128xf32>
    %55 = vector.shape_cast %54 : vector<128xf32> to vector<128x1xf32>
    %56 = vector.broadcast %55 : vector<128x1xf32> to vector<128x128xf32>
    %57 = arith.subf %53, %56 : vector<128x128xf32>
    %58 = math.exp %57 : vector<128x128xf32>
    %cst_24 = arith.constant dense<0.000000e+00> : vector<128xf32>
    %59 = vector.multi_reduction <add>, %58, %cst_24 [1] : vector<128x128xf32> to vector<128xf32>
    %60 = vector.shape_cast %59 : vector<128xf32> to vector<128x1xf32>
    %61 = tpu.reciprocal %60 {approx = true} : vector<128x1xf32> -> vector<128x1xf32>
    %62 = vector.broadcast %61 : vector<128x1xf32> to vector<128x128xf32>
    %63 = arith.mulf %58, %62 : vector<128x128xf32>
    %64 = arith.truncf %63 : vector<128x128xf32> to vector<128x128xbf16>
    %cst_25 = arith.constant dense<0.000000e+00> : vector<8x128xf32>
    %65 = tpu.matmul %46, %64, %cst_25 {dimension_numbers = #tpu.dot_dimension_numbers<[1], [1], [0], [0], [0, 0, 1, 0], [], []>} : vector<8x128xbf16>, vector<128x128xbf16>, vector<8x128xf32> -> vector<8x128xf32>
    %c1 = arith.constant 1 : index
    %c0_26 = arith.constant 0 : index
    %c0_27 = arith.constant 0 : index
    %66 = vector.load %arg5[%c1, %c0_26, %c0_27] : memref<2x16x8xbf16, #tpu.memory_space<vmem>>, vector<1x16x8xbf16>
    %67 = vector.shape_cast %66 : vector<1x16x8xbf16> to vector<16x8xbf16>
    %68 = arith.truncf %65 : vector<8x128xf32> to vector<8x128xbf16>
    %cst_28 = arith.constant dense<0.000000e+00> : vector<16x128xf32>
    %69 = tpu.matmul %67, %68, %cst_28 {dimension_numbers = #tpu.dot_dimension_numbers<[1], [0], [0], [1], [0, 0, 1, 1], [], []>} : vector<16x8xbf16>, vector<8x128xbf16>, vector<16x128xf32> -> vector<16x128xf32>
    %70 = arith.addf %40, %69 : vector<16x128xf32>
    %c0_29 = arith.constant 0 : index
    %c0_30 = arith.constant 0 : index
    %71 = vector.load %arg6[%c0_29, %c0_30] : memref<16x1xf32, #tpu.memory_space<vmem>>, vector<16x1xf32>
    %72 = vector.broadcast %71 : vector<16x1xf32> to vector<16x128xf32>
    %73 = arith.addf %70, %72 : vector<16x128xf32>
    %74 = arith.addf %1, %73 : vector<16x128xf32>
    %cst_31 = arith.constant dense<0.000000e+00> : vector<128xf32>
    %75 = vector.multi_reduction <add>, %74, %cst_31 [0] : vector<16x128xf32> to vector<128xf32>
    %76 = vector.shape_cast %75 : vector<128xf32> to vector<1x128xf32>
    %cst_32 = arith.constant 1.600000e+01 : f32
    %77 = vector.broadcast %cst_32 : f32 to vector<1x128xf32>
    %78 = arith.divf %76, %77 : vector<1x128xf32>
    %79 = vector.broadcast %78 : vector<1x128xf32> to vector<16x128xf32>
    %80 = arith.subf %74, %79 : vector<16x128xf32>
    %81 = arith.mulf %80, %80 : vector<16x128xf32>
    %cst_33 = arith.constant dense<0.000000e+00> : vector<128xf32>
    %82 = vector.multi_reduction <add>, %81, %cst_33 [0] : vector<16x128xf32> to vector<128xf32>
    %83 = vector.shape_cast %82 : vector<128xf32> to vector<1x128xf32>
    %cst_34 = arith.constant 1.600000e+01 : f32
    %84 = vector.broadcast %cst_34 : f32 to vector<1x128xf32>
    %85 = arith.divf %83, %84 : vector<1x128xf32>
    %cst_35 = arith.constant 9.99999974E-6 : f32
    %86 = vector.broadcast %cst_35 : f32 to vector<1x128xf32>
    %87 = arith.addf %85, %86 : vector<1x128xf32>
    %88 = math.rsqrt %87 : vector<1x128xf32>
    %89 = vector.broadcast %88 : vector<1x128xf32> to vector<16x128xf32>
    %90 = arith.mulf %80, %89 : vector<16x128xf32>
    %c0_36 = arith.constant 0 : index
    %c0_37 = arith.constant 0 : index
    %91 = vector.load %arg7[%c0_36, %c0_37] : memref<16x1xf32, #tpu.memory_space<vmem>>, vector<16x1xf32>
    %92 = vector.broadcast %91 : vector<16x1xf32> to vector<16x128xf32>
    %93 = arith.mulf %90, %92 : vector<16x128xf32>
    %c0_38 = arith.constant 0 : index
    %c0_39 = arith.constant 0 : index
    %94 = vector.load %arg8[%c0_38, %c0_39] : memref<16x1xf32, #tpu.memory_space<vmem>>, vector<16x1xf32>
    %95 = vector.broadcast %94 : vector<16x1xf32> to vector<16x128xf32>
    %96 = arith.addf %93, %95 : vector<16x128xf32>
    %c0_40 = arith.constant 0 : index
    %c0_41 = arith.constant 0 : index
    %c0_42 = arith.constant 0 : index
    %97 = vector.load %arg9[%c0_40, %c0_41, %c0_42] : memref<1x16x128xf32, #tpu.memory_space<vmem>>, vector<1x16x128xf32>
    %98 = vector.shape_cast %97 : vector<1x16x128xf32> to vector<16x128xf32>
    %99 = vector.shape_cast %96 : vector<16x128xf32> to vector<1x16x128xf32>
    tpu.vector_store %arg9[%c0_40, %c0_41, %c0_42], %99 {strides = array<i32>} : memref<1x16x128xf32, #tpu.memory_space<vmem>>, vector<1x16x128xf32>,
    return
  }
  func.func @transform_0(%arg0: i32) -> (i32, i32, i32) {
    %c0_i32 = arith.constant 0 : i32
    %c0_i32_0 = arith.constant 0 : i32
    %c0_i32_1 = arith.constant 0 : i32
    return %arg0, %c0_i32, %c0_i32_0 : i32, i32, i32
  }
  func.func @transform_1(%arg0: i32) -> (i32, i32, i32) {
    %c0_i32 = arith.constant 0 : i32
    %c0_i32_0 = arith.constant 0 : i32
    %c0_i32_1 = arith.constant 0 : i32
    return %arg0, %c0_i32, %c0_i32_0 : i32, i32, i32
  }
  func.func @transform_2(%arg0: i32) -> (i32, i32) {
    %c0_i32 = arith.constant 0 : i32
    %c0_i32_0 = arith.constant 0 : i32
    %c0_i32_1 = arith.constant 0 : i32
    return %c0_i32, %c0_i32_0 : i32, i32
  }
  func.func @transform_3(%arg0: i32) -> (i32, i32) {
    %c0_i32 = arith.constant 0 : i32
    %c0_i32_0 = arith.constant 0 : i32
    %c0_i32_1 = arith.constant 0 : i32
    return %c0_i32, %c0_i32_0 : i32, i32
  }
  func.func @transform_4(%arg0: i32) -> (i32, i32, i32) {
    %c0_i32 = arith.constant 0 : i32
    %c0_i32_0 = arith.constant 0 : i32
    %c0_i32_1 = arith.constant 0 : i32
    %c0_i32_2 = arith.constant 0 : i32
    return %c0_i32, %c0_i32_0, %c0_i32_1 : i32, i32, i32
  }
  func.func @transform_5(%arg0: i32) -> (i32, i32) {
    %c0_i32 = arith.constant 0 : i32
    %c0_i32_0 = arith.constant 0 : i32
    %c0_i32_1 = arith.constant 0 : i32
    return %c0_i32, %c0_i32_0 : i32, i32
  }
  func.func @transform_6(%arg0: i32) -> (i32, i32) {
    %c0_i32 = arith.constant 0 : i32
    %c0_i32_0 = arith.constant 0 : i32
    %c0_i32_1 = arith.constant 0 : i32
    return %c0_i32, %c0_i32_0 : i32, i32
  }
  func.func @transform_7(%arg0: i32) -> (i32, i32) {
    %c0_i32 = arith.constant 0 : i32
    %c0_i32_0 = arith.constant 0 : i32
    %c0_i32_1 = arith.constant 0 : i32
    return %c0_i32, %c0_i32_0 : i32, i32
  }
  func.func @transform_8(%arg0: i32) -> (i32, i32, i32) {
    %c0_i32 = arith.constant 0 : i32
    %c0_i32_0 = arith.constant 0 : i32
    %c0_i32_1 = arith.constant 0 : i32
    return %arg0, %c0_i32, %c0_i32_0 : i32, i32, i32
  }
}

module attributes {stable_mosaic.version = 11 : i64} {
  func.func @_conv_kernel(%arg0: i32, %arg1: memref<1x16x128xf32, #tpu.memory_space<vmem>>, %arg2: memref<1x16x16xbf16, #tpu.memory_space<vmem>>, %arg3: memref<16x1xf32, #tpu.memory_space<vmem>>, %arg4: memref<1x1x128xf32, #tpu.memory_space<vmem>>, %arg5: memref<1x1x128xf32, #tpu.memory_space<vmem>>, %arg6: memref<1x16x128xf32, #tpu.memory_space<vmem>>) attributes {dimension_semantics = [#tpu.dimension_semantics<parallel>], iteration_bounds = array<i64: 2>, scalar_prefetch = 0 : i64, scratch_operands = 0 : i64, tpu.core_type = #tpu.core_type<tc>, window_params = [{transform_indices = @transform_0, window_bounds = array<i64: 1, 16, 128>}, {pipeline_mode = #tpu.pipeline_mode<synchronous>, transform_indices = @transform_1, window_bounds = array<i64: 1, 16, 16>}, {pipeline_mode = #tpu.pipeline_mode<synchronous>, transform_indices = @transform_2, window_bounds = array<i64: 16, 1>}, {transform_indices = @transform_3, window_bounds = array<i64: 1, 1, 128>}, {transform_indices = @transform_4, window_bounds = array<i64: 1, 1, 128>}, {transform_indices = @transform_5, window_bounds = array<i64: 1, 16, 128>}]} {
    %c0 = arith.constant 0 : index
    %c0_0 = arith.constant 0 : index
    %c0_1 = arith.constant 0 : index
    %0 = vector.load %arg1[%c0, %c0_0, %c0_1] : memref<1x16x128xf32, #tpu.memory_space<vmem>>, vector<1x16x128xf32>
    %1 = vector.shape_cast %0 : vector<1x16x128xf32> to vector<16x128xf32>
    %2 = tpu.iota {dimensions = array<i32: 1>} : vector<16x128xi32>
    %c12_i32 = arith.constant 12 : i32
    %3 = vector.broadcast %c12_i32 : i32 to vector<16x128xi32>
    %4 = arith.cmpi slt, %2, %3 : vector<16x128xi32>
    %cst = arith.constant 0.000000e+00 : f32
    %5 = vector.broadcast %cst : f32 to vector<16x128xf32>
    %6 = arith.select %4, %1, %5 : vector<16x128xi1>, vector<16x128xf32>
    %c0_2 = arith.constant 0 : index
    %c0_3 = arith.constant 0 : index
    %c0_4 = arith.constant 0 : index
    %7 = vector.load %arg4[%c0_2, %c0_3, %c0_4] : memref<1x1x128xf32, #tpu.memory_space<vmem>>, vector<1x1x128xf32>
    %8 = vector.shape_cast %7 : vector<1x1x128xf32> to vector<1x128xf32>
    %9 = vector.broadcast %8 : vector<1x128xf32> to vector<16x128xf32>
    %10 = arith.mulf %6, %9 : vector<16x128xf32>
    %11 = arith.truncf %10 : vector<16x128xf32> to vector<16x128xbf16>
    %c0_5 = arith.constant 0 : index
    %c0_6 = arith.constant 0 : index
    %c0_7 = arith.constant 0 : index
    %12 = vector.load %arg2[%c0_5, %c0_6, %c0_7] : memref<1x16x16xbf16, #tpu.memory_space<vmem>>, vector<1x16x16xbf16>
    %13 = vector.shape_cast %12 : vector<1x16x16xbf16> to vector<16x16xbf16>
    %cst_8 = arith.constant dense<0.000000e+00> : vector<16x128xf32>
    %14 = tpu.matmul %13, %11, %cst_8 {dimension_numbers = #tpu.dot_dimension_numbers<[1], [0], [0], [1], [0, 0, 1, 1], [], []>} : vector<16x16xbf16>, vector<16x128xbf16>, vector<16x128xf32> -> vector<16x128xf32>
    %c0_9 = arith.constant 0 : index
    %c0_10 = arith.constant 0 : index
    %15 = vector.load %arg3[%c0_9, %c0_10] : memref<16x1xf32, #tpu.memory_space<vmem>>, vector<16x1xf32>
    %16 = vector.broadcast %15 : vector<16x1xf32> to vector<16x128xf32>
    %17 = arith.addf %14, %16 : vector<16x128xf32>
    %c0_11 = arith.constant 0 : index
    %c0_12 = arith.constant 0 : index
    %c0_13 = arith.constant 0 : index
    %18 = vector.load %arg5[%c0_11, %c0_12, %c0_13] : memref<1x1x128xf32, #tpu.memory_space<vmem>>, vector<1x1x128xf32>
    %19 = vector.shape_cast %18 : vector<1x1x128xf32> to vector<1x128xf32>
    %20 = vector.broadcast %19 : vector<1x128xf32> to vector<16x128xf32>
    %21 = arith.mulf %17, %20 : vector<16x128xf32>
    %c0_14 = arith.constant 0 : index
    %c0_15 = arith.constant 0 : index
    %c0_16 = arith.constant 0 : index
    %22 = vector.load %arg6[%c0_14, %c0_15, %c0_16] : memref<1x16x128xf32, #tpu.memory_space<vmem>>, vector<1x16x128xf32>
    %23 = vector.shape_cast %22 : vector<1x16x128xf32> to vector<16x128xf32>
    %24 = vector.shape_cast %21 : vector<16x128xf32> to vector<1x16x128xf32>
    tpu.vector_store %arg6[%c0_14, %c0_15, %c0_16], %24 {strides = array<i32>} : memref<1x16x128xf32, #tpu.memory_space<vmem>>, vector<1x16x128xf32>,
    return
  }
  func.func @transform_0(%arg0: i32) -> (i32, i32, i32) {
    %c0_i32 = arith.constant 0 : i32
    %c0_i32_0 = arith.constant 0 : i32
    %c0_i32_1 = arith.constant 0 : i32
    return %arg0, %c0_i32, %c0_i32_0 : i32, i32, i32
  }
  func.func @transform_1(%arg0: i32) -> (i32, i32, i32) {
    %c0_i32 = arith.constant 0 : i32
    %c0_i32_0 = arith.constant 0 : i32
    %c0_i32_1 = arith.constant 0 : i32
    %c0_i32_2 = arith.constant 0 : i32
    return %c0_i32, %c0_i32_0, %c0_i32_1 : i32, i32, i32
  }
  func.func @transform_2(%arg0: i32) -> (i32, i32) {
    %c0_i32 = arith.constant 0 : i32
    %c0_i32_0 = arith.constant 0 : i32
    %c0_i32_1 = arith.constant 0 : i32
    return %c0_i32, %c0_i32_0 : i32, i32
  }
  func.func @transform_3(%arg0: i32) -> (i32, i32, i32) {
    %c0_i32 = arith.constant 0 : i32
    %c0_i32_0 = arith.constant 0 : i32
    %c0_i32_1 = arith.constant 0 : i32
    return %arg0, %c0_i32, %c0_i32_0 : i32, i32, i32
  }
  func.func @transform_4(%arg0: i32) -> (i32, i32, i32) {
    %c0_i32 = arith.constant 0 : i32
    %c0_i32_0 = arith.constant 0 : i32
    %c0_i32_1 = arith.constant 0 : i32
    return %arg0, %c0_i32, %c0_i32_0 : i32, i32, i32
  }
  func.func @transform_5(%arg0: i32) -> (i32, i32, i32) {
    %c0_i32 = arith.constant 0 : i32
    %c0_i32_0 = arith.constant 0 : i32
    %c0_i32_1 = arith.constant 0 : i32
    return %arg0, %c0_i32, %c0_i32_0 : i32, i32, i32
  }
}

module attributes {stable_mosaic.version = 11 : i64} {
  func.func @_attn_block_kernel(%arg0: i32, %arg1: memref<1x16x128xf32, #tpu.memory_space<vmem>>, %arg2: memref<1x1x128xf32, #tpu.memory_space<vmem>>, %arg3: memref<48x16xbf16, #tpu.memory_space<vmem>>, %arg4: memref<48x1xf32, #tpu.memory_space<vmem>>, %arg5: memref<2x16x8xbf16, #tpu.memory_space<vmem>>, %arg6: memref<16x1xf32, #tpu.memory_space<vmem>>, %arg7: memref<16x1xf32, #tpu.memory_space<vmem>>, %arg8: memref<16x1xf32, #tpu.memory_space<vmem>>, %arg9: memref<1x16x128xf32, #tpu.memory_space<vmem>>) attributes {dimension_semantics = [#tpu.dimension_semantics<parallel>], iteration_bounds = array<i64: 2>, scalar_prefetch = 0 : i64, scratch_operands = 0 : i64, tpu.core_type = #tpu.core_type<tc>, window_params = [{transform_indices = @transform_0, window_bounds = array<i64: 1, 16, 128>}, {transform_indices = @transform_1, window_bounds = array<i64: 1, 1, 128>}, {pipeline_mode = #tpu.pipeline_mode<synchronous>, transform_indices = @transform_2, window_bounds = array<i64: 48, 16>}, {pipeline_mode = #tpu.pipeline_mode<synchronous>, transform_indices = @transform_3, window_bounds = array<i64: 48, 1>}, {pipeline_mode = #tpu.pipeline_mode<synchronous>, transform_indices = @transform_4, window_bounds = array<i64: 2, 16, 8>}, {pipeline_mode = #tpu.pipeline_mode<synchronous>, transform_indices = @transform_5, window_bounds = array<i64: 16, 1>}, {pipeline_mode = #tpu.pipeline_mode<synchronous>, transform_indices = @transform_6, window_bounds = array<i64: 16, 1>}, {pipeline_mode = #tpu.pipeline_mode<synchronous>, transform_indices = @transform_7, window_bounds = array<i64: 16, 1>}, {transform_indices = @transform_8, window_bounds = array<i64: 1, 16, 128>}]} {
    %c0 = arith.constant 0 : index
    %c0_0 = arith.constant 0 : index
    %c0_1 = arith.constant 0 : index
    %0 = vector.load %arg1[%c0, %c0_0, %c0_1] : memref<1x16x128xf32, #tpu.memory_space<vmem>>, vector<1x16x128xf32>
    %1 = vector.shape_cast %0 : vector<1x16x128xf32> to vector<16x128xf32>
    %c0_2 = arith.constant 0 : index
    %c0_3 = arith.constant 0 : index
    %c0_4 = arith.constant 0 : index
    %2 = vector.load %arg2[%c0_2, %c0_3, %c0_4] : memref<1x1x128xf32, #tpu.memory_space<vmem>>, vector<1x1x128xf32>
    %3 = vector.shape_cast %2 : vector<1x1x128xf32> to vector<1x128xf32>
    %4 = arith.truncf %1 : vector<16x128xf32> to vector<16x128xbf16>
    %c0_5 = arith.constant 0 : index
    %c0_6 = arith.constant 0 : index
    %5 = vector.load %arg3[%c0_5, %c0_6] : memref<48x16xbf16, #tpu.memory_space<vmem>>, vector<48x16xbf16>
    %cst = arith.constant dense<0.000000e+00> : vector<48x128xf32>
    %6 = tpu.matmul %5, %4, %cst {dimension_numbers = #tpu.dot_dimension_numbers<[1], [0], [0], [1], [0, 0, 1, 1], [], []>} : vector<48x16xbf16>, vector<16x128xbf16>, vector<48x128xf32> -> vector<48x128xf32>
    %c0_7 = arith.constant 0 : index
    %c0_8 = arith.constant 0 : index
    %7 = vector.load %arg4[%c0_7, %c0_8] : memref<48x1xf32, #tpu.memory_space<vmem>>, vector<48x1xf32>
    %8 = vector.broadcast %7 : vector<48x1xf32> to vector<48x128xf32>
    %9 = arith.addf %6, %8 : vector<48x128xf32>
    %cst_9 = arith.constant 0.000000e+00 : f32
    %10 = vector.broadcast %cst_9 : f32 to vector<1x128xf32>
    %11 = arith.cmpf ogt, %3, %10 : vector<1x128xf32>
    %12 = vector.extract_strided_slice %9 {offsets = [0, 0], sizes = [8, 128], strides = [1, 1]} : vector<48x128xf32> to vector<8x128xf32>
    %13 = arith.truncf %12 : vector<8x128xf32> to vector<8x128xbf16>
    %14 = vector.extract_strided_slice %9 {offsets = [16, 0], sizes = [8, 128], strides = [1, 1]} : vector<48x128xf32> to vector<8x128xf32>
    %15 = arith.truncf %14 : vector<8x128xf32> to vector<8x128xbf16>
    %16 = vector.extract_strided_slice %9 {offsets = [32, 0], sizes = [8, 128], strides = [1, 1]} : vector<48x128xf32> to vector<8x128xf32>
    %17 = arith.truncf %16 : vector<8x128xf32> to vector<8x128xbf16>
    %cst_10 = arith.constant dense<0.000000e+00> : vector<128x128xf32>
    %18 = tpu.matmul %13, %15, %cst_10 {dimension_numbers = #tpu.dot_dimension_numbers<[0], [0], [1], [1], [0, 1, 1, 1], [], []>} : vector<8x128xbf16>, vector<8x128xbf16>, vector<128x128xf32> -> vector<128x128xf32>
    %cst_11 = arith.constant 0.353553385 : f32
    %19 = vector.broadcast %cst_11 : f32 to vector<128x128xf32>
    %20 = arith.mulf %18, %19 : vector<128x128xf32>
    %cst_12 = arith.constant -1.000000e+04 : f32
    %21 = vector.shape_cast %11 : vector<1x128xi1> to vector<1x128xi1>
    %22 = vector.broadcast %21 : vector<1x128xi1> to vector<128x128xi1>
    %23 = vector.broadcast %cst_12 : f32 to vector<128x128xf32>
    %24 = arith.select %22, %20, %23 : vector<128x128xi1>, vector<128x128xf32>
    %cst_13 = arith.constant dense<0xFF800000> : vector<128xf32>
    %25 = vector.multi_reduction <maximumf>, %24, %cst_13 [1] : vector<128x128xf32> to vector<128xf32>
    %26 = vector.shape_cast %25 : vector<128xf32> to vector<128x1xf32>
    %27 = vector.broadcast %26 : vector<128x1xf32> to vector<128x128xf32>
    %28 = arith.subf %24, %27 : vector<128x128xf32>
    %29 = math.exp %28 : vector<128x128xf32>
    %cst_14 = arith.constant dense<0.000000e+00> : vector<128xf32>
    %30 = vector.multi_reduction <add>, %29, %cst_14 [1] : vector<128x128xf32> to vector<128xf32>
    %31 = vector.shape_cast %30 : vector<128xf32> to vector<128x1xf32>
    %32 = tpu.reciprocal %31 {approx = true} : vector<128x1xf32> -> vector<128x1xf32>
    %33 = vector.broadcast %32 : vector<128x1xf32> to vector<128x128xf32>
    %34 = arith.mulf %29, %33 : vector<128x128xf32>
    %35 = arith.truncf %34 : vector<128x128xf32> to vector<128x128xbf16>
    %cst_15 = arith.constant dense<0.000000e+00> : vector<8x128xf32>
    %36 = tpu.matmul %17, %35, %cst_15 {dimension_numbers = #tpu.dot_dimension_numbers<[1], [1], [0], [0], [0, 0, 1, 0], [], []>} : vector<8x128xbf16>, vector<128x128xbf16>, vector<8x128xf32> -> vector<8x128xf32>
    %c0_16 = arith.constant 0 : index
    %c0_17 = arith.constant 0 : index
    %c0_18 = arith.constant 0 : index
    %37 = vector.load %arg5[%c0_16, %c0_17, %c0_18] : memref<2x16x8xbf16, #tpu.memory_space<vmem>>, vector<1x16x8xbf16>
    %38 = vector.shape_cast %37 : vector<1x16x8xbf16> to vector<16x8xbf16>
    %39 = arith.truncf %36 : vector<8x128xf32> to vector<8x128xbf16>
    %cst_19 = arith.constant dense<0.000000e+00> : vector<16x128xf32>
    %40 = tpu.matmul %38, %39, %cst_19 {dimension_numbers = #tpu.dot_dimension_numbers<[1], [0], [0], [1], [0, 0, 1, 1], [], []>} : vector<16x8xbf16>, vector<8x128xbf16>, vector<16x128xf32> -> vector<16x128xf32>
    %41 = vector.extract_strided_slice %9 {offsets = [8, 0], sizes = [8, 128], strides = [1, 1]} : vector<48x128xf32> to vector<8x128xf32>
    %42 = arith.truncf %41 : vector<8x128xf32> to vector<8x128xbf16>
    %43 = vector.extract_strided_slice %9 {offsets = [24, 0], sizes = [8, 128], strides = [1, 1]} : vector<48x128xf32> to vector<8x128xf32>
    %44 = arith.truncf %43 : vector<8x128xf32> to vector<8x128xbf16>
    %45 = vector.extract_strided_slice %9 {offsets = [40, 0], sizes = [8, 128], strides = [1, 1]} : vector<48x128xf32> to vector<8x128xf32>
    %46 = arith.truncf %45 : vector<8x128xf32> to vector<8x128xbf16>
    %cst_20 = arith.constant dense<0.000000e+00> : vector<128x128xf32>
    %47 = tpu.matmul %42, %44, %cst_20 {dimension_numbers = #tpu.dot_dimension_numbers<[0], [0], [1], [1], [0, 1, 1, 1], [], []>} : vector<8x128xbf16>, vector<8x128xbf16>, vector<128x128xf32> -> vector<128x128xf32>
    %cst_21 = arith.constant 0.353553385 : f32
    %48 = vector.broadcast %cst_21 : f32 to vector<128x128xf32>
    %49 = arith.mulf %47, %48 : vector<128x128xf32>
    %cst_22 = arith.constant -1.000000e+04 : f32
    %50 = vector.shape_cast %11 : vector<1x128xi1> to vector<1x128xi1>
    %51 = vector.broadcast %50 : vector<1x128xi1> to vector<128x128xi1>
    %52 = vector.broadcast %cst_22 : f32 to vector<128x128xf32>
    %53 = arith.select %51, %49, %52 : vector<128x128xi1>, vector<128x128xf32>
    %cst_23 = arith.constant dense<0xFF800000> : vector<128xf32>
    %54 = vector.multi_reduction <maximumf>, %53, %cst_23 [1] : vector<128x128xf32> to vector<128xf32>
    %55 = vector.shape_cast %54 : vector<128xf32> to vector<128x1xf32>
    %56 = vector.broadcast %55 : vector<128x1xf32> to vector<128x128xf32>
    %57 = arith.subf %53, %56 : vector<128x128xf32>
    %58 = math.exp %57 : vector<128x128xf32>
    %cst_24 = arith.constant dense<0.000000e+00> : vector<128xf32>
    %59 = vector.multi_reduction <add>, %58, %cst_24 [1] : vector<128x128xf32> to vector<128xf32>
    %60 = vector.shape_cast %59 : vector<128xf32> to vector<128x1xf32>
    %61 = tpu.reciprocal %60 {approx = true} : vector<128x1xf32> -> vector<128x1xf32>
    %62 = vector.broadcast %61 : vector<128x1xf32> to vector<128x128xf32>
    %63 = arith.mulf %58, %62 : vector<128x128xf32>
    %64 = arith.truncf %63 : vector<128x128xf32> to vector<128x128xbf16>
    %cst_25 = arith.constant dense<0.000000e+00> : vector<8x128xf32>
    %65 = tpu.matmul %46, %64, %cst_25 {dimension_numbers = #tpu.dot_dimension_numbers<[1], [1], [0], [0], [0, 0, 1, 0], [], []>} : vector<8x128xbf16>, vector<128x128xbf16>, vector<8x128xf32> -> vector<8x128xf32>
    %c1 = arith.constant 1 : index
    %c0_26 = arith.constant 0 : index
    %c0_27 = arith.constant 0 : index
    %66 = vector.load %arg5[%c1, %c0_26, %c0_27] : memref<2x16x8xbf16, #tpu.memory_space<vmem>>, vector<1x16x8xbf16>
    %67 = vector.shape_cast %66 : vector<1x16x8xbf16> to vector<16x8xbf16>
    %68 = arith.truncf %65 : vector<8x128xf32> to vector<8x128xbf16>
    %cst_28 = arith.constant dense<0.000000e+00> : vector<16x128xf32>
    %69 = tpu.matmul %67, %68, %cst_28 {dimension_numbers = #tpu.dot_dimension_numbers<[1], [0], [0], [1], [0, 0, 1, 1], [], []>} : vector<16x8xbf16>, vector<8x128xbf16>, vector<16x128xf32> -> vector<16x128xf32>
    %70 = arith.addf %40, %69 : vector<16x128xf32>
    %c0_29 = arith.constant 0 : index
    %c0_30 = arith.constant 0 : index
    %71 = vector.load %arg6[%c0_29, %c0_30] : memref<16x1xf32, #tpu.memory_space<vmem>>, vector<16x1xf32>
    %72 = vector.broadcast %71 : vector<16x1xf32> to vector<16x128xf32>
    %73 = arith.addf %70, %72 : vector<16x128xf32>
    %74 = arith.addf %1, %73 : vector<16x128xf32>
    %cst_31 = arith.constant dense<0.000000e+00> : vector<128xf32>
    %75 = vector.multi_reduction <add>, %74, %cst_31 [0] : vector<16x128xf32> to vector<128xf32>
    %76 = vector.shape_cast %75 : vector<128xf32> to vector<1x128xf32>
    %cst_32 = arith.constant 1.600000e+01 : f32
    %77 = vector.broadcast %cst_32 : f32 to vector<1x128xf32>
    %78 = arith.divf %76, %77 : vector<1x128xf32>
    %79 = vector.broadcast %78 : vector<1x128xf32> to vector<16x128xf32>
    %80 = arith.subf %74, %79 : vector<16x128xf32>
    %81 = arith.mulf %80, %80 : vector<16x128xf32>
    %cst_33 = arith.constant dense<0.000000e+00> : vector<128xf32>
    %82 = vector.multi_reduction <add>, %81, %cst_33 [0] : vector<16x128xf32> to vector<128xf32>
    %83 = vector.shape_cast %82 : vector<128xf32> to vector<1x128xf32>
    %cst_34 = arith.constant 1.600000e+01 : f32
    %84 = vector.broadcast %cst_34 : f32 to vector<1x128xf32>
    %85 = arith.divf %83, %84 : vector<1x128xf32>
    %cst_35 = arith.constant 9.99999974E-6 : f32
    %86 = vector.broadcast %cst_35 : f32 to vector<1x128xf32>
    %87 = arith.addf %85, %86 : vector<1x128xf32>
    %88 = math.rsqrt %87 : vector<1x128xf32>
    %89 = vector.broadcast %88 : vector<1x128xf32> to vector<16x128xf32>
    %90 = arith.mulf %80, %89 : vector<16x128xf32>
    %c0_36 = arith.constant 0 : index
    %c0_37 = arith.constant 0 : index
    %91 = vector.load %arg7[%c0_36, %c0_37] : memref<16x1xf32, #tpu.memory_space<vmem>>, vector<16x1xf32>
    %92 = vector.broadcast %91 : vector<16x1xf32> to vector<16x128xf32>
    %93 = arith.mulf %90, %92 : vector<16x128xf32>
    %c0_38 = arith.constant 0 : index
    %c0_39 = arith.constant 0 : index
    %94 = vector.load %arg8[%c0_38, %c0_39] : memref<16x1xf32, #tpu.memory_space<vmem>>, vector<16x1xf32>
    %95 = vector.broadcast %94 : vector<16x1xf32> to vector<16x128xf32>
    %96 = arith.addf %93, %95 : vector<16x128xf32>
    %c0_40 = arith.constant 0 : index
    %c0_41 = arith.constant 0 : index
    %c0_42 = arith.constant 0 : index
    %97 = vector.load %arg9[%c0_40, %c0_41, %c0_42] : memref<1x16x128xf32, #tpu.memory_space<vmem>>, vector<1x16x128xf32>
    %98 = vector.shape_cast %97 : vector<1x16x128xf32> to vector<16x128xf32>
    %99 = vector.shape_cast %96 : vector<16x128xf32> to vector<1x16x128xf32>
    tpu.vector_store %arg9[%c0_40, %c0_41, %c0_42], %99 {strides = array<i32>} : memref<1x16x128xf32, #tpu.memory_space<vmem>>, vector<1x16x128xf32>,
    return
  }
  func.func @transform_0(%arg0: i32) -> (i32, i32, i32) {
    %c0_i32 = arith.constant 0 : i32
    %c0_i32_0 = arith.constant 0 : i32
    %c0_i32_1 = arith.constant 0 : i32
    return %arg0, %c0_i32, %c0_i32_0 : i32, i32, i32
  }
  func.func @transform_1(%arg0: i32) -> (i32, i32, i32) {
    %c0_i32 = arith.constant 0 : i32
    %c0_i32_0 = arith.constant 0 : i32
    %c0_i32_1 = arith.constant 0 : i32
    return %arg0, %c0_i32, %c0_i32_0 : i32, i32, i32
  }
  func.func @transform_2(%arg0: i32) -> (i32, i32) {
    %c0_i32 = arith.constant 0 : i32
    %c0_i32_0 = arith.constant 0 : i32
    %c0_i32_1 = arith.constant 0 : i32
    return %c0_i32, %c0_i32_0 : i32, i32
  }
  func.func @transform_3(%arg0: i32) -> (i32, i32) {
    %c0_i32 = arith.constant 0 : i32
    %c0_i32_0 = arith.constant 0 : i32
    %c0_i32_1 = arith.constant 0 : i32
    return %c0_i32, %c0_i32_0 : i32, i32
  }
  func.func @transform_4(%arg0: i32) -> (i32, i32, i32) {
    %c0_i32 = arith.constant 0 : i32
    %c0_i32_0 = arith.constant 0 : i32
    %c0_i32_1 = arith.constant 0 : i32
    %c0_i32_2 = arith.constant 0 : i32
    return %c0_i32, %c0_i32_0, %c0_i32_1 : i32, i32, i32
  }
  func.func @transform_5(%arg0: i32) -> (i32, i32) {
    %c0_i32 = arith.constant 0 : i32
    %c0_i32_0 = arith.constant 0 : i32
    %c0_i32_1 = arith.constant 0 : i32
    return %c0_i32, %c0_i32_0 : i32, i32
  }
  func.func @transform_6(%arg0: i32) -> (i32, i32) {
    %c0_i32 = arith.constant 0 : i32
    %c0_i32_0 = arith.constant 0 : i32
    %c0_i32_1 = arith.constant 0 : i32
    return %c0_i32, %c0_i32_0 : i32, i32
  }
  func.func @transform_7(%arg0: i32) -> (i32, i32) {
    %c0_i32 = arith.constant 0 : i32
    %c0_i32_0 = arith.constant 0 : i32
    %c0_i32_1 = arith.constant 0 : i32
    return %c0_i32, %c0_i32_0 : i32, i32
  }
  func.func @transform_8(%arg0: i32) -> (i32, i32, i32) {
    %c0_i32 = arith.constant 0 : i32
    %c0_i32_0 = arith.constant 0 : i32
    %c0_i32_1 = arith.constant 0 : i32
    return %arg0, %c0_i32, %c0_i32_0 : i32, i32, i32
  }
}

module attributes {stable_mosaic.version = 11 : i64} {
  func.func @_ffn_block_kernel(%arg0: i32, %arg1: memref<1x16x128xf32, #tpu.memory_space<vmem>>, %arg2: memref<1x1x128xf32, #tpu.memory_space<vmem>>, %arg3: memref<3x32x16xbf16, #tpu.memory_space<vmem>>, %arg4: memref<32x1xf32, #tpu.memory_space<vmem>>, %arg5: memref<3x16x32xbf16, #tpu.memory_space<vmem>>, %arg6: memref<16x1xf32, #tpu.memory_space<vmem>>, %arg7: memref<16x1xf32, #tpu.memory_space<vmem>>, %arg8: memref<16x1xf32, #tpu.memory_space<vmem>>, %arg9: memref<1x16x128xf32, #tpu.memory_space<vmem>>) attributes {dimension_semantics = [#tpu.dimension_semantics<parallel>], iteration_bounds = array<i64: 2>, scalar_prefetch = 0 : i64, scratch_operands = 0 : i64, tpu.core_type = #tpu.core_type<tc>, window_params = [{transform_indices = @transform_0, window_bounds = array<i64: 1, 16, 128>}, {transform_indices = @transform_1, window_bounds = array<i64: 1, 1, 128>}, {pipeline_mode = #tpu.pipeline_mode<synchronous>, transform_indices = @transform_2, window_bounds = array<i64: 3, 32, 16>}, {pipeline_mode = #tpu.pipeline_mode<synchronous>, transform_indices = @transform_3, window_bounds = array<i64: 32, 1>}, {pipeline_mode = #tpu.pipeline_mode<synchronous>, transform_indices = @transform_4, window_bounds = array<i64: 3, 16, 32>}, {pipeline_mode = #tpu.pipeline_mode<synchronous>, transform_indices = @transform_5, window_bounds = array<i64: 16, 1>}, {pipeline_mode = #tpu.pipeline_mode<synchronous>, transform_indices = @transform_6, window_bounds = array<i64: 16, 1>}, {pipeline_mode = #tpu.pipeline_mode<synchronous>, transform_indices = @transform_7, window_bounds = array<i64: 16, 1>}, {transform_indices = @transform_8, window_bounds = array<i64: 1, 16, 128>}]} {
    %c0 = arith.constant 0 : index
    %c0_0 = arith.constant 0 : index
    %c0_1 = arith.constant 0 : index
    %0 = vector.load %arg1[%c0, %c0_0, %c0_1] : memref<1x16x128xf32, #tpu.memory_space<vmem>>, vector<1x16x128xf32>
    %1 = vector.shape_cast %0 : vector<1x16x128xf32> to vector<16x128xf32>
    %c0_2 = arith.constant 0 : index
    %c0_3 = arith.constant 0 : index
    %c0_4 = arith.constant 0 : index
    %2 = vector.load %arg2[%c0_2, %c0_3, %c0_4] : memref<1x1x128xf32, #tpu.memory_space<vmem>>, vector<1x1x128xf32>
    %3 = vector.shape_cast %2 : vector<1x1x128xf32> to vector<1x128xf32>
    %4 = vector.broadcast %3 : vector<1x128xf32> to vector<16x128xf32>
    %5 = arith.mulf %1, %4 : vector<16x128xf32>
    %6 = arith.truncf %5 : vector<16x128xf32> to vector<16x128xbf16>
    %c0_i32 = arith.constant 0 : i32
    %7 = arith.sitofp %c0_i32 : i32 to bf16
    %8 = vector.broadcast %7 : bf16 to vector<16x1xbf16>
    %9 = tpu.concatenate %8, %6 in 1 : vector<16x1xbf16>, vector<16x128xbf16> -> vector<16x129xbf16>
    %10 = vector.broadcast %7 : bf16 to vector<16x1xbf16>
    %11 = tpu.concatenate %9, %10 in 1 : vector<16x129xbf16>, vector<16x1xbf16> -> vector<16x130xbf16>
    %c0_5 = arith.constant 0 : index
    %c0_6 = arith.constant 0 : index
    %c0_7 = arith.constant 0 : index
    %12 = vector.load %arg3[%c0_5, %c0_6, %c0_7] : memref<3x32x16xbf16, #tpu.memory_space<vmem>>, vector<1x32x16xbf16>
    %13 = vector.shape_cast %12 : vector<1x32x16xbf16> to vector<32x16xbf16>
    %14 = vector.extract_strided_slice %11 {offsets = [0, 0], sizes = [16, 128], strides = [1, 1]} : vector<16x130xbf16> to vector<16x128xbf16>
    %cst = arith.constant dense<0.000000e+00> : vector<32x128xf32>
    %15 = tpu.matmul %13, %14, %cst {dimension_numbers = #tpu.dot_dimension_numbers<[1], [0], [0], [1], [0, 0, 1, 1], [], []>} : vector<32x16xbf16>, vector<16x128xbf16>, vector<32x128xf32> -> vector<32x128xf32>
    %c1 = arith.constant 1 : index
    %c0_8 = arith.constant 0 : index
    %c0_9 = arith.constant 0 : index
    %16 = vector.load %arg3[%c1, %c0_8, %c0_9] : memref<3x32x16xbf16, #tpu.memory_space<vmem>>, vector<1x32x16xbf16>
    %17 = vector.shape_cast %16 : vector<1x32x16xbf16> to vector<32x16xbf16>
    %18 = vector.extract_strided_slice %11 {offsets = [0, 1], sizes = [16, 128], strides = [1, 1]} : vector<16x130xbf16> to vector<16x128xbf16>
    %cst_10 = arith.constant dense<0.000000e+00> : vector<32x128xf32>
    %19 = tpu.matmul %17, %18, %cst_10 {dimension_numbers = #tpu.dot_dimension_numbers<[1], [0], [0], [1], [0, 0, 1, 1], [], []>} : vector<32x16xbf16>, vector<16x128xbf16>, vector<32x128xf32> -> vector<32x128xf32>
    %20 = arith.addf %15, %19 : vector<32x128xf32>
    %c2 = arith.constant 2 : index
    %c0_11 = arith.constant 0 : index
    %c0_12 = arith.constant 0 : index
    %21 = vector.load %arg3[%c2, %c0_11, %c0_12] : memref<3x32x16xbf16, #tpu.memory_space<vmem>>, vector<1x32x16xbf16>
    %22 = vector.shape_cast %21 : vector<1x32x16xbf16> to vector<32x16xbf16>
    %23 = vector.extract_strided_slice %11 {offsets = [0, 2], sizes = [16, 128], strides = [1, 1]} : vector<16x130xbf16> to vector<16x128xbf16>
    %cst_13 = arith.constant dense<0.000000e+00> : vector<32x128xf32>
    %24 = tpu.matmul %22, %23, %cst_13 {dimension_numbers = #tpu.dot_dimension_numbers<[1], [0], [0], [1], [0, 0, 1, 1], [], []>} : vector<32x16xbf16>, vector<16x128xbf16>, vector<32x128xf32> -> vector<32x128xf32>
    %25 = arith.addf %20, %24 : vector<32x128xf32>
    %c0_14 = arith.constant 0 : index
    %c0_15 = arith.constant 0 : index
    %26 = vector.load %arg4[%c0_14, %c0_15] : memref<32x1xf32, #tpu.memory_space<vmem>>, vector<32x1xf32>
    %27 = vector.broadcast %26 : vector<32x1xf32> to vector<32x128xf32>
    %28 = arith.addf %25, %27 : vector<32x128xf32>
    %cst_16 = arith.constant 0.000000e+00 : f32
    %29 = vector.broadcast %cst_16 : f32 to vector<32x128xf32>
    %30 = arith.maximumf %28, %29 : vector<32x128xf32>
    %31 = vector.broadcast %3 : vector<1x128xf32> to vector<32x128xf32>
    %32 = arith.mulf %30, %31 : vector<32x128xf32>
    %33 = arith.truncf %32 : vector<32x128xf32> to vector<32x128xbf16>
    %c0_i32_17 = arith.constant 0 : i32
    %34 = arith.sitofp %c0_i32_17 : i32 to bf16
    %35 = vector.broadcast %34 : bf16 to vector<32x1xbf16>
    %36 = tpu.concatenate %35, %33 in 1 : vector<32x1xbf16>, vector<32x128xbf16> -> vector<32x129xbf16>
    %37 = vector.broadcast %34 : bf16 to vector<32x1xbf16>
    %38 = tpu.concatenate %36, %37 in 1 : vector<32x129xbf16>, vector<32x1xbf16> -> vector<32x130xbf16>
    %c0_18 = arith.constant 0 : index
    %c0_19 = arith.constant 0 : index
    %c0_20 = arith.constant 0 : index
    %39 = vector.load %arg5[%c0_18, %c0_19, %c0_20] : memref<3x16x32xbf16, #tpu.memory_space<vmem>>, vector<1x16x32xbf16>
    %40 = vector.shape_cast %39 : vector<1x16x32xbf16> to vector<16x32xbf16>
    %41 = vector.extract_strided_slice %38 {offsets = [0, 0], sizes = [32, 128], strides = [1, 1]} : vector<32x130xbf16> to vector<32x128xbf16>
    %cst_21 = arith.constant dense<0.000000e+00> : vector<16x128xf32>
    %42 = tpu.matmul %40, %41, %cst_21 {dimension_numbers = #tpu.dot_dimension_numbers<[1], [0], [0], [1], [0, 0, 1, 1], [], []>} : vector<16x32xbf16>, vector<32x128xbf16>, vector<16x128xf32> -> vector<16x128xf32>
    %c1_22 = arith.constant 1 : index
    %c0_23 = arith.constant 0 : index
    %c0_24 = arith.constant 0 : index
    %43 = vector.load %arg5[%c1_22, %c0_23, %c0_24] : memref<3x16x32xbf16, #tpu.memory_space<vmem>>, vector<1x16x32xbf16>
    %44 = vector.shape_cast %43 : vector<1x16x32xbf16> to vector<16x32xbf16>
    %45 = vector.extract_strided_slice %38 {offsets = [0, 1], sizes = [32, 128], strides = [1, 1]} : vector<32x130xbf16> to vector<32x128xbf16>
    %cst_25 = arith.constant dense<0.000000e+00> : vector<16x128xf32>
    %46 = tpu.matmul %44, %45, %cst_25 {dimension_numbers = #tpu.dot_dimension_numbers<[1], [0], [0], [1], [0, 0, 1, 1], [], []>} : vector<16x32xbf16>, vector<32x128xbf16>, vector<16x128xf32> -> vector<16x128xf32>
    %47 = arith.addf %42, %46 : vector<16x128xf32>
    %c2_26 = arith.constant 2 : index
    %c0_27 = arith.constant 0 : index
    %c0_28 = arith.constant 0 : index
    %48 = vector.load %arg5[%c2_26, %c0_27, %c0_28] : memref<3x16x32xbf16, #tpu.memory_space<vmem>>, vector<1x16x32xbf16>
    %49 = vector.shape_cast %48 : vector<1x16x32xbf16> to vector<16x32xbf16>
    %50 = vector.extract_strided_slice %38 {offsets = [0, 2], sizes = [32, 128], strides = [1, 1]} : vector<32x130xbf16> to vector<32x128xbf16>
    %cst_29 = arith.constant dense<0.000000e+00> : vector<16x128xf32>
    %51 = tpu.matmul %49, %50, %cst_29 {dimension_numbers = #tpu.dot_dimension_numbers<[1], [0], [0], [1], [0, 0, 1, 1], [], []>} : vector<16x32xbf16>, vector<32x128xbf16>, vector<16x128xf32> -> vector<16x128xf32>
    %52 = arith.addf %47, %51 : vector<16x128xf32>
    %c0_30 = arith.constant 0 : index
    %c0_31 = arith.constant 0 : index
    %53 = vector.load %arg6[%c0_30, %c0_31] : memref<16x1xf32, #tpu.memory_space<vmem>>, vector<16x1xf32>
    %54 = vector.broadcast %53 : vector<16x1xf32> to vector<16x128xf32>
    %55 = arith.addf %52, %54 : vector<16x128xf32>
    %56 = vector.broadcast %3 : vector<1x128xf32> to vector<16x128xf32>
    %57 = arith.mulf %55, %56 : vector<16x128xf32>
    %58 = arith.addf %1, %57 : vector<16x128xf32>
    %cst_32 = arith.constant dense<0.000000e+00> : vector<128xf32>
    %59 = vector.multi_reduction <add>, %58, %cst_32 [0] : vector<16x128xf32> to vector<128xf32>
    %60 = vector.shape_cast %59 : vector<128xf32> to vector<1x128xf32>
    %cst_33 = arith.constant 1.600000e+01 : f32
    %61 = vector.broadcast %cst_33 : f32 to vector<1x128xf32>
    %62 = arith.divf %60, %61 : vector<1x128xf32>
    %63 = vector.broadcast %62 : vector<1x128xf32> to vector<16x128xf32>
    %64 = arith.subf %58, %63 : vector<16x128xf32>
    %65 = arith.mulf %64, %64 : vector<16x128xf32>
    %cst_34 = arith.constant dense<0.000000e+00> : vector<128xf32>
    %66 = vector.multi_reduction <add>, %65, %cst_34 [0] : vector<16x128xf32> to vector<128xf32>
    %67 = vector.shape_cast %66 : vector<128xf32> to vector<1x128xf32>
    %cst_35 = arith.constant 1.600000e+01 : f32
    %68 = vector.broadcast %cst_35 : f32 to vector<1x128xf32>
    %69 = arith.divf %67, %68 : vector<1x128xf32>
    %cst_36 = arith.constant 9.99999974E-6 : f32
    %70 = vector.broadcast %cst_36 : f32 to vector<1x128xf32>
    %71 = arith.addf %69, %70 : vector<1x128xf32>
    %72 = math.rsqrt %71 : vector<1x128xf32>
    %73 = vector.broadcast %72 : vector<1x128xf32> to vector<16x128xf32>
    %74 = arith.mulf %64, %73 : vector<16x128xf32>
    %c0_37 = arith.constant 0 : index
    %c0_38 = arith.constant 0 : index
    %75 = vector.load %arg7[%c0_37, %c0_38] : memref<16x1xf32, #tpu.memory_space<vmem>>, vector<16x1xf32>
    %76 = vector.broadcast %75 : vector<16x1xf32> to vector<16x128xf32>
    %77 = arith.mulf %74, %76 : vector<16x128xf32>
    %c0_39 = arith.constant 0 : index
    %c0_40 = arith.constant 0 : index
    %78 = vector.load %arg8[%c0_39, %c0_40] : memref<16x1xf32, #tpu.memory_space<vmem>>, vector<16x1xf32>
    %79 = vector.broadcast %78 : vector<16x1xf32> to vector<16x128xf32>
    %80 = arith.addf %77, %79 : vector<16x128xf32>
    %c0_41 = arith.constant 0 : index
    %c0_42 = arith.constant 0 : index
    %c0_43 = arith.constant 0 : index
    %81 = vector.load %arg9[%c0_41, %c0_42, %c0_43] : memref<1x16x128xf32, #tpu.memory_space<vmem>>, vector<1x16x128xf32>
    %82 = vector.shape_cast %81 : vector<1x16x128xf32> to vector<16x128xf32>
    %83 = vector.shape_cast %80 : vector<16x128xf32> to vector<1x16x128xf32>
    tpu.vector_store %arg9[%c0_41, %c0_42, %c0_43], %83 {strides = array<i32>} : memref<1x16x128xf32, #tpu.memory_space<vmem>>, vector<1x16x128xf32>,
    return
  }
  func.func @transform_0(%arg0: i32) -> (i32, i32, i32) {
    %c0_i32 = arith.constant 0 : i32
    %c0_i32_0 = arith.constant 0 : i32
    %c0_i32_1 = arith.constant 0 : i32
    return %arg0, %c0_i32, %c0_i32_0 : i32, i32, i32
  }
  func.func @transform_1(%arg0: i32) -> (i32, i32, i32) {
    %c0_i32 = arith.constant 0 : i32
    %c0_i32_0 = arith.constant 0 : i32
    %c0_i32_1 = arith.constant 0 : i32
    return %arg0, %c0_i32, %c0_i32_0 : i32, i32, i32
  }
  func.func @transform_2(%arg0: i32) -> (i32, i32, i32) {
    %c0_i32 = arith.constant 0 : i32
    %c0_i32_0 = arith.constant 0 : i32
    %c0_i32_1 = arith.constant 0 : i32
    %c0_i32_2 = arith.constant 0 : i32
    return %c0_i32, %c0_i32_0, %c0_i32_1 : i32, i32, i32
  }
  func.func @transform_3(%arg0: i32) -> (i32, i32) {
    %c0_i32 = arith.constant 0 : i32
    %c0_i32_0 = arith.constant 0 : i32
    %c0_i32_1 = arith.constant 0 : i32
    return %c0_i32, %c0_i32_0 : i32, i32
  }
  func.func @transform_4(%arg0: i32) -> (i32, i32, i32) {
    %c0_i32 = arith.constant 0 : i32
    %c0_i32_0 = arith.constant 0 : i32
    %c0_i32_1 = arith.constant 0 : i32
    %c0_i32_2 = arith.constant 0 : i32
    return %c0_i32, %c0_i32_0, %c0_i32_1 : i32, i32, i32
  }
  func.func @transform_5(%arg0: i32) -> (i32, i32) {
    %c0_i32 = arith.constant 0 : i32
    %c0_i32_0 = arith.constant 0 : i32
    %c0_i32_1 = arith.constant 0 : i32
    return %c0_i32, %c0_i32_0 : i32, i32
  }
  func.func @transform_6(%arg0: i32) -> (i32, i32) {
    %c0_i32 = arith.constant 0 : i32
    %c0_i32_0 = arith.constant 0 : i32
    %c0_i32_1 = arith.constant 0 : i32
    return %c0_i32, %c0_i32_0 : i32, i32
  }
  func.func @transform_7(%arg0: i32) -> (i32, i32) {
    %c0_i32 = arith.constant 0 : i32
    %c0_i32_0 = arith.constant 0 : i32
    %c0_i32_1 = arith.constant 0 : i32
    return %c0_i32, %c0_i32_0 : i32, i32
  }
  func.func @transform_8(%arg0: i32) -> (i32, i32, i32) {
    %c0_i32 = arith.constant 0 : i32
    %c0_i32_0 = arith.constant 0 : i32
    %c0_i32_1 = arith.constant 0 : i32
    return %arg0, %c0_i32, %c0_i32_0 : i32, i32, i32
  }
}

module attributes {stable_mosaic.version = 11 : i64} {
  func.func @_wn_stack_kernel(%arg0: i32, %arg1: memref<1x16x128xf32, #tpu.memory_space<vmem>>, %arg2: memref<1x1x128xf32, #tpu.memory_space<vmem>>, %arg3: memref<80x32x16xbf16, #tpu.memory_space<vmem>>, %arg4: memref<16x32x1xf32, #tpu.memory_space<vmem>>, %arg5: memref<16x32x16xbf16, #tpu.memory_space<vmem>>, %arg6: memref<16x32x1xf32, #tpu.memory_space<vmem>>, %arg7: memref<1x16x128xf32, #tpu.memory_space<vmem>>) attributes {dimension_semantics = [#tpu.dimension_semantics<parallel>], iteration_bounds = array<i64: 2>, scalar_prefetch = 0 : i64, scratch_operands = 0 : i64, tpu.core_type = #tpu.core_type<tc>, window_params = [{transform_indices = @transform_0, window_bounds = array<i64: 1, 16, 128>}, {transform_indices = @transform_1, window_bounds = array<i64: 1, 1, 128>}, {pipeline_mode = #tpu.pipeline_mode<synchronous>, transform_indices = @transform_2, window_bounds = array<i64: 80, 32, 16>}, {pipeline_mode = #tpu.pipeline_mode<synchronous>, transform_indices = @transform_3, window_bounds = array<i64: 16, 32, 1>}, {pipeline_mode = #tpu.pipeline_mode<synchronous>, transform_indices = @transform_4, window_bounds = array<i64: 16, 32, 16>}, {pipeline_mode = #tpu.pipeline_mode<synchronous>, transform_indices = @transform_5, window_bounds = array<i64: 16, 32, 1>}, {transform_indices = @transform_6, window_bounds = array<i64: 1, 16, 128>}]} {
    %c0 = arith.constant 0 : index
    %c0_0 = arith.constant 0 : index
    %c0_1 = arith.constant 0 : index
    %0 = vector.load %arg2[%c0, %c0_0, %c0_1] : memref<1x1x128xf32, #tpu.memory_space<vmem>>, vector<1x1x128xf32>
    %1 = vector.shape_cast %0 : vector<1x1x128xf32> to vector<1x128xf32>
    %c0_2 = arith.constant 0 : index
    %c0_3 = arith.constant 0 : index
    %c0_4 = arith.constant 0 : index
    %2 = vector.load %arg1[%c0_2, %c0_3, %c0_4] : memref<1x16x128xf32, #tpu.memory_space<vmem>>, vector<1x16x128xf32>
    %3 = vector.shape_cast %2 : vector<1x16x128xf32> to vector<16x128xf32>
    %cst = arith.constant 0.000000e+00 : f32
    %4 = vector.broadcast %cst : f32 to vector<16x128xf32>
    %c0_i32 = arith.constant 0 : i32
    %c16_i32 = arith.constant 16 : i32
    %5 = arith.addi %c0_i32, %c16_i32 : i32
    %c1_i32 = arith.constant 1 : i32
    %6:2 = scf.for %arg8 = %c0_i32 to %5 step %c1_i32 iter_args(%arg9 = %3, %arg10 = %4) -> (vector<16x128xf32>, vector<16x128xf32>)  : i32 {
      %12 = arith.truncf %arg9 : vector<16x128xf32> to vector<16x128xbf16>
      %c0_i32_9 = arith.constant 0 : i32
      %13 = arith.sitofp %c0_i32_9 : i32 to bf16
      %14 = vector.broadcast %13 : bf16 to vector<16x2xbf16>
      %15 = tpu.concatenate %14, %12 in 1 : vector<16x2xbf16>, vector<16x128xbf16> -> vector<16x130xbf16>
      %16 = vector.broadcast %13 : bf16 to vector<16x2xbf16>
      %17 = tpu.concatenate %15, %16 in 1 : vector<16x130xbf16>, vector<16x2xbf16> -> vector<16x132xbf16>
      %c5_i32 = arith.constant 5 : i32
      %18 = arith.muli %arg8, %c5_i32 : i32
      %c0_i32_10 = arith.constant 0 : i32
      %19 = arith.addi %18, %c0_i32_10 : i32
      %20 = arith.index_cast %19 : i32 to index
      %c0_11 = arith.constant 0 : index
      %c0_12 = arith.constant 0 : index
      %21 = vector.load %arg3[%20, %c0_11, %c0_12] : memref<80x32x16xbf16, #tpu.memory_space<vmem>>, vector<1x32x16xbf16>
      %22 = vector.shape_cast %21 : vector<1x32x16xbf16> to vector<32x16xbf16>
      %23 = vector.extract_strided_slice %17 {offsets = [0, 0], sizes = [16, 128], strides = [1, 1]} : vector<16x132xbf16> to vector<16x128xbf16>
      %cst_13 = arith.constant dense<0.000000e+00> : vector<32x128xf32>
      %24 = tpu.matmul %22, %23, %cst_13 {dimension_numbers = #tpu.dot_dimension_numbers<[1], [0], [0], [1], [0, 0, 1, 1], [], []>} : vector<32x16xbf16>, vector<16x128xbf16>, vector<32x128xf32> -> vector<32x128xf32>
      %c5_i32_14 = arith.constant 5 : i32
      %25 = arith.muli %arg8, %c5_i32_14 : i32
      %c1_i32_15 = arith.constant 1 : i32
      %26 = arith.addi %25, %c1_i32_15 : i32
      %27 = arith.index_cast %26 : i32 to index
      %c0_16 = arith.constant 0 : index
      %c0_17 = arith.constant 0 : index
      %28 = vector.load %arg3[%27, %c0_16, %c0_17] : memref<80x32x16xbf16, #tpu.memory_space<vmem>>, vector<1x32x16xbf16>
      %29 = vector.shape_cast %28 : vector<1x32x16xbf16> to vector<32x16xbf16>
      %30 = vector.extract_strided_slice %17 {offsets = [0, 1], sizes = [16, 128], strides = [1, 1]} : vector<16x132xbf16> to vector<16x128xbf16>
      %cst_18 = arith.constant dense<0.000000e+00> : vector<32x128xf32>
      %31 = tpu.matmul %29, %30, %cst_18 {dimension_numbers = #tpu.dot_dimension_numbers<[1], [0], [0], [1], [0, 0, 1, 1], [], []>} : vector<32x16xbf16>, vector<16x128xbf16>, vector<32x128xf32> -> vector<32x128xf32>
      %32 = arith.addf %24, %31 : vector<32x128xf32>
      %c5_i32_19 = arith.constant 5 : i32
      %33 = arith.muli %arg8, %c5_i32_19 : i32
      %c2_i32 = arith.constant 2 : i32
      %34 = arith.addi %33, %c2_i32 : i32
      %35 = arith.index_cast %34 : i32 to index
      %c0_20 = arith.constant 0 : index
      %c0_21 = arith.constant 0 : index
      %36 = vector.load %arg3[%35, %c0_20, %c0_21] : memref<80x32x16xbf16, #tpu.memory_space<vmem>>, vector<1x32x16xbf16>
      %37 = vector.shape_cast %36 : vector<1x32x16xbf16> to vector<32x16xbf16>
      %38 = vector.extract_strided_slice %17 {offsets = [0, 2], sizes = [16, 128], strides = [1, 1]} : vector<16x132xbf16> to vector<16x128xbf16>
      %cst_22 = arith.constant dense<0.000000e+00> : vector<32x128xf32>
      %39 = tpu.matmul %37, %38, %cst_22 {dimension_numbers = #tpu.dot_dimension_numbers<[1], [0], [0], [1], [0, 0, 1, 1], [], []>} : vector<32x16xbf16>, vector<16x128xbf16>, vector<32x128xf32> -> vector<32x128xf32>
      %40 = arith.addf %32, %39 : vector<32x128xf32>
      %c5_i32_23 = arith.constant 5 : i32
      %41 = arith.muli %arg8, %c5_i32_23 : i32
      %c3_i32 = arith.constant 3 : i32
      %42 = arith.addi %41, %c3_i32 : i32
      %43 = arith.index_cast %42 : i32 to index
      %c0_24 = arith.constant 0 : index
      %c0_25 = arith.constant 0 : index
      %44 = vector.load %arg3[%43, %c0_24, %c0_25] : memref<80x32x16xbf16, #tpu.memory_space<vmem>>, vector<1x32x16xbf16>
      %45 = vector.shape_cast %44 : vector<1x32x16xbf16> to vector<32x16xbf16>
      %46 = vector.extract_strided_slice %17 {offsets = [0, 3], sizes = [16, 128], strides = [1, 1]} : vector<16x132xbf16> to vector<16x128xbf16>
      %cst_26 = arith.constant dense<0.000000e+00> : vector<32x128xf32>
      %47 = tpu.matmul %45, %46, %cst_26 {dimension_numbers = #tpu.dot_dimension_numbers<[1], [0], [0], [1], [0, 0, 1, 1], [], []>} : vector<32x16xbf16>, vector<16x128xbf16>, vector<32x128xf32> -> vector<32x128xf32>
      %48 = arith.addf %40, %47 : vector<32x128xf32>
      %c5_i32_27 = arith.constant 5 : i32
      %49 = arith.muli %arg8, %c5_i32_27 : i32
      %c4_i32 = arith.constant 4 : i32
      %50 = arith.addi %49, %c4_i32 : i32
      %51 = arith.index_cast %50 : i32 to index
      %c0_28 = arith.constant 0 : index
      %c0_29 = arith.constant 0 : index
      %52 = vector.load %arg3[%51, %c0_28, %c0_29] : memref<80x32x16xbf16, #tpu.memory_space<vmem>>, vector<1x32x16xbf16>
      %53 = vector.shape_cast %52 : vector<1x32x16xbf16> to vector<32x16xbf16>
      %54 = vector.extract_strided_slice %17 {offsets = [0, 4], sizes = [16, 128], strides = [1, 1]} : vector<16x132xbf16> to vector<16x128xbf16>
      %cst_30 = arith.constant dense<0.000000e+00> : vector<32x128xf32>
      %55 = tpu.matmul %53, %54, %cst_30 {dimension_numbers = #tpu.dot_dimension_numbers<[1], [0], [0], [1], [0, 0, 1, 1], [], []>} : vector<32x16xbf16>, vector<16x128xbf16>, vector<32x128xf32> -> vector<32x128xf32>
      %56 = arith.addf %48, %55 : vector<32x128xf32>
      %57 = arith.index_cast %arg8 : i32 to index
      %c0_31 = arith.constant 0 : index
      %c0_32 = arith.constant 0 : index
      %58 = vector.load %arg4[%57, %c0_31, %c0_32] : memref<16x32x1xf32, #tpu.memory_space<vmem>>, vector<1x32x1xf32>
      %59 = vector.shape_cast %58 : vector<1x32x1xf32> to vector<32x1xf32>
      %60 = vector.broadcast %59 : vector<32x1xf32> to vector<32x128xf32>
      %61 = arith.addf %56, %60 : vector<32x128xf32>
      %62 = vector.extract_strided_slice %61 {offsets = [0, 0], sizes = [16, 128], strides = [1, 1]} : vector<32x128xf32> to vector<16x128xf32>
      %63 = math.tanh %62 : vector<16x128xf32>
      %64 = vector.extract_strided_slice %61 {offsets = [16, 0], sizes = [16, 128], strides = [1, 1]} : vector<32x128xf32> to vector<16x128xf32>
      %65 = arith.negf %64 : vector<16x128xf32>
      %66 = math.exp %65 : vector<16x128xf32>
      %cst_33 = arith.constant 1.000000e+00 : f32
      %67 = vector.broadcast %cst_33 : f32 to vector<16x128xf32>
      %68 = arith.addf %67, %66 : vector<16x128xf32>
      %69 = arith.divf %67, %68 : vector<16x128xf32>
      %70 = arith.mulf %63, %69 : vector<16x128xf32>
      %71 = arith.index_cast %arg8 : i32 to index
      %c0_34 = arith.constant 0 : index
      %c0_35 = arith.constant 0 : index
      %72 = vector.load %arg5[%71, %c0_34, %c0_35] : memref<16x32x16xbf16, #tpu.memory_space<vmem>>, vector<1x32x16xbf16>
      %73 = vector.shape_cast %72 : vector<1x32x16xbf16> to vector<32x16xbf16>
      %74 = arith.truncf %70 : vector<16x128xf32> to vector<16x128xbf16>
      %cst_36 = arith.constant dense<0.000000e+00> : vector<32x128xf32>
      %75 = tpu.matmul %73, %74, %cst_36 {dimension_numbers = #tpu.dot_dimension_numbers<[1], [0], [0], [1], [0, 0, 1, 1], [], []>} : vector<32x16xbf16>, vector<16x128xbf16>, vector<32x128xf32> -> vector<32x128xf32>
      %76 = arith.index_cast %arg8 : i32 to index
      %c0_37 = arith.constant 0 : index
      %c0_38 = arith.constant 0 : index
      %77 = vector.load %arg6[%76, %c0_37, %c0_38] : memref<16x32x1xf32, #tpu.memory_space<vmem>>, vector<1x32x1xf32>
      %78 = vector.shape_cast %77 : vector<1x32x1xf32> to vector<32x1xf32>
      %79 = vector.broadcast %78 : vector<32x1xf32> to vector<32x128xf32>
      %80 = arith.addf %75, %79 : vector<32x128xf32>
      %81 = vector.extract_strided_slice %80 {offsets = [0, 0], sizes = [16, 128], strides = [1, 1]} : vector<32x128xf32> to vector<16x128xf32>
      %82 = arith.addf %arg9, %81 : vector<16x128xf32>
      %83 = vector.broadcast %1 : vector<1x128xf32> to vector<16x128xf32>
      %84 = arith.mulf %82, %83 : vector<16x128xf32>
      %85 = vector.extract_strided_slice %80 {offsets = [16, 0], sizes = [16, 128], strides = [1, 1]} : vector<32x128xf32> to vector<16x128xf32>
      %86 = arith.addf %arg10, %85 : vector<16x128xf32>
      scf.yield %84, %86 : vector<16x128xf32>, vector<16x128xf32>
    }
    %c16_i32_5 = arith.constant 16 : i32
    %7 = vector.broadcast %1 : vector<1x128xf32> to vector<16x128xf32>
    %8 = arith.mulf %6#1, %7 : vector<16x128xf32>
    %c0_6 = arith.constant 0 : index
    %c0_7 = arith.constant 0 : index
    %c0_8 = arith.constant 0 : index
    %9 = vector.load %arg7[%c0_6, %c0_7, %c0_8] : memref<1x16x128xf32, #tpu.memory_space<vmem>>, vector<1x16x128xf32>
    %10 = vector.shape_cast %9 : vector<1x16x128xf32> to vector<16x128xf32>
    %11 = vector.shape_cast %8 : vector<16x128xf32> to vector<1x16x128xf32>
    tpu.vector_store %arg7[%c0_6, %c0_7, %c0_8], %11 {strides = array<i32>} : memref<1x16x128xf32, #tpu.memory_space<vmem>>, vector<1x16x128xf32>,
    return
  }
  func.func @transform_0(%arg0: i32) -> (i32, i32, i32) {
    %c0_i32 = arith.constant 0 : i32
    %c0_i32_0 = arith.constant 0 : i32
    %c0_i32_1 = arith.constant 0 : i32
    return %arg0, %c0_i32, %c0_i32_0 : i32, i32, i32
  }
  func.func @transform_1(%arg0: i32) -> (i32, i32, i32) {
    %c0_i32 = arith.constant 0 : i32
    %c0_i32_0 = arith.constant 0 : i32
    %c0_i32_1 = arith.constant 0 : i32
    return %arg0, %c0_i32, %c0_i32_0 : i32, i32, i32
  }
  func.func @transform_2(%arg0: i32) -> (i32, i32, i32) {
    %c0_i32 = arith.constant 0 : i32
    %c0_i32_0 = arith.constant 0 : i32
    %c0_i32_1 = arith.constant 0 : i32
    %c0_i32_2 = arith.constant 0 : i32
    return %c0_i32, %c0_i32_0, %c0_i32_1 : i32, i32, i32
  }
  func.func @transform_3(%arg0: i32) -> (i32, i32, i32) {
    %c0_i32 = arith.constant 0 : i32
    %c0_i32_0 = arith.constant 0 : i32
    %c0_i32_1 = arith.constant 0 : i32
    %c0_i32_2 = arith.constant 0 : i32
    return %c0_i32, %c0_i32_0, %c0_i32_1 : i32, i32, i32
  }
  func.func @transform_4(%arg0: i32) -> (i32, i32, i32) {
    %c0_i32 = arith.constant 0 : i32
    %c0_i32_0 = arith.constant 0 : i32
    %c0_i32_1 = arith.constant 0 : i32
    %c0_i32_2 = arith.constant 0 : i32
    return %c0_i32, %c0_i32_0, %c0_i32_1 : i32, i32, i32
  }
  func.func @transform_5(%arg0: i32) -> (i32, i32, i32) {
    %c0_i32 = arith.constant 0 : i32
    %c0_i32_0 = arith.constant 0 : i32
    %c0_i32_1 = arith.constant 0 : i32
    %c0_i32_2 = arith.constant 0 : i32
    return %c0_i32, %c0_i32_0, %c0_i32_1 : i32, i32, i32
  }
  func.func @transform_6(%arg0: i32) -> (i32, i32, i32) {
    %c0_i32 = arith.constant 0 : i32
    %c0_i32_0 = arith.constant 0 : i32
    %c0_i32_1 = arith.constant 0 : i32
    return %arg0, %c0_i32, %c0_i32_0 : i32, i32, i32
  }
}

module attributes {stable_mosaic.version = 11 : i64} {
  func.func @_conv_kernel(%arg0: i32, %arg1: memref<1x4x128xf32, #tpu.memory_space<vmem>>, %arg2: memref<1x16x4xbf16, #tpu.memory_space<vmem>>, %arg3: memref<16x1xf32, #tpu.memory_space<vmem>>, %arg4: memref<1x1x128xf32, #tpu.memory_space<vmem>>, %arg5: memref<1x16x128xf32, #tpu.memory_space<vmem>>) attributes {dimension_semantics = [#tpu.dimension_semantics<parallel>], iteration_bounds = array<i64: 2>, scalar_prefetch = 0 : i64, scratch_operands = 0 : i64, tpu.core_type = #tpu.core_type<tc>, window_params = [{transform_indices = @transform_0, window_bounds = array<i64: 1, 4, 128>}, {pipeline_mode = #tpu.pipeline_mode<synchronous>, transform_indices = @transform_1, window_bounds = array<i64: 1, 16, 4>}, {pipeline_mode = #tpu.pipeline_mode<synchronous>, transform_indices = @transform_2, window_bounds = array<i64: 16, 1>}, {transform_indices = @transform_3, window_bounds = array<i64: 1, 1, 128>}, {transform_indices = @transform_4, window_bounds = array<i64: 1, 16, 128>}]} {
    %c0 = arith.constant 0 : index
    %c0_0 = arith.constant 0 : index
    %c0_1 = arith.constant 0 : index
    %0 = vector.load %arg1[%c0, %c0_0, %c0_1] : memref<1x4x128xf32, #tpu.memory_space<vmem>>, vector<1x4x128xf32>
    %1 = vector.shape_cast %0 : vector<1x4x128xf32> to vector<4x128xf32>
    %2 = tpu.iota {dimensions = array<i32: 1>} : vector<4x128xi32>
    %c16_i32 = arith.constant 16 : i32
    %3 = vector.broadcast %c16_i32 : i32 to vector<4x128xi32>
    %4 = arith.cmpi slt, %2, %3 : vector<4x128xi32>
    %cst = arith.constant 0.000000e+00 : f32
    %5 = vector.broadcast %cst : f32 to vector<4x128xf32>
    %6 = arith.select %4, %1, %5 : vector<4x128xi1>, vector<4x128xf32>
    %7 = arith.truncf %6 : vector<4x128xf32> to vector<4x128xbf16>
    %c0_2 = arith.constant 0 : index
    %c0_3 = arith.constant 0 : index
    %c0_4 = arith.constant 0 : index
    %8 = vector.load %arg2[%c0_2, %c0_3, %c0_4] : memref<1x16x4xbf16, #tpu.memory_space<vmem>>, vector<1x16x4xbf16>
    %9 = vector.shape_cast %8 : vector<1x16x4xbf16> to vector<16x4xbf16>
    %cst_5 = arith.constant dense<0.000000e+00> : vector<16x128xf32>
    %10 = tpu.matmul %9, %7, %cst_5 {dimension_numbers = #tpu.dot_dimension_numbers<[1], [0], [0], [1], [0, 0, 1, 1], [], []>} : vector<16x4xbf16>, vector<4x128xbf16>, vector<16x128xf32> -> vector<16x128xf32>
    %c0_6 = arith.constant 0 : index
    %c0_7 = arith.constant 0 : index
    %11 = vector.load %arg3[%c0_6, %c0_7] : memref<16x1xf32, #tpu.memory_space<vmem>>, vector<16x1xf32>
    %12 = vector.broadcast %11 : vector<16x1xf32> to vector<16x128xf32>
    %13 = arith.addf %10, %12 : vector<16x128xf32>
    %c0_8 = arith.constant 0 : index
    %c0_9 = arith.constant 0 : index
    %c0_10 = arith.constant 0 : index
    %14 = vector.load %arg4[%c0_8, %c0_9, %c0_10] : memref<1x1x128xf32, #tpu.memory_space<vmem>>, vector<1x1x128xf32>
    %15 = vector.shape_cast %14 : vector<1x1x128xf32> to vector<1x128xf32>
    %16 = vector.broadcast %15 : vector<1x128xf32> to vector<16x128xf32>
    %17 = arith.mulf %13, %16 : vector<16x128xf32>
    %c0_11 = arith.constant 0 : index
    %c0_12 = arith.constant 0 : index
    %c0_13 = arith.constant 0 : index
    %18 = vector.load %arg5[%c0_11, %c0_12, %c0_13] : memref<1x16x128xf32, #tpu.memory_space<vmem>>, vector<1x16x128xf32>
    %19 = vector.shape_cast %18 : vector<1x16x128xf32> to vector<16x128xf32>
    %20 = vector.shape_cast %17 : vector<16x128xf32> to vector<1x16x128xf32>
    tpu.vector_store %arg5[%c0_11, %c0_12, %c0_13], %20 {strides = array<i32>} : memref<1x16x128xf32, #tpu.memory_space<vmem>>, vector<1x16x128xf32>,
    return
  }
  func.func @transform_0(%arg0: i32) -> (i32, i32, i32) {
    %c0_i32 = arith.constant 0 : i32
    %c0_i32_0 = arith.constant 0 : i32
    %c0_i32_1 = arith.constant 0 : i32
    return %arg0, %c0_i32, %c0_i32_0 : i32, i32, i32
  }
  func.func @transform_1(%arg0: i32) -> (i32, i32, i32) {
    %c0_i32 = arith.constant 0 : i32
    %c0_i32_0 = arith.constant 0 : i32
    %c0_i32_1 = arith.constant 0 : i32
    %c0_i32_2 = arith.constant 0 : i32
    return %c0_i32, %c0_i32_0, %c0_i32_1 : i32, i32, i32
  }
  func.func @transform_2(%arg0: i32) -> (i32, i32) {
    %c0_i32 = arith.constant 0 : i32
    %c0_i32_0 = arith.constant 0 : i32
    %c0_i32_1 = arith.constant 0 : i32
    return %c0_i32, %c0_i32_0 : i32, i32
  }
  func.func @transform_3(%arg0: i32) -> (i32, i32, i32) {
    %c0_i32 = arith.constant 0 : i32
    %c0_i32_0 = arith.constant 0 : i32
    %c0_i32_1 = arith.constant 0 : i32
    return %arg0, %c0_i32, %c0_i32_0 : i32, i32, i32
  }
  func.func @transform_4(%arg0: i32) -> (i32, i32, i32) {
    %c0_i32 = arith.constant 0 : i32
    %c0_i32_0 = arith.constant 0 : i32
    %c0_i32_1 = arith.constant 0 : i32
    return %arg0, %c0_i32, %c0_i32_0 : i32, i32, i32
  }
}

module attributes {stable_mosaic.version = 11 : i64} {
  func.func @_wn_stack_kernel(%arg0: i32, %arg1: memref<1x16x128xf32, #tpu.memory_space<vmem>>, %arg2: memref<1x1x128xf32, #tpu.memory_space<vmem>>, %arg3: memref<20x32x16xbf16, #tpu.memory_space<vmem>>, %arg4: memref<4x32x1xf32, #tpu.memory_space<vmem>>, %arg5: memref<4x32x16xbf16, #tpu.memory_space<vmem>>, %arg6: memref<4x32x1xf32, #tpu.memory_space<vmem>>, %arg7: memref<1x16x128xf32, #tpu.memory_space<vmem>>) attributes {dimension_semantics = [#tpu.dimension_semantics<parallel>], iteration_bounds = array<i64: 2>, scalar_prefetch = 0 : i64, scratch_operands = 0 : i64, tpu.core_type = #tpu.core_type<tc>, window_params = [{transform_indices = @transform_0, window_bounds = array<i64: 1, 16, 128>}, {transform_indices = @transform_1, window_bounds = array<i64: 1, 1, 128>}, {pipeline_mode = #tpu.pipeline_mode<synchronous>, transform_indices = @transform_2, window_bounds = array<i64: 20, 32, 16>}, {pipeline_mode = #tpu.pipeline_mode<synchronous>, transform_indices = @transform_3, window_bounds = array<i64: 4, 32, 1>}, {pipeline_mode = #tpu.pipeline_mode<synchronous>, transform_indices = @transform_4, window_bounds = array<i64: 4, 32, 16>}, {pipeline_mode = #tpu.pipeline_mode<synchronous>, transform_indices = @transform_5, window_bounds = array<i64: 4, 32, 1>}, {transform_indices = @transform_6, window_bounds = array<i64: 1, 16, 128>}]} {
    %c0 = arith.constant 0 : index
    %c0_0 = arith.constant 0 : index
    %c0_1 = arith.constant 0 : index
    %0 = vector.load %arg2[%c0, %c0_0, %c0_1] : memref<1x1x128xf32, #tpu.memory_space<vmem>>, vector<1x1x128xf32>
    %1 = vector.shape_cast %0 : vector<1x1x128xf32> to vector<1x128xf32>
    %c0_2 = arith.constant 0 : index
    %c0_3 = arith.constant 0 : index
    %c0_4 = arith.constant 0 : index
    %2 = vector.load %arg1[%c0_2, %c0_3, %c0_4] : memref<1x16x128xf32, #tpu.memory_space<vmem>>, vector<1x16x128xf32>
    %3 = vector.shape_cast %2 : vector<1x16x128xf32> to vector<16x128xf32>
    %cst = arith.constant 0.000000e+00 : f32
    %4 = vector.broadcast %cst : f32 to vector<16x128xf32>
    %c0_i32 = arith.constant 0 : i32
    %c4_i32 = arith.constant 4 : i32
    %5 = arith.addi %c0_i32, %c4_i32 : i32
    %c1_i32 = arith.constant 1 : i32
    %6:2 = scf.for %arg8 = %c0_i32 to %5 step %c1_i32 iter_args(%arg9 = %3, %arg10 = %4) -> (vector<16x128xf32>, vector<16x128xf32>)  : i32 {
      %12 = arith.truncf %arg9 : vector<16x128xf32> to vector<16x128xbf16>
      %c0_i32_9 = arith.constant 0 : i32
      %13 = arith.sitofp %c0_i32_9 : i32 to bf16
      %14 = vector.broadcast %13 : bf16 to vector<16x2xbf16>
      %15 = tpu.concatenate %14, %12 in 1 : vector<16x2xbf16>, vector<16x128xbf16> -> vector<16x130xbf16>
      %16 = vector.broadcast %13 : bf16 to vector<16x2xbf16>
      %17 = tpu.concatenate %15, %16 in 1 : vector<16x130xbf16>, vector<16x2xbf16> -> vector<16x132xbf16>
      %c5_i32 = arith.constant 5 : i32
      %18 = arith.muli %arg8, %c5_i32 : i32
      %c0_i32_10 = arith.constant 0 : i32
      %19 = arith.addi %18, %c0_i32_10 : i32
      %20 = arith.index_cast %19 : i32 to index
      %c0_11 = arith.constant 0 : index
      %c0_12 = arith.constant 0 : index
      %21 = vector.load %arg3[%20, %c0_11, %c0_12] : memref<20x32x16xbf16, #tpu.memory_space<vmem>>, vector<1x32x16xbf16>
      %22 = vector.shape_cast %21 : vector<1x32x16xbf16> to vector<32x16xbf16>
      %23 = vector.extract_strided_slice %17 {offsets = [0, 0], sizes = [16, 128], strides = [1, 1]} : vector<16x132xbf16> to vector<16x128xbf16>
      %cst_13 = arith.constant dense<0.000000e+00> : vector<32x128xf32>
      %24 = tpu.matmul %22, %23, %cst_13 {dimension_numbers = #tpu.dot_dimension_numbers<[1], [0], [0], [1], [0, 0, 1, 1], [], []>} : vector<32x16xbf16>, vector<16x128xbf16>, vector<32x128xf32> -> vector<32x128xf32>
      %c5_i32_14 = arith.constant 5 : i32
      %25 = arith.muli %arg8, %c5_i32_14 : i32
      %c1_i32_15 = arith.constant 1 : i32
      %26 = arith.addi %25, %c1_i32_15 : i32
      %27 = arith.index_cast %26 : i32 to index
      %c0_16 = arith.constant 0 : index
      %c0_17 = arith.constant 0 : index
      %28 = vector.load %arg3[%27, %c0_16, %c0_17] : memref<20x32x16xbf16, #tpu.memory_space<vmem>>, vector<1x32x16xbf16>
      %29 = vector.shape_cast %28 : vector<1x32x16xbf16> to vector<32x16xbf16>
      %30 = vector.extract_strided_slice %17 {offsets = [0, 1], sizes = [16, 128], strides = [1, 1]} : vector<16x132xbf16> to vector<16x128xbf16>
      %cst_18 = arith.constant dense<0.000000e+00> : vector<32x128xf32>
      %31 = tpu.matmul %29, %30, %cst_18 {dimension_numbers = #tpu.dot_dimension_numbers<[1], [0], [0], [1], [0, 0, 1, 1], [], []>} : vector<32x16xbf16>, vector<16x128xbf16>, vector<32x128xf32> -> vector<32x128xf32>
      %32 = arith.addf %24, %31 : vector<32x128xf32>
      %c5_i32_19 = arith.constant 5 : i32
      %33 = arith.muli %arg8, %c5_i32_19 : i32
      %c2_i32 = arith.constant 2 : i32
      %34 = arith.addi %33, %c2_i32 : i32
      %35 = arith.index_cast %34 : i32 to index
      %c0_20 = arith.constant 0 : index
      %c0_21 = arith.constant 0 : index
      %36 = vector.load %arg3[%35, %c0_20, %c0_21] : memref<20x32x16xbf16, #tpu.memory_space<vmem>>, vector<1x32x16xbf16>
      %37 = vector.shape_cast %36 : vector<1x32x16xbf16> to vector<32x16xbf16>
      %38 = vector.extract_strided_slice %17 {offsets = [0, 2], sizes = [16, 128], strides = [1, 1]} : vector<16x132xbf16> to vector<16x128xbf16>
      %cst_22 = arith.constant dense<0.000000e+00> : vector<32x128xf32>
      %39 = tpu.matmul %37, %38, %cst_22 {dimension_numbers = #tpu.dot_dimension_numbers<[1], [0], [0], [1], [0, 0, 1, 1], [], []>} : vector<32x16xbf16>, vector<16x128xbf16>, vector<32x128xf32> -> vector<32x128xf32>
      %40 = arith.addf %32, %39 : vector<32x128xf32>
      %c5_i32_23 = arith.constant 5 : i32
      %41 = arith.muli %arg8, %c5_i32_23 : i32
      %c3_i32 = arith.constant 3 : i32
      %42 = arith.addi %41, %c3_i32 : i32
      %43 = arith.index_cast %42 : i32 to index
      %c0_24 = arith.constant 0 : index
      %c0_25 = arith.constant 0 : index
      %44 = vector.load %arg3[%43, %c0_24, %c0_25] : memref<20x32x16xbf16, #tpu.memory_space<vmem>>, vector<1x32x16xbf16>
      %45 = vector.shape_cast %44 : vector<1x32x16xbf16> to vector<32x16xbf16>
      %46 = vector.extract_strided_slice %17 {offsets = [0, 3], sizes = [16, 128], strides = [1, 1]} : vector<16x132xbf16> to vector<16x128xbf16>
      %cst_26 = arith.constant dense<0.000000e+00> : vector<32x128xf32>
      %47 = tpu.matmul %45, %46, %cst_26 {dimension_numbers = #tpu.dot_dimension_numbers<[1], [0], [0], [1], [0, 0, 1, 1], [], []>} : vector<32x16xbf16>, vector<16x128xbf16>, vector<32x128xf32> -> vector<32x128xf32>
      %48 = arith.addf %40, %47 : vector<32x128xf32>
      %c5_i32_27 = arith.constant 5 : i32
      %49 = arith.muli %arg8, %c5_i32_27 : i32
      %c4_i32_28 = arith.constant 4 : i32
      %50 = arith.addi %49, %c4_i32_28 : i32
      %51 = arith.index_cast %50 : i32 to index
      %c0_29 = arith.constant 0 : index
      %c0_30 = arith.constant 0 : index
      %52 = vector.load %arg3[%51, %c0_29, %c0_30] : memref<20x32x16xbf16, #tpu.memory_space<vmem>>, vector<1x32x16xbf16>
      %53 = vector.shape_cast %52 : vector<1x32x16xbf16> to vector<32x16xbf16>
      %54 = vector.extract_strided_slice %17 {offsets = [0, 4], sizes = [16, 128], strides = [1, 1]} : vector<16x132xbf16> to vector<16x128xbf16>
      %cst_31 = arith.constant dense<0.000000e+00> : vector<32x128xf32>
      %55 = tpu.matmul %53, %54, %cst_31 {dimension_numbers = #tpu.dot_dimension_numbers<[1], [0], [0], [1], [0, 0, 1, 1], [], []>} : vector<32x16xbf16>, vector<16x128xbf16>, vector<32x128xf32> -> vector<32x128xf32>
      %56 = arith.addf %48, %55 : vector<32x128xf32>
      %57 = arith.index_cast %arg8 : i32 to index
      %c0_32 = arith.constant 0 : index
      %c0_33 = arith.constant 0 : index
      %58 = vector.load %arg4[%57, %c0_32, %c0_33] : memref<4x32x1xf32, #tpu.memory_space<vmem>>, vector<1x32x1xf32>
      %59 = vector.shape_cast %58 : vector<1x32x1xf32> to vector<32x1xf32>
      %60 = vector.broadcast %59 : vector<32x1xf32> to vector<32x128xf32>
      %61 = arith.addf %56, %60 : vector<32x128xf32>
      %62 = vector.extract_strided_slice %61 {offsets = [0, 0], sizes = [16, 128], strides = [1, 1]} : vector<32x128xf32> to vector<16x128xf32>
      %63 = math.tanh %62 : vector<16x128xf32>
      %64 = vector.extract_strided_slice %61 {offsets = [16, 0], sizes = [16, 128], strides = [1, 1]} : vector<32x128xf32> to vector<16x128xf32>
      %65 = arith.negf %64 : vector<16x128xf32>
      %66 = math.exp %65 : vector<16x128xf32>
      %cst_34 = arith.constant 1.000000e+00 : f32
      %67 = vector.broadcast %cst_34 : f32 to vector<16x128xf32>
      %68 = arith.addf %67, %66 : vector<16x128xf32>
      %69 = arith.divf %67, %68 : vector<16x128xf32>
      %70 = arith.mulf %63, %69 : vector<16x128xf32>
      %71 = arith.index_cast %arg8 : i32 to index
      %c0_35 = arith.constant 0 : index
      %c0_36 = arith.constant 0 : index
      %72 = vector.load %arg5[%71, %c0_35, %c0_36] : memref<4x32x16xbf16, #tpu.memory_space<vmem>>, vector<1x32x16xbf16>
      %73 = vector.shape_cast %72 : vector<1x32x16xbf16> to vector<32x16xbf16>
      %74 = arith.truncf %70 : vector<16x128xf32> to vector<16x128xbf16>
      %cst_37 = arith.constant dense<0.000000e+00> : vector<32x128xf32>
      %75 = tpu.matmul %73, %74, %cst_37 {dimension_numbers = #tpu.dot_dimension_numbers<[1], [0], [0], [1], [0, 0, 1, 1], [], []>} : vector<32x16xbf16>, vector<16x128xbf16>, vector<32x128xf32> -> vector<32x128xf32>
      %76 = arith.index_cast %arg8 : i32 to index
      %c0_38 = arith.constant 0 : index
      %c0_39 = arith.constant 0 : index
      %77 = vector.load %arg6[%76, %c0_38, %c0_39] : memref<4x32x1xf32, #tpu.memory_space<vmem>>, vector<1x32x1xf32>
      %78 = vector.shape_cast %77 : vector<1x32x1xf32> to vector<32x1xf32>
      %79 = vector.broadcast %78 : vector<32x1xf32> to vector<32x128xf32>
      %80 = arith.addf %75, %79 : vector<32x128xf32>
      %81 = vector.extract_strided_slice %80 {offsets = [0, 0], sizes = [16, 128], strides = [1, 1]} : vector<32x128xf32> to vector<16x128xf32>
      %82 = arith.addf %arg9, %81 : vector<16x128xf32>
      %83 = vector.broadcast %1 : vector<1x128xf32> to vector<16x128xf32>
      %84 = arith.mulf %82, %83 : vector<16x128xf32>
      %85 = vector.extract_strided_slice %80 {offsets = [16, 0], sizes = [16, 128], strides = [1, 1]} : vector<32x128xf32> to vector<16x128xf32>
      %86 = arith.addf %arg10, %85 : vector<16x128xf32>
      scf.yield %84, %86 : vector<16x128xf32>, vector<16x128xf32>
    }
    %c4_i32_5 = arith.constant 4 : i32
    %7 = vector.broadcast %1 : vector<1x128xf32> to vector<16x128xf32>
    %8 = arith.mulf %6#1, %7 : vector<16x128xf32>
    %c0_6 = arith.constant 0 : index
    %c0_7 = arith.constant 0 : index
    %c0_8 = arith.constant 0 : index
    %9 = vector.load %arg7[%c0_6, %c0_7, %c0_8] : memref<1x16x128xf32, #tpu.memory_space<vmem>>, vector<1x16x128xf32>
    %10 = vector.shape_cast %9 : vector<1x16x128xf32> to vector<16x128xf32>
    %11 = vector.shape_cast %8 : vector<16x128xf32> to vector<1x16x128xf32>
    tpu.vector_store %arg7[%c0_6, %c0_7, %c0_8], %11 {strides = array<i32>} : memref<1x16x128xf32, #tpu.memory_space<vmem>>, vector<1x16x128xf32>,
    return
  }
  func.func @transform_0(%arg0: i32) -> (i32, i32, i32) {
    %c0_i32 = arith.constant 0 : i32
    %c0_i32_0 = arith.constant 0 : i32
    %c0_i32_1 = arith.constant 0 : i32
    return %arg0, %c0_i32, %c0_i32_0 : i32, i32, i32
  }
  func.func @transform_1(%arg0: i32) -> (i32, i32, i32) {
    %c0_i32 = arith.constant 0 : i32
    %c0_i32_0 = arith.constant 0 : i32
    %c0_i32_1 = arith.constant 0 : i32
    return %arg0, %c0_i32, %c0_i32_0 : i32, i32, i32
  }
  func.func @transform_2(%arg0: i32) -> (i32, i32, i32) {
    %c0_i32 = arith.constant 0 : i32
    %c0_i32_0 = arith.constant 0 : i32
    %c0_i32_1 = arith.constant 0 : i32
    %c0_i32_2 = arith.constant 0 : i32
    return %c0_i32, %c0_i32_0, %c0_i32_1 : i32, i32, i32
  }
  func.func @transform_3(%arg0: i32) -> (i32, i32, i32) {
    %c0_i32 = arith.constant 0 : i32
    %c0_i32_0 = arith.constant 0 : i32
    %c0_i32_1 = arith.constant 0 : i32
    %c0_i32_2 = arith.constant 0 : i32
    return %c0_i32, %c0_i32_0, %c0_i32_1 : i32, i32, i32
  }
  func.func @transform_4(%arg0: i32) -> (i32, i32, i32) {
    %c0_i32 = arith.constant 0 : i32
    %c0_i32_0 = arith.constant 0 : i32
    %c0_i32_1 = arith.constant 0 : i32
    %c0_i32_2 = arith.constant 0 : i32
    return %c0_i32, %c0_i32_0, %c0_i32_1 : i32, i32, i32
  }
  func.func @transform_5(%arg0: i32) -> (i32, i32, i32) {
    %c0_i32 = arith.constant 0 : i32
    %c0_i32_0 = arith.constant 0 : i32
    %c0_i32_1 = arith.constant 0 : i32
    %c0_i32_2 = arith.constant 0 : i32
    return %c0_i32, %c0_i32_0, %c0_i32_1 : i32, i32, i32
  }
  func.func @transform_6(%arg0: i32) -> (i32, i32, i32) {
    %c0_i32 = arith.constant 0 : i32
    %c0_i32_0 = arith.constant 0 : i32
    %c0_i32_1 = arith.constant 0 : i32
    return %arg0, %c0_i32, %c0_i32_0 : i32, i32, i32
  }
}

module attributes {stable_mosaic.version = 11 : i64} {
  func.func @_conv_kernel(%arg0: i32, %arg1: memref<1x16x128xf32, #tpu.memory_space<vmem>>, %arg2: memref<1x16x16xbf16, #tpu.memory_space<vmem>>, %arg3: memref<16x1xf32, #tpu.memory_space<vmem>>, %arg4: memref<1x1x128xf32, #tpu.memory_space<vmem>>, %arg5: memref<1x16x128xf32, #tpu.memory_space<vmem>>) attributes {dimension_semantics = [#tpu.dimension_semantics<parallel>], iteration_bounds = array<i64: 2>, scalar_prefetch = 0 : i64, scratch_operands = 0 : i64, tpu.core_type = #tpu.core_type<tc>, window_params = [{transform_indices = @transform_0, window_bounds = array<i64: 1, 16, 128>}, {pipeline_mode = #tpu.pipeline_mode<synchronous>, transform_indices = @transform_1, window_bounds = array<i64: 1, 16, 16>}, {pipeline_mode = #tpu.pipeline_mode<synchronous>, transform_indices = @transform_2, window_bounds = array<i64: 16, 1>}, {transform_indices = @transform_3, window_bounds = array<i64: 1, 1, 128>}, {transform_indices = @transform_4, window_bounds = array<i64: 1, 16, 128>}]} {
    %c0 = arith.constant 0 : index
    %c0_0 = arith.constant 0 : index
    %c0_1 = arith.constant 0 : index
    %0 = vector.load %arg1[%c0, %c0_0, %c0_1] : memref<1x16x128xf32, #tpu.memory_space<vmem>>, vector<1x16x128xf32>
    %1 = vector.shape_cast %0 : vector<1x16x128xf32> to vector<16x128xf32>
    %2 = tpu.iota {dimensions = array<i32: 1>} : vector<16x128xi32>
    %c16_i32 = arith.constant 16 : i32
    %3 = vector.broadcast %c16_i32 : i32 to vector<16x128xi32>
    %4 = arith.cmpi slt, %2, %3 : vector<16x128xi32>
    %cst = arith.constant 0.000000e+00 : f32
    %5 = vector.broadcast %cst : f32 to vector<16x128xf32>
    %6 = arith.select %4, %1, %5 : vector<16x128xi1>, vector<16x128xf32>
    %7 = arith.truncf %6 : vector<16x128xf32> to vector<16x128xbf16>
    %c0_2 = arith.constant 0 : index
    %c0_3 = arith.constant 0 : index
    %c0_4 = arith.constant 0 : index
    %8 = vector.load %arg2[%c0_2, %c0_3, %c0_4] : memref<1x16x16xbf16, #tpu.memory_space<vmem>>, vector<1x16x16xbf16>
    %9 = vector.shape_cast %8 : vector<1x16x16xbf16> to vector<16x16xbf16>
    %cst_5 = arith.constant dense<0.000000e+00> : vector<16x128xf32>
    %10 = tpu.matmul %9, %7, %cst_5 {dimension_numbers = #tpu.dot_dimension_numbers<[1], [0], [0], [1], [0, 0, 1, 1], [], []>} : vector<16x16xbf16>, vector<16x128xbf16>, vector<16x128xf32> -> vector<16x128xf32>
    %c0_6 = arith.constant 0 : index
    %c0_7 = arith.constant 0 : index
    %11 = vector.load %arg3[%c0_6, %c0_7] : memref<16x1xf32, #tpu.memory_space<vmem>>, vector<16x1xf32>
    %12 = vector.broadcast %11 : vector<16x1xf32> to vector<16x128xf32>
    %13 = arith.addf %10, %12 : vector<16x128xf32>
    %c0_8 = arith.constant 0 : index
    %c0_9 = arith.constant 0 : index
    %c0_10 = arith.constant 0 : index
    %14 = vector.load %arg4[%c0_8, %c0_9, %c0_10] : memref<1x1x128xf32, #tpu.memory_space<vmem>>, vector<1x1x128xf32>
    %15 = vector.shape_cast %14 : vector<1x1x128xf32> to vector<1x128xf32>
    %16 = vector.broadcast %15 : vector<1x128xf32> to vector<16x128xf32>
    %17 = arith.mulf %13, %16 : vector<16x128xf32>
    %c0_11 = arith.constant 0 : index
    %c0_12 = arith.constant 0 : index
    %c0_13 = arith.constant 0 : index
    %18 = vector.load %arg5[%c0_11, %c0_12, %c0_13] : memref<1x16x128xf32, #tpu.memory_space<vmem>>, vector<1x16x128xf32>
    %19 = vector.shape_cast %18 : vector<1x16x128xf32> to vector<16x128xf32>
    %20 = vector.shape_cast %17 : vector<16x128xf32> to vector<1x16x128xf32>
    tpu.vector_store %arg5[%c0_11, %c0_12, %c0_13], %20 {strides = array<i32>} : memref<1x16x128xf32, #tpu.memory_space<vmem>>, vector<1x16x128xf32>,
    return
  }
  func.func @transform_0(%arg0: i32) -> (i32, i32, i32) {
    %c0_i32 = arith.constant 0 : i32
    %c0_i32_0 = arith.constant 0 : i32
    %c0_i32_1 = arith.constant 0 : i32
    return %arg0, %c0_i32, %c0_i32_0 : i32, i32, i32
  }
  func.func @transform_1(%arg0: i32) -> (i32, i32, i32) {
    %c0_i32 = arith.constant 0 : i32
    %c0_i32_0 = arith.constant 0 : i32
    %c0_i32_1 = arith.constant 0 : i32
    %c0_i32_2 = arith.constant 0 : i32
    return %c0_i32, %c0_i32_0, %c0_i32_1 : i32, i32, i32
  }
  func.func @transform_2(%arg0: i32) -> (i32, i32) {
    %c0_i32 = arith.constant 0 : i32
    %c0_i32_0 = arith.constant 0 : i32
    %c0_i32_1 = arith.constant 0 : i32
    return %c0_i32, %c0_i32_0 : i32, i32
  }
  func.func @transform_3(%arg0: i32) -> (i32, i32, i32) {
    %c0_i32 = arith.constant 0 : i32
    %c0_i32_0 = arith.constant 0 : i32
    %c0_i32_1 = arith.constant 0 : i32
    return %arg0, %c0_i32, %c0_i32_0 : i32, i32, i32
  }
  func.func @transform_4(%arg0: i32) -> (i32, i32, i32) {
    %c0_i32 = arith.constant 0 : i32
    %c0_i32_0 = arith.constant 0 : i32
    %c0_i32_1 = arith.constant 0 : i32
    return %arg0, %c0_i32, %c0_i32_0 : i32, i32, i32
  }
}

module attributes {stable_mosaic.version = 11 : i64} {
  func.func @_lognorm_kernel(%arg0: i32, %arg1: memref<1x8x128xf32, #tpu.memory_space<vmem>>, %arg2: memref<1x8x128xf32, #tpu.memory_space<vmem>>, %arg3: memref<1x8x128xf32, #tpu.memory_space<vmem>>, %arg4: memref<1x128x128xf32, #tpu.memory_space<vmem>>) attributes {dimension_semantics = [#tpu.dimension_semantics<parallel>], iteration_bounds = array<i64: 2>, scalar_prefetch = 0 : i64, scratch_operands = 0 : i64, tpu.core_type = #tpu.core_type<tc>, window_params = [{transform_indices = @transform_0, window_bounds = array<i64: 1, 8, 128>}, {transform_indices = @transform_1, window_bounds = array<i64: 1, 8, 128>}, {transform_indices = @transform_2, window_bounds = array<i64: 1, 8, 128>}, {transform_indices = @transform_3, window_bounds = array<i64: 1, 128, 128>}]} {
    %c0 = arith.constant 0 : index
    %c0_0 = arith.constant 0 : index
    %c0_1 = arith.constant 0 : index
    %0 = vector.load %arg1[%c0, %c0_0, %c0_1] : memref<1x8x128xf32, #tpu.memory_space<vmem>>, vector<1x8x128xf32>
    %1 = vector.shape_cast %0 : vector<1x8x128xf32> to vector<8x128xf32>
    %c0_2 = arith.constant 0 : index
    %c0_3 = arith.constant 0 : index
    %c0_4 = arith.constant 0 : index
    %2 = vector.load %arg2[%c0_2, %c0_3, %c0_4] : memref<1x8x128xf32, #tpu.memory_space<vmem>>, vector<1x8x128xf32>
    %3 = vector.shape_cast %2 : vector<1x8x128xf32> to vector<8x128xf32>
    %c0_5 = arith.constant 0 : index
    %c0_6 = arith.constant 0 : index
    %c0_7 = arith.constant 0 : index
    %4 = vector.load %arg3[%c0_5, %c0_6, %c0_7] : memref<1x8x128xf32, #tpu.memory_space<vmem>>, vector<1x8x128xf32>
    %5 = vector.shape_cast %4 : vector<1x8x128xf32> to vector<8x128xf32>
    %cst = arith.constant -2.000000e+00 : f32
    %6 = vector.broadcast %cst : f32 to vector<8x128xf32>
    %7 = arith.mulf %6, %3 : vector<8x128xf32>
    %8 = math.exp %7 : vector<8x128xf32>
    %cst_8 = arith.constant -0.918938517 : f32
    %9 = vector.broadcast %cst_8 : f32 to vector<8x128xf32>
    %10 = arith.subf %9, %3 : vector<8x128xf32>
    %cst_9 = arith.constant dense<0.000000e+00> : vector<128xf32>
    %11 = vector.multi_reduction <add>, %10, %cst_9 [0] : vector<8x128xf32> to vector<128xf32>
    %12 = vector.shape_cast %11 : vector<128xf32> to vector<1x128xf32>
    %cst_10 = arith.constant -5.000000e-01 : f32
    %13 = vector.broadcast %cst_10 : f32 to vector<8x128xf32>
    %14 = arith.mulf %13, %1 : vector<8x128xf32>
    %15 = arith.mulf %14, %1 : vector<8x128xf32>
    %16 = arith.mulf %15, %8 : vector<8x128xf32>
    %cst_11 = arith.constant dense<0.000000e+00> : vector<128xf32>
    %17 = vector.multi_reduction <add>, %16, %cst_11 [0] : vector<8x128xf32> to vector<128xf32>
    %18 = vector.shape_cast %17 : vector<128xf32> to vector<1x128xf32>
    %cst_12 = arith.constant -5.000000e-01 : f32
    %19 = vector.broadcast %cst_12 : f32 to vector<8x128xf32>
    %20 = arith.mulf %19, %5 : vector<8x128xf32>
    %21 = arith.mulf %20, %5 : vector<8x128xf32>
    %cst_13 = arith.constant dense<0.000000e+00> : vector<128x128xf32>
    %22 = tpu.matmul %21, %8, %cst_13 {dimension_numbers = #tpu.dot_dimension_numbers<[0], [0], [1], [1], [0, 1, 1, 1], [], []>} : vector<8x128xf32>, vector<8x128xf32>, vector<128x128xf32> -> vector<128x128xf32>
    %23 = arith.mulf %1, %8 : vector<8x128xf32>
    %cst_14 = arith.constant dense<0.000000e+00> : vector<128x128xf32>
    %24 = tpu.matmul %5, %23, %cst_14 {dimension_numbers = #tpu.dot_dimension_numbers<[0], [0], [1], [1], [0, 1, 1, 1], [], []>} : vector<8x128xf32>, vector<8x128xf32>, vector<128x128xf32> -> vector<128x128xf32>
    %25 = vector.broadcast %12 : vector<1x128xf32> to vector<128x128xf32>
    %26 = arith.addf %25, %22 : vector<128x128xf32>
    %27 = arith.addf %26, %24 : vector<128x128xf32>
    %28 = vector.broadcast %18 : vector<1x128xf32> to vector<128x128xf32>
    %29 = arith.addf %27, %28 : vector<128x128xf32>
    %c0_15 = arith.constant 0 : index
    %c0_16 = arith.constant 0 : index
    %c0_17 = arith.constant 0 : index
    %30 = vector.load %arg4[%c0_15, %c0_16, %c0_17] : memref<1x128x128xf32, #tpu.memory_space<vmem>>, vector<1x128x128xf32>
    %31 = vector.shape_cast %30 : vector<1x128x128xf32> to vector<128x128xf32>
    %32 = vector.shape_cast %29 : vector<128x128xf32> to vector<1x128x128xf32>
    tpu.vector_store %arg4[%c0_15, %c0_16, %c0_17], %32 {strides = array<i32>} : memref<1x128x128xf32, #tpu.memory_space<vmem>>, vector<1x128x128xf32>,
    return
  }
  func.func @transform_0(%arg0: i32) -> (i32, i32, i32) {
    %c0_i32 = arith.constant 0 : i32
    %c0_i32_0 = arith.constant 0 : i32
    %c0_i32_1 = arith.constant 0 : i32
    return %arg0, %c0_i32, %c0_i32_0 : i32, i32, i32
  }
  func.func @transform_1(%arg0: i32) -> (i32, i32, i32) {
    %c0_i32 = arith.constant 0 : i32
    %c0_i32_0 = arith.constant 0 : i32
    %c0_i32_1 = arith.constant 0 : i32
    return %arg0, %c0_i32, %c0_i32_0 : i32, i32, i32
  }
  func.func @transform_2(%arg0: i32) -> (i32, i32, i32) {
    %c0_i32 = arith.constant 0 : i32
    %c0_i32_0 = arith.constant 0 : i32
    %c0_i32_1 = arith.constant 0 : i32
    return %arg0, %c0_i32, %c0_i32_0 : i32, i32, i32
  }
  func.func @transform_3(%arg0: i32) -> (i32, i32, i32) {
    %c0_i32 = arith.constant 0 : i32
    %c0_i32_0 = arith.constant 0 : i32
    %c0_i32_1 = arith.constant 0 : i32
    return %arg0, %c0_i32, %c0_i32_0 : i32, i32, i32
  }
}

module attributes {stable_mosaic.version = 11 : i64} {
  func.func @_conv_kernel(%arg0: i32, %arg1: memref<1x16x128xf32, #tpu.memory_space<vmem>>, %arg2: memref<1x4x16xbf16, #tpu.memory_space<vmem>>, %arg3: memref<4x1xf32, #tpu.memory_space<vmem>>, %arg4: memref<1x4x128xf32, #tpu.memory_space<vmem>>, %arg5: memref<1x1x128xf32, #tpu.memory_space<vmem>>, %arg6: memref<1x4x128xf32, #tpu.memory_space<vmem>>) attributes {dimension_semantics = [#tpu.dimension_semantics<parallel>], iteration_bounds = array<i64: 2>, scalar_prefetch = 0 : i64, scratch_operands = 0 : i64, tpu.core_type = #tpu.core_type<tc>, window_params = [{transform_indices = @transform_0, window_bounds = array<i64: 1, 16, 128>}, {pipeline_mode = #tpu.pipeline_mode<synchronous>, transform_indices = @transform_1, window_bounds = array<i64: 1, 4, 16>}, {pipeline_mode = #tpu.pipeline_mode<synchronous>, transform_indices = @transform_2, window_bounds = array<i64: 4, 1>}, {transform_indices = @transform_3, window_bounds = array<i64: 1, 4, 128>}, {transform_indices = @transform_4, window_bounds = array<i64: 1, 1, 128>}, {transform_indices = @transform_5, window_bounds = array<i64: 1, 4, 128>}]} {
    %c0 = arith.constant 0 : index
    %c0_0 = arith.constant 0 : index
    %c0_1 = arith.constant 0 : index
    %0 = vector.load %arg1[%c0, %c0_0, %c0_1] : memref<1x16x128xf32, #tpu.memory_space<vmem>>, vector<1x16x128xf32>
    %1 = vector.shape_cast %0 : vector<1x16x128xf32> to vector<16x128xf32>
    %2 = tpu.iota {dimensions = array<i32: 1>} : vector<16x128xi32>
    %c16_i32 = arith.constant 16 : i32
    %3 = vector.broadcast %c16_i32 : i32 to vector<16x128xi32>
    %4 = arith.cmpi slt, %2, %3 : vector<16x128xi32>
    %cst = arith.constant 0.000000e+00 : f32
    %5 = vector.broadcast %cst : f32 to vector<16x128xf32>
    %6 = arith.select %4, %1, %5 : vector<16x128xi1>, vector<16x128xf32>
    %7 = arith.truncf %6 : vector<16x128xf32> to vector<16x128xbf16>
    %c0_2 = arith.constant 0 : index
    %c0_3 = arith.constant 0 : index
    %c0_4 = arith.constant 0 : index
    %8 = vector.load %arg2[%c0_2, %c0_3, %c0_4] : memref<1x4x16xbf16, #tpu.memory_space<vmem>>, vector<1x4x16xbf16>
    %9 = vector.shape_cast %8 : vector<1x4x16xbf16> to vector<4x16xbf16>
    %cst_5 = arith.constant dense<0.000000e+00> : vector<4x128xf32>
    %10 = tpu.matmul %9, %7, %cst_5 {dimension_numbers = #tpu.dot_dimension_numbers<[1], [0], [0], [1], [0, 0, 1, 1], [], []>} : vector<4x16xbf16>, vector<16x128xbf16>, vector<4x128xf32> -> vector<4x128xf32>
    %c0_6 = arith.constant 0 : index
    %c0_7 = arith.constant 0 : index
    %11 = vector.load %arg3[%c0_6, %c0_7] : memref<4x1xf32, #tpu.memory_space<vmem>>, vector<4x1xf32>
    %12 = vector.broadcast %11 : vector<4x1xf32> to vector<4x128xf32>
    %13 = arith.addf %10, %12 : vector<4x128xf32>
    %c0_8 = arith.constant 0 : index
    %c0_9 = arith.constant 0 : index
    %c0_10 = arith.constant 0 : index
    %14 = vector.load %arg4[%c0_8, %c0_9, %c0_10] : memref<1x4x128xf32, #tpu.memory_space<vmem>>, vector<1x4x128xf32>
    %15 = vector.shape_cast %14 : vector<1x4x128xf32> to vector<4x128xf32>
    %16 = arith.addf %13, %15 : vector<4x128xf32>
    %c0_11 = arith.constant 0 : index
    %c0_12 = arith.constant 0 : index
    %c0_13 = arith.constant 0 : index
    %17 = vector.load %arg5[%c0_11, %c0_12, %c0_13] : memref<1x1x128xf32, #tpu.memory_space<vmem>>, vector<1x1x128xf32>
    %18 = vector.shape_cast %17 : vector<1x1x128xf32> to vector<1x128xf32>
    %19 = vector.broadcast %18 : vector<1x128xf32> to vector<4x128xf32>
    %20 = arith.mulf %16, %19 : vector<4x128xf32>
    %c0_14 = arith.constant 0 : index
    %c0_15 = arith.constant 0 : index
    %c0_16 = arith.constant 0 : index
    %21 = vector.load %arg6[%c0_14, %c0_15, %c0_16] : memref<1x4x128xf32, #tpu.memory_space<vmem>>, vector<1x4x128xf32>
    %22 = vector.shape_cast %21 : vector<1x4x128xf32> to vector<4x128xf32>
    %23 = vector.shape_cast %20 : vector<4x128xf32> to vector<1x4x128xf32>
    tpu.vector_store %arg6[%c0_14, %c0_15, %c0_16], %23 {strides = array<i32>} : memref<1x4x128xf32, #tpu.memory_space<vmem>>, vector<1x4x128xf32>,
    return
  }
  func.func @transform_0(%arg0: i32) -> (i32, i32, i32) {
    %c0_i32 = arith.constant 0 : i32
    %c0_i32_0 = arith.constant 0 : i32
    %c0_i32_1 = arith.constant 0 : i32
    return %arg0, %c0_i32, %c0_i32_0 : i32, i32, i32
  }
  func.func @transform_1(%arg0: i32) -> (i32, i32, i32) {
    %c0_i32 = arith.constant 0 : i32
    %c0_i32_0 = arith.constant 0 : i32
    %c0_i32_1 = arith.constant 0 : i32
    %c0_i32_2 = arith.constant 0 : i32
    return %c0_i32, %c0_i32_0, %c0_i32_1 : i32, i32, i32
  }
  func.func @transform_2(%arg0: i32) -> (i32, i32) {
    %c0_i32 = arith.constant 0 : i32
    %c0_i32_0 = arith.constant 0 : i32
    %c0_i32_1 = arith.constant 0 : i32
    return %c0_i32, %c0_i32_0 : i32, i32
  }
  func.func @transform_3(%arg0: i32) -> (i32, i32, i32) {
    %c0_i32 = arith.constant 0 : i32
    %c0_i32_0 = arith.constant 0 : i32
    %c0_i32_1 = arith.constant 0 : i32
    return %arg0, %c0_i32, %c0_i32_0 : i32, i32, i32
  }
  func.func @transform_4(%arg0: i32) -> (i32, i32, i32) {
    %c0_i32 = arith.constant 0 : i32
    %c0_i32_0 = arith.constant 0 : i32
    %c0_i32_1 = arith.constant 0 : i32
    return %arg0, %c0_i32, %c0_i32_0 : i32, i32, i32
  }
  func.func @transform_5(%arg0: i32) -> (i32, i32, i32) {
    %c0_i32 = arith.constant 0 : i32
    %c0_i32_0 = arith.constant 0 : i32
    %c0_i32_1 = arith.constant 0 : i32
    return %arg0, %c0_i32, %c0_i32_0 : i32, i32, i32
  }
}

</mosaic_0001>

<llo_original>
// kernel: phase1.25
$region0: #{phase1.25}
  #allocation0 [shape = 'u32[]', space=smem, size = 0x4, offset = 0x4, fixed_abs, tag = 'smem constant byte address 0x4 - core index']
  #allocation1 [shape = 'u32[144,128]{1,0:T(1,128)}', space=vmem, size = 0x12000, scoped, tag = 'internal scratch']
  %s0 = inlined_call_operand.vmem [shape: f32[2,16,128], index: 0, kind: input, shape index: {}]
  %s1 = inlined_call_operand.hbm [shape: bf16[1,16,16], index: 1, kind: input, shape index: {}]
  %s2 = inlined_call_operand.hbm [shape: f32[16,1], index: 2, kind: input, shape index: {}]
  %s3 = inlined_call_operand.vmem [shape: f32[2,1,128], index: 3, kind: input, shape index: {}, may-alias: {3,4}]
  %s4 = inlined_call_operand.vmem [shape: f32[2,1,128], index: 4, kind: input, shape index: {}, may-alias: {3,4}]
  %s5 = inlined_call_operand.vmem [shape: f32[2,16,128], index: 5, kind: output, shape index: {}]
  %s6 = sld [smem:[#allocation0]]
  $region61: #{phase1.25} parent=0
    _
  %s8 = ssub.s32 1, %s6
  %s9 = scalar_select 0, %s8, %s6
  $region1: #{phase1.25} parent=0
    #allocation2 [shape = 'u8[4096]{0}', space=vmem, size = 0x1000, scoped, tag = 'input window, operand 1, single buffered']
    #allocation3 [shape = 's32[2]{0}', space=sflag, size = 0x8, scoped, tag = 'scoped memory for phase1.25']
    #allocation4 [shape = 'u8[8192]{0}', space=vmem, size = 0x2000, scoped, tag = 'input window, operand 2, single buffered']
    #allocation5 [shape = 's32[1]{0}', space=sflag, size = 0x4, scoped, tag = 'scoped memory for phase1.25']
    %10 = vsyncpa [#allocation3], 0
    %11 = vsyncpa [#allocation5], 0
    loop: start=0, step=1, limit=4
    $region2: #{phase1.25} parent=1 // loop_pre_header
      _
    $region3: #{phase1.25} parent=1 // loop_header
      %s13 = sphi 0, %s17
      %p14 = scmp.ge.s32.totalorder %s13, 4
      %s23 = sphi 0, %s25
      %s26 = sphi 0, %s23
      %s27 = sphi 0, %s26
      %s43 = sphi 0, %s27
      %s47 = sphi 0, %s47
      %s49 = sphi 0, %s47
      %s50 = sphi 0, %s49
      %s64 = sphi 0, %s50
      %s68 = sphi 0, %s68
      %s70 = sphi 0, %s68
      %s71 = sphi 0, %s70
      %s85 = sphi 0, %s71
      %s91 = sphi 0, %s93
      %s94 = sphi 0, %s91
      %s95 = sphi 0, %s94
      %s111 = sphi 0, %s95
      %s117 = sphi 0, %s119
      %s120 = sphi 0, %s117
      %s121 = sphi 0, %s120
      %s137 = sphi 0, %s121
      %s143 = sphi 0, %s145
      %s146 = sphi 0, %s143
      %s147 = sphi 0, %s146
      %s163 = sphi 0, %s147
    $region4: #{phase1.25} parent=1 // loop_header_branch
      %16 = sbr.rel (%p14) target = $region8
    $region5: #{phase1.25} parent=1 // loop_body
      %s18 = ssub.s32 %s13, 1
      %s19 = ssub.s32 %s13, 2
      %s20 = sadd.s32 %s13, 1
      %s21 = ssub.s32 %s13, %s20
      %p22 = scmp.eq.s32.totalorder %s21, 0
      %s24 = sadd.s32 %s23, 1
      %s25 = scalar_select %p22, %s23, %s24
      %p28 = pneg %p22
      %p29 = scmp.eq.s32.totalorder %s13, 1
      %p30 = por %p28, %p29
      %p31 = scmp.ne.s32.totalorder %s23, %s26
      %p32 = scmp.eq.s32.totalorder %s13, 0
      %p33 = por %p31, %p32
      %p34 = scmp.ne.s32.totalorder %s23, %s26
      %p35 = scmp.eq.s32.totalorder %s18, 1
      %p36 = por %p34, %p35
      %p37 = scmp.ne.s32.totalorder %s26, %s27
      %p38 = scmp.eq.s32.totalorder %s18, 0
      %p39 = por %p37, %p38
      %p40 = scmp.ne.s32.totalorder %s26, %s27
      %p41 = scmp.eq.s32.totalorder %s19, 1
      %p42 = por %p40, %p41
      %p44 = scmp.ne.s32.totalorder %s27, %s43
      %p45 = scmp.eq.s32.totalorder %s19, 0
      %p46 = por %p44, %p45
      %s48 = sadd.s32 %s47, 1
      %p51 = scmp.eq.s32.totalorder %s13, 1
      %p52 = scmp.ne.s32.totalorder %s47, %s49
      %p53 = scmp.eq.s32.totalorder %s13, 0
      %p54 = por %p52, %p53
      %p55 = scmp.ne.s32.totalorder %s47, %s49
      %p56 = scmp.eq.s32.totalorder %s18, 1
      %p57 = por %p55, %p56
      %p58 = scmp.ne.s32.totalorder %s49, %s50
      %p59 = scmp.eq.s32.totalorder %s18, 0
      %p60 = por %p58, %p59
      %p61 = scmp.ne.s32.totalorder %s49, %s50
      %p62 = scmp.eq.s32.totalorder %s19, 1
      %p63 = por %p61, %p62
      %p65 = scmp.ne.s32.totalorder %s50, %s64
      %p66 = scmp.eq.s32.totalorder %s19, 0
      %p67 = por %p65, %p66
      %s69 = sadd.s32 %s68, 1
      %p72 = scmp.eq.s32.totalorder %s13, 1
      %p73 = scmp.ne.s32.totalorder %s68, %s70
      %p74 = scmp.eq.s32.totalorder %s13, 0
      %p75 = por %p73, %p74
      %p76 = scmp.ne.s32.totalorder %s68, %s70
      %p77 = scmp.eq.s32.totalorder %s18, 1
      %p78 = por %p76, %p77
      %p79 = scmp.ne.s32.totalorder %s70, %s71
      %p80 = scmp.eq.s32.totalorder %s18, 0
      %p81 = por %p79, %p80
      %p82 = scmp.ne.s32.totalorder %s70, %s71
      %p83 = scmp.eq.s32.totalorder %s19, 1
      %p84 = por %p82, %p83
      %p86 = scmp.ne.s32.totalorder %s71, %s85
      %p87 = scmp.eq.s32.totalorder %s19, 0
      %p88 = por %p86, %p87
      %s89 = ssub.s32 %s13, %s20
      %p90 = scmp.eq.s32.totalorder %s89, 0
      %s92 = sadd.s32 %s91, 1
      %s93 = scalar_select %p90, %s91, %s92
      %p96 = pneg %p90
      %p97 = scmp.eq.s32.totalorder %s13, 1
      %p98 = por %p96, %p97
      %p99 = scmp.ne.s32.totalorder %s91, %s94
      %p100 = scmp.eq.s32.totalorder %s13, 0
      %p101 = por %p99, %p100
      %p102 = scmp.ne.s32.totalorder %s91, %s94
      %p103 = scmp.eq.s32.totalorder %s18, 1
      %p104 = por %p102, %p103
      %p105 = scmp.ne.s32.totalorder %s94, %s95
      %p106 = scmp.eq.s32.totalorder %s18, 0
      %p107 = por %p105, %p106
      %p108 = scmp.ne.s32.totalorder %s94, %s95
      %p109 = scmp.eq.s32.totalorder %s19, 1
      %p110 = por %p108, %p109
      %p112 = scmp.ne.s32.totalorder %s95, %s111
      %p113 = scmp.eq.s32.totalorder %s19, 0
      %p114 = por %p112, %p113
      %s115 = ssub.s32 %s13, %s20
      %p116 = scmp.eq.s32.totalorder %s115, 0
      %s118 = sadd.s32 %s117, 1
      %s119 = scalar_select %p116, %s117, %s118
      %p122 = pneg %p116
      %p123 = scmp.eq.s32.totalorder %s13, 1
      %p124 = por %p122, %p123
      %p125 = scmp.ne.s32.totalorder %s117, %s120
      %p126 = scmp.eq.s32.totalorder %s13, 0
      %p127 = por %p125, %p126
      %p128 = scmp.ne.s32.totalorder %s117, %s120
      %p129 = scmp.eq.s32.totalorder %s18, 1
      %p130 = por %p128, %p129
      %p131 = scmp.ne.s32.totalorder %s120, %s121
      %p132 = scmp.eq.s32.totalorder %s18, 0
      %p133 = por %p131, %p132
      %p134 = scmp.ne.s32.totalorder %s120, %s121
      %p135 = scmp.eq.s32.totalorder %s19, 1
      %p136 = por %p134, %p135
      %p138 = scmp.ne.s32.totalorder %s121, %s137
      %p139 = scmp.eq.s32.totalorder %s19, 0
      %p140 = por %p138, %p139
      %s141 = ssub.s32 %s13, %s20
      %p142 = scmp.eq.s32.totalorder %s141, 0
      %s144 = sadd.s32 %s143, 1
      %s145 = scalar_select %p142, %s143, %s144
      %p148 = pneg %p142
      %p149 = scmp.eq.s32.totalorder %s13, 1
      %p150 = por %p148, %p149
      %p151 = scmp.ne.s32.totalorder %s143, %s146
      %p152 = scmp.eq.s32.totalorder %s13, 0
      %p153 = por %p151, %p152
      %p154 = scmp.ne.s32.totalorder %s143, %s146
      %p155 = scmp.eq.s32.totalorder %s18, 1
      %p156 = por %p154, %p155
      %p157 = scmp.ne.s32.totalorder %s146, %s147
      %p158 = scmp.eq.s32.totalorder %s18, 0
      %p159 = por %p157, %p158
      %p160 = scmp.ne.s32.totalorder %s146, %s147
      %p161 = scmp.eq.s32.totalorder %s19, 1
      %p162 = por %p160, %p161
      %p164 = scmp.ne.s32.totalorder %s147, %s163
      %p165 = scmp.eq.s32.totalorder %s19, 0
      %p166 = por %p164, %p165
      %p167 = scmp.le.s32.totalorder 1, %s13
      %p168 = scmp.lt.s32.totalorder %s13, 3
      %p169 = pnand %p167, %p168
      %p170 = pneg %p169
      // Predicated region
      $region9: #{phase1.25} parent=5 // pred_check
        _
      $region10: #{phase1.25} parent=5 // pred_check_branch
        %172 = sbr.rel (%p169) target = $region12
      $region11: #{phase1.25} parent=5 // pred_region
        %s173 = ssub.s32 %s13, 1
        // Predicated region
        $region13: #{phase1.25} parent=11 // pred_check
          %p174 = pneg %p60
        $region14: #{phase1.25} parent=11 // pred_check_branch
          %176 = sbr.rel (%p174) target = $region16
        $region15: #{phase1.25} parent=11 // pred_region
          %s178 = ssub.s32 128, 128
          %179 = vsyncadd [#allocation3], %s178
          %s180 = sshll.u32 [#allocation2], 4
          %s181 = int_to_ptr.vmem [resolvable:$true] %s180
          %186 = dma.hbm_to_vmem [thread:$0]  %s1, 128, %s181, [#allocation3], 64, 64, 4
        $region16: #{phase1.25} parent=11 // pred_fallthru
          _
        // Predicated region
        $region17: #{phase1.25} parent=11 // pred_check
          %p187 = pneg %p81
        $region18: #{phase1.25} parent=11 // pred_check_branch
          %189 = sbr.rel (%p187) target = $region20
        $region19: #{phase1.25} parent=11 // pred_region
          %s191 = ssub.s32 256, 256
          %192 = vsyncadd [#allocation5], %s191
          %s193 = sshll.u32 [#allocation4], 4
          %s194 = int_to_ptr.vmem [resolvable:$true] %s193
          %199 = dma.hbm_to_vmem [thread:$0]  %s2, 256, %s194, [#allocation5], 128, 128, 8
        $region20: #{phase1.25} parent=11 // pred_fallthru
          _
      $region12: #{phase1.25} parent=5 // pred_fallthru
        _
      %p200 = scmp.lt.s32.totalorder %s13, 2
      // Predicated region
      $region21: #{phase1.25} parent=5 // pred_check
        %p201 = pneg %p200
      $region22: #{phase1.25} parent=5 // pred_check_branch
        %203 = sbr.rel (%p201) target = $region24
      $region23: #{phase1.25} parent=5 // pred_region
        // Predicated region
        $region25: #{phase1.25} parent=23 // pred_check
          %p204 = pneg %p33
        $region26: #{phase1.25} parent=23 // pred_check_branch
          %206 = sbr.rel (%p204) target = $region28
        $region27: #{phase1.25} parent=23 // pred_region
          %p207 = scmp.lt.s32.totalorder %s13, 1
          %s208 = scalar_select %p207, %s13, 1
          %s209 = smul.addr %s208, 2
          %s210 = smul.addr %s209, 8
          %s211 = scalar_lea.vmem %s0, %s210
        $region28: #{phase1.25} parent=23 // pred_fallthru
          _
        // Predicated region
        $region29: #{phase1.25} parent=23 // pred_check
          %p212 = pneg %p101
        $region30: #{phase1.25} parent=23 // pred_check_branch
          %214 = sbr.rel (%p212) target = $region32
        $region31: #{phase1.25} parent=23 // pred_region
          %p215 = scmp.lt.s32.totalorder %s13, 1
          %s216 = scalar_select %p215, %s13, 1
          %s217 = scalar_lea.vmem %s3, %s216
        $region32: #{phase1.25} parent=23 // pred_fallthru
          _
        // Predicated region
        $region33: #{phase1.25} parent=23 // pred_check
          %p218 = pneg %p127
        $region34: #{phase1.25} parent=23 // pred_check_branch
          %220 = sbr.rel (%p218) target = $region36
        $region35: #{phase1.25} parent=23 // pred_region
          %p221 = scmp.lt.s32.totalorder %s13, 1
          %s222 = scalar_select %p221, %s13, 1
          %s223 = scalar_lea.vmem %s4, %s222
        $region36: #{phase1.25} parent=23 // pred_fallthru
          _
      $region24: #{phase1.25} parent=5 // pred_fallthru
        _
      %p224 = scmp.le.s32.totalorder 1, %s13
      %p225 = scmp.lt.s32.totalorder %s13, 3
      %p226 = pnand %p224, %p225
      %p227 = pneg %p226
      // Predicated region
      $region37: #{phase1.25} parent=5 // pred_check
        _
      $region38: #{phase1.25} parent=5 // pred_check_branch
        %229 = sbr.rel (%p226) target = $region40
      $region39: #{phase1.25} parent=5 // pred_region
        %s230 = ssub.s32 %s13, 1
        // Predicated region
        $region41: #{phase1.25} parent=39 // pred_check
          %p231 = pneg %p60
        $region42: #{phase1.25} parent=39 // pred_check_branch
          %233 = sbr.rel (%p231) target = $region44
        $region43: #{phase1.25} parent=39 // pred_region
          %234 = dma.done [#allocation3], 128
        $region44: #{phase1.25} parent=39 // pred_fallthru
          _
        // Predicated region
        $region45: #{phase1.25} parent=39 // pred_check
          %p235 = pneg %p81
        $region46: #{phase1.25} parent=39 // pred_check_branch
          %237 = sbr.rel (%p235) target = $region48
        $region47: #{phase1.25} parent=39 // pred_region
          %238 = dma.done [#allocation5], 256
        $region48: #{phase1.25} parent=39 // pred_fallthru
          _
        %p239 = scmp.lt.s32.totalorder %s18, 1
        %s240 = scalar_select %p239, %s18, 1
        %s241 = smul.addr %s240, 2
        %s242 = smul.addr %s241, 8
        %s243 = scalar_lea.vmem %s0, %s242
        %p244 = pneg %p39
        %p245 = pneg %p36
        %p246 = pneg %p60
        %p247 = pneg %p57
        %p248 = pneg %p81
        %p249 = pneg %p78
        %p250 = scmp.lt.s32.totalorder %s18, 1
        %s251 = scalar_select %p250, %s18, 1
        %s252 = scalar_lea.vmem %s3, %s251
        %p253 = pneg %p107
        %p254 = pneg %p104
        %p255 = scmp.lt.s32.totalorder %s18, 1
        %s256 = scalar_select %p255, %s18, 1
        %s257 = scalar_lea.vmem %s4, %s256
        %p258 = pneg %p133
        %p259 = pneg %p130
        %p260 = pneg %p159
        %p261 = pneg %p156
        %p262 = scmp.lt.s32.totalorder %s18, 1
        %s263 = scalar_select %p262, %s18, 1
        %s264 = smul.addr %s263, 2
        %s265 = smul.addr %s264, 8
        %s266 = scalar_lea.vmem %s5, %s265
        %p267 = scmp.lt.s32.totalorder %s18, 1
        %s268 = scalar_select %p267, %s18, 1
        %s269 = smul.addr %s268, 2
        %s270 = smul.addr %s269, 8
        %s271 = scalar_lea.vmem %s0, %s270
        %p272 = scmp.lt.s32.totalorder %s18, 1
        %s273 = scalar_select %p272, %s18, 1
        %s274 = scalar_lea.vmem %s3, %s273
        %p275 = scmp.lt.s32.totalorder %s18, 1
        %s276 = scalar_select %p275, %s18, 1
        %s277 = scalar_lea.vmem %s4, %s276
        %p278 = scmp.lt.s32.totalorder %s18, 1
        %s279 = scalar_select %p278, %s18, 1
        %s280 = smul.addr %s279, 2
        %s281 = smul.addr %s280, 8
        %s282 = scalar_lea.vmem %s5, %s281
        %v284 = vld [vmem:[%s271] sm:$0xff]
        %v285 = vld [vmem:[%s271 + $0x8] sm:$0xff]
        %v286 = vlaneseq
        %v287 = vand.u32 %v286, 127
        %vm288 = vcmp.lt.s32.totalorder %v287, 12
        %v289 = vsel %vm288, %v284, 0.0
        %v290 = vsel %vm288, %v285, 0.0
        %v291 = vld [vmem:[%s274] sm:$0x1]
        %v293 = vlaneseq
        %v294 = vshrl.u32 %v293, 7
        %v295 = vsub.s32 0, %v294
        %v296 = vrot.slane %v291, %v295
        %v298 = vmul.f32 %v289, %v296
        %v299 = vmul.f32 %v290, %v296
        %v300 = vpack.c.bf16 %v299, %v298
        %v301 = vld [vmem:[#allocation2] sm:$0xf]
        %v302 = vld [vmem:[#allocation2 + $0x4] sm:$0xf]
        %v303 = vld [vmem:[#allocation4] sm:$0xff]
        %v304 = vld [vmem:[#allocation4 + $0x8] sm:$0xff]
        %306 = vset.pattern.permute.xlu0 0
        %307 = vperm.xlu0 %306, %v303
        %v308 = vpop.permute.xlu0 %307
        %311 = vset.pattern.permute.xlu0 0
        %312 = vperm.xlu0 %311, %v304
        %v313 = vpop.permute.xlu0 %312
        %v317 = vunpack.c.l.b16 %v301
        %v318 = vunpack.c.l.b16 %v302
        %v319 = vpack.c.b16 %v318, %v317
        %vm320 = vcmask 130048
        %v322 = vsel %vm320, %v319, 0
        %324 = vmatprep.subr.bf16.mxu0 0
        %325 = vmatpush1.bf16.msra.mxu0 0
        %326 = vmatprep.subr.bf16.mxu0 0
        %327 = vmatpush1.bf16.msra.mxu0 0
        %328 = vmatprep.subr.bf16.mxu0 0
        %329 = vmatpush1.bf16.msra.mxu0 0
        %330 = vmatprep.subr.bf16.mxu0 0
        %331 = vmatpush1.bf16.msra.mxu0 0
        %332 = vmatprep.subr.bf16.mxu0 0
        %333 = vmatpush1.bf16.msra.mxu0 0
        %334 = vmatprep.subr.bf16.mxu0 0
        %335 = vmatpush1.bf16.msra.mxu0 0
        %336 = vmatprep.subr.bf16.mxu0 0
        %337 = vmatpush1.bf16.msra.mxu0 0
        %338 = vmatprep.subr.bf16.mxu0 0
        %339 = vmatpush1.bf16.msra.mxu0 %v300
        %340 = vmatprep.subr.bf16.mxu0 0
        %341 = vmatpush2.bf16.msra.mxu0 0
        %342 = vmatprep.subr.bf16.mxu0 0
        %343 = vmatpush2.bf16.msra.mxu0 0
        %344 = vmatprep.subr.bf16.mxu0 0
        %345 = vmatpush2.bf16.msra.mxu0 0
        %346 = vmatprep.subr.bf16.mxu0 0
        %347 = vmatpush2.bf16.msra.mxu0 0
        %348 = vmatprep.subr.bf16.mxu0 0
        %349 = vmatpush2.bf16.msra.mxu0 0
        %350 = vmatprep.subr.bf16.mxu0 0
        %351 = vmatpush2.bf16.msra.mxu0 0
        %352 = vmatprep.subr.bf16.mxu0 0
        %353 = vmatpush2.bf16.msra.mxu0 0
        %354 = vmatprep.subr.bf16.mxu0 0
        %355 = vmatpush2.bf16.msra.mxu0 0
        %356 = vmatprep.mubr.bf16.mxu0 0
        %357 = vmatmul.mubr.bf16.gmra.mxu0 %v322
        %v358 = vpop.f32.mrf.mxu0
        %v359 = vadd.f32 %v308, %v358
        %v360 = vpop.f32.mrf.mxu0
        %v361 = vpop.f32.mrf.mxu0
        %v362 = vadd.f32 %v313, %v361
        %v363 = vpop.f32.mrf.mxu0
        %364 = vdwg.mxu0
        %v365 = vld [vmem:[%s277] sm:$0x1]
        %v367 = vlaneseq
        %v368 = vshrl.u32 %v367, 7
        %v369 = vsub.s32 0, %v368
        %v370 = vrot.slane %v365, %v369
        %v372 = vmul.f32 %v359, %v370
        %v373 = vmul.f32 %v362, %v370
        %374 = vst [vmem:[%s282] sm:$0xff] %v372
        %375 = vst [vmem:[%s282 + $0x8] sm:$0xff] %v373
        %p376 = scmp.lt.s32.totalorder %s18, 1
        %s377 = scalar_select %p376, %s18, 1
        %s378 = smul.addr %s377, 2
        %s379 = smul.addr %s378, 8
        %s380 = scalar_lea.vmem %s5, %s379
        // Predicated region
        $region49: #{phase1.25} parent=39 // pred_check
          %p381 = pneg %p156
        $region50: #{phase1.25} parent=39 // pred_check_branch
          %383 = sbr.rel (%p381) target = $region52
        $region51: #{phase1.25} parent=39 // pred_region
          _
        $region52: #{phase1.25} parent=39 // pred_fallthru
          _
      $region40: #{phase1.25} parent=5 // pred_fallthru
        _
      %p384 = scmp.le.s32.totalorder 2, %s13
      // Predicated region
      $region53: #{phase1.25} parent=5 // pred_check
        %p385 = pneg %p384
      $region54: #{phase1.25} parent=5 // pred_check_branch
        %387 = sbr.rel (%p385) target = $region56
      $region55: #{phase1.25} parent=5 // pred_region
        %s388 = ssub.s32 %s13, 2
        // Predicated region
        $region57: #{phase1.25} parent=55 // pred_check
          %p389 = pneg %p162
        $region58: #{phase1.25} parent=55 // pred_check_branch
          %391 = sbr.rel (%p389) target = $region60
        $region59: #{phase1.25} parent=55 // pred_region
          %p392 = scmp.lt.s32.totalorder %s19, 1
          %s393 = scalar_select %p392, %s19, 1
          %s394 = smul.addr %s393, 2
          %s395 = smul.addr %s394, 8
          %s396 = scalar_lea.vmem %s5, %s395
        $region60: #{phase1.25} parent=55 // pred_fallthru
          _
      $region56: #{phase1.25} parent=5 // pred_fallthru
        _
    $region6: #{phase1.25} parent=1 // loop_footer
      %s17 = sadd.s32 1, %s13
    $region7: #{phase1.25} parent=1 // loop_footer_branch
      %12 = sbr.rel target = $region3
    $region8: #{phase1.25} parent=1 // loop_exit
      _
    %397 = vsyncpa [#allocation3], 1
    %s398 = scalar_lea.sflag [#allocation3], 1
    %399 = vsyncpa %s398, 1
    %400 = vsyncpa [#allocation5], 1

// kernel: phase1.22
$region0: #{phase1.22}
  #allocation0 [shape = 'u32[]', space=smem, size = 0x4, offset = 0x4, fixed_abs, tag = 'smem constant byte address 0x4 - core index']
  #allocation1 [shape = 'u32[144,128]{1,0:T(1,128)}', space=vmem, size = 0x12000, scoped, tag = 'internal scratch']
  %s0 = inlined_call_operand.vmem [shape: f32[2,16,128], index: 0, kind: input, shape index: {}]
  %s1 = inlined_call_operand.vmem [shape: f32[2,1,128], index: 1, kind: input, shape index: {}]
  %s2 = inlined_call_operand.vmem [shape: bf16[3,32,16], index: 2, kind: input, shape index: {}]
  %s3 = inlined_call_operand.hbm [shape: f32[32,1], index: 3, kind: input, shape index: {}]
  %s4 = inlined_call_operand.hbm [shape: bf16[3,16,32], index: 4, kind: input, shape index: {}]
  %s5 = inlined_call_operand.hbm [shape: f32[16,1], index: 5, kind: input, shape index: {}]
  %s6 = inlined_call_operand.vmem [shape: f32[16,1], index: 6, kind: input, shape index: {}]
  %s7 = inlined_call_operand.vmem [shape: f32[16,1], index: 7, kind: input, shape index: {}]
  %s8 = inlined_call_operand.vmem [shape: f32[2,16,128], index: 8, kind: output, shape index: {}]
  %s9 = sld [smem:[#allocation0]]
  $region77: #{phase1.22} parent=0
    _
  %s11 = ssub.s32 1, %s9
  %s12 = scalar_select 0, %s11, %s9
  $region1: #{phase1.22} parent=0
    #allocation2 [shape = 'u8[16384]{0}', space=vmem, size = 0x4000, scoped, tag = 'input window, operand 3, single buffered']
    #allocation3 [shape = 's32[2]{0}', space=sflag, size = 0x8, scoped, tag = 'scoped memory for phase1.22']
    #allocation4 [shape = 'u8[12288]{0}', space=vmem, size = 0x3000, scoped, tag = 'input window, operand 4, single buffered']
    #allocation5 [shape = 's32[1]{0}', space=sflag, size = 0x4, scoped, tag = 'scoped memory for phase1.22']
    #allocation6 [shape = 'u8[8192]{0}', space=vmem, size = 0x2000, scoped, tag = 'input window, operand 5, single buffered']
    %13 = vsyncpa [#allocation3], 0
    %14 = vsyncpa [#allocation5], 0
    loop: start=0, step=1, limit=4
    $region2: #{phase1.22} parent=1 // loop_pre_header
      _
    $region3: #{phase1.22} parent=1 // loop_header
      %s16 = sphi 0, %s20
      %p17 = scmp.ge.s32.totalorder %s16, 4
      %s26 = sphi 0, %s28
      %s29 = sphi 0, %s26
      %s30 = sphi 0, %s29
      %s46 = sphi 0, %s30
      %s52 = sphi 0, %s54
      %s55 = sphi 0, %s52
      %s56 = sphi 0, %s55
      %s72 = sphi 0, %s56
      %s76 = sphi 0, %s76
      %s78 = sphi 0, %s76
      %s79 = sphi 0, %s78
      %s93 = sphi 0, %s79
      %s97 = sphi 0, %s97
      %s99 = sphi 0, %s97
      %s100 = sphi 0, %s99
      %s114 = sphi 0, %s100
      %s118 = sphi 0, %s118
      %s120 = sphi 0, %s118
      %s121 = sphi 0, %s120
      %s135 = sphi 0, %s121
      %s139 = sphi 0, %s139
      %s141 = sphi 0, %s139
      %s142 = sphi 0, %s141
      %s156 = sphi 0, %s142
      %s160 = sphi 0, %s160
      %s162 = sphi 0, %s160
      %s163 = sphi 0, %s162
      %s177 = sphi 0, %s163
      %s181 = sphi 0, %s181
      %s183 = sphi 0, %s181
      %s184 = sphi 0, %s183
      %s198 = sphi 0, %s184
      %s204 = sphi 0, %s206
      %s207 = sphi 0, %s204
      %s208 = sphi 0, %s207
      %s224 = sphi 0, %s208
    $region4: #{phase1.22} parent=1 // loop_header_branch
      %19 = sbr.rel (%p17) target = $region8
    $region5: #{phase1.22} parent=1 // loop_body
      %s21 = ssub.s32 %s16, 1
      %s22 = ssub.s32 %s16, 2
      %s23 = sadd.s32 %s16, 1
      %s24 = ssub.s32 %s16, %s23
      %p25 = scmp.eq.s32.totalorder %s24, 0
      %s27 = sadd.s32 %s26, 1
      %s28 = scalar_select %p25, %s26, %s27
      %p31 = pneg %p25
      %p32 = scmp.eq.s32.totalorder %s16, 1
      %p33 = por %p31, %p32
      %p34 = scmp.ne.s32.totalorder %s26, %s29
      %p35 = scmp.eq.s32.totalorder %s16, 0
      %p36 = por %p34, %p35
      %p37 = scmp.ne.s32.totalorder %s26, %s29
      %p38 = scmp.eq.s32.totalorder %s21, 1
      %p39 = por %p37, %p38
      %p40 = scmp.ne.s32.totalorder %s29, %s30
      %p41 = scmp.eq.s32.totalorder %s21, 0
      %p42 = por %p40, %p41
      %p43 = scmp.ne.s32.totalorder %s29, %s30
      %p44 = scmp.eq.s32.totalorder %s22, 1
      %p45 = por %p43, %p44
      %p47 = scmp.ne.s32.totalorder %s30, %s46
      %p48 = scmp.eq.s32.totalorder %s22, 0
      %p49 = por %p47, %p48
      %s50 = ssub.s32 %s16, %s23
      %p51 = scmp.eq.s32.totalorder %s50, 0
      %s53 = sadd.s32 %s52, 1
      %s54 = scalar_select %p51, %s52, %s53
      %p57 = pneg %p51
      %p58 = scmp.eq.s32.totalorder %s16, 1
      %p59 = por %p57, %p58
      %p60 = scmp.ne.s32.totalorder %s52, %s55
      %p61 = scmp.eq.s32.totalorder %s16, 0
      %p62 = por %p60, %p61
      %p63 = scmp.ne.s32.totalorder %s52, %s55
      %p64 = scmp.eq.s32.totalorder %s21, 1
      %p65 = por %p63, %p64
      %p66 = scmp.ne.s32.totalorder %s55, %s56
      %p67 = scmp.eq.s32.totalorder %s21, 0
      %p68 = por %p66, %p67
      %p69 = scmp.ne.s32.totalorder %s55, %s56
      %p70 = scmp.eq.s32.totalorder %s22, 1
      %p71 = por %p69, %p70
      %p73 = scmp.ne.s32.totalorder %s56, %s72
      %p74 = scmp.eq.s32.totalorder %s22, 0
      %p75 = por %p73, %p74
      %s77 = sadd.s32 %s76, 1
      %p80 = scmp.eq.s32.totalorder %s16, 1
      %p81 = scmp.ne.s32.totalorder %s76, %s78
      %p82 = scmp.eq.s32.totalorder %s16, 0
      %p83 = por %p81, %p82
      %p84 = scmp.ne.s32.totalorder %s76, %s78
      %p85 = scmp.eq.s32.totalorder %s21, 1
      %p86 = por %p84, %p85
      %p87 = scmp.ne.s32.totalorder %s78, %s79
      %p88 = scmp.eq.s32.totalorder %s21, 0
      %p89 = por %p87, %p88
      %p90 = scmp.ne.s32.totalorder %s78, %s79
      %p91 = scmp.eq.s32.totalorder %s22, 1
      %p92 = por %p90, %p91
      %p94 = scmp.ne.s32.totalorder %s79, %s93
      %p95 = scmp.eq.s32.totalorder %s22, 0
      %p96 = por %p94, %p95
      %s98 = sadd.s32 %s97, 1
      %p101 = scmp.eq.s32.totalorder %s16, 1
      %p102 = scmp.ne.s32.totalorder %s97, %s99
      %p103 = scmp.eq.s32.totalorder %s16, 0
      %p104 = por %p102, %p103
      %p105 = scmp.ne.s32.totalorder %s97, %s99
      %p106 = scmp.eq.s32.totalorder %s21, 1
      %p107 = por %p105, %p106
      %p108 = scmp.ne.s32.totalorder %s99, %s100
      %p109 = scmp.eq.s32.totalorder %s21, 0
      %p110 = por %p108, %p109
      %p111 = scmp.ne.s32.totalorder %s99, %s100
      %p112 = scmp.eq.s32.totalorder %s22, 1
      %p113 = por %p111, %p112
      %p115 = scmp.ne.s32.totalorder %s100, %s114
      %p116 = scmp.eq.s32.totalorder %s22, 0
      %p117 = por %p115, %p116
      %s119 = sadd.s32 %s118, 1
      %p122 = scmp.eq.s32.totalorder %s16, 1
      %p123 = scmp.ne.s32.totalorder %s118, %s120
      %p124 = scmp.eq.s32.totalorder %s16, 0
      %p125 = por %p123, %p124
      %p126 = scmp.ne.s32.totalorder %s118, %s120
      %p127 = scmp.eq.s32.totalorder %s21, 1
      %p128 = por %p126, %p127
      %p129 = scmp.ne.s32.totalorder %s120, %s121
      %p130 = scmp.eq.s32.totalorder %s21, 0
      %p131 = por %p129, %p130
      %p132 = scmp.ne.s32.totalorder %s120, %s121
      %p133 = scmp.eq.s32.totalorder %s22, 1
      %p134 = por %p132, %p133
      %p136 = scmp.ne.s32.totalorder %s121, %s135
      %p137 = scmp.eq.s32.totalorder %s22, 0
      %p138 = por %p136, %p137
      %s140 = sadd.s32 %s139, 1
      %p143 = scmp.eq.s32.totalorder %s16, 1
      %p144 = scmp.ne.s32.totalorder %s139, %s141
      %p145 = scmp.eq.s32.totalorder %s16, 0
      %p146 = por %p144, %p145
      %p147 = scmp.ne.s32.totalorder %s139, %s141
      %p148 = scmp.eq.s32.totalorder %s21, 1
      %p149 = por %p147, %p148
      %p150 = scmp.ne.s32.totalorder %s141, %s142
      %p151 = scmp.eq.s32.totalorder %s21, 0
      %p152 = por %p150, %p151
      %p153 = scmp.ne.s32.totalorder %s141, %s142
      %p154 = scmp.eq.s32.totalorder %s22, 1
      %p155 = por %p153, %p154
      %p157 = scmp.ne.s32.totalorder %s142, %s156
      %p158 = scmp.eq.s32.totalorder %s22, 0
      %p159 = por %p157, %p158
      %s161 = sadd.s32 %s160, 1
      %p164 = scmp.eq.s32.totalorder %s16, 1
      %p165 = scmp.ne.s32.totalorder %s160, %s162
      %p166 = scmp.eq.s32.totalorder %s16, 0
      %p167 = por %p165, %p166
      %p168 = scmp.ne.s32.totalorder %s160, %s162
      %p169 = scmp.eq.s32.totalorder %s21, 1
      %p170 = por %p168, %p169
      %p171 = scmp.ne.s32.totalorder %s162, %s163
      %p172 = scmp.eq.s32.totalorder %s21, 0
      %p173 = por %p171, %p172
      %p174 = scmp.ne.s32.totalorder %s162, %s163
      %p175 = scmp.eq.s32.totalorder %s22, 1
      %p176 = por %p174, %p175
      %p178 = scmp.ne.s32.totalorder %s163, %s177
      %p179 = scmp.eq.s32.totalorder %s22, 0
      %p180 = por %p178, %p179
      %s182 = sadd.s32 %s181, 1
      %p185 = scmp.eq.s32.totalorder %s16, 1
      %p186 = scmp.ne.s32.totalorder %s181, %s183
      %p187 = scmp.eq.s32.totalorder %s16, 0
      %p188 = por %p186, %p187
      %p189 = scmp.ne.s32.totalorder %s181, %s183
      %p190 = scmp.eq.s32.totalorder %s21, 1
      %p191 = por %p189, %p190
      %p192 = scmp.ne.s32.totalorder %s183, %s184
      %p193 = scmp.eq.s32.totalorder %s21, 0
      %p194 = por %p192, %p193
      %p195 = scmp.ne.s32.totalorder %s183, %s184
      %p196 = scmp.eq.s32.totalorder %s22, 1
      %p197 = por %p195, %p196
      %p199 = scmp.ne.s32.totalorder %s184, %s198
      %p200 = scmp.eq.s32.totalorder %s22, 0
      %p201 = por %p199, %p200
      %s202 = ssub.s32 %s16, %s23
      %p203 = scmp.eq.s32.totalorder %s202, 0
      %s205 = sadd.s32 %s204, 1
      %s206 = scalar_select %p203, %s204, %s205
      %p209 = pneg %p203
      %p210 = scmp.eq.s32.totalorder %s16, 1
      %p211 = por %p209, %p210
      %p212 = scmp.ne.s32.totalorder %s204, %s207
      %p213 = scmp.eq.s32.totalorder %s16, 0
      %p214 = por %p212, %p213
      %p215 = scmp.ne.s32.totalorder %s204, %s207
      %p216 = scmp.eq.s32.totalorder %s21, 1
      %p217 = por %p215, %p216
      %p218 = scmp.ne.s32.totalorder %s207, %s208
      %p219 = scmp.eq.s32.totalorder %s21, 0
      %p220 = por %p218, %p219
      %p221 = scmp.ne.s32.totalorder %s207, %s208
      %p222 = scmp.eq.s32.totalorder %s22, 1
      %p223 = por %p221, %p222
      %p225 = scmp.ne.s32.totalorder %s208, %s224
      %p226 = scmp.eq.s32.totalorder %s22, 0
      %p227 = por %p225, %p226
      %p228 = scmp.le.s32.totalorder 1, %s16
      %p229 = scmp.lt.s32.totalorder %s16, 3
      %p230 = pnand %p228, %p229
      %p231 = pneg %p230
      // Predicated region
      $region9: #{phase1.22} parent=5 // pred_check
        _
      $region10: #{phase1.22} parent=5 // pred_check_branch
        %233 = sbr.rel (%p230) target = $region12
      $region11: #{phase1.22} parent=5 // pred_region
        %s234 = ssub.s32 %s16, 1
        // Predicated region
        $region13: #{phase1.22} parent=11 // pred_check
          %p235 = pneg %p89
        $region14: #{phase1.22} parent=11 // pred_check_branch
          %237 = sbr.rel (%p235) target = $region16
        $region15: #{phase1.22} parent=11 // pred_region
          _
        $region16: #{phase1.22} parent=11 // pred_fallthru
          _
        // Predicated region
        $region17: #{phase1.22} parent=11 // pred_check
          %p238 = pneg %p110
        $region18: #{phase1.22} parent=11 // pred_check_branch
          %240 = sbr.rel (%p238) target = $region20
        $region19: #{phase1.22} parent=11 // pred_region
          %s242 = ssub.s32 512, 512
          %243 = vsyncadd [#allocation3], %s242
          %s244 = sshll.u32 [#allocation2], 4
          %s245 = int_to_ptr.vmem [resolvable:$true] %s244
          %250 = dma.hbm_to_vmem [thread:$0]  %s3, 512, %s245, [#allocation3], 128, 128, 8
        $region20: #{phase1.22} parent=11 // pred_fallthru
          _
        // Predicated region
        $region21: #{phase1.22} parent=11 // pred_check
          %p251 = pneg %p131
        $region22: #{phase1.22} parent=11 // pred_check_branch
          %253 = sbr.rel (%p251) target = $region24
        $region23: #{phase1.22} parent=11 // pred_region
          %s255 = ssub.s32 384, 384
          %256 = vsyncadd [#allocation5], %s255
          %s257 = sshll.u32 [#allocation4], 4
          %s258 = int_to_ptr.vmem [resolvable:$true] %s257
          %263 = dma.hbm_to_vmem [thread:$0]  %s4, 384, %s258, [#allocation5], 64, 64, 4
        $region24: #{phase1.22} parent=11 // pred_fallthru
          _
        // Predicated region
        $region25: #{phase1.22} parent=11 // pred_check
          %p264 = pneg %p152
        $region26: #{phase1.22} parent=11 // pred_check_branch
          %266 = sbr.rel (%p264) target = $region28
        $region27: #{phase1.22} parent=11 // pred_region
          %s268 = ssub.s32 256, 256
          %269 = vsyncadd [#allocation5], %s268
          %s270 = sshll.u32 [#allocation6], 4
          %s271 = int_to_ptr.vmem [resolvable:$true] %s270
          %276 = dma.hbm_to_vmem [thread:$0]  %s5, 256, %s271, [#allocation5], 128, 128, 8
        $region28: #{phase1.22} parent=11 // pred_fallthru
          _
        // Predicated region
        $region29: #{phase1.22} parent=11 // pred_check
          %p277 = pneg %p173
        $region30: #{phase1.22} parent=11 // pred_check_branch
          %279 = sbr.rel (%p277) target = $region32
        $region31: #{phase1.22} parent=11 // pred_region
          _
        $region32: #{phase1.22} parent=11 // pred_fallthru
          _
        // Predicated region
        $region33: #{phase1.22} parent=11 // pred_check
          %p280 = pneg %p194
        $region34: #{phase1.22} parent=11 // pred_check_branch
          %282 = sbr.rel (%p280) target = $region36
        $region35: #{phase1.22} parent=11 // pred_region
          _
        $region36: #{phase1.22} parent=11 // pred_fallthru
          _
      $region12: #{phase1.22} parent=5 // pred_fallthru
        _
      %p283 = scmp.lt.s32.totalorder %s16, 2
      // Predicated region
      $region37: #{phase1.22} parent=5 // pred_check
        %p284 = pneg %p283
      $region38: #{phase1.22} parent=5 // pred_check_branch
        %286 = sbr.rel (%p284) target = $region40
      $region39: #{phase1.22} parent=5 // pred_region
        // Predicated region
        $region41: #{phase1.22} parent=39 // pred_check
          %p287 = pneg %p36
        $region42: #{phase1.22} parent=39 // pred_check_branch
          %289 = sbr.rel (%p287) target = $region44
        $region43: #{phase1.22} parent=39 // pred_region
          %p290 = scmp.lt.s32.totalorder %s16, 1
          %s291 = scalar_select %p290, %s16, 1
          %s292 = smul.addr %s291, 2
          %s293 = smul.addr %s292, 8
          %s294 = scalar_lea.vmem %s0, %s293
        $region44: #{phase1.22} parent=39 // pred_fallthru
          _
        // Predicated region
        $region45: #{phase1.22} parent=39 // pred_check
          %p295 = pneg %p62
        $region46: #{phase1.22} parent=39 // pred_check_branch
          %297 = sbr.rel (%p295) target = $region48
        $region47: #{phase1.22} parent=39 // pred_region
          %p298 = scmp.lt.s32.totalorder %s16, 1
          %s299 = scalar_select %p298, %s16, 1
          %s300 = scalar_lea.vmem %s1, %s299
        $region48: #{phase1.22} parent=39 // pred_fallthru
          _
      $region40: #{phase1.22} parent=5 // pred_fallthru
        _
      %p301 = scmp.le.s32.totalorder 1, %s16
      %p302 = scmp.lt.s32.totalorder %s16, 3
      %p303 = pnand %p301, %p302
      %p304 = pneg %p303
      // Predicated region
      $region49: #{phase1.22} parent=5 // pred_check
        _
      $region50: #{phase1.22} parent=5 // pred_check_branch
        %306 = sbr.rel (%p303) target = $region52
      $region51: #{phase1.22} parent=5 // pred_region
        %s307 = ssub.s32 %s16, 1
        // Predicated region
        $region53: #{phase1.22} parent=51 // pred_check
          %p308 = pneg %p110
        $region54: #{phase1.22} parent=51 // pred_check_branch
          %310 = sbr.rel (%p308) target = $region56
        $region55: #{phase1.22} parent=51 // pred_region
          %311 = dma.done [#allocation3], 512
        $region56: #{phase1.22} parent=51 // pred_fallthru
          _
        // Predicated region
        $region57: #{phase1.22} parent=51 // pred_check
          %p312 = pneg %p131
        $region58: #{phase1.22} parent=51 // pred_check_branch
          %314 = sbr.rel (%p312) target = $region60
        $region59: #{phase1.22} parent=51 // pred_region
          %315 = dma.done [#allocation5], 384
        $region60: #{phase1.22} parent=51 // pred_fallthru
          _
        // Predicated region
        $region61: #{phase1.22} parent=51 // pred_check
          %p316 = pneg %p152
        $region62: #{phase1.22} parent=51 // pred_check_branch
          %318 = sbr.rel (%p316) target = $region64
        $region63: #{phase1.22} parent=51 // pred_region
          %319 = dma.done [#allocation5], 256
        $region64: #{phase1.22} parent=51 // pred_fallthru
          _
        %p320 = scmp.lt.s32.totalorder %s21, 1
        %s321 = scalar_select %p320, %s21, 1
        %s322 = smul.addr %s321, 2
        %s323 = smul.addr %s322, 8
        %s324 = scalar_lea.vmem %s0, %s323
        %p325 = pneg %p42
        %p326 = pneg %p39
        %p327 = scmp.lt.s32.totalorder %s21, 1
        %s328 = scalar_select %p327, %s21, 1
        %s329 = scalar_lea.vmem %s1, %s328
        %p330 = pneg %p68
        %p331 = pneg %p65
        %p332 = pneg %p89
        %p333 = pneg %p86
        %p334 = pneg %p110
        %p335 = pneg %p107
        %p336 = pneg %p131
        %p337 = pneg %p128
        %p338 = pneg %p152
        %p339 = pneg %p149
        %p340 = pneg %p173
        %p341 = pneg %p170
        %p342 = pneg %p194
        %p343 = pneg %p191
        %p344 = pneg %p220
        %p345 = pneg %p217
        %p346 = scmp.lt.s32.totalorder %s21, 1
        %s347 = scalar_select %p346, %s21, 1
        %s348 = smul.addr %s347, 2
        %s349 = smul.addr %s348, 8
        %s350 = scalar_lea.vmem %s8, %s349
        %p351 = scmp.lt.s32.totalorder %s21, 1
        %s352 = scalar_select %p351, %s21, 1
        %s353 = smul.addr %s352, 2
        %s354 = smul.addr %s353, 8
        %s355 = scalar_lea.vmem %s0, %s354
        %p356 = scmp.lt.s32.totalorder %s21, 1
        %s357 = scalar_select %p356, %s21, 1
        %s358 = scalar_lea.vmem %s1, %s357
        %p359 = scmp.lt.s32.totalorder %s21, 1
        %s360 = scalar_select %p359, %s21, 1
        %s361 = smul.addr %s360, 2
        %s362 = smul.addr %s361, 8
        %s363 = scalar_lea.vmem %s8, %s362
        %v365 = vld [vmem:[%s355] sm:$0xff]
        %v366 = vld [vmem:[%s355 + $0x8] sm:$0xff]
        %v367 = vld [vmem:[%s358] sm:$0x1]
        %v369 = vlaneseq
        %v370 = vshrl.u32 %v369, 7
        %v371 = vsub.s32 0, %v370
        %v372 = vrot.slane %v367, %v371
        %v374 = vmul.f32 %v365, %v372
        %v375 = vmul.f32 %v366, %v372
        %v376 = vpack.c.bf16 %v375, %v374
        %378 = vrot.lane.b32.xlu0 %v376, 1
        %v379 = vpop.permute.xlu0 %378
        %vm380 = vcmask 7168
        %v383 = vsel %vm380, 0, %v379
        %v385 = vsel %vm380, %v379, 0
        %v386 = vld [vmem:[%s2] sm:$0xf]
        %v387 = vld [vmem:[%s2 + $0x4] sm:$0xf]
        %v388 = vld [vmem:[%s2 + $0x8] sm:$0xf]
        %v389 = vld [vmem:[%s2 + $0xc] sm:$0xf]
        %s390 = scalar_lea.vmem %s2, 16
        %v391 = vld [vmem:[%s390] sm:$0xf]
        %v392 = vld [vmem:[%s390 + $0x4] sm:$0xf]
        %v393 = vld [vmem:[%s390 + $0x8] sm:$0xf]
        %v394 = vld [vmem:[%s390 + $0xc] sm:$0xf]
        %v399 = vunpack.c.l.b16 %v391
        %v400 = vunpack.c.l.b16 %v392
        %v401 = vunpack.c.l.b16 %v393
        %v402 = vunpack.c.l.b16 %v394
        %v403 = vpack.c.b16 %v400, %v399
        %v404 = vpack.c.b16 %v402, %v401
        %407 = vrot.lane.b32.xlu0 %v383, 127
        %v408 = vpop.permute.xlu0 %407
        %409 = vrot.lane.b32.xlu0 %v385, 127
        %v410 = vpop.permute.xlu0 %409
        %vm411 = vcmask 1039360
        %v412 = vsel %vm411, %v408, %v410
        %vm414 = vcmask 130048
        %v416 = vsel %vm414, %v403, 0
        %v419 = vsel %vm414, %v404, 0
        %421 = vmatprep.subr.bf16.mxu0 0
        %422 = vmatpush1.bf16.msra.mxu0 0
        %423 = vmatprep.subr.bf16.mxu0 0
        %424 = vmatpush1.bf16.msra.mxu0 0
        %425 = vmatprep.subr.bf16.mxu0 0
        %426 = vmatpush1.bf16.msra.mxu0 0
        %427 = vmatprep.subr.bf16.mxu0 0
        %428 = vmatpush1.bf16.msra.mxu0 0
        %429 = vmatprep.subr.bf16.mxu0 0
        %430 = vmatpush1.bf16.msra.mxu0 0
        %431 = vmatprep.subr.bf16.mxu0 0
        %432 = vmatpush1.bf16.msra.mxu0 0
        %433 = vmatprep.subr.bf16.mxu0 0
        %434 = vmatpush1.bf16.msra.mxu0 0
        %435 = vmatprep.subr.bf16.mxu0 0
        %436 = vmatpush1.bf16.msra.mxu0 %v412
        %437 = vmatprep.subr.bf16.mxu0 0
        %438 = vmatpush2.bf16.msra.mxu0 0
        %439 = vmatprep.subr.bf16.mxu0 0
        %440 = vmatpush2.bf16.msra.mxu0 0
        %441 = vmatprep.subr.bf16.mxu0 0
        %442 = vmatpush2.bf16.msra.mxu0 0
        %443 = vmatprep.subr.bf16.mxu0 0
        %444 = vmatpush2.bf16.msra.mxu0 0
        %445 = vmatprep.subr.bf16.mxu0 0
        %446 = vmatpush2.bf16.msra.mxu0 0
        %447 = vmatprep.subr.bf16.mxu0 0
        %448 = vmatpush2.bf16.msra.mxu0 0
        %449 = vmatprep.subr.bf16.mxu0 0
        %450 = vmatpush2.bf16.msra.mxu0 0
        %451 = vmatprep.subr.bf16.mxu0 0
        %452 = vmatpush2.bf16.msra.mxu0 0
        %453 = vmatprep.mubr.bf16.mxu0 0
        %454 = vmatmul.mubr.bf16.gmra.mxu0 %v416
        %v455 = vpop.f32.mrf.mxu0
        %v456 = vadd.f32 0.0, %v455
        %v457 = vpop.f32.mrf.mxu0
        %v458 = vpop.f32.mrf.mxu0
        %v459 = vadd.f32 0.0, %v458
        %v460 = vpop.f32.mrf.mxu0
        %461 = vmatprep.mubr.bf16.mxu0 0
        %462 = vmatmul.mubr.bf16.gmra.mxu0 %v419
        %v463 = vpop.f32.mrf.mxu0
        %v464 = vadd.f32 0.0, %v463
        %v465 = vpop.f32.mrf.mxu0
        %v466 = vpop.f32.mrf.mxu0
        %v467 = vadd.f32 0.0, %v466
        %v468 = vpop.f32.mrf.mxu0
        %469 = vdwg.mxu0
        %v474 = vunpack.c.l.b16 %v386
        %v475 = vunpack.c.l.b16 %v387
        %v476 = vunpack.c.l.b16 %v388
        %v477 = vunpack.c.l.b16 %v389
        %v478 = vpack.c.b16 %v475, %v474
        %v479 = vpack.c.b16 %v477, %v476
        %v481 = vsel %vm414, %v478, 0
        %v484 = vsel %vm414, %v479, 0
        %486 = vmatprep.subr.bf16.mxu0 0
        %487 = vmatpush1.bf16.msra.mxu0 0
        %488 = vmatprep.subr.bf16.mxu0 0
        %489 = vmatpush1.bf16.msra.mxu0 0
        %490 = vmatprep.subr.bf16.mxu0 0
        %491 = vmatpush1.bf16.msra.mxu0 0
        %492 = vmatprep.subr.bf16.mxu0 0
        %493 = vmatpush1.bf16.msra.mxu0 0
        %494 = vmatprep.subr.bf16.mxu0 0
        %495 = vmatpush1.bf16.msra.mxu0 0
        %496 = vmatprep.subr.bf16.mxu0 0
        %497 = vmatpush1.bf16.msra.mxu0 0
        %498 = vmatprep.subr.bf16.mxu0 0
        %499 = vmatpush1.bf16.msra.mxu0 0
        %500 = vmatprep.subr.bf16.mxu0 0
        %501 = vmatpush1.bf16.msra.mxu0 %v383
        %502 = vmatprep.subr.bf16.mxu0 0
        %503 = vmatpush2.bf16.msra.mxu0 0
        %504 = vmatprep.subr.bf16.mxu0 0
        %505 = vmatpush2.bf16.msra.mxu0 0
        %506 = vmatprep.subr.bf16.mxu0 0
        %507 = vmatpush2.bf16.msra.mxu0 0
        %508 = vmatprep.subr.bf16.mxu0 0
        %509 = vmatpush2.bf16.msra.mxu0 0
        %510 = vmatprep.subr.bf16.mxu0 0
        %511 = vmatpush2.bf16.msra.mxu0 0
        %512 = vmatprep.subr.bf16.mxu0 0
        %513 = vmatpush2.bf16.msra.mxu0 0
        %514 = vmatprep.subr.bf16.mxu0 0
        %515 = vmatpush2.bf16.msra.mxu0 0
        %516 = vmatprep.subr.bf16.mxu0 0
        %517 = vmatpush2.bf16.msra.mxu0 0
        %518 = vmatprep.mubr.bf16.mxu0 0
        %519 = vmatmul.mubr.bf16.gmra.mxu0 %v481
        %v520 = vpop.f32.mrf.mxu0
        %v521 = vadd.f32 %v456, %v520
        %v522 = vpop.f32.mrf.mxu0
        %v523 = vpop.f32.mrf.mxu0
        %v524 = vadd.f32 %v459, %v523
        %v525 = vpop.f32.mrf.mxu0
        %526 = vmatprep.mubr.bf16.mxu0 0
        %527 = vmatmul.mubr.bf16.gmra.mxu0 %v484
        %v528 = vpop.f32.mrf.mxu0
        %v529 = vadd.f32 %v464, %v528
        %v530 = vpop.f32.mrf.mxu0
        %v531 = vpop.f32.mrf.mxu0
        %v532 = vadd.f32 %v467, %v531
        %v533 = vpop.f32.mrf.mxu0
        %534 = vdwg.mxu0
        %s535 = scalar_lea.vmem %s2, 32
        %v536 = vld [vmem:[%s535] sm:$0xf]
        %v537 = vld [vmem:[%s535 + $0x4] sm:$0xf]
        %v538 = vld [vmem:[%s535 + $0x8] sm:$0xf]
        %v539 = vld [vmem:[%s535 + $0xc] sm:$0xf]
        %v544 = vunpack.c.l.b16 %v536
        %v545 = vunpack.c.l.b16 %v537
        %v546 = vunpack.c.l.b16 %v538
        %v547 = vunpack.c.l.b16 %v539
        %v548 = vpack.c.b16 %v545, %v544
        %v549 = vpack.c.b16 %v547, %v546
        %550 = vrot.lane.b32.xlu0 %v383, 126
        %v551 = vpop.permute.xlu0 %550
        %552 = vrot.lane.b32.xlu0 %v385, 126
        %v553 = vpop.permute.xlu0 %552
        %vm554 = vcmask 1031168
        %v555 = vsel %vm554, %v551, %v553
        %v558 = vsel %vm414, %v548, 0
        %v561 = vsel %vm414, %v549, 0
        %563 = vmatprep.subr.bf16.mxu0 0
        %564 = vmatpush1.bf16.msra.mxu0 0
        %565 = vmatprep.subr.bf16.mxu0 0
        %566 = vmatpush1.bf16.msra.mxu0 0
        %567 = vmatprep.subr.bf16.mxu0 0
        %568 = vmatpush1.bf16.msra.mxu0 0
        %569 = vmatprep.subr.bf16.mxu0 0
        %570 = vmatpush1.bf16.msra.mxu0 0
        %571 = vmatprep.subr.bf16.mxu0 0
        %572 = vmatpush1.bf16.msra.mxu0 0
        %573 = vmatprep.subr.bf16.mxu0 0
        %574 = vmatpush1.bf16.msra.mxu0 0
        %575 = vmatprep.subr.bf16.mxu0 0
        %576 = vmatpush1.bf16.msra.mxu0 0
        %577 = vmatprep.subr.bf16.mxu0 0
        %578 = vmatpush1.bf16.msra.mxu0 %v555
        %579 = vmatprep.subr.bf16.mxu0 0
        %580 = vmatpush2.bf16.msra.mxu0 0
        %581 = vmatprep.subr.bf16.mxu0 0
        %582 = vmatpush2.bf16.msra.mxu0 0
        %583 = vmatprep.subr.bf16.mxu0 0
        %584 = vmatpush2.bf16.msra.mxu0 0
        %585 = vmatprep.subr.bf16.mxu0 0
        %586 = vmatpush2.bf16.msra.mxu0 0
        %587 = vmatprep.subr.bf16.mxu0 0
        %588 = vmatpush2.bf16.msra.mxu0 0
        %589 = vmatprep.subr.bf16.mxu0 0
        %590 = vmatpush2.bf16.msra.mxu0 0
        %591 = vmatprep.subr.bf16.mxu0 0
        %592 = vmatpush2.bf16.msra.mxu0 0
        %593 = vmatprep.subr.bf16.mxu0 0
        %594 = vmatpush2.bf16.msra.mxu0 0
        %595 = vmatprep.mubr.bf16.mxu0 0
        %596 = vmatmul.mubr.bf16.gmra.mxu0 %v558
        %v597 = vpop.f32.mrf.mxu0
        %v598 = vadd.f32 0.0, %v597
        %v599 = vpop.f32.mrf.mxu0
        %v600 = vpop.f32.mrf.mxu0
        %v601 = vadd.f32 0.0, %v600
        %v602 = vpop.f32.mrf.mxu0
        %603 = vmatprep.mubr.bf16.mxu0 0
        %604 = vmatmul.mubr.bf16.gmra.mxu0 %v561
        %v605 = vpop.f32.mrf.mxu0
        %v606 = vadd.f32 0.0, %v605
        %v607 = vpop.f32.mrf.mxu0
        %v608 = vpop.f32.mrf.mxu0
        %v609 = vadd.f32 0.0, %v608
        %v610 = vpop.f32.mrf.mxu0
        %611 = vdwg.mxu0
        %v612 = vadd.f32 %v521, %v598
        %v613 = vadd.f32 %v524, %v601
        %v614 = vadd.f32 %v529, %v606
        %v615 = vadd.f32 %v532, %v609
        %v616 = vld [vmem:[#allocation2] sm:$0xff]
        %v617 = vld [vmem:[#allocation2 + $0x8] sm:$0xff]
        %v618 = vld [vmem:[#allocation2 + $0x10] sm:$0xff]
        %v619 = vld [vmem:[#allocation2 + $0x18] sm:$0xff]
        %621 = vset.pattern.permute.xlu0 0
        %622 = vperm.xlu0 %621, %v616
        %v623 = vpop.permute.xlu0 %622
        %626 = vset.pattern.permute.xlu0 0
        %627 = vperm.xlu0 %626, %v617
        %v628 = vpop.permute.xlu0 %627
        %631 = vset.pattern.permute.xlu0 0
        %632 = vperm.xlu0 %631, %v618
        %v633 = vpop.permute.xlu0 %632
        %636 = vset.pattern.permute.xlu0 0
        %637 = vperm.xlu0 %636, %v619
        %v638 = vpop.permute.xlu0 %637
        %v640 = vadd.f32 %v612, %v623
        %v641 = vadd.f32 %v613, %v628
        %v642 = vadd.f32 %v614, %v633
        %v643 = vadd.f32 %v615, %v638
        %v644 = vmax.f32 %v640, 0.0
        %v645 = vmax.f32 %v641, 0.0
        %v646 = vmax.f32 %v642, 0.0
        %v647 = vmax.f32 %v643, 0.0
        %v648 = vmul.f32 %v644, %v372
        %v649 = vmul.f32 %v645, %v372
        %v650 = vmul.f32 %v646, %v372
        %v651 = vmul.f32 %v647, %v372
        %v652 = vpack.c.bf16 %v649, %v648
        %v653 = vpack.c.bf16 %v651, %v650
        %656 = vrot.lane.b32.xlu0 %v652, 1
        %v657 = vpop.permute.xlu0 %656
        %658 = vrot.lane.b32.xlu0 %v653, 1
        %v659 = vpop.permute.xlu0 %658
        %v661 = vsel %vm380, 0, %v657
        %v664 = vsel %vm380, 0, %v659
        %v666 = vsel %vm380, %v657, 0
        %v667 = vsel %vm380, %v659, 0
        %v668 = vld [vmem:[#allocation4] sm:$0xf]
        %v669 = vld [vmem:[#allocation4 + $0x4] sm:$0xf]
        %s670 = scalar_lea.vmem [#allocation4], 8
        %v671 = vld [vmem:[%s670] sm:$0xf]
        %v672 = vld [vmem:[%s670 + $0x4] sm:$0xf]
        %v675 = vunpack.c.l.b16 %v671
        %v676 = vunpack.c.l.b16 %v672
        %v677 = vpack.c.b16 %v676, %v675
        %682 = vrot.lane.b32.xlu0 %v661, 127
        %v683 = vpop.permute.xlu0 %682
        %684 = vrot.lane.b32.xlu0 %v666, 127
        %v685 = vpop.permute.xlu0 %684
        %686 = vrot.lane.b32.xlu0 %v664, 127
        %v687 = vpop.permute.xlu0 %686
        %688 = vrot.lane.b32.xlu0 %v667, 127
        %v689 = vpop.permute.xlu0 %688
        %v690 = vsel %vm411, %v683, %v685
        %v691 = vsel %vm411, %v687, %v689
        %vm694 = vcmask 261120
        %v696 = vsel %vm694, %v677, 0
        %698 = vmatprep.subr.bf16.mxu0 0
        %699 = vmatpush1.bf16.msra.mxu0 0
        %700 = vmatprep.subr.bf16.mxu0 0
        %701 = vmatpush1.bf16.msra.mxu0 0
        %702 = vmatprep.subr.bf16.mxu0 0
        %703 = vmatpush1.bf16.msra.mxu0 0
        %704 = vmatprep.subr.bf16.mxu0 0
        %705 = vmatpush1.bf16.msra.mxu0 0
        %706 = vmatprep.subr.bf16.mxu0 0
        %707 = vmatpush1.bf16.msra.mxu0 0
        %708 = vmatprep.subr.bf16.mxu0 0
        %709 = vmatpush1.bf16.msra.mxu0 0
        %710 = vmatprep.subr.bf16.mxu0 0
        %711 = vmatpush1.bf16.msra.mxu0 %v691
        %712 = vmatprep.subr.bf16.mxu0 0
        %713 = vmatpush1.bf16.msra.mxu0 %v690
        %714 = vmatprep.subr.bf16.mxu0 0
        %715 = vmatpush2.bf16.msra.mxu0 0
        %716 = vmatprep.subr.bf16.mxu0 0
        %717 = vmatpush2.bf16.msra.mxu0 0
        %718 = vmatprep.subr.bf16.mxu0 0
        %719 = vmatpush2.bf16.msra.mxu0 0
        %720 = vmatprep.subr.bf16.mxu0 0
        %721 = vmatpush2.bf16.msra.mxu0 0
        %722 = vmatprep.subr.bf16.mxu0 0
        %723 = vmatpush2.bf16.msra.mxu0 0
        %724 = vmatprep.subr.bf16.mxu0 0
        %725 = vmatpush2.bf16.msra.mxu0 0
        %726 = vmatprep.subr.bf16.mxu0 0
        %727 = vmatpush2.bf16.msra.mxu0 0
        %728 = vmatprep.subr.bf16.mxu0 0
        %729 = vmatpush2.bf16.msra.mxu0 0
        %730 = vmatprep.mubr.bf16.mxu0 0
        %731 = vmatmul.mubr.bf16.gmra.mxu0 %v696
        %v732 = vpop.f32.mrf.mxu0
        %v733 = vadd.f32 0.0, %v732
        %v734 = vpop.f32.mrf.mxu0
        %v735 = vpop.f32.mrf.mxu0
        %v736 = vadd.f32 0.0, %v735
        %v737 = vpop.f32.mrf.mxu0
        %738 = vdwg.mxu0
        %v741 = vunpack.c.l.b16 %v668
        %v742 = vunpack.c.l.b16 %v669
        %v743 = vpack.c.b16 %v742, %v741
        %v745 = vsel %vm694, %v743, 0
        %747 = vmatprep.subr.bf16.mxu0 0
        %748 = vmatpush1.bf16.msra.mxu0 0
        %749 = vmatprep.subr.bf16.mxu0 0
        %750 = vmatpush1.bf16.msra.mxu0 0
        %751 = vmatprep.subr.bf16.mxu0 0
        %752 = vmatpush1.bf16.msra.mxu0 0
        %753 = vmatprep.subr.bf16.mxu0 0
        %754 = vmatpush1.bf16.msra.mxu0 0
        %755 = vmatprep.subr.bf16.mxu0 0
        %756 = vmatpush1.bf16.msra.mxu0 0
        %757 = vmatprep.subr.bf16.mxu0 0
        %758 = vmatpush1.bf16.msra.mxu0 0
        %759 = vmatprep.subr.bf16.mxu0 0
        %760 = vmatpush1.bf16.msra.mxu0 %v664
        %761 = vmatprep.subr.bf16.mxu0 0
        %762 = vmatpush1.bf16.msra.mxu0 %v661
        %763 = vmatprep.subr.bf16.mxu0 0
        %764 = vmatpush2.bf16.msra.mxu0 0
        %765 = vmatprep.subr.bf16.mxu0 0
        %766 = vmatpush2.bf16.msra.mxu0 0
        %767 = vmatprep.subr.bf16.mxu0 0
        %768 = vmatpush2.bf16.msra.mxu0 0
        %769 = vmatprep.subr.bf16.mxu0 0
        %770 = vmatpush2.bf16.msra.mxu0 0
        %771 = vmatprep.subr.bf16.mxu0 0
        %772 = vmatpush2.bf16.msra.mxu0 0
        %773 = vmatprep.subr.bf16.mxu0 0
        %774 = vmatpush2.bf16.msra.mxu0 0
        %775 = vmatprep.subr.bf16.mxu0 0
        %776 = vmatpush2.bf16.msra.mxu0 0
        %777 = vmatprep.subr.bf16.mxu0 0
        %778 = vmatpush2.bf16.msra.mxu0 0
        %779 = vmatprep.mubr.bf16.mxu0 0
        %780 = vmatmul.mubr.bf16.gmra.mxu0 %v745
        %v781 = vpop.f32.mrf.mxu0
        %v782 = vadd.f32 %v733, %v781
        %v783 = vpop.f32.mrf.mxu0
        %v784 = vpop.f32.mrf.mxu0
        %v785 = vadd.f32 %v736, %v784
        %v786 = vpop.f32.mrf.mxu0
        %787 = vdwg.mxu0
        %s788 = scalar_lea.vmem [#allocation4], 16
        %v789 = vld [vmem:[%s788] sm:$0xf]
        %v790 = vld [vmem:[%s788 + $0x4] sm:$0xf]
        %v793 = vunpack.c.l.b16 %v789
        %v794 = vunpack.c.l.b16 %v790
        %v795 = vpack.c.b16 %v794, %v793
        %796 = vrot.lane.b32.xlu0 %v661, 126
        %v797 = vpop.permute.xlu0 %796
        %798 = vrot.lane.b32.xlu0 %v666, 126
        %v799 = vpop.permute.xlu0 %798
        %800 = vrot.lane.b32.xlu0 %v664, 126
        %v801 = vpop.permute.xlu0 %800
        %802 = vrot.lane.b32.xlu0 %v667, 126
        %v803 = vpop.permute.xlu0 %802
        %v804 = vsel %vm554, %v797, %v799
        %v805 = vsel %vm554, %v801, %v803
        %v809 = vsel %vm694, %v795, 0
        %811 = vmatprep.subr.bf16.mxu0 0
        %812 = vmatpush1.bf16.msra.mxu0 0
        %813 = vmatprep.subr.bf16.mxu0 0
        %814 = vmatpush1.bf16.msra.mxu0 0
        %815 = vmatprep.subr.bf16.mxu0 0
        %816 = vmatpush1.bf16.msra.mxu0 0
        %817 = vmatprep.subr.bf16.mxu0 0
        %818 = vmatpush1.bf16.msra.mxu0 0
        %819 = vmatprep.subr.bf16.mxu0 0
        %820 = vmatpush1.bf16.msra.mxu0 0
        %821 = vmatprep.subr.bf16.mxu0 0
        %822 = vmatpush1.bf16.msra.mxu0 0
        %823 = vmatprep.subr.bf16.mxu0 0
        %824 = vmatpush1.bf16.msra.mxu0 %v805
        %825 = vmatprep.subr.bf16.mxu0 0
        %826 = vmatpush1.bf16.msra.mxu0 %v804
        %827 = vmatprep.subr.bf16.mxu0 0
        %828 = vmatpush2.bf16.msra.mxu0 0
        %829 = vmatprep.subr.bf16.mxu0 0
        %830 = vmatpush2.bf16.msra.mxu0 0
        %831 = vmatprep.subr.bf16.mxu0 0
        %832 = vmatpush2.bf16.msra.mxu0 0
        %833 = vmatprep.subr.bf16.mxu0 0
        %834 = vmatpush2.bf16.msra.mxu0 0
        %835 = vmatprep.subr.bf16.mxu0 0
        %836 = vmatpush2.bf16.msra.mxu0 0
        %837 = vmatprep.subr.bf16.mxu0 0
        %838 = vmatpush2.bf16.msra.mxu0 0
        %839 = vmatprep.subr.bf16.mxu0 0
        %840 = vmatpush2.bf16.msra.mxu0 0
        %841 = vmatprep.subr.bf16.mxu0 0
        %842 = vmatpush2.bf16.msra.mxu0 0
        %843 = vmatprep.mubr.bf16.mxu0 0
        %844 = vmatmul.mubr.bf16.gmra.mxu0 %v809
        %v845 = vpop.f32.mrf.mxu0
        %v846 = vadd.f32 0.0, %v845
        %v847 = vpop.f32.mrf.mxu0
        %v848 = vpop.f32.mrf.mxu0
        %v849 = vadd.f32 0.0, %v848
        %v850 = vpop.f32.mrf.mxu0
        %851 = vdwg.mxu0
        %v852 = vadd.f32 %v782, %v846
        %v853 = vadd.f32 %v785, %v849
        %v854 = vld [vmem:[#allocation6] sm:$0xff]
        %v855 = vld [vmem:[#allocation6 + $0x8] sm:$0xff]
        %857 = vset.pattern.permute.xlu0 0
        %858 = vperm.xlu0 %857, %v854
        %v859 = vpop.permute.xlu0 %858
        %862 = vset.pattern.permute.xlu0 0
        %863 = vperm.xlu0 %862, %v855
        %v864 = vpop.permute.xlu0 %863
        %v866 = vadd.f32 %v852, %v859
        %v867 = vadd.f32 %v853, %v864
        %v868 = vmul.f32 %v866, %v372
        %v869 = vmul.f32 %v867, %v372
        %v870 = vadd.f32 %v365, %v868
        %v871 = vadd.f32 %v366, %v869
        %v872 = vadd.f32 %v870, %v871
        %v873 = vrot.slane %v872, 4
        %v874 = vadd.f32 %v872, %v873
        %v875 = vrot.slane %v874, 2
        %v876 = vadd.f32 %v874, %v875
        %v877 = vrot.slane %v876, 1
        %v878 = vadd.f32 %v876, %v877
        %v879 = vrcp.pop 16.0
        %v880 = vmul.f32 %v878, %v879
        %v881 = vsub.f32 %v870, %v880
        %v882 = vsub.f32 %v871, %v880
        %v883 = vmul.f32 %v881, %v881
        %v884 = vmul.f32 %v882, %v882
        %v885 = vadd.f32 %v883, %v884
        %v886 = vrot.slane %v885, 4
        %v887 = vadd.f32 %v885, %v886
        %v888 = vrot.slane %v887, 2
        %v889 = vadd.f32 %v887, %v888
        %v890 = vrot.slane %v889, 1
        %v891 = vadd.f32 %v889, %v890
        %v892 = vmul.f32 %v891, %v879
        %v893 = vadd.f32 %v892, 1e-05
        %v894 = vrsqrt.pop %v893
        %v895 = vmul.f32 %v881, %v894
        %v896 = vmul.f32 %v882, %v894
        %v897 = vld [vmem:[%s6] sm:$0xff]
        %v898 = vld [vmem:[%s6 + $0x8] sm:$0xff]
        %900 = vset.pattern.permute.xlu0 0
        %901 = vperm.xlu0 %900, %v897
        %v902 = vpop.permute.xlu0 %901
        %905 = vset.pattern.permute.xlu0 0
        %906 = vperm.xlu0 %905, %v898
        %v907 = vpop.permute.xlu0 %906
        %v909 = vmul.f32 %v895, %v902
        %v910 = vmul.f32 %v896, %v907
        %v911 = vld [vmem:[%s7] sm:$0xff]
        %v912 = vld [vmem:[%s7 + $0x8] sm:$0xff]
        %914 = vset.pattern.permute.xlu0 0
        %915 = vperm.xlu0 %914, %v911
        %v916 = vpop.permute.xlu0 %915
        %919 = vset.pattern.permute.xlu0 0
        %920 = vperm.xlu0 %919, %v912
        %v921 = vpop.permute.xlu0 %920
        %v923 = vadd.f32 %v909, %v916
        %v924 = vadd.f32 %v910, %v921
        %925 = vst [vmem:[%s363] sm:$0xff] %v923
        %926 = vst [vmem:[%s363 + $0x8] sm:$0xff] %v924
        %p927 = scmp.lt.s32.totalorder %s21, 1
        %s928 = scalar_select %p927, %s21, 1
        %s929 = smul.addr %s928, 2
        %s930 = smul.addr %s929, 8
        %s931 = scalar_lea.vmem %s8, %s930
        // Predicated region
        $region65: #{phase1.22} parent=51 // pred_check
          %p932 = pneg %p217
        $region66: #{phase1.22} parent=51 // pred_check_branch
          %934 = sbr.rel (%p932) target = $region68
        $region67: #{phase1.22} parent=51 // pred_region
          _
        $region68: #{phase1.22} parent=51 // pred_fallthru
          _
      $region52: #{phase1.22} parent=5 // pred_fallthru
        _
      %p935 = scmp.le.s32.totalorder 2, %s16
      // Predicated region
      $region69: #{phase1.22} parent=5 // pred_check
        %p936 = pneg %p935
      $region70: #{phase1.22} parent=5 // pred_check_branch
        %938 = sbr.rel (%p936) target = $region72
      $region71: #{phase1.22} parent=5 // pred_region
        %s939 = ssub.s32 %s16, 2
        // Predicated region
        $region73: #{phase1.22} parent=71 // pred_check
          %p940 = pneg %p223
        $region74: #{phase1.22} parent=71 // pred_check_branch
          %942 = sbr.rel (%p940) target = $region76
        $region75: #{phase1.22} parent=71 // pred_region
          %p943 = scmp.lt.s32.totalorder %s22, 1
          %s944 = scalar_select %p943, %s22, 1
          %s945 = smul.addr %s944, 2
          %s946 = smul.addr %s945, 8
          %s947 = scalar_lea.vmem %s8, %s946
        $region76: #{phase1.22} parent=71 // pred_fallthru
          _
      $region72: #{phase1.22} parent=5 // pred_fallthru
        _
    $region6: #{phase1.22} parent=1 // loop_footer
      %s20 = sadd.s32 1, %s16
    $region7: #{phase1.22} parent=1 // loop_footer_branch
      %15 = sbr.rel target = $region3
    $region8: #{phase1.22} parent=1 // loop_exit
      _
    %948 = vsyncpa [#allocation3], 1
    %s949 = scalar_lea.sflag [#allocation3], 1
    %950 = vsyncpa %s949, 1
    %951 = vsyncpa [#allocation5], 1

// kernel: phase1.23
$region0: #{phase1.23}
  #allocation0 [shape = 'u32[]', space=smem, size = 0x4, offset = 0x4, fixed_abs, tag = 'smem constant byte address 0x4 - core index']
  #allocation1 [shape = 'u32[144,128]{1,0:T(1,128)}', space=vmem, size = 0x12000, scoped, tag = 'internal scratch']
  %s0 = inlined_call_operand.vmem [shape: f32[2,16,128], index: 0, kind: input, shape index: {}]
  %s1 = inlined_call_operand.vmem [shape: f32[2,1,128], index: 1, kind: input, shape index: {}]
  %s2 = inlined_call_operand.hbm [shape: bf16[48,16], index: 2, kind: input, shape index: {}]
  %s3 = inlined_call_operand.hbm [shape: f32[48,1], index: 3, kind: input, shape index: {}]
  %s4 = inlined_call_operand.hbm [shape: bf16[2,16,8], index: 4, kind: input, shape index: {}]
  %s5 = inlined_call_operand.hbm [shape: f32[16,1], index: 5, kind: input, shape index: {}]
  %s6 = inlined_call_operand.vmem [shape: f32[16,1], index: 6, kind: input, shape index: {}]
  %s7 = inlined_call_operand.vmem [shape: f32[16,1], index: 7, kind: input, shape index: {}]
  %s8 = inlined_call_operand.vmem [shape: f32[2,16,128], index: 8, kind: output, shape index: {}]
  %s9 = sld [smem:[#allocation0]]
  $region81: #{phase1.23} parent=0
    _
  %s11 = ssub.s32 1, %s9
  %s12 = scalar_select 0, %s11, %s9
  $region1: #{phase1.23} parent=0
    #allocation2 [shape = 'u8[12288]{0}', space=vmem, size = 0x3000, scoped, tag = 'input window, operand 2, single buffered']
    #allocation3 [shape = 's32[2]{0}', space=sflag, size = 0x8, scoped, tag = 'scoped memory for phase1.23']
    #allocation4 [shape = 'u8[24576]{0}', space=vmem, size = 0x6000, scoped, tag = 'input window, operand 3, single buffered']
    #allocation5 [shape = 's32[1]{0}', space=sflag, size = 0x4, scoped, tag = 'scoped memory for phase1.23']
    #allocation6 [shape = 'u8[8192]{0}', space=vmem, size = 0x2000, scoped, tag = 'input window, operand 4, single buffered']
    #allocation7 [shape = 'u8[8192]{0}', space=vmem, size = 0x2000, scoped, tag = 'input window, operand 5, single buffered']
    #allocation8 [shape = 's32[1]{0}', space=sflag, size = 0x4, scoped, tag = 'scoped memory for phase1.23']
    %13 = vsyncpa [#allocation3], 0
    %14 = vsyncpa [#allocation5], 0
    %15 = vsyncpa [#allocation8], 0
    loop: start=0, step=1, limit=4
    $region2: #{phase1.23} parent=1 // loop_pre_header
      _
    $region3: #{phase1.23} parent=1 // loop_header
      %s17 = sphi 0, %s21
      %p18 = scmp.ge.s32.totalorder %s17, 4
      %s27 = sphi 0, %s29
      %s30 = sphi 0, %s27
      %s31 = sphi 0, %s30
      %s47 = sphi 0, %s31
      %s53 = sphi 0, %s55
      %s56 = sphi 0, %s53
      %s57 = sphi 0, %s56
      %s73 = sphi 0, %s57
      %s77 = sphi 0, %s77
      %s79 = sphi 0, %s77
      %s80 = sphi 0, %s79
      %s94 = sphi 0, %s80
      %s98 = sphi 0, %s98
      %s100 = sphi 0, %s98
      %s101 = sphi 0, %s100
      %s115 = sphi 0, %s101
      %s119 = sphi 0, %s119
      %s121 = sphi 0, %s119
      %s122 = sphi 0, %s121
      %s136 = sphi 0, %s122
      %s140 = sphi 0, %s140
      %s142 = sphi 0, %s140
      %s143 = sphi 0, %s142
      %s157 = sphi 0, %s143
      %s161 = sphi 0, %s161
      %s163 = sphi 0, %s161
      %s164 = sphi 0, %s163
      %s178 = sphi 0, %s164
      %s182 = sphi 0, %s182
      %s184 = sphi 0, %s182
      %s185 = sphi 0, %s184
      %s199 = sphi 0, %s185
      %s205 = sphi 0, %s207
      %s208 = sphi 0, %s205
      %s209 = sphi 0, %s208
      %s225 = sphi 0, %s209
    $region4: #{phase1.23} parent=1 // loop_header_branch
      %20 = sbr.rel (%p18) target = $region8
    $region5: #{phase1.23} parent=1 // loop_body
      %s22 = ssub.s32 %s17, 1
      %s23 = ssub.s32 %s17, 2
      %s24 = sadd.s32 %s17, 1
      %s25 = ssub.s32 %s17, %s24
      %p26 = scmp.eq.s32.totalorder %s25, 0
      %s28 = sadd.s32 %s27, 1
      %s29 = scalar_select %p26, %s27, %s28
      %p32 = pneg %p26
      %p33 = scmp.eq.s32.totalorder %s17, 1
      %p34 = por %p32, %p33
      %p35 = scmp.ne.s32.totalorder %s27, %s30
      %p36 = scmp.eq.s32.totalorder %s17, 0
      %p37 = por %p35, %p36
      %p38 = scmp.ne.s32.totalorder %s27, %s30
      %p39 = scmp.eq.s32.totalorder %s22, 1
      %p40 = por %p38, %p39
      %p41 = scmp.ne.s32.totalorder %s30, %s31
      %p42 = scmp.eq.s32.totalorder %s22, 0
      %p43 = por %p41, %p42
      %p44 = scmp.ne.s32.totalorder %s30, %s31
      %p45 = scmp.eq.s32.totalorder %s23, 1
      %p46 = por %p44, %p45
      %p48 = scmp.ne.s32.totalorder %s31, %s47
      %p49 = scmp.eq.s32.totalorder %s23, 0
      %p50 = por %p48, %p49
      %s51 = ssub.s32 %s17, %s24
      %p52 = scmp.eq.s32.totalorder %s51, 0
      %s54 = sadd.s32 %s53, 1
      %s55 = scalar_select %p52, %s53, %s54
      %p58 = pneg %p52
      %p59 = scmp.eq.s32.totalorder %s17, 1
      %p60 = por %p58, %p59
      %p61 = scmp.ne.s32.totalorder %s53, %s56
      %p62 = scmp.eq.s32.totalorder %s17, 0
      %p63 = por %p61, %p62
      %p64 = scmp.ne.s32.totalorder %s53, %s56
      %p65 = scmp.eq.s32.totalorder %s22, 1
      %p66 = por %p64, %p65
      %p67 = scmp.ne.s32.totalorder %s56, %s57
      %p68 = scmp.eq.s32.totalorder %s22, 0
      %p69 = por %p67, %p68
      %p70 = scmp.ne.s32.totalorder %s56, %s57
      %p71 = scmp.eq.s32.totalorder %s23, 1
      %p72 = por %p70, %p71
      %p74 = scmp.ne.s32.totalorder %s57, %s73
      %p75 = scmp.eq.s32.totalorder %s23, 0
      %p76 = por %p74, %p75
      %s78 = sadd.s32 %s77, 1
      %p81 = scmp.eq.s32.totalorder %s17, 1
      %p82 = scmp.ne.s32.totalorder %s77, %s79
      %p83 = scmp.eq.s32.totalorder %s17, 0
      %p84 = por %p82, %p83
      %p85 = scmp.ne.s32.totalorder %s77, %s79
      %p86 = scmp.eq.s32.totalorder %s22, 1
      %p87 = por %p85, %p86
      %p88 = scmp.ne.s32.totalorder %s79, %s80
      %p89 = scmp.eq.s32.totalorder %s22, 0
      %p90 = por %p88, %p89
      %p91 = scmp.ne.s32.totalorder %s79, %s80
      %p92 = scmp.eq.s32.totalorder %s23, 1
      %p93 = por %p91, %p92
      %p95 = scmp.ne.s32.totalorder %s80, %s94
      %p96 = scmp.eq.s32.totalorder %s23, 0
      %p97 = por %p95, %p96
      %s99 = sadd.s32 %s98, 1
      %p102 = scmp.eq.s32.totalorder %s17, 1
      %p103 = scmp.ne.s32.totalorder %s98, %s100
      %p104 = scmp.eq.s32.totalorder %s17, 0
      %p105 = por %p103, %p104
      %p106 = scmp.ne.s32.totalorder %s98, %s100
      %p107 = scmp.eq.s32.totalorder %s22, 1
      %p108 = por %p106, %p107
      %p109 = scmp.ne.s32.totalorder %s100, %s101
      %p110 = scmp.eq.s32.totalorder %s22, 0
      %p111 = por %p109, %p110
      %p112 = scmp.ne.s32.totalorder %s100, %s101
      %p113 = scmp.eq.s32.totalorder %s23, 1
      %p114 = por %p112, %p113
      %p116 = scmp.ne.s32.totalorder %s101, %s115
      %p117 = scmp.eq.s32.totalorder %s23, 0
      %p118 = por %p116, %p117
      %s120 = sadd.s32 %s119, 1
      %p123 = scmp.eq.s32.totalorder %s17, 1
      %p124 = scmp.ne.s32.totalorder %s119, %s121
      %p125 = scmp.eq.s32.totalorder %s17, 0
      %p126 = por %p124, %p125
      %p127 = scmp.ne.s32.totalorder %s119, %s121
      %p128 = scmp.eq.s32.totalorder %s22, 1
      %p129 = por %p127, %p128
      %p130 = scmp.ne.s32.totalorder %s121, %s122
      %p131 = scmp.eq.s32.totalorder %s22, 0
      %p132 = por %p130, %p131
      %p133 = scmp.ne.s32.totalorder %s121, %s122
      %p134 = scmp.eq.s32.totalorder %s23, 1
      %p135 = por %p133, %p134
      %p137 = scmp.ne.s32.totalorder %s122, %s136
      %p138 = scmp.eq.s32.totalorder %s23, 0
      %p139 = por %p137, %p138
      %s141 = sadd.s32 %s140, 1
      %p144 = scmp.eq.s32.totalorder %s17, 1
      %p145 = scmp.ne.s32.totalorder %s140, %s142
      %p146 = scmp.eq.s32.totalorder %s17, 0
      %p147 = por %p145, %p146
      %p148 = scmp.ne.s32.totalorder %s140, %s142
      %p149 = scmp.eq.s32.totalorder %s22, 1
      %p150 = por %p148, %p149
      %p151 = scmp.ne.s32.totalorder %s142, %s143
      %p152 = scmp.eq.s32.totalorder %s22, 0
      %p153 = por %p151, %p152
      %p154 = scmp.ne.s32.totalorder %s142, %s143
      %p155 = scmp.eq.s32.totalorder %s23, 1
      %p156 = por %p154, %p155
      %p158 = scmp.ne.s32.totalorder %s143, %s157
      %p159 = scmp.eq.s32.totalorder %s23, 0
      %p160 = por %p158, %p159
      %s162 = sadd.s32 %s161, 1
      %p165 = scmp.eq.s32.totalorder %s17, 1
      %p166 = scmp.ne.s32.totalorder %s161, %s163
      %p167 = scmp.eq.s32.totalorder %s17, 0
      %p168 = por %p166, %p167
      %p169 = scmp.ne.s32.totalorder %s161, %s163
      %p170 = scmp.eq.s32.totalorder %s22, 1
      %p171 = por %p169, %p170
      %p172 = scmp.ne.s32.totalorder %s163, %s164
      %p173 = scmp.eq.s32.totalorder %s22, 0
      %p174 = por %p172, %p173
      %p175 = scmp.ne.s32.totalorder %s163, %s164
      %p176 = scmp.eq.s32.totalorder %s23, 1
      %p177 = por %p175, %p176
      %p179 = scmp.ne.s32.totalorder %s164, %s178
      %p180 = scmp.eq.s32.totalorder %s23, 0
      %p181 = por %p179, %p180
      %s183 = sadd.s32 %s182, 1
      %p186 = scmp.eq.s32.totalorder %s17, 1
      %p187 = scmp.ne.s32.totalorder %s182, %s184
      %p188 = scmp.eq.s32.totalorder %s17, 0
      %p189 = por %p187, %p188
      %p190 = scmp.ne.s32.totalorder %s182, %s184
      %p191 = scmp.eq.s32.totalorder %s22, 1
      %p192 = por %p190, %p191
      %p193 = scmp.ne.s32.totalorder %s184, %s185
      %p194 = scmp.eq.s32.totalorder %s22, 0
      %p195 = por %p193, %p194
      %p196 = scmp.ne.s32.totalorder %s184, %s185
      %p197 = scmp.eq.s32.totalorder %s23, 1
      %p198 = por %p196, %p197
      %p200 = scmp.ne.s32.totalorder %s185, %s199
      %p201 = scmp.eq.s32.totalorder %s23, 0
      %p202 = por %p200, %p201
      %s203 = ssub.s32 %s17, %s24
      %p204 = scmp.eq.s32.totalorder %s203, 0
      %s206 = sadd.s32 %s205, 1
      %s207 = scalar_select %p204, %s205, %s206
      %p210 = pneg %p204
      %p211 = scmp.eq.s32.totalorder %s17, 1
      %p212 = por %p210, %p211
      %p213 = scmp.ne.s32.totalorder %s205, %s208
      %p214 = scmp.eq.s32.totalorder %s17, 0
      %p215 = por %p213, %p214
      %p216 = scmp.ne.s32.totalorder %s205, %s208
      %p217 = scmp.eq.s32.totalorder %s22, 1
      %p218 = por %p216, %p217
      %p219 = scmp.ne.s32.totalorder %s208, %s209
      %p220 = scmp.eq.s32.totalorder %s22, 0
      %p221 = por %p219, %p220
      %p222 = scmp.ne.s32.totalorder %s208, %s209
      %p223 = scmp.eq.s32.totalorder %s23, 1
      %p224 = por %p222, %p223
      %p226 = scmp.ne.s32.totalorder %s209, %s225
      %p227 = scmp.eq.s32.totalorder %s23, 0
      %p228 = por %p226, %p227
      %p229 = scmp.le.s32.totalorder 1, %s17
      %p230 = scmp.lt.s32.totalorder %s17, 3
      %p231 = pnand %p229, %p230
      %p232 = pneg %p231
      // Predicated region
      $region9: #{phase1.23} parent=5 // pred_check
        _
      $region10: #{phase1.23} parent=5 // pred_check_branch
        %234 = sbr.rel (%p231) target = $region12
      $region11: #{phase1.23} parent=5 // pred_region
        %s235 = ssub.s32 %s17, 1
        // Predicated region
        $region13: #{phase1.23} parent=11 // pred_check
          %p236 = pneg %p90
        $region14: #{phase1.23} parent=11 // pred_check_branch
          %238 = sbr.rel (%p236) target = $region16
        $region15: #{phase1.23} parent=11 // pred_region
          %s240 = ssub.s32 384, 384
          %241 = vsyncadd [#allocation3], %s240
          %s242 = sshll.u32 [#allocation2], 4
          %s243 = int_to_ptr.vmem [resolvable:$true] %s242
          %248 = dma.hbm_to_vmem [thread:$0]  %s2, 384, %s243, [#allocation3], 64, 64, 4
        $region16: #{phase1.23} parent=11 // pred_fallthru
          _
        // Predicated region
        $region17: #{phase1.23} parent=11 // pred_check
          %p249 = pneg %p111
        $region18: #{phase1.23} parent=11 // pred_check_branch
          %251 = sbr.rel (%p249) target = $region20
        $region19: #{phase1.23} parent=11 // pred_region
          %s253 = ssub.s32 768, 768
          %254 = vsyncadd [#allocation5], %s253
          %s255 = sshll.u32 [#allocation4], 4
          %s256 = int_to_ptr.vmem [resolvable:$true] %s255
          %261 = dma.hbm_to_vmem [thread:$0]  %s3, 768, %s256, [#allocation5], 128, 128, 8
        $region20: #{phase1.23} parent=11 // pred_fallthru
          _
        // Predicated region
        $region21: #{phase1.23} parent=11 // pred_check
          %p262 = pneg %p132
        $region22: #{phase1.23} parent=11 // pred_check_branch
          %264 = sbr.rel (%p262) target = $region24
        $region23: #{phase1.23} parent=11 // pred_region
          %s266 = ssub.s32 256, 256
          %267 = vsyncadd [#allocation5], %s266
          %s268 = sshll.u32 [#allocation6], 4
          %s269 = int_to_ptr.vmem [resolvable:$true] %s268
          %274 = dma.hbm_to_vmem [thread:$0]  %s4, 256, %s269, [#allocation5], 64, 64, 4
        $region24: #{phase1.23} parent=11 // pred_fallthru
          _
        // Predicated region
        $region25: #{phase1.23} parent=11 // pred_check
          %p275 = pneg %p153
        $region26: #{phase1.23} parent=11 // pred_check_branch
          %277 = sbr.rel (%p275) target = $region28
        $region27: #{phase1.23} parent=11 // pred_region
          %s279 = ssub.s32 256, 256
          %280 = vsyncadd [#allocation8], %s279
          %s281 = sshll.u32 [#allocation7], 4
          %s282 = int_to_ptr.vmem [resolvable:$true] %s281
          %287 = dma.hbm_to_vmem [thread:$0]  %s5, 256, %s282, [#allocation8], 128, 128, 8
        $region28: #{phase1.23} parent=11 // pred_fallthru
          _
        // Predicated region
        $region29: #{phase1.23} parent=11 // pred_check
          %p288 = pneg %p174
        $region30: #{phase1.23} parent=11 // pred_check_branch
          %290 = sbr.rel (%p288) target = $region32
        $region31: #{phase1.23} parent=11 // pred_region
          _
        $region32: #{phase1.23} parent=11 // pred_fallthru
          _
        // Predicated region
        $region33: #{phase1.23} parent=11 // pred_check
          %p291 = pneg %p195
        $region34: #{phase1.23} parent=11 // pred_check_branch
          %293 = sbr.rel (%p291) target = $region36
        $region35: #{phase1.23} parent=11 // pred_region
          _
        $region36: #{phase1.23} parent=11 // pred_fallthru
          _
      $region12: #{phase1.23} parent=5 // pred_fallthru
        _
      %p294 = scmp.lt.s32.totalorder %s17, 2
      // Predicated region
      $region37: #{phase1.23} parent=5 // pred_check
        %p295 = pneg %p294
      $region38: #{phase1.23} parent=5 // pred_check_branch
        %297 = sbr.rel (%p295) target = $region40
      $region39: #{phase1.23} parent=5 // pred_region
        // Predicated region
        $region41: #{phase1.23} parent=39 // pred_check
          %p298 = pneg %p37
        $region42: #{phase1.23} parent=39 // pred_check_branch
          %300 = sbr.rel (%p298) target = $region44
        $region43: #{phase1.23} parent=39 // pred_region
          %p301 = scmp.lt.s32.totalorder %s17, 1
          %s302 = scalar_select %p301, %s17, 1
          %s303 = smul.addr %s302, 2
          %s304 = smul.addr %s303, 8
          %s305 = scalar_lea.vmem %s0, %s304
        $region44: #{phase1.23} parent=39 // pred_fallthru
          _
        // Predicated region
        $region45: #{phase1.23} parent=39 // pred_check
          %p306 = pneg %p63
        $region46: #{phase1.23} parent=39 // pred_check_branch
          %308 = sbr.rel (%p306) target = $region48
        $region47: #{phase1.23} parent=39 // pred_region
          %p309 = scmp.lt.s32.totalorder %s17, 1
          %s310 = scalar_select %p309, %s17, 1
          %s311 = scalar_lea.vmem %s1, %s310
        $region48: #{phase1.23} parent=39 // pred_fallthru
          _
      $region40: #{phase1.23} parent=5 // pred_fallthru
        _
      %p312 = scmp.le.s32.totalorder 1, %s17
      %p313 = scmp.lt.s32.totalorder %s17, 3
      %p314 = pnand %p312, %p313
      %p315 = pneg %p314
      // Predicated region
      $region49: #{phase1.23} parent=5 // pred_check
        _
      $region50: #{phase1.23} parent=5 // pred_check_branch
        %317 = sbr.rel (%p314) target = $region52
      $region51: #{phase1.23} parent=5 // pred_region
        %s318 = ssub.s32 %s17, 1
        // Predicated region
        $region53: #{phase1.23} parent=51 // pred_check
          %p319 = pneg %p90
        $region54: #{phase1.23} parent=51 // pred_check_branch
          %321 = sbr.rel (%p319) target = $region56
        $region55: #{phase1.23} parent=51 // pred_region
          %322 = dma.done [#allocation3], 384
        $region56: #{phase1.23} parent=51 // pred_fallthru
          _
        // Predicated region
        $region57: #{phase1.23} parent=51 // pred_check
          %p323 = pneg %p111
        $region58: #{phase1.23} parent=51 // pred_check_branch
          %325 = sbr.rel (%p323) target = $region60
        $region59: #{phase1.23} parent=51 // pred_region
          %326 = dma.done [#allocation5], 768
        $region60: #{phase1.23} parent=51 // pred_fallthru
          _
        // Predicated region
        $region61: #{phase1.23} parent=51 // pred_check
          %p327 = pneg %p132
        $region62: #{phase1.23} parent=51 // pred_check_branch
          %329 = sbr.rel (%p327) target = $region64
        $region63: #{phase1.23} parent=51 // pred_region
          %330 = dma.done [#allocation5], 256
        $region64: #{phase1.23} parent=51 // pred_fallthru
          _
        // Predicated region
        $region65: #{phase1.23} parent=51 // pred_check
          %p331 = pneg %p153
        $region66: #{phase1.23} parent=51 // pred_check_branch
          %333 = sbr.rel (%p331) target = $region68
        $region67: #{phase1.23} parent=51 // pred_region
          %334 = dma.done [#allocation8], 256
        $region68: #{phase1.23} parent=51 // pred_fallthru
          _
        %p335 = scmp.lt.s32.totalorder %s22, 1
        %s336 = scalar_select %p335, %s22, 1
        %s337 = smul.addr %s336, 2
        %s338 = smul.addr %s337, 8
        %s339 = scalar_lea.vmem %s0, %s338
        %p340 = pneg %p43
        %p341 = pneg %p40
        %p342 = scmp.lt.s32.totalorder %s22, 1
        %s343 = scalar_select %p342, %s22, 1
        %s344 = scalar_lea.vmem %s1, %s343
        %p345 = pneg %p69
        %p346 = pneg %p66
        %p347 = pneg %p90
        %p348 = pneg %p87
        %p349 = pneg %p111
        %p350 = pneg %p108
        %p351 = pneg %p132
        %p352 = pneg %p129
        %p353 = pneg %p153
        %p354 = pneg %p150
        %p355 = pneg %p174
        %p356 = pneg %p171
        %p357 = pneg %p195
        %p358 = pneg %p192
        %p359 = pneg %p221
        %p360 = pneg %p218
        %p361 = scmp.lt.s32.totalorder %s22, 1
        %s362 = scalar_select %p361, %s22, 1
        %s363 = smul.addr %s362, 2
        %s364 = smul.addr %s363, 8
        %s365 = scalar_lea.vmem %s8, %s364
        %p366 = scmp.lt.s32.totalorder %s22, 1
        %s367 = scalar_select %p366, %s22, 1
        %s368 = smul.addr %s367, 2
        %s369 = smul.addr %s368, 8
        %s370 = scalar_lea.vmem %s0, %s369
        %p371 = scmp.lt.s32.totalorder %s22, 1
        %s372 = scalar_select %p371, %s22, 1
        %s373 = scalar_lea.vmem %s1, %s372
        %p374 = scmp.lt.s32.totalorder %s22, 1
        %s375 = scalar_select %p374, %s22, 1
        %s376 = smul.addr %s375, 2
        %s377 = smul.addr %s376, 8
        %s378 = scalar_lea.vmem %s8, %s377
        %v380 = vld [vmem:[%s370] sm:$0xff]
        %v381 = vld [vmem:[%s370 + $0x8] sm:$0xff]
        %v382 = vld [vmem:[%s373] sm:$0x1]
        %v383 = vpack.c.bf16 %v381, %v380
        %v384 = vld [vmem:[#allocation2] sm:$0xf]
        %v385 = vld [vmem:[#allocation2 + $0x4] sm:$0xf]
        %v386 = vld [vmem:[#allocation2 + $0x8] sm:$0xf]
        %v387 = vld [vmem:[#allocation2 + $0xc] sm:$0xf]
        %v388 = vld [vmem:[#allocation2 + $0x10] sm:$0xf]
        %v389 = vld [vmem:[#allocation2 + $0x14] sm:$0xf]
        %v390 = vld [vmem:[#allocation4] sm:$0xff]
        %v391 = vld [vmem:[#allocation4 + $0x8] sm:$0xff]
        %v392 = vld [vmem:[#allocation4 + $0x10] sm:$0xff]
        %v393 = vld [vmem:[#allocation4 + $0x18] sm:$0xff]
        %v394 = vld [vmem:[#allocation4 + $0x20] sm:$0xff]
        %v395 = vld [vmem:[#allocation4 + $0x28] sm:$0xff]
        %397 = vset.pattern.permute.xlu0 0
        %398 = vperm.xlu0 %397, %v390
        %v399 = vpop.permute.xlu0 %398
        %402 = vset.pattern.permute.xlu0 0
        %403 = vperm.xlu0 %402, %v391
        %v404 = vpop.permute.xlu0 %403
        %407 = vset.pattern.permute.xlu0 0
        %408 = vperm.xlu0 %407, %v392
        %v409 = vpop.permute.xlu0 %408
        %412 = vset.pattern.permute.xlu0 0
        %413 = vperm.xlu0 %412, %v393
        %v414 = vpop.permute.xlu0 %413
        %417 = vset.pattern.permute.xlu0 0
        %418 = vperm.xlu0 %417, %v394
        %v419 = vpop.permute.xlu0 %418
        %422 = vset.pattern.permute.xlu0 0
        %423 = vperm.xlu0 %422, %v395
        %v424 = vpop.permute.xlu0 %423
        %v432 = vunpack.c.l.b16 %v384
        %v433 = vunpack.c.l.b16 %v385
        %v434 = vunpack.c.l.b16 %v386
        %v435 = vunpack.c.l.b16 %v387
        %v436 = vunpack.c.l.b16 %v388
        %v437 = vunpack.c.l.b16 %v389
        %v438 = vpack.c.b16 %v433, %v432
        %v439 = vpack.c.b16 %v435, %v434
        %v440 = vpack.c.b16 %v437, %v436
        %vm441 = vcmask 130048
        %v443 = vsel %vm441, %v438, 0
        %v446 = vsel %vm441, %v439, 0
        %v449 = vsel %vm441, %v440, 0
        %451 = vmatprep.subr.bf16.mxu0 0
        %452 = vmatpush1.bf16.msra.mxu0 0
        %453 = vmatprep.subr.bf16.mxu0 0
        %454 = vmatpush1.bf16.msra.mxu0 0
        %455 = vmatprep.subr.bf16.mxu0 0
        %456 = vmatpush1.bf16.msra.mxu0 0
        %457 = vmatprep.subr.bf16.mxu0 0
        %458 = vmatpush1.bf16.msra.mxu0 0
        %459 = vmatprep.subr.bf16.mxu0 0
        %460 = vmatpush1.bf16.msra.mxu0 0
        %461 = vmatprep.subr.bf16.mxu0 0
        %462 = vmatpush1.bf16.msra.mxu0 0
        %463 = vmatprep.subr.bf16.mxu0 0
        %464 = vmatpush1.bf16.msra.mxu0 0
        %465 = vmatprep.subr.bf16.mxu0 0
        %466 = vmatpush1.bf16.msra.mxu0 %v383
        %467 = vmatprep.subr.bf16.mxu0 0
        %468 = vmatpush2.bf16.msra.mxu0 0
        %469 = vmatprep.subr.bf16.mxu0 0
        %470 = vmatpush2.bf16.msra.mxu0 0
        %471 = vmatprep.subr.bf16.mxu0 0
        %472 = vmatpush2.bf16.msra.mxu0 0
        %473 = vmatprep.subr.bf16.mxu0 0
        %474 = vmatpush2.bf16.msra.mxu0 0
        %475 = vmatprep.subr.bf16.mxu0 0
        %476 = vmatpush2.bf16.msra.mxu0 0
        %477 = vmatprep.subr.bf16.mxu0 0
        %478 = vmatpush2.bf16.msra.mxu0 0
        %479 = vmatprep.subr.bf16.mxu0 0
        %480 = vmatpush2.bf16.msra.mxu0 0
        %481 = vmatprep.subr.bf16.mxu0 0
        %482 = vmatpush2.bf16.msra.mxu0 0
        %483 = vmatprep.mubr.bf16.mxu0 0
        %484 = vmatmul.mubr.bf16.gmra.mxu0 %v443
        %v485 = vpop.f32.mrf.mxu0
        %v486 = vadd.f32 %v399, %v485
        %v487 = vpop.f32.mrf.mxu0
        %v488 = vpop.f32.mrf.mxu0
        %v489 = vadd.f32 %v404, %v488
        %v490 = vpop.f32.mrf.mxu0
        %491 = vmatprep.mubr.bf16.mxu0 0
        %492 = vmatmul.mubr.bf16.gmra.mxu0 %v446
        %v493 = vpop.f32.mrf.mxu0
        %v494 = vadd.f32 %v409, %v493
        %v495 = vpop.f32.mrf.mxu0
        %v496 = vpop.f32.mrf.mxu0
        %v497 = vadd.f32 %v414, %v496
        %v498 = vpop.f32.mrf.mxu0
        %499 = vmatprep.mubr.bf16.mxu0 0
        %500 = vmatmul.mubr.bf16.gmra.mxu0 %v449
        %v501 = vpop.f32.mrf.mxu0
        %v502 = vadd.f32 %v419, %v501
        %v503 = vpop.f32.mrf.mxu0
        %v504 = vpop.f32.mrf.mxu0
        %v505 = vadd.f32 %v424, %v504
        %v506 = vpop.f32.mrf.mxu0
        %507 = vdwg.mxu0
        %vm508 = vcmp.gt.f32.partialorder %v382, 0.0
        %v509 = vpack.c.bf16 %v486, %v486
        %v510 = vpack.c.bf16 %v494, %v494
        %v511 = vpack.c.bf16 %v502, %v502
        %512 = vxpose.xlu0.c.b16.start [1/8] %v509, 128
        %513 = vxpose.xlu0.c.b16.cont [2/8] 0, 128
        %514 = vxpose.xlu0.c.b16.cont [3/8] 0, 128
        %515 = vxpose.xlu0.c.b16.cont [4/8] 0, 128
        %516 = vxpose.xlu0.c.b16.cont [5/8] 0, 128
        %517 = vxpose.xlu0.c.b16.cont [6/8] 0, 128
        %518 = vxpose.xlu0.c.b16.cont [7/8] 0, 128
        %519 = vxpose.xlu0.c.b16.end [8/8] 0, 128
        %v520 = vpop.trf.xlu0
        %v521 = vpop.trf.xlu0
        %v522 = vpop.trf.xlu0
        %v523 = vpop.trf.xlu0
        %v524 = vpop.trf.xlu0
        %v525 = vpop.trf.xlu0
        %v526 = vpop.trf.xlu0
        %v527 = vpop.trf.xlu0
        %vm528 = vcmask 64512
        %v530 = vsel %vm528, %v520, 0
        %v533 = vsel %vm528, %v521, 0
        %v536 = vsel %vm528, %v522, 0
        %v539 = vsel %vm528, %v523, 0
        %v542 = vsel %vm528, %v524, 0
        %v545 = vsel %vm528, %v525, 0
        %v548 = vsel %vm528, %v526, 0
        %v551 = vsel %vm528, %v527, 0
        %vm553 = vcmask 1043456
        %v555 = vsel %vm553, %v510, 0
        %557 = vmatprep.subr.bf16.mxu0 0
        %558 = vmatpush1.bf16.msra.mxu0 0
        %559 = vmatprep.subr.bf16.mxu0 0
        %560 = vmatpush1.bf16.msra.mxu0 0
        %561 = vmatprep.subr.bf16.mxu0 0
        %562 = vmatpush1.bf16.msra.mxu0 0
        %563 = vmatprep.subr.bf16.mxu0 0
        %564 = vmatpush1.bf16.msra.mxu0 0
        %565 = vmatprep.subr.bf16.mxu0 0
        %566 = vmatpush1.bf16.msra.mxu0 0
        %567 = vmatprep.subr.bf16.mxu0 0
        %568 = vmatpush1.bf16.msra.mxu0 0
        %569 = vmatprep.subr.bf16.mxu0 0
        %570 = vmatpush1.bf16.msra.mxu0 0
        %571 = vmatprep.subr.bf16.mxu0 0
        %572 = vmatpush1.bf16.msra.mxu0 %v555
        %573 = vmatprep.subr.bf16.mxu0 0
        %574 = vmatpush2.bf16.msra.mxu0 0
        %575 = vmatprep.subr.bf16.mxu0 0
        %576 = vmatpush2.bf16.msra.mxu0 0
        %577 = vmatprep.subr.bf16.mxu0 0
        %578 = vmatpush2.bf16.msra.mxu0 0
        %579 = vmatprep.subr.bf16.mxu0 0
        %580 = vmatpush2.bf16.msra.mxu0 0
        %581 = vmatprep.subr.bf16.mxu0 0
        %582 = vmatpush2.bf16.msra.mxu0 0
        %583 = vmatprep.subr.bf16.mxu0 0
        %584 = vmatpush2.bf16.msra.mxu0 0
        %585 = vmatprep.subr.bf16.mxu0 0
        %586 = vmatpush2.bf16.msra.mxu0 0
        %587 = vmatprep.subr.bf16.mxu0 0
        %588 = vmatpush2.bf16.msra.mxu0 0
        %589 = vmatprep.mubr.bf16.mxu0 0
        %590 = vmatmul.mubr.bf16.gmra.mxu0 %v530
        %v591 = vpop.f32.mrf.mxu0
        %v592 = vadd.f32 0.0, %v591
        %v593 = vpop.f32.mrf.mxu0
        %v594 = vpop.f32.mrf.mxu0
        %v595 = vadd.f32 0.0, %v594
        %v596 = vpop.f32.mrf.mxu0
        %597 = vmatprep.mubr.bf16.mxu0 0
        %598 = vmatmul.mubr.bf16.gmra.mxu0 %v533
        %v599 = vpop.f32.mrf.mxu0
        %v600 = vadd.f32 0.0, %v599
        %v601 = vpop.f32.mrf.mxu0
        %v602 = vpop.f32.mrf.mxu0
        %v603 = vadd.f32 0.0, %v602
        %v604 = vpop.f32.mrf.mxu0
        %605 = vmatprep.mubr.bf16.mxu0 0
        %606 = vmatmul.mubr.bf16.gmra.mxu0 %v536
        %v607 = vpop.f32.mrf.mxu0
        %v608 = vadd.f32 0.0, %v607
        %v609 = vpop.f32.mrf.mxu0
        %v610 = vpop.f32.mrf.mxu0
        %v611 = vadd.f32 0.0, %v610
        %v612 = vpop.f32.mrf.mxu0
        %613 = vmatprep.mubr.bf16.mxu0 0
        %614 = vmatmul.mubr.bf16.gmra.mxu0 %v539
        %v615 = vpop.f32.mrf.mxu0
        %v616 = vadd.f32 0.0, %v615
        %v617 = vpop.f32.mrf.mxu0
        %v618 = vpop.f32.mrf.mxu0
        %v619 = vadd.f32 0.0, %v618
        %v620 = vpop.f32.mrf.mxu0
        %621 = vmatprep.mubr.bf16.mxu0 0
        %622 = vmatmul.mubr.bf16.gmra.mxu0 %v542
        %v623 = vpop.f32.mrf.mxu0
        %v624 = vadd.f32 0.0, %v623
        %v625 = vpop.f32.mrf.mxu0
        %v626 = vpop.f32.mrf.mxu0
        %v627 = vadd.f32 0.0, %v626
        %v628 = vpop.f32.mrf.mxu0
        %629 = vmatprep.mubr.bf16.mxu0 0
        %630 = vmatmul.mubr.bf16.gmra.mxu0 %v545
        %v631 = vpop.f32.mrf.mxu0
        %v632 = vadd.f32 0.0, %v631
        %v633 = vpop.f32.mrf.mxu0
        %v634 = vpop.f32.mrf.mxu0
        %v635 = vadd.f32 0.0, %v634
        %v636 = vpop.f32.mrf.mxu0
        %637 = vmatprep.mubr.bf16.mxu0 0
        %638 = vmatmul.mubr.bf16.gmra.mxu0 %v548
        %v639 = vpop.f32.mrf.mxu0
        %v640 = vadd.f32 0.0, %v639
        %v641 = vpop.f32.mrf.mxu0
        %v642 = vpop.f32.mrf.mxu0
        %v643 = vadd.f32 0.0, %v642
        %v644 = vpop.f32.mrf.mxu0
        %645 = vmatprep.mubr.bf16.mxu0 0
        %646 = vmatmul.mubr.bf16.gmra.mxu0 %v551
        %v647 = vpop.f32.mrf.mxu0
        %v648 = vadd.f32 0.0, %v647
        %v649 = vpop.f32.mrf.mxu0
        %v650 = vpop.f32.mrf.mxu0
        %v651 = vadd.f32 0.0, %v650
        %v652 = vpop.f32.mrf.mxu0
        %653 = vdwg.mxu0
        %v654 = vmul.f32 %v592, 0.35355338
        %v655 = vmul.f32 %v595, 0.35355338
        %v656 = vmul.f32 %v600, 0.35355338
        %v657 = vmul.f32 %v603, 0.35355338
        %v658 = vmul.f32 %v608, 0.35355338
        %v659 = vmul.f32 %v611, 0.35355338
        %v660 = vmul.f32 %v616, 0.35355338
        %v661 = vmul.f32 %v619, 0.35355338
        %v662 = vmul.f32 %v624, 0.35355338
        %v663 = vmul.f32 %v627, 0.35355338
        %v664 = vmul.f32 %v632, 0.35355338
        %v665 = vmul.f32 %v635, 0.35355338
        %v666 = vmul.f32 %v640, 0.35355338
        %v667 = vmul.f32 %v643, 0.35355338
        %v668 = vmul.f32 %v648, 0.35355338
        %v669 = vmul.f32 %v651, 0.35355338
        %v670 = vsel %vm508, 1, 0
        %v671 = vlaneseq
        %v672 = vshrl.u32 %v671, 7
        %v673 = vsub.s32 0, %v672
        %v674 = vrot.slane %v670, %v673
        %vm675 = vcmp.eq.s32.totalorder %v674, 1
        %v676 = vsel %vm675, %v654, -10000.0
        %v677 = vsel %vm675, %v655, -10000.0
        %v678 = vsel %vm675, %v656, -10000.0
        %v679 = vsel %vm675, %v657, -10000.0
        %v680 = vsel %vm675, %v658, -10000.0
        %v681 = vsel %vm675, %v659, -10000.0
        %v682 = vsel %vm675, %v660, -10000.0
        %v683 = vsel %vm675, %v661, -10000.0
        %v684 = vsel %vm675, %v662, -10000.0
        %v685 = vsel %vm675, %v663, -10000.0
        %v686 = vsel %vm675, %v664, -10000.0
        %v687 = vsel %vm675, %v665, -10000.0
        %v688 = vsel %vm675, %v666, -10000.0
        %v689 = vsel %vm675, %v667, -10000.0
        %v690 = vsel %vm675, %v668, -10000.0
        %v691 = vsel %vm675, %v669, -10000.0
        %692 = vmax.xlane.f32.xlu0 %v676
        %v693 = vpop.xlane.xlu0 %692
        %694 = vmax.xlane.f32.xlu0 %v677
        %v695 = vpop.xlane.xlu0 %694
        %696 = vmax.xlane.f32.xlu0 %v678
        %v697 = vpop.xlane.xlu0 %696
        %698 = vmax.xlane.f32.xlu0 %v679
        %v699 = vpop.xlane.xlu0 %698
        %700 = vmax.xlane.f32.xlu0 %v680
        %v701 = vpop.xlane.xlu0 %700
        %702 = vmax.xlane.f32.xlu0 %v681
        %v703 = vpop.xlane.xlu0 %702
        %704 = vmax.xlane.f32.xlu0 %v682
        %v705 = vpop.xlane.xlu0 %704
        %706 = vmax.xlane.f32.xlu0 %v683
        %v707 = vpop.xlane.xlu0 %706
        %708 = vmax.xlane.f32.xlu0 %v684
        %v709 = vpop.xlane.xlu0 %708
        %710 = vmax.xlane.f32.xlu0 %v685
        %v711 = vpop.xlane.xlu0 %710
        %712 = vmax.xlane.f32.xlu0 %v686
        %v713 = vpop.xlane.xlu0 %712
        %714 = vmax.xlane.f32.xlu0 %v687
        %v715 = vpop.xlane.xlu0 %714
        %716 = vmax.xlane.f32.xlu0 %v688
        %v717 = vpop.xlane.xlu0 %716
        %718 = vmax.xlane.f32.xlu0 %v689
        %v719 = vpop.xlane.xlu0 %718
        %720 = vmax.xlane.f32.xlu0 %v690
        %v721 = vpop.xlane.xlu0 %720
        %722 = vmax.xlane.f32.xlu0 %v691
        %v723 = vpop.xlane.xlu0 %722
        %v724 = vsub.f32 %v676, %v693
        %v725 = vsub.f32 %v677, %v695
        %v726 = vsub.f32 %v678, %v697
        %v727 = vsub.f32 %v679, %v699
        %v728 = vsub.f32 %v680, %v701
        %v729 = vsub.f32 %v681, %v703
        %v730 = vsub.f32 %v682, %v705
        %v731 = vsub.f32 %v683, %v707
        %v732 = vsub.f32 %v684, %v709
        %v733 = vsub.f32 %v685, %v711
        %v734 = vsub.f32 %v686, %v713
        %v735 = vsub.f32 %v687, %v715
        %v736 = vsub.f32 %v688, %v717
        %v737 = vsub.f32 %v689, %v719
        %v738 = vsub.f32 %v690, %v721
        %v739 = vsub.f32 %v691, %v723
        %v740 = vmul.f32 %v724, 1.442695
        %v741 = vpow.pop %v740
        %v742 = vmul.f32 %v725, 1.442695
        %v743 = vpow.pop %v742
        %v744 = vmul.f32 %v726, 1.442695
        %v745 = vpow.pop %v744
        %v746 = vmul.f32 %v727, 1.442695
        %v747 = vpow.pop %v746
        %v748 = vmul.f32 %v728, 1.442695
        %v749 = vpow.pop %v748
        %v750 = vmul.f32 %v729, 1.442695
        %v751 = vpow.pop %v750
        %v752 = vmul.f32 %v730, 1.442695
        %v753 = vpow.pop %v752
        %v754 = vmul.f32 %v731, 1.442695
        %v755 = vpow.pop %v754
        %v756 = vmul.f32 %v732, 1.442695
        %v757 = vpow.pop %v756
        %v758 = vmul.f32 %v733, 1.442695
        %v759 = vpow.pop %v758
        %v760 = vmul.f32 %v734, 1.442695
        %v761 = vpow.pop %v760
        %v762 = vmul.f32 %v735, 1.442695
        %v763 = vpow.pop %v762
        %v764 = vmul.f32 %v736, 1.442695
        %v765 = vpow.pop %v764
        %v766 = vmul.f32 %v737, 1.442695
        %v767 = vpow.pop %v766
        %v768 = vmul.f32 %v738, 1.442695
        %v769 = vpow.pop %v768
        %v770 = vmul.f32 %v739, 1.442695
        %v771 = vpow.pop %v770
        %772 = vadd.xlane.f32.xlu0 %v741
        %v773 = vpop.xlane.xlu0 %772
        %774 = vadd.xlane.f32.xlu0 %v743
        %v775 = vpop.xlane.xlu0 %774
        %776 = vadd.xlane.f32.xlu0 %v745
        %v777 = vpop.xlane.xlu0 %776
        %778 = vadd.xlane.f32.xlu0 %v747
        %v779 = vpop.xlane.xlu0 %778
        %780 = vadd.xlane.f32.xlu0 %v749
        %v781 = vpop.xlane.xlu0 %780
        %782 = vadd.xlane.f32.xlu0 %v751
        %v783 = vpop.xlane.xlu0 %782
        %784 = vadd.xlane.f32.xlu0 %v753
        %v785 = vpop.xlane.xlu0 %784
        %786 = vadd.xlane.f32.xlu0 %v755
        %v787 = vpop.xlane.xlu0 %786
        %788 = vadd.xlane.f32.xlu0 %v757
        %v789 = vpop.xlane.xlu0 %788
        %790 = vadd.xlane.f32.xlu0 %v759
        %v791 = vpop.xlane.xlu0 %790
        %792 = vadd.xlane.f32.xlu0 %v761
        %v793 = vpop.xlane.xlu0 %792
        %794 = vadd.xlane.f32.xlu0 %v763
        %v795 = vpop.xlane.xlu0 %794
        %796 = vadd.xlane.f32.xlu0 %v765
        %v797 = vpop.xlane.xlu0 %796
        %798 = vadd.xlane.f32.xlu0 %v767
        %v799 = vpop.xlane.xlu0 %798
        %800 = vadd.xlane.f32.xlu0 %v769
        %v801 = vpop.xlane.xlu0 %800
        %802 = vadd.xlane.f32.xlu0 %v771
        %v803 = vpop.xlane.xlu0 %802
        %v804 = vrcp.pop %v773
        %v805 = vrcp.pop %v775
        %v806 = vrcp.pop %v777
        %v807 = vrcp.pop %v779
        %v808 = vrcp.pop %v781
        %v809 = vrcp.pop %v783
        %v810 = vrcp.pop %v785
        %v811 = vrcp.pop %v787
        %v812 = vrcp.pop %v789
        %v813 = vrcp.pop %v791
        %v814 = vrcp.pop %v793
        %v815 = vrcp.pop %v795
        %v816 = vrcp.pop %v797
        %v817 = vrcp.pop %v799
        %v818 = vrcp.pop %v801
        %v819 = vrcp.pop %v803
        %v820 = vmul.f32 %v741, %v804
        %v821 = vmul.f32 %v743, %v805
        %v822 = vmul.f32 %v745, %v806
        %v823 = vmul.f32 %v747, %v807
        %v824 = vmul.f32 %v749, %v808
        %v825 = vmul.f32 %v751, %v809
        %v826 = vmul.f32 %v753, %v810
        %v827 = vmul.f32 %v755, %v811
        %v828 = vmul.f32 %v757, %v812
        %v829 = vmul.f32 %v759, %v813
        %v830 = vmul.f32 %v761, %v814
        %v831 = vmul.f32 %v763, %v815
        %v832 = vmul.f32 %v765, %v816
        %v833 = vmul.f32 %v767, %v817
        %v834 = vmul.f32 %v769, %v818
        %v835 = vmul.f32 %v771, %v819
        %v836 = vpack.c.bf16 %v821, %v820
        %v837 = vpack.c.bf16 %v823, %v822
        %v838 = vpack.c.bf16 %v825, %v824
        %v839 = vpack.c.bf16 %v827, %v826
        %v840 = vpack.c.bf16 %v829, %v828
        %v841 = vpack.c.bf16 %v831, %v830
        %v842 = vpack.c.bf16 %v833, %v832
        %v843 = vpack.c.bf16 %v835, %v834
        %844 = vmatprep.subr.bf16.mxu0 0
        %845 = vmatpush1.bf16.xpose.msra.mxu0 %v843
        %846 = vmatprep.subr.bf16.mxu0 0
        %847 = vmatpush1.bf16.xpose.msra.mxu0 %v842
        %848 = vmatprep.subr.bf16.mxu0 0
        %849 = vmatpush1.bf16.xpose.msra.mxu0 %v841
        %850 = vmatprep.subr.bf16.mxu0 0
        %851 = vmatpush1.bf16.xpose.msra.mxu0 %v840
        %852 = vmatprep.subr.bf16.mxu0 0
        %853 = vmatpush1.bf16.xpose.msra.mxu0 %v839
        %854 = vmatprep.subr.bf16.mxu0 0
        %855 = vmatpush1.bf16.xpose.msra.mxu0 %v838
        %856 = vmatprep.subr.bf16.mxu0 0
        %857 = vmatpush1.bf16.xpose.msra.mxu0 %v837
        %858 = vmatprep.subr.bf16.mxu0 0
        %859 = vmatpush1.bf16.xpose.msra.mxu0 %v836
        %860 = vmatprep.subr.bf16.mxu0 0
        %861 = vmatpush2.bf16.xpose.msra.mxu0 0
        %862 = vmatprep.subr.bf16.mxu0 0
        %863 = vmatpush2.bf16.xpose.msra.mxu0 0
        %864 = vmatprep.subr.bf16.mxu0 0
        %865 = vmatpush2.bf16.xpose.msra.mxu0 0
        %866 = vmatprep.subr.bf16.mxu0 0
        %867 = vmatpush2.bf16.xpose.msra.mxu0 0
        %868 = vmatprep.subr.bf16.mxu0 0
        %869 = vmatpush2.bf16.xpose.msra.mxu0 0
        %870 = vmatprep.subr.bf16.mxu0 0
        %871 = vmatpush2.bf16.xpose.msra.mxu0 0
        %872 = vmatprep.subr.bf16.mxu0 0
        %873 = vmatpush2.bf16.xpose.msra.mxu0 0
        %874 = vmatprep.subr.bf16.mxu0 0
        %875 = vmatpush2.bf16.xpose.msra.mxu0 0
        %876 = vmatprep.mubr.bf16.mxu0 0
        %877 = vmatmul.mubr.bf16.gmra.mxu0 %v511
        %v878 = vpop.f32.mrf.mxu0
        %v879 = vadd.f32 0.0, %v878
        %v880 = vpop.f32.mrf.mxu0
        %v881 = vpop.f32.mrf.mxu0
        %v882 = vpop.f32.mrf.mxu0
        %883 = vdwg.mxu0
        %v884 = vld [vmem:[#allocation6] sm:$0xf]
        %v885 = vld [vmem:[#allocation6 + $0x4] sm:$0xf]
        %v886 = vpack.c.bf16 %v879, %v879
        %v887 = vpack.c.bf16 %v489, %v489
        %v888 = vpack.c.bf16 %v497, %v497
        %v889 = vpack.c.bf16 %v505, %v505
        %890 = vxpose.xlu0.c.b16.start [1/8] %v887, 128
        %891 = vxpose.xlu0.c.b16.cont [2/8] 0, 128
        %892 = vxpose.xlu0.c.b16.cont [3/8] 0, 128
        %893 = vxpose.xlu0.c.b16.cont [4/8] 0, 128
        %894 = vxpose.xlu0.c.b16.cont [5/8] 0, 128
        %895 = vxpose.xlu0.c.b16.cont [6/8] 0, 128
        %896 = vxpose.xlu0.c.b16.cont [7/8] 0, 128
        %897 = vxpose.xlu0.c.b16.end [8/8] 0, 128
        %v898 = vpop.trf.xlu0
        %v899 = vpop.trf.xlu0
        %v900 = vpop.trf.xlu0
        %v901 = vpop.trf.xlu0
        %v902 = vpop.trf.xlu0
        %v903 = vpop.trf.xlu0
        %v904 = vpop.trf.xlu0
        %v905 = vpop.trf.xlu0
        %v907 = vsel %vm528, %v898, 0
        %v910 = vsel %vm528, %v899, 0
        %v913 = vsel %vm528, %v900, 0
        %v916 = vsel %vm528, %v901, 0
        %v919 = vsel %vm528, %v902, 0
        %v922 = vsel %vm528, %v903, 0
        %v925 = vsel %vm528, %v904, 0
        %v928 = vsel %vm528, %v905, 0
        %v931 = vsel %vm553, %v888, 0
        %933 = vmatprep.subr.bf16.mxu0 0
        %934 = vmatpush1.bf16.msra.mxu0 0
        %935 = vmatprep.subr.bf16.mxu0 0
        %936 = vmatpush1.bf16.msra.mxu0 0
        %937 = vmatprep.subr.bf16.mxu0 0
        %938 = vmatpush1.bf16.msra.mxu0 0
        %939 = vmatprep.subr.bf16.mxu0 0
        %940 = vmatpush1.bf16.msra.mxu0 0
        %941 = vmatprep.subr.bf16.mxu0 0
        %942 = vmatpush1.bf16.msra.mxu0 0
        %943 = vmatprep.subr.bf16.mxu0 0
        %944 = vmatpush1.bf16.msra.mxu0 0
        %945 = vmatprep.subr.bf16.mxu0 0
        %946 = vmatpush1.bf16.msra.mxu0 0
        %947 = vmatprep.subr.bf16.mxu0 0
        %948 = vmatpush1.bf16.msra.mxu0 %v931
        %949 = vmatprep.subr.bf16.mxu0 0
        %950 = vmatpush2.bf16.msra.mxu0 0
        %951 = vmatprep.subr.bf16.mxu0 0
        %952 = vmatpush2.bf16.msra.mxu0 0
        %953 = vmatprep.subr.bf16.mxu0 0
        %954 = vmatpush2.bf16.msra.mxu0 0
        %955 = vmatprep.subr.bf16.mxu0 0
        %956 = vmatpush2.bf16.msra.mxu0 0
        %957 = vmatprep.subr.bf16.mxu0 0
        %958 = vmatpush2.bf16.msra.mxu0 0
        %959 = vmatprep.subr.bf16.mxu0 0
        %960 = vmatpush2.bf16.msra.mxu0 0
        %961 = vmatprep.subr.bf16.mxu0 0
        %962 = vmatpush2.bf16.msra.mxu0 0
        %963 = vmatprep.subr.bf16.mxu0 0
        %964 = vmatpush2.bf16.msra.mxu0 0
        %965 = vmatprep.mubr.bf16.mxu0 0
        %966 = vmatmul.mubr.bf16.gmra.mxu0 %v907
        %v967 = vpop.f32.mrf.mxu0
        %v968 = vadd.f32 0.0, %v967
        %v969 = vpop.f32.mrf.mxu0
        %v970 = vpop.f32.mrf.mxu0
        %v971 = vadd.f32 0.0, %v970
        %v972 = vpop.f32.mrf.mxu0
        %973 = vmatprep.mubr.bf16.mxu0 0
        %974 = vmatmul.mubr.bf16.gmra.mxu0 %v910
        %v975 = vpop.f32.mrf.mxu0
        %v976 = vadd.f32 0.0, %v975
        %v977 = vpop.f32.mrf.mxu0
        %v978 = vpop.f32.mrf.mxu0
        %v979 = vadd.f32 0.0, %v978
        %v980 = vpop.f32.mrf.mxu0
        %981 = vmatprep.mubr.bf16.mxu0 0
        %982 = vmatmul.mubr.bf16.gmra.mxu0 %v913
        %v983 = vpop.f32.mrf.mxu0
        %v984 = vadd.f32 0.0, %v983
        %v985 = vpop.f32.mrf.mxu0
        %v986 = vpop.f32.mrf.mxu0
        %v987 = vadd.f32 0.0, %v986
        %v988 = vpop.f32.mrf.mxu0
        %989 = vmatprep.mubr.bf16.mxu0 0
        %990 = vmatmul.mubr.bf16.gmra.mxu0 %v916
        %v991 = vpop.f32.mrf.mxu0
        %v992 = vadd.f32 0.0, %v991
        %v993 = vpop.f32.mrf.mxu0
        %v994 = vpop.f32.mrf.mxu0
        %v995 = vadd.f32 0.0, %v994
        %v996 = vpop.f32.mrf.mxu0
        %997 = vmatprep.mubr.bf16.mxu0 0
        %998 = vmatmul.mubr.bf16.gmra.mxu0 %v919
        %v999 = vpop.f32.mrf.mxu0
        %v1000 = vadd.f32 0.0, %v999
        %v1001 = vpop.f32.mrf.mxu0
        %v1002 = vpop.f32.mrf.mxu0
        %v1003 = vadd.f32 0.0, %v1002
        %v1004 = vpop.f32.mrf.mxu0
        %1005 = vmatprep.mubr.bf16.mxu0 0
        %1006 = vmatmul.mubr.bf16.gmra.mxu0 %v922
        %v1007 = vpop.f32.mrf.mxu0
        %v1008 = vadd.f32 0.0, %v1007
        %v1009 = vpop.f32.mrf.mxu0
        %v1010 = vpop.f32.mrf.mxu0
        %v1011 = vadd.f32 0.0, %v1010
        %v1012 = vpop.f32.mrf.mxu0
        %1013 = vmatprep.mubr.bf16.mxu0 0
        %1014 = vmatmul.mubr.bf16.gmra.mxu0 %v925
        %v1015 = vpop.f32.mrf.mxu0
        %v1016 = vadd.f32 0.0, %v1015
        %v1017 = vpop.f32.mrf.mxu0
        %v1018 = vpop.f32.mrf.mxu0
        %v1019 = vadd.f32 0.0, %v1018
        %v1020 = vpop.f32.mrf.mxu0
        %1021 = vmatprep.mubr.bf16.mxu0 0
        %1022 = vmatmul.mubr.bf16.gmra.mxu0 %v928
        %v1023 = vpop.f32.mrf.mxu0
        %v1024 = vadd.f32 0.0, %v1023
        %v1025 = vpop.f32.mrf.mxu0
        %v1026 = vpop.f32.mrf.mxu0
        %v1027 = vadd.f32 0.0, %v1026
        %v1028 = vpop.f32.mrf.mxu0
        %1029 = vdwg.mxu0
        %v1030 = vmul.f32 %v968, 0.35355338
        %v1031 = vmul.f32 %v971, 0.35355338
        %v1032 = vmul.f32 %v976, 0.35355338
        %v1033 = vmul.f32 %v979, 0.35355338
        %v1034 = vmul.f32 %v984, 0.35355338
        %v1035 = vmul.f32 %v987, 0.35355338
        %v1036 = vmul.f32 %v992, 0.35355338
        %v1037 = vmul.f32 %v995, 0.35355338
        %v1038 = vmul.f32 %v1000, 0.35355338
        %v1039 = vmul.f32 %v1003, 0.35355338
        %v1040 = vmul.f32 %v1008, 0.35355338
        %v1041 = vmul.f32 %v1011, 0.35355338
        %v1042 = vmul.f32 %v1016, 0.35355338
        %v1043 = vmul.f32 %v1019, 0.35355338
        %v1044 = vmul.f32 %v1024, 0.35355338
        %v1045 = vmul.f32 %v1027, 0.35355338
        %v1046 = vsel %vm675, %v1030, -10000.0
        %v1047 = vsel %vm675, %v1031, -10000.0
        %v1048 = vsel %vm675, %v1032, -10000.0
        %v1049 = vsel %vm675, %v1033, -10000.0
        %v1050 = vsel %vm675, %v1034, -10000.0
        %v1051 = vsel %vm675, %v1035, -10000.0
        %v1052 = vsel %vm675, %v1036, -10000.0
        %v1053 = vsel %vm675, %v1037, -10000.0
        %v1054 = vsel %vm675, %v1038, -10000.0
        %v1055 = vsel %vm675, %v1039, -10000.0
        %v1056 = vsel %vm675, %v1040, -10000.0
        %v1057 = vsel %vm675, %v1041, -10000.0
        %v1058 = vsel %vm675, %v1042, -10000.0
        %v1059 = vsel %vm675, %v1043, -10000.0
        %v1060 = vsel %vm675, %v1044, -10000.0
        %v1061 = vsel %vm675, %v1045, -10000.0
        %1062 = vmax.xlane.f32.xlu0 %v1046
        %v1063 = vpop.xlane.xlu0 %1062
        %1064 = vmax.xlane.f32.xlu0 %v1047
        %v1065 = vpop.xlane.xlu0 %1064
        %1066 = vmax.xlane.f32.xlu0 %v1048
        %v1067 = vpop.xlane.xlu0 %1066
        %1068 = vmax.xlane.f32.xlu0 %v1049
        %v1069 = vpop.xlane.xlu0 %1068
        %1070 = vmax.xlane.f32.xlu0 %v1050
        %v1071 = vpop.xlane.xlu0 %1070
        %1072 = vmax.xlane.f32.xlu0 %v1051
        %v1073 = vpop.xlane.xlu0 %1072
        %1074 = vmax.xlane.f32.xlu0 %v1052
        %v1075 = vpop.xlane.xlu0 %1074
        %1076 = vmax.xlane.f32.xlu0 %v1053
        %v1077 = vpop.xlane.xlu0 %1076
        %1078 = vmax.xlane.f32.xlu0 %v1054
        %v1079 = vpop.xlane.xlu0 %1078
        %1080 = vmax.xlane.f32.xlu0 %v1055
        %v1081 = vpop.xlane.xlu0 %1080
        %1082 = vmax.xlane.f32.xlu0 %v1056
        %v1083 = vpop.xlane.xlu0 %1082
        %1084 = vmax.xlane.f32.xlu0 %v1057
        %v1085 = vpop.xlane.xlu0 %1084
        %1086 = vmax.xlane.f32.xlu0 %v1058
        %v1087 = vpop.xlane.xlu0 %1086
        %1088 = vmax.xlane.f32.xlu0 %v1059
        %v1089 = vpop.xlane.xlu0 %1088
        %1090 = vmax.xlane.f32.xlu0 %v1060
        %v1091 = vpop.xlane.xlu0 %1090
        %1092 = vmax.xlane.f32.xlu0 %v1061
        %v1093 = vpop.xlane.xlu0 %1092
        %v1094 = vsub.f32 %v1046, %v1063
        %v1095 = vsub.f32 %v1047, %v1065
        %v1096 = vsub.f32 %v1048, %v1067
        %v1097 = vsub.f32 %v1049, %v1069
        %v1098 = vsub.f32 %v1050, %v1071
        %v1099 = vsub.f32 %v1051, %v1073
        %v1100 = vsub.f32 %v1052, %v1075
        %v1101 = vsub.f32 %v1053, %v1077
        %v1102 = vsub.f32 %v1054, %v1079
        %v1103 = vsub.f32 %v1055, %v1081
        %v1104 = vsub.f32 %v1056, %v1083
        %v1105 = vsub.f32 %v1057, %v1085
        %v1106 = vsub.f32 %v1058, %v1087
        %v1107 = vsub.f32 %v1059, %v1089
        %v1108 = vsub.f32 %v1060, %v1091
        %v1109 = vsub.f32 %v1061, %v1093
        %v1110 = vmul.f32 %v1094, 1.442695
        %v1111 = vpow.pop %v1110
        %v1112 = vmul.f32 %v1095, 1.442695
        %v1113 = vpow.pop %v1112
        %v1114 = vmul.f32 %v1096, 1.442695
        %v1115 = vpow.pop %v1114
        %v1116 = vmul.f32 %v1097, 1.442695
        %v1117 = vpow.pop %v1116
        %v1118 = vmul.f32 %v1098, 1.442695
        %v1119 = vpow.pop %v1118
        %v1120 = vmul.f32 %v1099, 1.442695
        %v1121 = vpow.pop %v1120
        %v1122 = vmul.f32 %v1100, 1.442695
        %v1123 = vpow.pop %v1122
        %v1124 = vmul.f32 %v1101, 1.442695
        %v1125 = vpow.pop %v1124
        %v1126 = vmul.f32 %v1102, 1.442695
        %v1127 = vpow.pop %v1126
        %v1128 = vmul.f32 %v1103, 1.442695
        %v1129 = vpow.pop %v1128
        %v1130 = vmul.f32 %v1104, 1.442695
        %v1131 = vpow.pop %v1130
        %v1132 = vmul.f32 %v1105, 1.442695
        %v1133 = vpow.pop %v1132
        %v1134 = vmul.f32 %v1106, 1.442695
        %v1135 = vpow.pop %v1134
        %v1136 = vmul.f32 %v1107, 1.442695
        %v1137 = vpow.pop %v1136
        %v1138 = vmul.f32 %v1108, 1.442695
        %v1139 = vpow.pop %v1138
        %v1140 = vmul.f32 %v1109, 1.442695
        %v1141 = vpow.pop %v1140
        %1142 = vadd.xlane.f32.xlu0 %v1111
        %v1143 = vpop.xlane.xlu0 %1142
        %1144 = vadd.xlane.f32.xlu0 %v1113
        %v1145 = vpop.xlane.xlu0 %1144
        %1146 = vadd.xlane.f32.xlu0 %v1115
        %v1147 = vpop.xlane.xlu0 %1146
        %1148 = vadd.xlane.f32.xlu0 %v1117
        %v1149 = vpop.xlane.xlu0 %1148
        %1150 = vadd.xlane.f32.xlu0 %v1119
        %v1151 = vpop.xlane.xlu0 %1150
        %1152 = vadd.xlane.f32.xlu0 %v1121
        %v1153 = vpop.xlane.xlu0 %1152
        %1154 = vadd.xlane.f32.xlu0 %v1123
        %v1155 = vpop.xlane.xlu0 %1154
        %1156 = vadd.xlane.f32.xlu0 %v1125
        %v1157 = vpop.xlane.xlu0 %1156
        %1158 = vadd.xlane.f32.xlu0 %v1127
        %v1159 = vpop.xlane.xlu0 %1158
        %1160 = vadd.xlane.f32.xlu0 %v1129
        %v1161 = vpop.xlane.xlu0 %1160
        %1162 = vadd.xlane.f32.xlu0 %v1131
        %v1163 = vpop.xlane.xlu0 %1162
        %1164 = vadd.xlane.f32.xlu0 %v1133
        %v1165 = vpop.xlane.xlu0 %1164
        %1166 = vadd.xlane.f32.xlu0 %v1135
        %v1167 = vpop.xlane.xlu0 %1166
        %1168 = vadd.xlane.f32.xlu0 %v1137
        %v1169 = vpop.xlane.xlu0 %1168
        %1170 = vadd.xlane.f32.xlu0 %v1139
        %v1171 = vpop.xlane.xlu0 %1170
        %1172 = vadd.xlane.f32.xlu0 %v1141
        %v1173 = vpop.xlane.xlu0 %1172
        %v1174 = vrcp.pop %v1143
        %v1175 = vrcp.pop %v1145
        %v1176 = vrcp.pop %v1147
        %v1177 = vrcp.pop %v1149
        %v1178 = vrcp.pop %v1151
        %v1179 = vrcp.pop %v1153
        %v1180 = vrcp.pop %v1155
        %v1181 = vrcp.pop %v1157
        %v1182 = vrcp.pop %v1159
        %v1183 = vrcp.pop %v1161
        %v1184 = vrcp.pop %v1163
        %v1185 = vrcp.pop %v1165
        %v1186 = vrcp.pop %v1167
        %v1187 = vrcp.pop %v1169
        %v1188 = vrcp.pop %v1171
        %v1189 = vrcp.pop %v1173
        %v1190 = vmul.f32 %v1111, %v1174
        %v1191 = vmul.f32 %v1113, %v1175
        %v1192 = vmul.f32 %v1115, %v1176
        %v1193 = vmul.f32 %v1117, %v1177
        %v1194 = vmul.f32 %v1119, %v1178
        %v1195 = vmul.f32 %v1121, %v1179
        %v1196 = vmul.f32 %v1123, %v1180
        %v1197 = vmul.f32 %v1125, %v1181
        %v1198 = vmul.f32 %v1127, %v1182
        %v1199 = vmul.f32 %v1129, %v1183
        %v1200 = vmul.f32 %v1131, %v1184
        %v1201 = vmul.f32 %v1133, %v1185
        %v1202 = vmul.f32 %v1135, %v1186
        %v1203 = vmul.f32 %v1137, %v1187
        %v1204 = vmul.f32 %v1139, %v1188
        %v1205 = vmul.f32 %v1141, %v1189
        %v1206 = vpack.c.bf16 %v1191, %v1190
        %v1207 = vpack.c.bf16 %v1193, %v1192
        %v1208 = vpack.c.bf16 %v1195, %v1194
        %v1209 = vpack.c.bf16 %v1197, %v1196
        %v1210 = vpack.c.bf16 %v1199, %v1198
        %v1211 = vpack.c.bf16 %v1201, %v1200
        %v1212 = vpack.c.bf16 %v1203, %v1202
        %v1213 = vpack.c.bf16 %v1205, %v1204
        %1214 = vmatprep.subr.bf16.mxu0 0
        %1215 = vmatpush1.bf16.xpose.msra.mxu0 %v1213
        %1216 = vmatprep.subr.bf16.mxu0 0
        %1217 = vmatpush1.bf16.xpose.msra.mxu0 %v1212
        %1218 = vmatprep.subr.bf16.mxu0 0
        %1219 = vmatpush1.bf16.xpose.msra.mxu0 %v1211
        %1220 = vmatprep.subr.bf16.mxu0 0
        %1221 = vmatpush1.bf16.xpose.msra.mxu0 %v1210
        %1222 = vmatprep.subr.bf16.mxu0 0
        %1223 = vmatpush1.bf16.xpose.msra.mxu0 %v1209
        %1224 = vmatprep.subr.bf16.mxu0 0
        %1225 = vmatpush1.bf16.xpose.msra.mxu0 %v1208
        %1226 = vmatprep.subr.bf16.mxu0 0
        %1227 = vmatpush1.bf16.xpose.msra.mxu0 %v1207
        %1228 = vmatprep.subr.bf16.mxu0 0
        %1229 = vmatpush1.bf16.xpose.msra.mxu0 %v1206
        %1230 = vmatprep.subr.bf16.mxu0 0
        %1231 = vmatpush2.bf16.xpose.msra.mxu0 0
        %1232 = vmatprep.subr.bf16.mxu0 0
        %1233 = vmatpush2.bf16.xpose.msra.mxu0 0
        %1234 = vmatprep.subr.bf16.mxu0 0
        %1235 = vmatpush2.bf16.xpose.msra.mxu0 0
        %1236 = vmatprep.subr.bf16.mxu0 0
        %1237 = vmatpush2.bf16.xpose.msra.mxu0 0
        %1238 = vmatprep.subr.bf16.mxu0 0
        %1239 = vmatpush2.bf16.xpose.msra.mxu0 0
        %1240 = vmatprep.subr.bf16.mxu0 0
        %1241 = vmatpush2.bf16.xpose.msra.mxu0 0
        %1242 = vmatprep.subr.bf16.mxu0 0
        %1243 = vmatpush2.bf16.xpose.msra.mxu0 0
        %1244 = vmatprep.subr.bf16.mxu0 0
        %1245 = vmatpush2.bf16.xpose.msra.mxu0 0
        %1246 = vmatprep.mubr.bf16.mxu0 0
        %1247 = vmatmul.mubr.bf16.gmra.mxu0 %v889
        %v1248 = vpop.f32.mrf.mxu0
        %v1249 = vadd.f32 0.0, %v1248
        %v1250 = vpop.f32.mrf.mxu0
        %v1251 = vpop.f32.mrf.mxu0
        %v1252 = vpop.f32.mrf.mxu0
        %1253 = vdwg.mxu0
        %s1254 = scalar_lea.vmem [#allocation6], 8
        %v1255 = vld [vmem:[%s1254] sm:$0xf]
        %v1256 = vld [vmem:[%s1254 + $0x4] sm:$0xf]
        %v1257 = vpack.c.bf16 %v1249, %v1249
        %v1260 = vunpack.c.l.b16 %v1255
        %v1261 = vunpack.c.l.b16 %v1256
        %v1262 = vpack.c.b16 %v1261, %v1260
        %v1264 = vsel %vm528, %v1262, 0
        %v1267 = vsel %vm553, %v1257, 0
        %1269 = vmatprep.subr.bf16.mxu0 0
        %1270 = vmatpush1.bf16.msra.mxu0 0
        %1271 = vmatprep.subr.bf16.mxu0 0
        %1272 = vmatpush1.bf16.msra.mxu0 0
        %1273 = vmatprep.subr.bf16.mxu0 0
        %1274 = vmatpush1.bf16.msra.mxu0 0
        %1275 = vmatprep.subr.bf16.mxu0 0
        %1276 = vmatpush1.bf16.msra.mxu0 0
        %1277 = vmatprep.subr.bf16.mxu0 0
        %1278 = vmatpush1.bf16.msra.mxu0 0
        %1279 = vmatprep.subr.bf16.mxu0 0
        %1280 = vmatpush1.bf16.msra.mxu0 0
        %1281 = vmatprep.subr.bf16.mxu0 0
        %1282 = vmatpush1.bf16.msra.mxu0 0
        %1283 = vmatprep.subr.bf16.mxu0 0
        %1284 = vmatpush1.bf16.msra.mxu0 %v1267
        %1285 = vmatprep.subr.bf16.mxu0 0
        %1286 = vmatpush2.bf16.msra.mxu0 0
        %1287 = vmatprep.subr.bf16.mxu0 0
        %1288 = vmatpush2.bf16.msra.mxu0 0
        %1289 = vmatprep.subr.bf16.mxu0 0
        %1290 = vmatpush2.bf16.msra.mxu0 0
        %1291 = vmatprep.subr.bf16.mxu0 0
        %1292 = vmatpush2.bf16.msra.mxu0 0
        %1293 = vmatprep.subr.bf16.mxu0 0
        %1294 = vmatpush2.bf16.msra.mxu0 0
        %1295 = vmatprep.subr.bf16.mxu0 0
        %1296 = vmatpush2.bf16.msra.mxu0 0
        %1297 = vmatprep.subr.bf16.mxu0 0
        %1298 = vmatpush2.bf16.msra.mxu0 0
        %1299 = vmatprep.subr.bf16.mxu0 0
        %1300 = vmatpush2.bf16.msra.mxu0 0
        %1301 = vmatprep.mubr.bf16.mxu0 0
        %1302 = vmatmul.mubr.bf16.gmra.mxu0 %v1264
        %v1303 = vpop.f32.mrf.mxu0
        %v1304 = vadd.f32 0.0, %v1303
        %v1305 = vpop.f32.mrf.mxu0
        %v1306 = vpop.f32.mrf.mxu0
        %v1307 = vadd.f32 0.0, %v1306
        %v1308 = vpop.f32.mrf.mxu0
        %1309 = vdwg.mxu0
        %v1312 = vunpack.c.l.b16 %v884
        %v1313 = vunpack.c.l.b16 %v885
        %v1314 = vpack.c.b16 %v1313, %v1312
        %v1316 = vsel %vm528, %v1314, 0
        %v1319 = vsel %vm553, %v886, 0
        %1321 = vmatprep.subr.bf16.mxu0 0
        %1322 = vmatpush1.bf16.msra.mxu0 0
        %1323 = vmatprep.subr.bf16.mxu0 0
        %1324 = vmatpush1.bf16.msra.mxu0 0
        %1325 = vmatprep.subr.bf16.mxu0 0
        %1326 = vmatpush1.bf16.msra.mxu0 0
        %1327 = vmatprep.subr.bf16.mxu0 0
        %1328 = vmatpush1.bf16.msra.mxu0 0
        %1329 = vmatprep.subr.bf16.mxu0 0
        %1330 = vmatpush1.bf16.msra.mxu0 0
        %1331 = vmatprep.subr.bf16.mxu0 0
        %1332 = vmatpush1.bf16.msra.mxu0 0
        %1333 = vmatprep.subr.bf16.mxu0 0
        %1334 = vmatpush1.bf16.msra.mxu0 0
        %1335 = vmatprep.subr.bf16.mxu0 0
        %1336 = vmatpush1.bf16.msra.mxu0 %v1319
        %1337 = vmatprep.subr.bf16.mxu0 0
        %1338 = vmatpush2.bf16.msra.mxu0 0
        %1339 = vmatprep.subr.bf16.mxu0 0
        %1340 = vmatpush2.bf16.msra.mxu0 0
        %1341 = vmatprep.subr.bf16.mxu0 0
        %1342 = vmatpush2.bf16.msra.mxu0 0
        %1343 = vmatprep.subr.bf16.mxu0 0
        %1344 = vmatpush2.bf16.msra.mxu0 0
        %1345 = vmatprep.subr.bf16.mxu0 0
        %1346 = vmatpush2.bf16.msra.mxu0 0
        %1347 = vmatprep.subr.bf16.mxu0 0
        %1348 = vmatpush2.bf16.msra.mxu0 0
        %1349 = vmatprep.subr.bf16.mxu0 0
        %1350 = vmatpush2.bf16.msra.mxu0 0
        %1351 = vmatprep.subr.bf16.mxu0 0
        %1352 = vmatpush2.bf16.msra.mxu0 0
        %1353 = vmatprep.mubr.bf16.mxu0 0
        %1354 = vmatmul.mubr.bf16.gmra.mxu0 %v1316
        %v1355 = vpop.f32.mrf.mxu0
        %v1356 = vadd.f32 %v1304, %v1355
        %v1357 = vpop.f32.mrf.mxu0
        %v1358 = vpop.f32.mrf.mxu0
        %v1359 = vadd.f32 %v1307, %v1358
        %v1360 = vpop.f32.mrf.mxu0
        %1361 = vdwg.mxu0
        %v1362 = vld [vmem:[#allocation7] sm:$0xff]
        %v1363 = vld [vmem:[#allocation7 + $0x8] sm:$0xff]
        %1365 = vset.pattern.permute.xlu0 0
        %1366 = vperm.xlu0 %1365, %v1362
        %v1367 = vpop.permute.xlu0 %1366
        %1370 = vset.pattern.permute.xlu0 0
        %1371 = vperm.xlu0 %1370, %v1363
        %v1372 = vpop.permute.xlu0 %1371
        %v1374 = vadd.f32 %v1356, %v1367
        %v1375 = vadd.f32 %v1359, %v1372
        %v1376 = vadd.f32 %v380, %v1374
        %v1377 = vadd.f32 %v381, %v1375
        %v1378 = vadd.f32 %v1376, %v1377
        %v1379 = vrot.slane %v1378, 4
        %v1380 = vadd.f32 %v1378, %v1379
        %v1381 = vrot.slane %v1380, 2
        %v1382 = vadd.f32 %v1380, %v1381
        %v1383 = vrot.slane %v1382, 1
        %v1384 = vadd.f32 %v1382, %v1383
        %v1385 = vrcp.pop 16.0
        %v1386 = vmul.f32 %v1384, %v1385
        %v1387 = vsub.f32 %v1376, %v1386
        %v1388 = vsub.f32 %v1377, %v1386
        %v1389 = vmul.f32 %v1387, %v1387
        %v1390 = vmul.f32 %v1388, %v1388
        %v1391 = vadd.f32 %v1389, %v1390
        %v1392 = vrot.slane %v1391, 4
        %v1393 = vadd.f32 %v1391, %v1392
        %v1394 = vrot.slane %v1393, 2
        %v1395 = vadd.f32 %v1393, %v1394
        %v1396 = vrot.slane %v1395, 1
        %v1397 = vadd.f32 %v1395, %v1396
        %v1398 = vmul.f32 %v1397, %v1385
        %v1399 = vadd.f32 %v1398, 1e-05
        %v1400 = vrsqrt.pop %v1399
        %v1401 = vmul.f32 %v1387, %v1400
        %v1402 = vmul.f32 %v1388, %v1400
        %v1403 = vld [vmem:[%s6] sm:$0xff]
        %v1404 = vld [vmem:[%s6 + $0x8] sm:$0xff]
        %1406 = vset.pattern.permute.xlu0 0
        %1407 = vperm.xlu0 %1406, %v1403
        %v1408 = vpop.permute.xlu0 %1407
        %1411 = vset.pattern.permute.xlu0 0
        %1412 = vperm.xlu0 %1411, %v1404
        %v1413 = vpop.permute.xlu0 %1412
        %v1415 = vmul.f32 %v1401, %v1408
        %v1416 = vmul.f32 %v1402, %v1413
        %v1417 = vld [vmem:[%s7] sm:$0xff]
        %v1418 = vld [vmem:[%s7 + $0x8] sm:$0xff]
        %1420 = vset.pattern.permute.xlu0 0
        %1421 = vperm.xlu0 %1420, %v1417
        %v1422 = vpop.permute.xlu0 %1421
        %1425 = vset.pattern.permute.xlu0 0
        %1426 = vperm.xlu0 %1425, %v1418
        %v1427 = vpop.permute.xlu0 %1426
        %v1429 = vadd.f32 %v1415, %v1422
        %v1430 = vadd.f32 %v1416, %v1427
        %1431 = vst [vmem:[%s378] sm:$0xff] %v1429
        %1432 = vst [vmem:[%s378 + $0x8] sm:$0xff] %v1430
        %p1433 = scmp.lt.s32.totalorder %s22, 1
        %s1434 = scalar_select %p1433, %s22, 1
        %s1435 = smul.addr %s1434, 2
        %s1436 = smul.addr %s1435, 8
        %s1437 = scalar_lea.vmem %s8, %s1436
        // Predicated region
        $region69: #{phase1.23} parent=51 // pred_check
          %p1438 = pneg %p218
        $region70: #{phase1.23} parent=51 // pred_check_branch
          %1440 = sbr.rel (%p1438) target = $region72
        $region71: #{phase1.23} parent=51 // pred_region
          _
        $region72: #{phase1.23} parent=51 // pred_fallthru
          _
      $region52: #{phase1.23} parent=5 // pred_fallthru
        _
      %p1441 = scmp.le.s32.totalorder 2, %s17
      // Predicated region
      $region73: #{phase1.23} parent=5 // pred_check
        %p1442 = pneg %p1441
      $region74: #{phase1.23} parent=5 // pred_check_branch
        %1444 = sbr.rel (%p1442) target = $region76
      $region75: #{phase1.23} parent=5 // pred_region
        %s1445 = ssub.s32 %s17, 2
        // Predicated region
        $region77: #{phase1.23} parent=75 // pred_check
          %p1446 = pneg %p224
        $region78: #{phase1.23} parent=75 // pred_check_branch
          %1448 = sbr.rel (%p1446) target = $region80
        $region79: #{phase1.23} parent=75 // pred_region
          %p1449 = scmp.lt.s32.totalorder %s23, 1
          %s1450 = scalar_select %p1449, %s23, 1
          %s1451 = smul.addr %s1450, 2
          %s1452 = smul.addr %s1451, 8
          %s1453 = scalar_lea.vmem %s8, %s1452
        $region80: #{phase1.23} parent=75 // pred_fallthru
          _
      $region76: #{phase1.23} parent=5 // pred_fallthru
        _
    $region6: #{phase1.23} parent=1 // loop_footer
      %s21 = sadd.s32 1, %s17
    $region7: #{phase1.23} parent=1 // loop_footer_branch
      %16 = sbr.rel target = $region3
    $region8: #{phase1.23} parent=1 // loop_exit
      _
    %1454 = vsyncpa [#allocation3], 1
    %s1455 = scalar_lea.sflag [#allocation3], 1
    %1456 = vsyncpa %s1455, 1
    %1457 = vsyncpa [#allocation5], 1
    %1458 = vsyncpa [#allocation8], 1

// kernel: phase1.21
$region0: #{phase1.21}
  #allocation0 [shape = 'u32[]', space=smem, size = 0x4, offset = 0x4, fixed_abs, tag = 'smem constant byte address 0x4 - core index']
  #allocation1 [shape = 'u32[144,128]{1,0:T(1,128)}', space=vmem, size = 0x12000, scoped, tag = 'internal scratch']
  %s0 = inlined_call_operand.vmem [shape: f32[2,16,128], index: 0, kind: input, shape index: {}]
  %s1 = inlined_call_operand.vmem [shape: f32[2,1,128], index: 1, kind: input, shape index: {}]
  %s2 = inlined_call_operand.vmem [shape: bf16[48,16], index: 2, kind: input, shape index: {}]
  %s3 = inlined_call_operand.hbm [shape: f32[48,1], index: 3, kind: input, shape index: {}]
  %s4 = inlined_call_operand.hbm [shape: bf16[2,16,8], index: 4, kind: input, shape index: {}]
  %s5 = inlined_call_operand.hbm [shape: f32[16,1], index: 5, kind: input, shape index: {}]
  %s6 = inlined_call_operand.vmem [shape: f32[16,1], index: 6, kind: input, shape index: {}]
  %s7 = inlined_call_operand.vmem [shape: f32[16,1], index: 7, kind: input, shape index: {}]
  %s8 = inlined_call_operand.vmem [shape: f32[2,16,128], index: 8, kind: output, shape index: {}]
  %s9 = sld [smem:[#allocation0]]
  $region77: #{phase1.21} parent=0
    _
  %s11 = ssub.s32 1, %s9
  %s12 = scalar_select 0, %s11, %s9
  $region1: #{phase1.21} parent=0
    #allocation2 [shape = 'u8[24576]{0}', space=vmem, size = 0x6000, scoped, tag = 'input window, operand 3, single buffered']
    #allocation3 [shape = 's32[2]{0}', space=sflag, size = 0x8, scoped, tag = 'scoped memory for phase1.21']
    #allocation4 [shape = 'u8[8192]{0}', space=vmem, size = 0x2000, scoped, tag = 'input window, operand 4, single buffered']
    #allocation5 [shape = 's32[1]{0}', space=sflag, size = 0x4, scoped, tag = 'scoped memory for phase1.21']
    #allocation6 [shape = 'u8[8192]{0}', space=vmem, size = 0x2000, scoped, tag = 'input window, operand 5, single buffered']
    %13 = vsyncpa [#allocation3], 0
    %14 = vsyncpa [#allocation5], 0
    loop: start=0, step=1, limit=4
    $region2: #{phase1.21} parent=1 // loop_pre_header
      _
    $region3: #{phase1.21} parent=1 // loop_header
      %s16 = sphi 0, %s20
      %p17 = scmp.ge.s32.totalorder %s16, 4
      %s26 = sphi 0, %s28
      %s29 = sphi 0, %s26
      %s30 = sphi 0, %s29
      %s46 = sphi 0, %s30
      %s52 = sphi 0, %s54
      %s55 = sphi 0, %s52
      %s56 = sphi 0, %s55
      %s72 = sphi 0, %s56
      %s76 = sphi 0, %s76
      %s78 = sphi 0, %s76
      %s79 = sphi 0, %s78
      %s93 = sphi 0, %s79
      %s97 = sphi 0, %s97
      %s99 = sphi 0, %s97
      %s100 = sphi 0, %s99
      %s114 = sphi 0, %s100
      %s118 = sphi 0, %s118
      %s120 = sphi 0, %s118
      %s121 = sphi 0, %s120
      %s135 = sphi 0, %s121
      %s139 = sphi 0, %s139
      %s141 = sphi 0, %s139
      %s142 = sphi 0, %s141
      %s156 = sphi 0, %s142
      %s160 = sphi 0, %s160
      %s162 = sphi 0, %s160
      %s163 = sphi 0, %s162
      %s177 = sphi 0, %s163
      %s181 = sphi 0, %s181
      %s183 = sphi 0, %s181
      %s184 = sphi 0, %s183
      %s198 = sphi 0, %s184
      %s204 = sphi 0, %s206
      %s207 = sphi 0, %s204
      %s208 = sphi 0, %s207
      %s224 = sphi 0, %s208
    $region4: #{phase1.21} parent=1 // loop_header_branch
      %19 = sbr.rel (%p17) target = $region8
    $region5: #{phase1.21} parent=1 // loop_body
      %s21 = ssub.s32 %s16, 1
      %s22 = ssub.s32 %s16, 2
      %s23 = sadd.s32 %s16, 1
      %s24 = ssub.s32 %s16, %s23
      %p25 = scmp.eq.s32.totalorder %s24, 0
      %s27 = sadd.s32 %s26, 1
      %s28 = scalar_select %p25, %s26, %s27
      %p31 = pneg %p25
      %p32 = scmp.eq.s32.totalorder %s16, 1
      %p33 = por %p31, %p32
      %p34 = scmp.ne.s32.totalorder %s26, %s29
      %p35 = scmp.eq.s32.totalorder %s16, 0
      %p36 = por %p34, %p35
      %p37 = scmp.ne.s32.totalorder %s26, %s29
      %p38 = scmp.eq.s32.totalorder %s21, 1
      %p39 = por %p37, %p38
      %p40 = scmp.ne.s32.totalorder %s29, %s30
      %p41 = scmp.eq.s32.totalorder %s21, 0
      %p42 = por %p40, %p41
      %p43 = scmp.ne.s32.totalorder %s29, %s30
      %p44 = scmp.eq.s32.totalorder %s22, 1
      %p45 = por %p43, %p44
      %p47 = scmp.ne.s32.totalorder %s30, %s46
      %p48 = scmp.eq.s32.totalorder %s22, 0
      %p49 = por %p47, %p48
      %s50 = ssub.s32 %s16, %s23
      %p51 = scmp.eq.s32.totalorder %s50, 0
      %s53 = sadd.s32 %s52, 1
      %s54 = scalar_select %p51, %s52, %s53
      %p57 = pneg %p51
      %p58 = scmp.eq.s32.totalorder %s16, 1
      %p59 = por %p57, %p58
      %p60 = scmp.ne.s32.totalorder %s52, %s55
      %p61 = scmp.eq.s32.totalorder %s16, 0
      %p62 = por %p60, %p61
      %p63 = scmp.ne.s32.totalorder %s52, %s55
      %p64 = scmp.eq.s32.totalorder %s21, 1
      %p65 = por %p63, %p64
      %p66 = scmp.ne.s32.totalorder %s55, %s56
      %p67 = scmp.eq.s32.totalorder %s21, 0
      %p68 = por %p66, %p67
      %p69 = scmp.ne.s32.totalorder %s55, %s56
      %p70 = scmp.eq.s32.totalorder %s22, 1
      %p71 = por %p69, %p70
      %p73 = scmp.ne.s32.totalorder %s56, %s72
      %p74 = scmp.eq.s32.totalorder %s22, 0
      %p75 = por %p73, %p74
      %s77 = sadd.s32 %s76, 1
      %p80 = scmp.eq.s32.totalorder %s16, 1
      %p81 = scmp.ne.s32.totalorder %s76, %s78
      %p82 = scmp.eq.s32.totalorder %s16, 0
      %p83 = por %p81, %p82
      %p84 = scmp.ne.s32.totalorder %s76, %s78
      %p85 = scmp.eq.s32.totalorder %s21, 1
      %p86 = por %p84, %p85
      %p87 = scmp.ne.s32.totalorder %s78, %s79
      %p88 = scmp.eq.s32.totalorder %s21, 0
      %p89 = por %p87, %p88
      %p90 = scmp.ne.s32.totalorder %s78, %s79
      %p91 = scmp.eq.s32.totalorder %s22, 1
      %p92 = por %p90, %p91
      %p94 = scmp.ne.s32.totalorder %s79, %s93
      %p95 = scmp.eq.s32.totalorder %s22, 0
      %p96 = por %p94, %p95
      %s98 = sadd.s32 %s97, 1
      %p101 = scmp.eq.s32.totalorder %s16, 1
      %p102 = scmp.ne.s32.totalorder %s97, %s99
      %p103 = scmp.eq.s32.totalorder %s16, 0
      %p104 = por %p102, %p103
      %p105 = scmp.ne.s32.totalorder %s97, %s99
      %p106 = scmp.eq.s32.totalorder %s21, 1
      %p107 = por %p105, %p106
      %p108 = scmp.ne.s32.totalorder %s99, %s100
      %p109 = scmp.eq.s32.totalorder %s21, 0
      %p110 = por %p108, %p109
      %p111 = scmp.ne.s32.totalorder %s99, %s100
      %p112 = scmp.eq.s32.totalorder %s22, 1
      %p113 = por %p111, %p112
      %p115 = scmp.ne.s32.totalorder %s100, %s114
      %p116 = scmp.eq.s32.totalorder %s22, 0
      %p117 = por %p115, %p116
      %s119 = sadd.s32 %s118, 1
      %p122 = scmp.eq.s32.totalorder %s16, 1
      %p123 = scmp.ne.s32.totalorder %s118, %s120
      %p124 = scmp.eq.s32.totalorder %s16, 0
      %p125 = por %p123, %p124
      %p126 = scmp.ne.s32.totalorder %s118, %s120
      %p127 = scmp.eq.s32.totalorder %s21, 1
      %p128 = por %p126, %p127
      %p129 = scmp.ne.s32.totalorder %s120, %s121
      %p130 = scmp.eq.s32.totalorder %s21, 0
      %p131 = por %p129, %p130
      %p132 = scmp.ne.s32.totalorder %s120, %s121
      %p133 = scmp.eq.s32.totalorder %s22, 1
      %p134 = por %p132, %p133
      %p136 = scmp.ne.s32.totalorder %s121, %s135
      %p137 = scmp.eq.s32.totalorder %s22, 0
      %p138 = por %p136, %p137
      %s140 = sadd.s32 %s139, 1
      %p143 = scmp.eq.s32.totalorder %s16, 1
      %p144 = scmp.ne.s32.totalorder %s139, %s141
      %p145 = scmp.eq.s32.totalorder %s16, 0
      %p146 = por %p144, %p145
      %p147 = scmp.ne.s32.totalorder %s139, %s141
      %p148 = scmp.eq.s32.totalorder %s21, 1
      %p149 = por %p147, %p148
      %p150 = scmp.ne.s32.totalorder %s141, %s142
      %p151 = scmp.eq.s32.totalorder %s21, 0
      %p152 = por %p150, %p151
      %p153 = scmp.ne.s32.totalorder %s141, %s142
      %p154 = scmp.eq.s32.totalorder %s22, 1
      %p155 = por %p153, %p154
      %p157 = scmp.ne.s32.totalorder %s142, %s156
      %p158 = scmp.eq.s32.totalorder %s22, 0
      %p159 = por %p157, %p158
      %s161 = sadd.s32 %s160, 1
      %p164 = scmp.eq.s32.totalorder %s16, 1
      %p165 = scmp.ne.s32.totalorder %s160, %s162
      %p166 = scmp.eq.s32.totalorder %s16, 0
      %p167 = por %p165, %p166
      %p168 = scmp.ne.s32.totalorder %s160, %s162
      %p169 = scmp.eq.s32.totalorder %s21, 1
      %p170 = por %p168, %p169
      %p171 = scmp.ne.s32.totalorder %s162, %s163
      %p172 = scmp.eq.s32.totalorder %s21, 0
      %p173 = por %p171, %p172
      %p174 = scmp.ne.s32.totalorder %s162, %s163
      %p175 = scmp.eq.s32.totalorder %s22, 1
      %p176 = por %p174, %p175
      %p178 = scmp.ne.s32.totalorder %s163, %s177
      %p179 = scmp.eq.s32.totalorder %s22, 0
      %p180 = por %p178, %p179
      %s182 = sadd.s32 %s181, 1
      %p185 = scmp.eq.s32.totalorder %s16, 1
      %p186 = scmp.ne.s32.totalorder %s181, %s183
      %p187 = scmp.eq.s32.totalorder %s16, 0
      %p188 = por %p186, %p187
      %p189 = scmp.ne.s32.totalorder %s181, %s183
      %p190 = scmp.eq.s32.totalorder %s21, 1
      %p191 = por %p189, %p190
      %p192 = scmp.ne.s32.totalorder %s183, %s184
      %p193 = scmp.eq.s32.totalorder %s21, 0
      %p194 = por %p192, %p193
      %p195 = scmp.ne.s32.totalorder %s183, %s184
      %p196 = scmp.eq.s32.totalorder %s22, 1
      %p197 = por %p195, %p196
      %p199 = scmp.ne.s32.totalorder %s184, %s198
      %p200 = scmp.eq.s32.totalorder %s22, 0
      %p201 = por %p199, %p200
      %s202 = ssub.s32 %s16, %s23
      %p203 = scmp.eq.s32.totalorder %s202, 0
      %s205 = sadd.s32 %s204, 1
      %s206 = scalar_select %p203, %s204, %s205
      %p209 = pneg %p203
      %p210 = scmp.eq.s32.totalorder %s16, 1
      %p211 = por %p209, %p210
      %p212 = scmp.ne.s32.totalorder %s204, %s207
      %p213 = scmp.eq.s32.totalorder %s16, 0
      %p214 = por %p212, %p213
      %p215 = scmp.ne.s32.totalorder %s204, %s207
      %p216 = scmp.eq.s32.totalorder %s21, 1
      %p217 = por %p215, %p216
      %p218 = scmp.ne.s32.totalorder %s207, %s208
      %p219 = scmp.eq.s32.totalorder %s21, 0
      %p220 = por %p218, %p219
      %p221 = scmp.ne.s32.totalorder %s207, %s208
      %p222 = scmp.eq.s32.totalorder %s22, 1
      %p223 = por %p221, %p222
      %p225 = scmp.ne.s32.totalorder %s208, %s224
      %p226 = scmp.eq.s32.totalorder %s22, 0
      %p227 = por %p225, %p226
      %p228 = scmp.le.s32.totalorder 1, %s16
      %p229 = scmp.lt.s32.totalorder %s16, 3
      %p230 = pnand %p228, %p229
      %p231 = pneg %p230
      // Predicated region
      $region9: #{phase1.21} parent=5 // pred_check
        _
      $region10: #{phase1.21} parent=5 // pred_check_branch
        %233 = sbr.rel (%p230) target = $region12
      $region11: #{phase1.21} parent=5 // pred_region
        %s234 = ssub.s32 %s16, 1
        // Predicated region
        $region13: #{phase1.21} parent=11 // pred_check
          %p235 = pneg %p89
        $region14: #{phase1.21} parent=11 // pred_check_branch
          %237 = sbr.rel (%p235) target = $region16
        $region15: #{phase1.21} parent=11 // pred_region
          _
        $region16: #{phase1.21} parent=11 // pred_fallthru
          _
        // Predicated region
        $region17: #{phase1.21} parent=11 // pred_check
          %p238 = pneg %p110
        $region18: #{phase1.21} parent=11 // pred_check_branch
          %240 = sbr.rel (%p238) target = $region20
        $region19: #{phase1.21} parent=11 // pred_region
          %s242 = ssub.s32 768, 768
          %243 = vsyncadd [#allocation3], %s242
          %s244 = sshll.u32 [#allocation2], 4
          %s245 = int_to_ptr.vmem [resolvable:$true] %s244
          %250 = dma.hbm_to_vmem [thread:$0]  %s3, 768, %s245, [#allocation3], 128, 128, 8
        $region20: #{phase1.21} parent=11 // pred_fallthru
          _
        // Predicated region
        $region21: #{phase1.21} parent=11 // pred_check
          %p251 = pneg %p131
        $region22: #{phase1.21} parent=11 // pred_check_branch
          %253 = sbr.rel (%p251) target = $region24
        $region23: #{phase1.21} parent=11 // pred_region
          %s255 = ssub.s32 256, 256
          %256 = vsyncadd [#allocation5], %s255
          %s257 = sshll.u32 [#allocation4], 4
          %s258 = int_to_ptr.vmem [resolvable:$true] %s257
          %263 = dma.hbm_to_vmem [thread:$0]  %s4, 256, %s258, [#allocation5], 64, 64, 4
        $region24: #{phase1.21} parent=11 // pred_fallthru
          _
        // Predicated region
        $region25: #{phase1.21} parent=11 // pred_check
          %p264 = pneg %p152
        $region26: #{phase1.21} parent=11 // pred_check_branch
          %266 = sbr.rel (%p264) target = $region28
        $region27: #{phase1.21} parent=11 // pred_region
          %s268 = ssub.s32 256, 256
          %269 = vsyncadd [#allocation5], %s268
          %s270 = sshll.u32 [#allocation6], 4
          %s271 = int_to_ptr.vmem [resolvable:$true] %s270
          %276 = dma.hbm_to_vmem [thread:$0]  %s5, 256, %s271, [#allocation5], 128, 128, 8
        $region28: #{phase1.21} parent=11 // pred_fallthru
          _
        // Predicated region
        $region29: #{phase1.21} parent=11 // pred_check
          %p277 = pneg %p173
        $region30: #{phase1.21} parent=11 // pred_check_branch
          %279 = sbr.rel (%p277) target = $region32
        $region31: #{phase1.21} parent=11 // pred_region
          _
        $region32: #{phase1.21} parent=11 // pred_fallthru
          _
        // Predicated region
        $region33: #{phase1.21} parent=11 // pred_check
          %p280 = pneg %p194
        $region34: #{phase1.21} parent=11 // pred_check_branch
          %282 = sbr.rel (%p280) target = $region36
        $region35: #{phase1.21} parent=11 // pred_region
          _
        $region36: #{phase1.21} parent=11 // pred_fallthru
          _
      $region12: #{phase1.21} parent=5 // pred_fallthru
        _
      %p283 = scmp.lt.s32.totalorder %s16, 2
      // Predicated region
      $region37: #{phase1.21} parent=5 // pred_check
        %p284 = pneg %p283
      $region38: #{phase1.21} parent=5 // pred_check_branch
        %286 = sbr.rel (%p284) target = $region40
      $region39: #{phase1.21} parent=5 // pred_region
        // Predicated region
        $region41: #{phase1.21} parent=39 // pred_check
          %p287 = pneg %p36
        $region42: #{phase1.21} parent=39 // pred_check_branch
          %289 = sbr.rel (%p287) target = $region44
        $region43: #{phase1.21} parent=39 // pred_region
          %p290 = scmp.lt.s32.totalorder %s16, 1
          %s291 = scalar_select %p290, %s16, 1
          %s292 = smul.addr %s291, 2
          %s293 = smul.addr %s292, 8
          %s294 = scalar_lea.vmem %s0, %s293
        $region44: #{phase1.21} parent=39 // pred_fallthru
          _
        // Predicated region
        $region45: #{phase1.21} parent=39 // pred_check
          %p295 = pneg %p62
        $region46: #{phase1.21} parent=39 // pred_check_branch
          %297 = sbr.rel (%p295) target = $region48
        $region47: #{phase1.21} parent=39 // pred_region
          %p298 = scmp.lt.s32.totalorder %s16, 1
          %s299 = scalar_select %p298, %s16, 1
          %s300 = scalar_lea.vmem %s1, %s299
        $region48: #{phase1.21} parent=39 // pred_fallthru
          _
      $region40: #{phase1.21} parent=5 // pred_fallthru
        _
      %p301 = scmp.le.s32.totalorder 1, %s16
      %p302 = scmp.lt.s32.totalorder %s16, 3
      %p303 = pnand %p301, %p302
      %p304 = pneg %p303
      // Predicated region
      $region49: #{phase1.21} parent=5 // pred_check
        _
      $region50: #{phase1.21} parent=5 // pred_check_branch
        %306 = sbr.rel (%p303) target = $region52
      $region51: #{phase1.21} parent=5 // pred_region
        %s307 = ssub.s32 %s16, 1
        // Predicated region
        $region53: #{phase1.21} parent=51 // pred_check
          %p308 = pneg %p110
        $region54: #{phase1.21} parent=51 // pred_check_branch
          %310 = sbr.rel (%p308) target = $region56
        $region55: #{phase1.21} parent=51 // pred_region
          %311 = dma.done [#allocation3], 768
        $region56: #{phase1.21} parent=51 // pred_fallthru
          _
        // Predicated region
        $region57: #{phase1.21} parent=51 // pred_check
          %p312 = pneg %p131
        $region58: #{phase1.21} parent=51 // pred_check_branch
          %314 = sbr.rel (%p312) target = $region60
        $region59: #{phase1.21} parent=51 // pred_region
          %315 = dma.done [#allocation5], 256
        $region60: #{phase1.21} parent=51 // pred_fallthru
          _
        // Predicated region
        $region61: #{phase1.21} parent=51 // pred_check
          %p316 = pneg %p152
        $region62: #{phase1.21} parent=51 // pred_check_branch
          %318 = sbr.rel (%p316) target = $region64
        $region63: #{phase1.21} parent=51 // pred_region
          %319 = dma.done [#allocation5], 256
        $region64: #{phase1.21} parent=51 // pred_fallthru
          _
        %p320 = scmp.lt.s32.totalorder %s21, 1
        %s321 = scalar_select %p320, %s21, 1
        %s322 = smul.addr %s321, 2
        %s323 = smul.addr %s322, 8
        %s324 = scalar_lea.vmem %s0, %s323
        %p325 = pneg %p42
        %p326 = pneg %p39
        %p327 = scmp.lt.s32.totalorder %s21, 1
        %s328 = scalar_select %p327, %s21, 1
        %s329 = scalar_lea.vmem %s1, %s328
        %p330 = pneg %p68
        %p331 = pneg %p65
        %p332 = pneg %p89
        %p333 = pneg %p86
        %p334 = pneg %p110
        %p335 = pneg %p107
        %p336 = pneg %p131
        %p337 = pneg %p128
        %p338 = pneg %p152
        %p339 = pneg %p149
        %p340 = pneg %p173
        %p341 = pneg %p170
        %p342 = pneg %p194
        %p343 = pneg %p191
        %p344 = pneg %p220
        %p345 = pneg %p217
        %p346 = scmp.lt.s32.totalorder %s21, 1
        %s347 = scalar_select %p346, %s21, 1
        %s348 = smul.addr %s347, 2
        %s349 = smul.addr %s348, 8
        %s350 = scalar_lea.vmem %s8, %s349
        %p351 = scmp.lt.s32.totalorder %s21, 1
        %s352 = scalar_select %p351, %s21, 1
        %s353 = smul.addr %s352, 2
        %s354 = smul.addr %s353, 8
        %s355 = scalar_lea.vmem %s0, %s354
        %p356 = scmp.lt.s32.totalorder %s21, 1
        %s357 = scalar_select %p356, %s21, 1
        %s358 = scalar_lea.vmem %s1, %s357
        %p359 = scmp.lt.s32.totalorder %s21, 1
        %s360 = scalar_select %p359, %s21, 1
        %s361 = smul.addr %s360, 2
        %s362 = smul.addr %s361, 8
        %s363 = scalar_lea.vmem %s8, %s362
        %v365 = vld [vmem:[%s355] sm:$0xff]
        %v366 = vld [vmem:[%s355 + $0x8] sm:$0xff]
        %v367 = vld [vmem:[%s358] sm:$0x1]
        %v368 = vpack.c.bf16 %v366, %v365
        %v369 = vld [vmem:[%s2] sm:$0xf]
        %v370 = vld [vmem:[%s2 + $0x4] sm:$0xf]
        %v371 = vld [vmem:[%s2 + $0x8] sm:$0xf]
        %v372 = vld [vmem:[%s2 + $0xc] sm:$0xf]
        %v373 = vld [vmem:[%s2 + $0x10] sm:$0xf]
        %v374 = vld [vmem:[%s2 + $0x14] sm:$0xf]
        %v375 = vld [vmem:[#allocation2] sm:$0xff]
        %v376 = vld [vmem:[#allocation2 + $0x8] sm:$0xff]
        %v377 = vld [vmem:[#allocation2 + $0x10] sm:$0xff]
        %v378 = vld [vmem:[#allocation2 + $0x18] sm:$0xff]
        %v379 = vld [vmem:[#allocation2 + $0x20] sm:$0xff]
        %v380 = vld [vmem:[#allocation2 + $0x28] sm:$0xff]
        %382 = vset.pattern.permute.xlu0 0
        %383 = vperm.xlu0 %382, %v375
        %v384 = vpop.permute.xlu0 %383
        %387 = vset.pattern.permute.xlu0 0
        %388 = vperm.xlu0 %387, %v376
        %v389 = vpop.permute.xlu0 %388
        %392 = vset.pattern.permute.xlu0 0
        %393 = vperm.xlu0 %392, %v377
        %v394 = vpop.permute.xlu0 %393
        %397 = vset.pattern.permute.xlu0 0
        %398 = vperm.xlu0 %397, %v378
        %v399 = vpop.permute.xlu0 %398
        %402 = vset.pattern.permute.xlu0 0
        %403 = vperm.xlu0 %402, %v379
        %v404 = vpop.permute.xlu0 %403
        %407 = vset.pattern.permute.xlu0 0
        %408 = vperm.xlu0 %407, %v380
        %v409 = vpop.permute.xlu0 %408
        %v417 = vunpack.c.l.b16 %v369
        %v418 = vunpack.c.l.b16 %v370
        %v419 = vunpack.c.l.b16 %v371
        %v420 = vunpack.c.l.b16 %v372
        %v421 = vunpack.c.l.b16 %v373
        %v422 = vunpack.c.l.b16 %v374
        %v423 = vpack.c.b16 %v418, %v417
        %v424 = vpack.c.b16 %v420, %v419
        %v425 = vpack.c.b16 %v422, %v421
        %vm426 = vcmask 130048
        %v428 = vsel %vm426, %v423, 0
        %v431 = vsel %vm426, %v424, 0
        %v434 = vsel %vm426, %v425, 0
        %436 = vmatprep.subr.bf16.mxu0 0
        %437 = vmatpush1.bf16.msra.mxu0 0
        %438 = vmatprep.subr.bf16.mxu0 0
        %439 = vmatpush1.bf16.msra.mxu0 0
        %440 = vmatprep.subr.bf16.mxu0 0
        %441 = vmatpush1.bf16.msra.mxu0 0
        %442 = vmatprep.subr.bf16.mxu0 0
        %443 = vmatpush1.bf16.msra.mxu0 0
        %444 = vmatprep.subr.bf16.mxu0 0
        %445 = vmatpush1.bf16.msra.mxu0 0
        %446 = vmatprep.subr.bf16.mxu0 0
        %447 = vmatpush1.bf16.msra.mxu0 0
        %448 = vmatprep.subr.bf16.mxu0 0
        %449 = vmatpush1.bf16.msra.mxu0 0
        %450 = vmatprep.subr.bf16.mxu0 0
        %451 = vmatpush1.bf16.msra.mxu0 %v368
        %452 = vmatprep.subr.bf16.mxu0 0
        %453 = vmatpush2.bf16.msra.mxu0 0
        %454 = vmatprep.subr.bf16.mxu0 0
        %455 = vmatpush2.bf16.msra.mxu0 0
        %456 = vmatprep.subr.bf16.mxu0 0
        %457 = vmatpush2.bf16.msra.mxu0 0
        %458 = vmatprep.subr.bf16.mxu0 0
        %459 = vmatpush2.bf16.msra.mxu0 0
        %460 = vmatprep.subr.bf16.mxu0 0
        %461 = vmatpush2.bf16.msra.mxu0 0
        %462 = vmatprep.subr.bf16.mxu0 0
        %463 = vmatpush2.bf16.msra.mxu0 0
        %464 = vmatprep.subr.bf16.mxu0 0
        %465 = vmatpush2.bf16.msra.mxu0 0
        %466 = vmatprep.subr.bf16.mxu0 0
        %467 = vmatpush2.bf16.msra.mxu0 0
        %468 = vmatprep.mubr.bf16.mxu0 0
        %469 = vmatmul.mubr.bf16.gmra.mxu0 %v428
        %v470 = vpop.f32.mrf.mxu0
        %v471 = vadd.f32 %v384, %v470
        %v472 = vpop.f32.mrf.mxu0
        %v473 = vpop.f32.mrf.mxu0
        %v474 = vadd.f32 %v389, %v473
        %v475 = vpop.f32.mrf.mxu0
        %476 = vmatprep.mubr.bf16.mxu0 0
        %477 = vmatmul.mubr.bf16.gmra.mxu0 %v431
        %v478 = vpop.f32.mrf.mxu0
        %v479 = vadd.f32 %v394, %v478
        %v480 = vpop.f32.mrf.mxu0
        %v481 = vpop.f32.mrf.mxu0
        %v482 = vadd.f32 %v399, %v481
        %v483 = vpop.f32.mrf.mxu0
        %484 = vmatprep.mubr.bf16.mxu0 0
        %485 = vmatmul.mubr.bf16.gmra.mxu0 %v434
        %v486 = vpop.f32.mrf.mxu0
        %v487 = vadd.f32 %v404, %v486
        %v488 = vpop.f32.mrf.mxu0
        %v489 = vpop.f32.mrf.mxu0
        %v490 = vadd.f32 %v409, %v489
        %v491 = vpop.f32.mrf.mxu0
        %492 = vdwg.mxu0
        %vm493 = vcmp.gt.f32.partialorder %v367, 0.0
        %v494 = vpack.c.bf16 %v471, %v471
        %v495 = vpack.c.bf16 %v479, %v479
        %v496 = vpack.c.bf16 %v487, %v487
        %497 = vxpose.xlu0.c.b16.start [1/8] %v494, 128
        %498 = vxpose.xlu0.c.b16.cont [2/8] 0, 128
        %499 = vxpose.xlu0.c.b16.cont [3/8] 0, 128
        %500 = vxpose.xlu0.c.b16.cont [4/8] 0, 128
        %501 = vxpose.xlu0.c.b16.cont [5/8] 0, 128
        %502 = vxpose.xlu0.c.b16.cont [6/8] 0, 128
        %503 = vxpose.xlu0.c.b16.cont [7/8] 0, 128
        %504 = vxpose.xlu0.c.b16.end [8/8] 0, 128
        %v505 = vpop.trf.xlu0
        %v506 = vpop.trf.xlu0
        %v507 = vpop.trf.xlu0
        %v508 = vpop.trf.xlu0
        %v509 = vpop.trf.xlu0
        %v510 = vpop.trf.xlu0
        %v511 = vpop.trf.xlu0
        %v512 = vpop.trf.xlu0
        %vm513 = vcmask 64512
        %v515 = vsel %vm513, %v505, 0
        %v518 = vsel %vm513, %v506, 0
        %v521 = vsel %vm513, %v507, 0
        %v524 = vsel %vm513, %v508, 0
        %v527 = vsel %vm513, %v509, 0
        %v530 = vsel %vm513, %v510, 0
        %v533 = vsel %vm513, %v511, 0
        %v536 = vsel %vm513, %v512, 0
        %vm538 = vcmask 1043456
        %v540 = vsel %vm538, %v495, 0
        %542 = vmatprep.subr.bf16.mxu0 0
        %543 = vmatpush1.bf16.msra.mxu0 0
        %544 = vmatprep.subr.bf16.mxu0 0
        %545 = vmatpush1.bf16.msra.mxu0 0
        %546 = vmatprep.subr.bf16.mxu0 0
        %547 = vmatpush1.bf16.msra.mxu0 0
        %548 = vmatprep.subr.bf16.mxu0 0
        %549 = vmatpush1.bf16.msra.mxu0 0
        %550 = vmatprep.subr.bf16.mxu0 0
        %551 = vmatpush1.bf16.msra.mxu0 0
        %552 = vmatprep.subr.bf16.mxu0 0
        %553 = vmatpush1.bf16.msra.mxu0 0
        %554 = vmatprep.subr.bf16.mxu0 0
        %555 = vmatpush1.bf16.msra.mxu0 0
        %556 = vmatprep.subr.bf16.mxu0 0
        %557 = vmatpush1.bf16.msra.mxu0 %v540
        %558 = vmatprep.subr.bf16.mxu0 0
        %559 = vmatpush2.bf16.msra.mxu0 0
        %560 = vmatprep.subr.bf16.mxu0 0
        %561 = vmatpush2.bf16.msra.mxu0 0
        %562 = vmatprep.subr.bf16.mxu0 0
        %563 = vmatpush2.bf16.msra.mxu0 0
        %564 = vmatprep.subr.bf16.mxu0 0
        %565 = vmatpush2.bf16.msra.mxu0 0
        %566 = vmatprep.subr.bf16.mxu0 0
        %567 = vmatpush2.bf16.msra.mxu0 0
        %568 = vmatprep.subr.bf16.mxu0 0
        %569 = vmatpush2.bf16.msra.mxu0 0
        %570 = vmatprep.subr.bf16.mxu0 0
        %571 = vmatpush2.bf16.msra.mxu0 0
        %572 = vmatprep.subr.bf16.mxu0 0
        %573 = vmatpush2.bf16.msra.mxu0 0
        %574 = vmatprep.mubr.bf16.mxu0 0
        %575 = vmatmul.mubr.bf16.gmra.mxu0 %v515
        %v576 = vpop.f32.mrf.mxu0
        %v577 = vadd.f32 0.0, %v576
        %v578 = vpop.f32.mrf.mxu0
        %v579 = vpop.f32.mrf.mxu0
        %v580 = vadd.f32 0.0, %v579
        %v581 = vpop.f32.mrf.mxu0
        %582 = vmatprep.mubr.bf16.mxu0 0
        %583 = vmatmul.mubr.bf16.gmra.mxu0 %v518
        %v584 = vpop.f32.mrf.mxu0
        %v585 = vadd.f32 0.0, %v584
        %v586 = vpop.f32.mrf.mxu0
        %v587 = vpop.f32.mrf.mxu0
        %v588 = vadd.f32 0.0, %v587
        %v589 = vpop.f32.mrf.mxu0
        %590 = vmatprep.mubr.bf16.mxu0 0
        %591 = vmatmul.mubr.bf16.gmra.mxu0 %v521
        %v592 = vpop.f32.mrf.mxu0
        %v593 = vadd.f32 0.0, %v592
        %v594 = vpop.f32.mrf.mxu0
        %v595 = vpop.f32.mrf.mxu0
        %v596 = vadd.f32 0.0, %v595
        %v597 = vpop.f32.mrf.mxu0
        %598 = vmatprep.mubr.bf16.mxu0 0
        %599 = vmatmul.mubr.bf16.gmra.mxu0 %v524
        %v600 = vpop.f32.mrf.mxu0
        %v601 = vadd.f32 0.0, %v600
        %v602 = vpop.f32.mrf.mxu0
        %v603 = vpop.f32.mrf.mxu0
        %v604 = vadd.f32 0.0, %v603
        %v605 = vpop.f32.mrf.mxu0
        %606 = vmatprep.mubr.bf16.mxu0 0
        %607 = vmatmul.mubr.bf16.gmra.mxu0 %v527
        %v608 = vpop.f32.mrf.mxu0
        %v609 = vadd.f32 0.0, %v608
        %v610 = vpop.f32.mrf.mxu0
        %v611 = vpop.f32.mrf.mxu0
        %v612 = vadd.f32 0.0, %v611
        %v613 = vpop.f32.mrf.mxu0
        %614 = vmatprep.mubr.bf16.mxu0 0
        %615 = vmatmul.mubr.bf16.gmra.mxu0 %v530
        %v616 = vpop.f32.mrf.mxu0
        %v617 = vadd.f32 0.0, %v616
        %v618 = vpop.f32.mrf.mxu0
        %v619 = vpop.f32.mrf.mxu0
        %v620 = vadd.f32 0.0, %v619
        %v621 = vpop.f32.mrf.mxu0
        %622 = vmatprep.mubr.bf16.mxu0 0
        %623 = vmatmul.mubr.bf16.gmra.mxu0 %v533
        %v624 = vpop.f32.mrf.mxu0
        %v625 = vadd.f32 0.0, %v624
        %v626 = vpop.f32.mrf.mxu0
        %v627 = vpop.f32.mrf.mxu0
        %v628 = vadd.f32 0.0, %v627
        %v629 = vpop.f32.mrf.mxu0
        %630 = vmatprep.mubr.bf16.mxu0 0
        %631 = vmatmul.mubr.bf16.gmra.mxu0 %v536
        %v632 = vpop.f32.mrf.mxu0
        %v633 = vadd.f32 0.0, %v632
        %v634 = vpop.f32.mrf.mxu0
        %v635 = vpop.f32.mrf.mxu0
        %v636 = vadd.f32 0.0, %v635
        %v637 = vpop.f32.mrf.mxu0
        %638 = vdwg.mxu0
        %v639 = vmul.f32 %v577, 0.35355338
        %v640 = vmul.f32 %v580, 0.35355338
        %v641 = vmul.f32 %v585, 0.35355338
        %v642 = vmul.f32 %v588, 0.35355338
        %v643 = vmul.f32 %v593, 0.35355338
        %v644 = vmul.f32 %v596, 0.35355338
        %v645 = vmul.f32 %v601, 0.35355338
        %v646 = vmul.f32 %v604, 0.35355338
        %v647 = vmul.f32 %v609, 0.35355338
        %v648 = vmul.f32 %v612, 0.35355338
        %v649 = vmul.f32 %v617, 0.35355338
        %v650 = vmul.f32 %v620, 0.35355338
        %v651 = vmul.f32 %v625, 0.35355338
        %v652 = vmul.f32 %v628, 0.35355338
        %v653 = vmul.f32 %v633, 0.35355338
        %v654 = vmul.f32 %v636, 0.35355338
        %v655 = vsel %vm493, 1, 0
        %v656 = vlaneseq
        %v657 = vshrl.u32 %v656, 7
        %v658 = vsub.s32 0, %v657
        %v659 = vrot.slane %v655, %v658
        %vm660 = vcmp.eq.s32.totalorder %v659, 1
        %v661 = vsel %vm660, %v639, -10000.0
        %v662 = vsel %vm660, %v640, -10000.0
        %v663 = vsel %vm660, %v641, -10000.0
        %v664 = vsel %vm660, %v642, -10000.0
        %v665 = vsel %vm660, %v643, -10000.0
        %v666 = vsel %vm660, %v644, -10000.0
        %v667 = vsel %vm660, %v645, -10000.0
        %v668 = vsel %vm660, %v646, -10000.0
        %v669 = vsel %vm660, %v647, -10000.0
        %v670 = vsel %vm660, %v648, -10000.0
        %v671 = vsel %vm660, %v649, -10000.0
        %v672 = vsel %vm660, %v650, -10000.0
        %v673 = vsel %vm660, %v651, -10000.0
        %v674 = vsel %vm660, %v652, -10000.0
        %v675 = vsel %vm660, %v653, -10000.0
        %v676 = vsel %vm660, %v654, -10000.0
        %677 = vmax.xlane.f32.xlu0 %v661
        %v678 = vpop.xlane.xlu0 %677
        %679 = vmax.xlane.f32.xlu0 %v662
        %v680 = vpop.xlane.xlu0 %679
        %681 = vmax.xlane.f32.xlu0 %v663
        %v682 = vpop.xlane.xlu0 %681
        %683 = vmax.xlane.f32.xlu0 %v664
        %v684 = vpop.xlane.xlu0 %683
        %685 = vmax.xlane.f32.xlu0 %v665
        %v686 = vpop.xlane.xlu0 %685
        %687 = vmax.xlane.f32.xlu0 %v666
        %v688 = vpop.xlane.xlu0 %687
        %689 = vmax.xlane.f32.xlu0 %v667
        %v690 = vpop.xlane.xlu0 %689
        %691 = vmax.xlane.f32.xlu0 %v668
        %v692 = vpop.xlane.xlu0 %691
        %693 = vmax.xlane.f32.xlu0 %v669
        %v694 = vpop.xlane.xlu0 %693
        %695 = vmax.xlane.f32.xlu0 %v670
        %v696 = vpop.xlane.xlu0 %695
        %697 = vmax.xlane.f32.xlu0 %v671
        %v698 = vpop.xlane.xlu0 %697
        %699 = vmax.xlane.f32.xlu0 %v672
        %v700 = vpop.xlane.xlu0 %699
        %701 = vmax.xlane.f32.xlu0 %v673
        %v702 = vpop.xlane.xlu0 %701
        %703 = vmax.xlane.f32.xlu0 %v674
        %v704 = vpop.xlane.xlu0 %703
        %705 = vmax.xlane.f32.xlu0 %v675
        %v706 = vpop.xlane.xlu0 %705
        %707 = vmax.xlane.f32.xlu0 %v676
        %v708 = vpop.xlane.xlu0 %707
        %v709 = vsub.f32 %v661, %v678
        %v710 = vsub.f32 %v662, %v680
        %v711 = vsub.f32 %v663, %v682
        %v712 = vsub.f32 %v664, %v684
        %v713 = vsub.f32 %v665, %v686
        %v714 = vsub.f32 %v666, %v688
        %v715 = vsub.f32 %v667, %v690
        %v716 = vsub.f32 %v668, %v692
        %v717 = vsub.f32 %v669, %v694
        %v718 = vsub.f32 %v670, %v696
        %v719 = vsub.f32 %v671, %v698
        %v720 = vsub.f32 %v672, %v700
        %v721 = vsub.f32 %v673, %v702
        %v722 = vsub.f32 %v674, %v704
        %v723 = vsub.f32 %v675, %v706
        %v724 = vsub.f32 %v676, %v708
        %v725 = vmul.f32 %v709, 1.442695
        %v726 = vpow.pop %v725
        %v727 = vmul.f32 %v710, 1.442695
        %v728 = vpow.pop %v727
        %v729 = vmul.f32 %v711, 1.442695
        %v730 = vpow.pop %v729
        %v731 = vmul.f32 %v712, 1.442695
        %v732 = vpow.pop %v731
        %v733 = vmul.f32 %v713, 1.442695
        %v734 = vpow.pop %v733
        %v735 = vmul.f32 %v714, 1.442695
        %v736 = vpow.pop %v735
        %v737 = vmul.f32 %v715, 1.442695
        %v738 = vpow.pop %v737
        %v739 = vmul.f32 %v716, 1.442695
        %v740 = vpow.pop %v739
        %v741 = vmul.f32 %v717, 1.442695
        %v742 = vpow.pop %v741
        %v743 = vmul.f32 %v718, 1.442695
        %v744 = vpow.pop %v743
        %v745 = vmul.f32 %v719, 1.442695
        %v746 = vpow.pop %v745
        %v747 = vmul.f32 %v720, 1.442695
        %v748 = vpow.pop %v747
        %v749 = vmul.f32 %v721, 1.442695
        %v750 = vpow.pop %v749
        %v751 = vmul.f32 %v722, 1.442695
        %v752 = vpow.pop %v751
        %v753 = vmul.f32 %v723, 1.442695
        %v754 = vpow.pop %v753
        %v755 = vmul.f32 %v724, 1.442695
        %v756 = vpow.pop %v755
        %757 = vadd.xlane.f32.xlu0 %v726
        %v758 = vpop.xlane.xlu0 %757
        %759 = vadd.xlane.f32.xlu0 %v728
        %v760 = vpop.xlane.xlu0 %759
        %761 = vadd.xlane.f32.xlu0 %v730
        %v762 = vpop.xlane.xlu0 %761
        %763 = vadd.xlane.f32.xlu0 %v732
        %v764 = vpop.xlane.xlu0 %763
        %765 = vadd.xlane.f32.xlu0 %v734
        %v766 = vpop.xlane.xlu0 %765
        %767 = vadd.xlane.f32.xlu0 %v736
        %v768 = vpop.xlane.xlu0 %767
        %769 = vadd.xlane.f32.xlu0 %v738
        %v770 = vpop.xlane.xlu0 %769
        %771 = vadd.xlane.f32.xlu0 %v740
        %v772 = vpop.xlane.xlu0 %771
        %773 = vadd.xlane.f32.xlu0 %v742
        %v774 = vpop.xlane.xlu0 %773
        %775 = vadd.xlane.f32.xlu0 %v744
        %v776 = vpop.xlane.xlu0 %775
        %777 = vadd.xlane.f32.xlu0 %v746
        %v778 = vpop.xlane.xlu0 %777
        %779 = vadd.xlane.f32.xlu0 %v748
        %v780 = vpop.xlane.xlu0 %779
        %781 = vadd.xlane.f32.xlu0 %v750
        %v782 = vpop.xlane.xlu0 %781
        %783 = vadd.xlane.f32.xlu0 %v752
        %v784 = vpop.xlane.xlu0 %783
        %785 = vadd.xlane.f32.xlu0 %v754
        %v786 = vpop.xlane.xlu0 %785
        %787 = vadd.xlane.f32.xlu0 %v756
        %v788 = vpop.xlane.xlu0 %787
        %v789 = vrcp.pop %v758
        %v790 = vrcp.pop %v760
        %v791 = vrcp.pop %v762
        %v792 = vrcp.pop %v764
        %v793 = vrcp.pop %v766
        %v794 = vrcp.pop %v768
        %v795 = vrcp.pop %v770
        %v796 = vrcp.pop %v772
        %v797 = vrcp.pop %v774
        %v798 = vrcp.pop %v776
        %v799 = vrcp.pop %v778
        %v800 = vrcp.pop %v780
        %v801 = vrcp.pop %v782
        %v802 = vrcp.pop %v784
        %v803 = vrcp.pop %v786
        %v804 = vrcp.pop %v788
        %v805 = vmul.f32 %v726, %v789
        %v806 = vmul.f32 %v728, %v790
        %v807 = vmul.f32 %v730, %v791
        %v808 = vmul.f32 %v732, %v792
        %v809 = vmul.f32 %v734, %v793
        %v810 = vmul.f32 %v736, %v794
        %v811 = vmul.f32 %v738, %v795
        %v812 = vmul.f32 %v740, %v796
        %v813 = vmul.f32 %v742, %v797
        %v814 = vmul.f32 %v744, %v798
        %v815 = vmul.f32 %v746, %v799
        %v816 = vmul.f32 %v748, %v800
        %v817 = vmul.f32 %v750, %v801
        %v818 = vmul.f32 %v752, %v802
        %v819 = vmul.f32 %v754, %v803
        %v820 = vmul.f32 %v756, %v804
        %v821 = vpack.c.bf16 %v806, %v805
        %v822 = vpack.c.bf16 %v808, %v807
        %v823 = vpack.c.bf16 %v810, %v809
        %v824 = vpack.c.bf16 %v812, %v811
        %v825 = vpack.c.bf16 %v814, %v813
        %v826 = vpack.c.bf16 %v816, %v815
        %v827 = vpack.c.bf16 %v818, %v817
        %v828 = vpack.c.bf16 %v820, %v819
        %829 = vmatprep.subr.bf16.mxu0 0
        %830 = vmatpush1.bf16.xpose.msra.mxu0 %v828
        %831 = vmatprep.subr.bf16.mxu0 0
        %832 = vmatpush1.bf16.xpose.msra.mxu0 %v827
        %833 = vmatprep.subr.bf16.mxu0 0
        %834 = vmatpush1.bf16.xpose.msra.mxu0 %v826
        %835 = vmatprep.subr.bf16.mxu0 0
        %836 = vmatpush1.bf16.xpose.msra.mxu0 %v825
        %837 = vmatprep.subr.bf16.mxu0 0
        %838 = vmatpush1.bf16.xpose.msra.mxu0 %v824
        %839 = vmatprep.subr.bf16.mxu0 0
        %840 = vmatpush1.bf16.xpose.msra.mxu0 %v823
        %841 = vmatprep.subr.bf16.mxu0 0
        %842 = vmatpush1.bf16.xpose.msra.mxu0 %v822
        %843 = vmatprep.subr.bf16.mxu0 0
        %844 = vmatpush1.bf16.xpose.msra.mxu0 %v821
        %845 = vmatprep.subr.bf16.mxu0 0
        %846 = vmatpush2.bf16.xpose.msra.mxu0 0
        %847 = vmatprep.subr.bf16.mxu0 0
        %848 = vmatpush2.bf16.xpose.msra.mxu0 0
        %849 = vmatprep.subr.bf16.mxu0 0
        %850 = vmatpush2.bf16.xpose.msra.mxu0 0
        %851 = vmatprep.subr.bf16.mxu0 0
        %852 = vmatpush2.bf16.xpose.msra.mxu0 0
        %853 = vmatprep.subr.bf16.mxu0 0
        %854 = vmatpush2.bf16.xpose.msra.mxu0 0
        %855 = vmatprep.subr.bf16.mxu0 0
        %856 = vmatpush2.bf16.xpose.msra.mxu0 0
        %857 = vmatprep.subr.bf16.mxu0 0
        %858 = vmatpush2.bf16.xpose.msra.mxu0 0
        %859 = vmatprep.subr.bf16.mxu0 0
        %860 = vmatpush2.bf16.xpose.msra.mxu0 0
        %861 = vmatprep.mubr.bf16.mxu0 0
        %862 = vmatmul.mubr.bf16.gmra.mxu0 %v496
        %v863 = vpop.f32.mrf.mxu0
        %v864 = vadd.f32 0.0, %v863
        %v865 = vpop.f32.mrf.mxu0
        %v866 = vpop.f32.mrf.mxu0
        %v867 = vpop.f32.mrf.mxu0
        %868 = vdwg.mxu0
        %v869 = vld [vmem:[#allocation4] sm:$0xf]
        %v870 = vld [vmem:[#allocation4 + $0x4] sm:$0xf]
        %v871 = vpack.c.bf16 %v864, %v864
        %v872 = vpack.c.bf16 %v474, %v474
        %v873 = vpack.c.bf16 %v482, %v482
        %v874 = vpack.c.bf16 %v490, %v490
        %875 = vxpose.xlu0.c.b16.start [1/8] %v872, 128
        %876 = vxpose.xlu0.c.b16.cont [2/8] 0, 128
        %877 = vxpose.xlu0.c.b16.cont [3/8] 0, 128
        %878 = vxpose.xlu0.c.b16.cont [4/8] 0, 128
        %879 = vxpose.xlu0.c.b16.cont [5/8] 0, 128
        %880 = vxpose.xlu0.c.b16.cont [6/8] 0, 128
        %881 = vxpose.xlu0.c.b16.cont [7/8] 0, 128
        %882 = vxpose.xlu0.c.b16.end [8/8] 0, 128
        %v883 = vpop.trf.xlu0
        %v884 = vpop.trf.xlu0
        %v885 = vpop.trf.xlu0
        %v886 = vpop.trf.xlu0
        %v887 = vpop.trf.xlu0
        %v888 = vpop.trf.xlu0
        %v889 = vpop.trf.xlu0
        %v890 = vpop.trf.xlu0
        %v892 = vsel %vm513, %v883, 0
        %v895 = vsel %vm513, %v884, 0
        %v898 = vsel %vm513, %v885, 0
        %v901 = vsel %vm513, %v886, 0
        %v904 = vsel %vm513, %v887, 0
        %v907 = vsel %vm513, %v888, 0
        %v910 = vsel %vm513, %v889, 0
        %v913 = vsel %vm513, %v890, 0
        %v916 = vsel %vm538, %v873, 0
        %918 = vmatprep.subr.bf16.mxu0 0
        %919 = vmatpush1.bf16.msra.mxu0 0
        %920 = vmatprep.subr.bf16.mxu0 0
        %921 = vmatpush1.bf16.msra.mxu0 0
        %922 = vmatprep.subr.bf16.mxu0 0
        %923 = vmatpush1.bf16.msra.mxu0 0
        %924 = vmatprep.subr.bf16.mxu0 0
        %925 = vmatpush1.bf16.msra.mxu0 0
        %926 = vmatprep.subr.bf16.mxu0 0
        %927 = vmatpush1.bf16.msra.mxu0 0
        %928 = vmatprep.subr.bf16.mxu0 0
        %929 = vmatpush1.bf16.msra.mxu0 0
        %930 = vmatprep.subr.bf16.mxu0 0
        %931 = vmatpush1.bf16.msra.mxu0 0
        %932 = vmatprep.subr.bf16.mxu0 0
        %933 = vmatpush1.bf16.msra.mxu0 %v916
        %934 = vmatprep.subr.bf16.mxu0 0
        %935 = vmatpush2.bf16.msra.mxu0 0
        %936 = vmatprep.subr.bf16.mxu0 0
        %937 = vmatpush2.bf16.msra.mxu0 0
        %938 = vmatprep.subr.bf16.mxu0 0
        %939 = vmatpush2.bf16.msra.mxu0 0
        %940 = vmatprep.subr.bf16.mxu0 0
        %941 = vmatpush2.bf16.msra.mxu0 0
        %942 = vmatprep.subr.bf16.mxu0 0
        %943 = vmatpush2.bf16.msra.mxu0 0
        %944 = vmatprep.subr.bf16.mxu0 0
        %945 = vmatpush2.bf16.msra.mxu0 0
        %946 = vmatprep.subr.bf16.mxu0 0
        %947 = vmatpush2.bf16.msra.mxu0 0
        %948 = vmatprep.subr.bf16.mxu0 0
        %949 = vmatpush2.bf16.msra.mxu0 0
        %950 = vmatprep.mubr.bf16.mxu0 0
        %951 = vmatmul.mubr.bf16.gmra.mxu0 %v892
        %v952 = vpop.f32.mrf.mxu0
        %v953 = vadd.f32 0.0, %v952
        %v954 = vpop.f32.mrf.mxu0
        %v955 = vpop.f32.mrf.mxu0
        %v956 = vadd.f32 0.0, %v955
        %v957 = vpop.f32.mrf.mxu0
        %958 = vmatprep.mubr.bf16.mxu0 0
        %959 = vmatmul.mubr.bf16.gmra.mxu0 %v895
        %v960 = vpop.f32.mrf.mxu0
        %v961 = vadd.f32 0.0, %v960
        %v962 = vpop.f32.mrf.mxu0
        %v963 = vpop.f32.mrf.mxu0
        %v964 = vadd.f32 0.0, %v963
        %v965 = vpop.f32.mrf.mxu0
        %966 = vmatprep.mubr.bf16.mxu0 0
        %967 = vmatmul.mubr.bf16.gmra.mxu0 %v898
        %v968 = vpop.f32.mrf.mxu0
        %v969 = vadd.f32 0.0, %v968
        %v970 = vpop.f32.mrf.mxu0
        %v971 = vpop.f32.mrf.mxu0
        %v972 = vadd.f32 0.0, %v971
        %v973 = vpop.f32.mrf.mxu0
        %974 = vmatprep.mubr.bf16.mxu0 0
        %975 = vmatmul.mubr.bf16.gmra.mxu0 %v901
        %v976 = vpop.f32.mrf.mxu0
        %v977 = vadd.f32 0.0, %v976
        %v978 = vpop.f32.mrf.mxu0
        %v979 = vpop.f32.mrf.mxu0
        %v980 = vadd.f32 0.0, %v979
        %v981 = vpop.f32.mrf.mxu0
        %982 = vmatprep.mubr.bf16.mxu0 0
        %983 = vmatmul.mubr.bf16.gmra.mxu0 %v904
        %v984 = vpop.f32.mrf.mxu0
        %v985 = vadd.f32 0.0, %v984
        %v986 = vpop.f32.mrf.mxu0
        %v987 = vpop.f32.mrf.mxu0
        %v988 = vadd.f32 0.0, %v987
        %v989 = vpop.f32.mrf.mxu0
        %990 = vmatprep.mubr.bf16.mxu0 0
        %991 = vmatmul.mubr.bf16.gmra.mxu0 %v907
        %v992 = vpop.f32.mrf.mxu0
        %v993 = vadd.f32 0.0, %v992
        %v994 = vpop.f32.mrf.mxu0
        %v995 = vpop.f32.mrf.mxu0
        %v996 = vadd.f32 0.0, %v995
        %v997 = vpop.f32.mrf.mxu0
        %998 = vmatprep.mubr.bf16.mxu0 0
        %999 = vmatmul.mubr.bf16.gmra.mxu0 %v910
        %v1000 = vpop.f32.mrf.mxu0
        %v1001 = vadd.f32 0.0, %v1000
        %v1002 = vpop.f32.mrf.mxu0
        %v1003 = vpop.f32.mrf.mxu0
        %v1004 = vadd.f32 0.0, %v1003
        %v1005 = vpop.f32.mrf.mxu0
        %1006 = vmatprep.mubr.bf16.mxu0 0
        %1007 = vmatmul.mubr.bf16.gmra.mxu0 %v913
        %v1008 = vpop.f32.mrf.mxu0
        %v1009 = vadd.f32 0.0, %v1008
        %v1010 = vpop.f32.mrf.mxu0
        %v1011 = vpop.f32.mrf.mxu0
        %v1012 = vadd.f32 0.0, %v1011
        %v1013 = vpop.f32.mrf.mxu0
        %1014 = vdwg.mxu0
        %v1015 = vmul.f32 %v953, 0.35355338
        %v1016 = vmul.f32 %v956, 0.35355338
        %v1017 = vmul.f32 %v961, 0.35355338
        %v1018 = vmul.f32 %v964, 0.35355338
        %v1019 = vmul.f32 %v969, 0.35355338
        %v1020 = vmul.f32 %v972, 0.35355338
        %v1021 = vmul.f32 %v977, 0.35355338
        %v1022 = vmul.f32 %v980, 0.35355338
        %v1023 = vmul.f32 %v985, 0.35355338
        %v1024 = vmul.f32 %v988, 0.35355338
        %v1025 = vmul.f32 %v993, 0.35355338
        %v1026 = vmul.f32 %v996, 0.35355338
        %v1027 = vmul.f32 %v1001, 0.35355338
        %v1028 = vmul.f32 %v1004, 0.35355338
        %v1029 = vmul.f32 %v1009, 0.35355338
        %v1030 = vmul.f32 %v1012, 0.35355338
        %v1031 = vsel %vm660, %v1015, -10000.0
        %v1032 = vsel %vm660, %v1016, -10000.0
        %v1033 = vsel %vm660, %v1017, -10000.0
        %v1034 = vsel %vm660, %v1018, -10000.0
        %v1035 = vsel %vm660, %v1019, -10000.0
        %v1036 = vsel %vm660, %v1020, -10000.0
        %v1037 = vsel %vm660, %v1021, -10000.0
        %v1038 = vsel %vm660, %v1022, -10000.0
        %v1039 = vsel %vm660, %v1023, -10000.0
        %v1040 = vsel %vm660, %v1024, -10000.0
        %v1041 = vsel %vm660, %v1025, -10000.0
        %v1042 = vsel %vm660, %v1026, -10000.0
        %v1043 = vsel %vm660, %v1027, -10000.0
        %v1044 = vsel %vm660, %v1028, -10000.0
        %v1045 = vsel %vm660, %v1029, -10000.0
        %v1046 = vsel %vm660, %v1030, -10000.0
        %1047 = vmax.xlane.f32.xlu0 %v1031
        %v1048 = vpop.xlane.xlu0 %1047
        %1049 = vmax.xlane.f32.xlu0 %v1032
        %v1050 = vpop.xlane.xlu0 %1049
        %1051 = vmax.xlane.f32.xlu0 %v1033
        %v1052 = vpop.xlane.xlu0 %1051
        %1053 = vmax.xlane.f32.xlu0 %v1034
        %v1054 = vpop.xlane.xlu0 %1053
        %1055 = vmax.xlane.f32.xlu0 %v1035
        %v1056 = vpop.xlane.xlu0 %1055
        %1057 = vmax.xlane.f32.xlu0 %v1036
        %v1058 = vpop.xlane.xlu0 %1057
        %1059 = vmax.xlane.f32.xlu0 %v1037
        %v1060 = vpop.xlane.xlu0 %1059
        %1061 = vmax.xlane.f32.xlu0 %v1038
        %v1062 = vpop.xlane.xlu0 %1061
        %1063 = vmax.xlane.f32.xlu0 %v1039
        %v1064 = vpop.xlane.xlu0 %1063
        %1065 = vmax.xlane.f32.xlu0 %v1040
        %v1066 = vpop.xlane.xlu0 %1065
        %1067 = vmax.xlane.f32.xlu0 %v1041
        %v1068 = vpop.xlane.xlu0 %1067
        %1069 = vmax.xlane.f32.xlu0 %v1042
        %v1070 = vpop.xlane.xlu0 %1069
        %1071 = vmax.xlane.f32.xlu0 %v1043
        %v1072 = vpop.xlane.xlu0 %1071
        %1073 = vmax.xlane.f32.xlu0 %v1044
        %v1074 = vpop.xlane.xlu0 %1073
        %1075 = vmax.xlane.f32.xlu0 %v1045
        %v1076 = vpop.xlane.xlu0 %1075
        %1077 = vmax.xlane.f32.xlu0 %v1046
        %v1078 = vpop.xlane.xlu0 %1077
        %v1079 = vsub.f32 %v1031, %v1048
        %v1080 = vsub.f32 %v1032, %v1050
        %v1081 = vsub.f32 %v1033, %v1052
        %v1082 = vsub.f32 %v1034, %v1054
        %v1083 = vsub.f32 %v1035, %v1056
        %v1084 = vsub.f32 %v1036, %v1058
        %v1085 = vsub.f32 %v1037, %v1060
        %v1086 = vsub.f32 %v1038, %v1062
        %v1087 = vsub.f32 %v1039, %v1064
        %v1088 = vsub.f32 %v1040, %v1066
        %v1089 = vsub.f32 %v1041, %v1068
        %v1090 = vsub.f32 %v1042, %v1070
        %v1091 = vsub.f32 %v1043, %v1072
        %v1092 = vsub.f32 %v1044, %v1074
        %v1093 = vsub.f32 %v1045, %v1076
        %v1094 = vsub.f32 %v1046, %v1078
        %v1095 = vmul.f32 %v1079, 1.442695
        %v1096 = vpow.pop %v1095
        %v1097 = vmul.f32 %v1080, 1.442695
        %v1098 = vpow.pop %v1097
        %v1099 = vmul.f32 %v1081, 1.442695
        %v1100 = vpow.pop %v1099
        %v1101 = vmul.f32 %v1082, 1.442695
        %v1102 = vpow.pop %v1101
        %v1103 = vmul.f32 %v1083, 1.442695
        %v1104 = vpow.pop %v1103
        %v1105 = vmul.f32 %v1084, 1.442695
        %v1106 = vpow.pop %v1105
        %v1107 = vmul.f32 %v1085, 1.442695
        %v1108 = vpow.pop %v1107
        %v1109 = vmul.f32 %v1086, 1.442695
        %v1110 = vpow.pop %v1109
        %v1111 = vmul.f32 %v1087, 1.442695
        %v1112 = vpow.pop %v1111
        %v1113 = vmul.f32 %v1088, 1.442695
        %v1114 = vpow.pop %v1113
        %v1115 = vmul.f32 %v1089, 1.442695
        %v1116 = vpow.pop %v1115
        %v1117 = vmul.f32 %v1090, 1.442695
        %v1118 = vpow.pop %v1117
        %v1119 = vmul.f32 %v1091, 1.442695
        %v1120 = vpow.pop %v1119
        %v1121 = vmul.f32 %v1092, 1.442695
        %v1122 = vpow.pop %v1121
        %v1123 = vmul.f32 %v1093, 1.442695
        %v1124 = vpow.pop %v1123
        %v1125 = vmul.f32 %v1094, 1.442695
        %v1126 = vpow.pop %v1125
        %1127 = vadd.xlane.f32.xlu0 %v1096
        %v1128 = vpop.xlane.xlu0 %1127
        %1129 = vadd.xlane.f32.xlu0 %v1098
        %v1130 = vpop.xlane.xlu0 %1129
        %1131 = vadd.xlane.f32.xlu0 %v1100
        %v1132 = vpop.xlane.xlu0 %1131
        %1133 = vadd.xlane.f32.xlu0 %v1102
        %v1134 = vpop.xlane.xlu0 %1133
        %1135 = vadd.xlane.f32.xlu0 %v1104
        %v1136 = vpop.xlane.xlu0 %1135
        %1137 = vadd.xlane.f32.xlu0 %v1106
        %v1138 = vpop.xlane.xlu0 %1137
        %1139 = vadd.xlane.f32.xlu0 %v1108
        %v1140 = vpop.xlane.xlu0 %1139
        %1141 = vadd.xlane.f32.xlu0 %v1110
        %v1142 = vpop.xlane.xlu0 %1141
        %1143 = vadd.xlane.f32.xlu0 %v1112
        %v1144 = vpop.xlane.xlu0 %1143
        %1145 = vadd.xlane.f32.xlu0 %v1114
        %v1146 = vpop.xlane.xlu0 %1145
        %1147 = vadd.xlane.f32.xlu0 %v1116
        %v1148 = vpop.xlane.xlu0 %1147
        %1149 = vadd.xlane.f32.xlu0 %v1118
        %v1150 = vpop.xlane.xlu0 %1149
        %1151 = vadd.xlane.f32.xlu0 %v1120
        %v1152 = vpop.xlane.xlu0 %1151
        %1153 = vadd.xlane.f32.xlu0 %v1122
        %v1154 = vpop.xlane.xlu0 %1153
        %1155 = vadd.xlane.f32.xlu0 %v1124
        %v1156 = vpop.xlane.xlu0 %1155
        %1157 = vadd.xlane.f32.xlu0 %v1126
        %v1158 = vpop.xlane.xlu0 %1157
        %v1159 = vrcp.pop %v1128
        %v1160 = vrcp.pop %v1130
        %v1161 = vrcp.pop %v1132
        %v1162 = vrcp.pop %v1134
        %v1163 = vrcp.pop %v1136
        %v1164 = vrcp.pop %v1138
        %v1165 = vrcp.pop %v1140
        %v1166 = vrcp.pop %v1142
        %v1167 = vrcp.pop %v1144
        %v1168 = vrcp.pop %v1146
        %v1169 = vrcp.pop %v1148
        %v1170 = vrcp.pop %v1150
        %v1171 = vrcp.pop %v1152
        %v1172 = vrcp.pop %v1154
        %v1173 = vrcp.pop %v1156
        %v1174 = vrcp.pop %v1158
        %v1175 = vmul.f32 %v1096, %v1159
        %v1176 = vmul.f32 %v1098, %v1160
        %v1177 = vmul.f32 %v1100, %v1161
        %v1178 = vmul.f32 %v1102, %v1162
        %v1179 = vmul.f32 %v1104, %v1163
        %v1180 = vmul.f32 %v1106, %v1164
        %v1181 = vmul.f32 %v1108, %v1165
        %v1182 = vmul.f32 %v1110, %v1166
        %v1183 = vmul.f32 %v1112, %v1167
        %v1184 = vmul.f32 %v1114, %v1168
        %v1185 = vmul.f32 %v1116, %v1169
        %v1186 = vmul.f32 %v1118, %v1170
        %v1187 = vmul.f32 %v1120, %v1171
        %v1188 = vmul.f32 %v1122, %v1172
        %v1189 = vmul.f32 %v1124, %v1173
        %v1190 = vmul.f32 %v1126, %v1174
        %v1191 = vpack.c.bf16 %v1176, %v1175
        %v1192 = vpack.c.bf16 %v1178, %v1177
        %v1193 = vpack.c.bf16 %v1180, %v1179
        %v1194 = vpack.c.bf16 %v1182, %v1181
        %v1195 = vpack.c.bf16 %v1184, %v1183
        %v1196 = vpack.c.bf16 %v1186, %v1185
        %v1197 = vpack.c.bf16 %v1188, %v1187
        %v1198 = vpack.c.bf16 %v1190, %v1189
        %1199 = vmatprep.subr.bf16.mxu0 0
        %1200 = vmatpush1.bf16.xpose.msra.mxu0 %v1198
        %1201 = vmatprep.subr.bf16.mxu0 0
        %1202 = vmatpush1.bf16.xpose.msra.mxu0 %v1197
        %1203 = vmatprep.subr.bf16.mxu0 0
        %1204 = vmatpush1.bf16.xpose.msra.mxu0 %v1196
        %1205 = vmatprep.subr.bf16.mxu0 0
        %1206 = vmatpush1.bf16.xpose.msra.mxu0 %v1195
        %1207 = vmatprep.subr.bf16.mxu0 0
        %1208 = vmatpush1.bf16.xpose.msra.mxu0 %v1194
        %1209 = vmatprep.subr.bf16.mxu0 0
        %1210 = vmatpush1.bf16.xpose.msra.mxu0 %v1193
        %1211 = vmatprep.subr.bf16.mxu0 0
        %1212 = vmatpush1.bf16.xpose.msra.mxu0 %v1192
        %1213 = vmatprep.subr.bf16.mxu0 0
        %1214 = vmatpush1.bf16.xpose.msra.mxu0 %v1191
        %1215 = vmatprep.subr.bf16.mxu0 0
        %1216 = vmatpush2.bf16.xpose.msra.mxu0 0
        %1217 = vmatprep.subr.bf16.mxu0 0
        %1218 = vmatpush2.bf16.xpose.msra.mxu0 0
        %1219 = vmatprep.subr.bf16.mxu0 0
        %1220 = vmatpush2.bf16.xpose.msra.mxu0 0
        %1221 = vmatprep.subr.bf16.mxu0 0
        %1222 = vmatpush2.bf16.xpose.msra.mxu0 0
        %1223 = vmatprep.subr.bf16.mxu0 0
        %1224 = vmatpush2.bf16.xpose.msra.mxu0 0
        %1225 = vmatprep.subr.bf16.mxu0 0
        %1226 = vmatpush2.bf16.xpose.msra.mxu0 0
        %1227 = vmatprep.subr.bf16.mxu0 0
        %1228 = vmatpush2.bf16.xpose.msra.mxu0 0
        %1229 = vmatprep.subr.bf16.mxu0 0
        %1230 = vmatpush2.bf16.xpose.msra.mxu0 0
        %1231 = vmatprep.mubr.bf16.mxu0 0
        %1232 = vmatmul.mubr.bf16.gmra.mxu0 %v874
        %v1233 = vpop.f32.mrf.mxu0
        %v1234 = vadd.f32 0.0, %v1233
        %v1235 = vpop.f32.mrf.mxu0
        %v1236 = vpop.f32.mrf.mxu0
        %v1237 = vpop.f32.mrf.mxu0
        %1238 = vdwg.mxu0
        %s1239 = scalar_lea.vmem [#allocation4], 8
        %v1240 = vld [vmem:[%s1239] sm:$0xf]
        %v1241 = vld [vmem:[%s1239 + $0x4] sm:$0xf]
        %v1242 = vpack.c.bf16 %v1234, %v1234
        %v1245 = vunpack.c.l.b16 %v1240
        %v1246 = vunpack.c.l.b16 %v1241
        %v1247 = vpack.c.b16 %v1246, %v1245
        %v1249 = vsel %vm513, %v1247, 0
        %v1252 = vsel %vm538, %v1242, 0
        %1254 = vmatprep.subr.bf16.mxu0 0
        %1255 = vmatpush1.bf16.msra.mxu0 0
        %1256 = vmatprep.subr.bf16.mxu0 0
        %1257 = vmatpush1.bf16.msra.mxu0 0
        %1258 = vmatprep.subr.bf16.mxu0 0
        %1259 = vmatpush1.bf16.msra.mxu0 0
        %1260 = vmatprep.subr.bf16.mxu0 0
        %1261 = vmatpush1.bf16.msra.mxu0 0
        %1262 = vmatprep.subr.bf16.mxu0 0
        %1263 = vmatpush1.bf16.msra.mxu0 0
        %1264 = vmatprep.subr.bf16.mxu0 0
        %1265 = vmatpush1.bf16.msra.mxu0 0
        %1266 = vmatprep.subr.bf16.mxu0 0
        %1267 = vmatpush1.bf16.msra.mxu0 0
        %1268 = vmatprep.subr.bf16.mxu0 0
        %1269 = vmatpush1.bf16.msra.mxu0 %v1252
        %1270 = vmatprep.subr.bf16.mxu0 0
        %1271 = vmatpush2.bf16.msra.mxu0 0
        %1272 = vmatprep.subr.bf16.mxu0 0
        %1273 = vmatpush2.bf16.msra.mxu0 0
        %1274 = vmatprep.subr.bf16.mxu0 0
        %1275 = vmatpush2.bf16.msra.mxu0 0
        %1276 = vmatprep.subr.bf16.mxu0 0
        %1277 = vmatpush2.bf16.msra.mxu0 0
        %1278 = vmatprep.subr.bf16.mxu0 0
        %1279 = vmatpush2.bf16.msra.mxu0 0
        %1280 = vmatprep.subr.bf16.mxu0 0
        %1281 = vmatpush2.bf16.msra.mxu0 0
        %1282 = vmatprep.subr.bf16.mxu0 0
        %1283 = vmatpush2.bf16.msra.mxu0 0
        %1284 = vmatprep.subr.bf16.mxu0 0
        %1285 = vmatpush2.bf16.msra.mxu0 0
        %1286 = vmatprep.mubr.bf16.mxu0 0
        %1287 = vmatmul.mubr.bf16.gmra.mxu0 %v1249
        %v1288 = vpop.f32.mrf.mxu0
        %v1289 = vadd.f32 0.0, %v1288
        %v1290 = vpop.f32.mrf.mxu0
        %v1291 = vpop.f32.mrf.mxu0
        %v1292 = vadd.f32 0.0, %v1291
        %v1293 = vpop.f32.mrf.mxu0
        %1294 = vdwg.mxu0
        %v1297 = vunpack.c.l.b16 %v869
        %v1298 = vunpack.c.l.b16 %v870
        %v1299 = vpack.c.b16 %v1298, %v1297
        %v1301 = vsel %vm513, %v1299, 0
        %v1304 = vsel %vm538, %v871, 0
        %1306 = vmatprep.subr.bf16.mxu0 0
        %1307 = vmatpush1.bf16.msra.mxu0 0
        %1308 = vmatprep.subr.bf16.mxu0 0
        %1309 = vmatpush1.bf16.msra.mxu0 0
        %1310 = vmatprep.subr.bf16.mxu0 0
        %1311 = vmatpush1.bf16.msra.mxu0 0
        %1312 = vmatprep.subr.bf16.mxu0 0
        %1313 = vmatpush1.bf16.msra.mxu0 0
        %1314 = vmatprep.subr.bf16.mxu0 0
        %1315 = vmatpush1.bf16.msra.mxu0 0
        %1316 = vmatprep.subr.bf16.mxu0 0
        %1317 = vmatpush1.bf16.msra.mxu0 0
        %1318 = vmatprep.subr.bf16.mxu0 0
        %1319 = vmatpush1.bf16.msra.mxu0 0
        %1320 = vmatprep.subr.bf16.mxu0 0
        %1321 = vmatpush1.bf16.msra.mxu0 %v1304
        %1322 = vmatprep.subr.bf16.mxu0 0
        %1323 = vmatpush2.bf16.msra.mxu0 0
        %1324 = vmatprep.subr.bf16.mxu0 0
        %1325 = vmatpush2.bf16.msra.mxu0 0
        %1326 = vmatprep.subr.bf16.mxu0 0
        %1327 = vmatpush2.bf16.msra.mxu0 0
        %1328 = vmatprep.subr.bf16.mxu0 0
        %1329 = vmatpush2.bf16.msra.mxu0 0
        %1330 = vmatprep.subr.bf16.mxu0 0
        %1331 = vmatpush2.bf16.msra.mxu0 0
        %1332 = vmatprep.subr.bf16.mxu0 0
        %1333 = vmatpush2.bf16.msra.mxu0 0
        %1334 = vmatprep.subr.bf16.mxu0 0
        %1335 = vmatpush2.bf16.msra.mxu0 0
        %1336 = vmatprep.subr.bf16.mxu0 0
        %1337 = vmatpush2.bf16.msra.mxu0 0
        %1338 = vmatprep.mubr.bf16.mxu0 0
        %1339 = vmatmul.mubr.bf16.gmra.mxu0 %v1301
        %v1340 = vpop.f32.mrf.mxu0
        %v1341 = vadd.f32 %v1289, %v1340
        %v1342 = vpop.f32.mrf.mxu0
        %v1343 = vpop.f32.mrf.mxu0
        %v1344 = vadd.f32 %v1292, %v1343
        %v1345 = vpop.f32.mrf.mxu0
        %1346 = vdwg.mxu0
        %v1347 = vld [vmem:[#allocation6] sm:$0xff]
        %v1348 = vld [vmem:[#allocation6 + $0x8] sm:$0xff]
        %1350 = vset.pattern.permute.xlu0 0
        %1351 = vperm.xlu0 %1350, %v1347
        %v1352 = vpop.permute.xlu0 %1351
        %1355 = vset.pattern.permute.xlu0 0
        %1356 = vperm.xlu0 %1355, %v1348
        %v1357 = vpop.permute.xlu0 %1356
        %v1359 = vadd.f32 %v1341, %v1352
        %v1360 = vadd.f32 %v1344, %v1357
        %v1361 = vadd.f32 %v365, %v1359
        %v1362 = vadd.f32 %v366, %v1360
        %v1363 = vadd.f32 %v1361, %v1362
        %v1364 = vrot.slane %v1363, 4
        %v1365 = vadd.f32 %v1363, %v1364
        %v1366 = vrot.slane %v1365, 2
        %v1367 = vadd.f32 %v1365, %v1366
        %v1368 = vrot.slane %v1367, 1
        %v1369 = vadd.f32 %v1367, %v1368
        %v1370 = vrcp.pop 16.0
        %v1371 = vmul.f32 %v1369, %v1370
        %v1372 = vsub.f32 %v1361, %v1371
        %v1373 = vsub.f32 %v1362, %v1371
        %v1374 = vmul.f32 %v1372, %v1372
        %v1375 = vmul.f32 %v1373, %v1373
        %v1376 = vadd.f32 %v1374, %v1375
        %v1377 = vrot.slane %v1376, 4
        %v1378 = vadd.f32 %v1376, %v1377
        %v1379 = vrot.slane %v1378, 2
        %v1380 = vadd.f32 %v1378, %v1379
        %v1381 = vrot.slane %v1380, 1
        %v1382 = vadd.f32 %v1380, %v1381
        %v1383 = vmul.f32 %v1382, %v1370
        %v1384 = vadd.f32 %v1383, 1e-05
        %v1385 = vrsqrt.pop %v1384
        %v1386 = vmul.f32 %v1372, %v1385
        %v1387 = vmul.f32 %v1373, %v1385
        %v1388 = vld [vmem:[%s6] sm:$0xff]
        %v1389 = vld [vmem:[%s6 + $0x8] sm:$0xff]
        %1391 = vset.pattern.permute.xlu0 0
        %1392 = vperm.xlu0 %1391, %v1388
        %v1393 = vpop.permute.xlu0 %1392
        %1396 = vset.pattern.permute.xlu0 0
        %1397 = vperm.xlu0 %1396, %v1389
        %v1398 = vpop.permute.xlu0 %1397
        %v1400 = vmul.f32 %v1386, %v1393
        %v1401 = vmul.f32 %v1387, %v1398
        %v1402 = vld [vmem:[%s7] sm:$0xff]
        %v1403 = vld [vmem:[%s7 + $0x8] sm:$0xff]
        %1405 = vset.pattern.permute.xlu0 0
        %1406 = vperm.xlu0 %1405, %v1402
        %v1407 = vpop.permute.xlu0 %1406
        %1410 = vset.pattern.permute.xlu0 0
        %1411 = vperm.xlu0 %1410, %v1403
        %v1412 = vpop.permute.xlu0 %1411
        %v1414 = vadd.f32 %v1400, %v1407
        %v1415 = vadd.f32 %v1401, %v1412
        %1416 = vst [vmem:[%s363] sm:$0xff] %v1414
        %1417 = vst [vmem:[%s363 + $0x8] sm:$0xff] %v1415
        %p1418 = scmp.lt.s32.totalorder %s21, 1
        %s1419 = scalar_select %p1418, %s21, 1
        %s1420 = smul.addr %s1419, 2
        %s1421 = smul.addr %s1420, 8
        %s1422 = scalar_lea.vmem %s8, %s1421
        // Predicated region
        $region65: #{phase1.21} parent=51 // pred_check
          %p1423 = pneg %p217
        $region66: #{phase1.21} parent=51 // pred_check_branch
          %1425 = sbr.rel (%p1423) target = $region68
        $region67: #{phase1.21} parent=51 // pred_region
          _
        $region68: #{phase1.21} parent=51 // pred_fallthru
          _
      $region52: #{phase1.21} parent=5 // pred_fallthru
        _
      %p1426 = scmp.le.s32.totalorder 2, %s16
      // Predicated region
      $region69: #{phase1.21} parent=5 // pred_check
        %p1427 = pneg %p1426
      $region70: #{phase1.21} parent=5 // pred_check_branch
        %1429 = sbr.rel (%p1427) target = $region72
      $region71: #{phase1.21} parent=5 // pred_region
        %s1430 = ssub.s32 %s16, 2
        // Predicated region
        $region73: #{phase1.21} parent=71 // pred_check
          %p1431 = pneg %p223
        $region74: #{phase1.21} parent=71 // pred_check_branch
          %1433 = sbr.rel (%p1431) target = $region76
        $region75: #{phase1.21} parent=71 // pred_region
          %p1434 = scmp.lt.s32.totalorder %s22, 1
          %s1435 = scalar_select %p1434, %s22, 1
          %s1436 = smul.addr %s1435, 2
          %s1437 = smul.addr %s1436, 8
          %s1438 = scalar_lea.vmem %s8, %s1437
        $region76: #{phase1.21} parent=71 // pred_fallthru
          _
      $region72: #{phase1.21} parent=5 // pred_fallthru
        _
    $region6: #{phase1.21} parent=1 // loop_footer
      %s20 = sadd.s32 1, %s16
    $region7: #{phase1.21} parent=1 // loop_footer_branch
      %15 = sbr.rel target = $region3
    $region8: #{phase1.21} parent=1 // loop_exit
      _
    %1439 = vsyncpa [#allocation3], 1
    %s1440 = scalar_lea.sflag [#allocation3], 1
    %1441 = vsyncpa %s1440, 1
    %1442 = vsyncpa [#allocation5], 1

// kernel: reverse.1
$region0: #{reverse.1}
  %s0 = inlined_call_operand.vmem [shape: f32[2,4,128], index: 0, kind: input, shape index: {}]
  %s1 = inlined_call_operand.vmem [shape: f32[2,4,128], index: 1, kind: output, shape index: {}]
  $region1: #{reverse.1} parent=0
    #allocation0 [shape = 'u8[16384]{0}', space=vmem, size = 0x4000, scoped, tag = 'operand span for operand 0']
    #allocation1 [shape = 'u8[8192]{0}', space=vmem, size = 0x2000, scoped, tag = 'packed  for operand 0']
    #allocation2 [shape = 'u8[8192]{0}', space=vmem, size = 0x2000, scoped, tag = 'operand span for operand 1']
    #allocation3 [shape = 'u8[4096]{0}', space=vmem, size = 0x1000, scoped, tag = 'packed  for operand 1']
    %s2 = scalar_lea.vmem [#allocation1], 4
    // Predicated region
    $region2: #{reverse.1} parent=1 // pred_check
      _
    $region3: #{reverse.1} parent=1 // pred_check_branch
      %4 = sbr.rel (0) target = $region5
    $region4: #{reverse.1} parent=1 // pred_region
      // Predicated region
      $region6: #{reverse.1} parent=4 // pred_check
        _
      $region7: #{reverse.1} parent=4 // pred_check_branch
        %6 = sbr.rel target = $region9
      $region8: #{reverse.1} parent=4 // pred_region
        // Predicated region
        $region21: #{reverse.1} parent=8 // pred_check
          _
        $region22: #{reverse.1} parent=8 // pred_check_branch
          %24 = sbr.rel (0) target = $region24
        $region23: #{reverse.1} parent=8 // pred_region
          loop: start=0, step=1, limit=1
          $region25: #{reverse.1} parent=23 // loop_pre_header
            _
          $region26: #{reverse.1} parent=23 // loop_header
            %s26 = sphi 0, %s30
            %p27 = scmp.ge.s32.totalorder %s26, 1
            %s31 = sphi %s0, %s0
            %s32 = sphi %s2, %s2
          $region27: #{reverse.1} parent=23 // loop_header_branch
            %29 = sbr.rel (%p27) target = $region31
          $region28: #{reverse.1} parent=23 // loop_body
            _
          $region29: #{reverse.1} parent=23 // loop_footer
            %s30 = sadd.s32 1, %s26
          $region30: #{reverse.1} parent=23 // loop_footer_branch
            %25 = sbr.rel target = $region26
          $region31: #{reverse.1} parent=23 // loop_exit
            _
          %s34 = ssub.s32 16, 1
          loop: start=0, step=1, limit=1
          $region32: #{reverse.1} parent=23 // loop_pre_header
            _
          $region33: #{reverse.1} parent=23 // loop_header
            %s36 = sphi 0, %s40
            %p37 = scmp.ge.s32.totalorder %s36, 1
            %s41 = sphi %s0, %s0
            %s42 = sphi %s2, %s2
          $region34: #{reverse.1} parent=23 // loop_header_branch
            %39 = sbr.rel (%p37) target = $region38
          $region35: #{reverse.1} parent=23 // loop_body
            %v43 = vld [vmem:[%s41] sm:%s34]
            %44 = vst [vmem:[%s42] sm:%s34] %v43
            %v45 = vld [vmem:[%s41 + $0x4] sm:%s34]
            %46 = vst [vmem:[%s42 + $0x8] sm:%s34] %v45
          $region36: #{reverse.1} parent=23 // loop_footer
            %s40 = sadd.s32 1, %s36
          $region37: #{reverse.1} parent=23 // loop_footer_branch
            %35 = sbr.rel target = $region33
          $region38: #{reverse.1} parent=23 // loop_exit
            _
        $region24: #{reverse.1} parent=8 // pred_fallthru
          _
      $region9: #{reverse.1} parent=4 // pred_fallthru
        _
      // Predicated region
      $region10: #{reverse.1} parent=4 // pred_check
        _
      $region11: #{reverse.1} parent=4 // pred_check_branch
        %8 = sbr.rel (0) target = $region13
      $region12: #{reverse.1} parent=4 // pred_region
        %s10 = ssub.s32 16, 1
        loop: start=0, step=1, limit=1
        $region14: #{reverse.1} parent=12 // loop_pre_header
          _
        $region15: #{reverse.1} parent=12 // loop_header
          %s12 = sphi 0, %s16
          %p13 = scmp.ge.s32.totalorder %s12, 1
          %s17 = sphi %s0, %s0
          %s18 = sphi %s2, %s2
        $region16: #{reverse.1} parent=12 // loop_header_branch
          %15 = sbr.rel (%p13) target = $region20
        $region17: #{reverse.1} parent=12 // loop_body
          %v19 = vld [vmem:[%s17] sm:%s10]
          %20 = vst [vmem:[%s18] sm:%s10] %v19
          %v21 = vld [vmem:[%s17 + $0x4] sm:%s10]
          %22 = vst [vmem:[%s18 + $0x8] sm:%s10] %v21
        $region18: #{reverse.1} parent=12 // loop_footer
          %s16 = sadd.s32 1, %s12
        $region19: #{reverse.1} parent=12 // loop_footer_branch
          %11 = sbr.rel target = $region15
        $region20: #{reverse.1} parent=12 // loop_exit
          _
      $region13: #{reverse.1} parent=4 // pred_fallthru
        _
    $region5: #{reverse.1} parent=1 // pred_fallthru
      _
    %47 = vnop
    %s49 = sshll.u32 1, 4
    %s50 = ssub.s32 %s49, 1
    %s51 = smul.addr 4, 3
    %s52 = scalar_lea.vmem [#allocation1], %s51
    %v53 = vld [vmem:[%s52] sm:%s50]
    %s54 = scalar_lea.vmem [#allocation0], 24
    %55 = vst [vmem:[%s54] sm:%s50] %v53
    %s56 = smul.addr 4, 2
    %s57 = scalar_lea.vmem [#allocation1], %s56
    %v58 = vld [vmem:[%s57] sm:%s50]
    %s59 = scalar_lea.vmem [#allocation0], 16
    %60 = vst [vmem:[%s59] sm:%s50] %v58
    %s61 = scalar_lea.vmem [#allocation1], 4
    %v62 = vld [vmem:[%s61] sm:%s50]
    %s63 = scalar_lea.vmem [#allocation0], 8
    %64 = vst [vmem:[%s63] sm:%s50] %v62
    %v65 = vld [vmem:[#allocation1] sm:%s50]
    %66 = vst [vmem:[#allocation0] sm:%s50] %v65
    %s67 = scalar_lea.vmem [#allocation0], 7
    %v68 = vld [vmem:[%s67] ss:$-1 sm:$0xff]
    %v69 = vrot.slane %v68, 4
    %70 = vst [vmem:[#allocation2] sm:$0xff] %v69
    %s71 = scalar_lea.vmem [#allocation0], 8
    %s72 = scalar_lea.vmem %s71, 7 [#allocation0]
    %v73 = vld [vmem:[%s72] ss:$-1 sm:$0xff]
    %v74 = vrot.slane %v73, 4
    %v75 = vlaneseq
    %v76 = vshrl.u32 %v75, 7
    %vm77 = vcmp.lt.s32.totalorder %v76, 4
    %78 = vst.msk [vmem:[#allocation2] sm:$0xff] %vm77, %v74
    %s79 = scalar_lea.vmem [#allocation2], 8
    %s80 = scalar_lea.vmem [#allocation0], 16
    %s81 = scalar_lea.vmem %s80, 7 [#allocation0]
    %v82 = vld [vmem:[%s81] ss:$-1 sm:$0xff]
    %v83 = vrot.slane %v82, 4
    %84 = vst [vmem:[%s79] sm:$0xff] %v83
    %s85 = scalar_lea.vmem %s80, 8 [#allocation0]
    %s86 = scalar_lea.vmem %s85, 7 [#allocation0]
    %v87 = vld [vmem:[%s86] ss:$-1 sm:$0xff]
    %v88 = vrot.slane %v87, 4
    %v89 = vlaneseq
    %v90 = vshrl.u32 %v89, 7
    %vm91 = vcmp.lt.s32.totalorder %v90, 4
    %92 = vst.msk [vmem:[%s79] sm:$0xff] %vm91, %v88
    %s94 = sshll.u32 1, 4
    %s95 = ssub.s32 %s94, 1
    %v97 = vld [vmem:[#allocation2] sm:%s95]
    %s98 = sshll.u32 1, 4
    %s99 = ssub.s32 %s98, 1
    %100 = vst [vmem:[#allocation3] sm:%s99] %v97
    %s101 = scalar_lea.vmem [#allocation2], 8
    %v102 = vld [vmem:[%s101] sm:%s95]
    %s103 = sshll.u32 1, 4
    %s104 = ssub.s32 %s103, 1
    %s105 = scalar_lea.vmem [#allocation3], 4
    %106 = vst [vmem:[%s105] sm:%s104] %v102
    // Predicated region
    $region39: #{reverse.1} parent=1 // pred_check
      _
    $region40: #{reverse.1} parent=1 // pred_check_branch
      %108 = sbr.rel (0) target = $region42
    $region41: #{reverse.1} parent=1 // pred_region
      // Predicated region
      $region43: #{reverse.1} parent=41 // pred_check
        _
      $region44: #{reverse.1} parent=41 // pred_check_branch
        %110 = sbr.rel target = $region46
      $region45: #{reverse.1} parent=41 // pred_region
        // Predicated region
        $region58: #{reverse.1} parent=45 // pred_check
          _
        $region59: #{reverse.1} parent=45 // pred_check_branch
          %128 = sbr.rel (0) target = $region61
        $region60: #{reverse.1} parent=45 // pred_region
          loop: start=0, step=1, limit=1
          $region62: #{reverse.1} parent=60 // loop_pre_header
            _
          $region63: #{reverse.1} parent=60 // loop_header
            %s130 = sphi 0, %s134
            %p131 = scmp.ge.s32.totalorder %s130, 1
            %s135 = sphi [#allocation3], [#allocation3]
            %s136 = sphi %s1, %s1
          $region64: #{reverse.1} parent=60 // loop_header_branch
            %133 = sbr.rel (%p131) target = $region68
          $region65: #{reverse.1} parent=60 // loop_body
            _
          $region66: #{reverse.1} parent=60 // loop_footer
            %s134 = sadd.s32 1, %s130
          $region67: #{reverse.1} parent=60 // loop_footer_branch
            %129 = sbr.rel target = $region63
          $region68: #{reverse.1} parent=60 // loop_exit
            _
          %s138 = ssub.s32 16, 1
          loop: start=0, step=1, limit=1
          $region69: #{reverse.1} parent=60 // loop_pre_header
            _
          $region70: #{reverse.1} parent=60 // loop_header
            %s140 = sphi 0, %s144
            %p141 = scmp.ge.s32.totalorder %s140, 1
            %s145 = sphi [#allocation3], [#allocation3]
            %s146 = sphi %s1, %s1
          $region71: #{reverse.1} parent=60 // loop_header_branch
            %143 = sbr.rel (%p141) target = $region75
          $region72: #{reverse.1} parent=60 // loop_body
            %v147 = vld [vmem:[%s145] sm:%s138]
            %148 = vst [vmem:[%s146] sm:%s138] %v147
            %v149 = vld [vmem:[%s145 + $0x4] sm:%s138]
            %150 = vst [vmem:[%s146 + $0x4] sm:%s138] %v149
          $region73: #{reverse.1} parent=60 // loop_footer
            %s144 = sadd.s32 1, %s140
          $region74: #{reverse.1} parent=60 // loop_footer_branch
            %139 = sbr.rel target = $region70
          $region75: #{reverse.1} parent=60 // loop_exit
            _
        $region61: #{reverse.1} parent=45 // pred_fallthru
          _
      $region46: #{reverse.1} parent=41 // pred_fallthru
        _
      // Predicated region
      $region47: #{reverse.1} parent=41 // pred_check
        _
      $region48: #{reverse.1} parent=41 // pred_check_branch
        %112 = sbr.rel (0) target = $region50
      $region49: #{reverse.1} parent=41 // pred_region
        %s114 = ssub.s32 16, 1
        loop: start=0, step=1, limit=1
        $region51: #{reverse.1} parent=49 // loop_pre_header
          _
        $region52: #{reverse.1} parent=49 // loop_header
          %s116 = sphi 0, %s120
          %p117 = scmp.ge.s32.totalorder %s116, 1
          %s121 = sphi [#allocation3], [#allocation3]
          %s122 = sphi %s1, %s1
        $region53: #{reverse.1} parent=49 // loop_header_branch
          %119 = sbr.rel (%p117) target = $region57
        $region54: #{reverse.1} parent=49 // loop_body
          %v123 = vld [vmem:[%s121] sm:%s114]
          %124 = vst [vmem:[%s122] sm:%s114] %v123
          %v125 = vld [vmem:[%s121 + $0x4] sm:%s114]
          %126 = vst [vmem:[%s122 + $0x4] sm:%s114] %v125
        $region55: #{reverse.1} parent=49 // loop_footer
          %s120 = sadd.s32 1, %s116
        $region56: #{reverse.1} parent=49 // loop_footer_branch
          %115 = sbr.rel target = $region52
        $region57: #{reverse.1} parent=49 // loop_exit
          _
      $region50: #{reverse.1} parent=41 // pred_fallthru
        _
    $region42: #{reverse.1} parent=1 // pred_fallthru
      _
    %151 = vnop

// kernel: phase1.29
$region0: #{phase1.29}
  #allocation0 [shape = 'u32[]', space=smem, size = 0x4, offset = 0x4, fixed_abs, tag = 'smem constant byte address 0x4 - core index']
  #allocation1 [shape = 'u32[144,128]{1,0:T(1,128)}', space=vmem, size = 0x12000, scoped, tag = 'internal scratch']
  %s0 = inlined_call_operand.vmem [shape: f32[2,4,128], index: 0, kind: input, shape index: {}]
  %s1 = inlined_call_operand.vmem [shape: bf16[1,16,4], index: 1, kind: input, shape index: {}]
  %s2 = inlined_call_operand.vmem [shape: f32[16,1], index: 2, kind: input, shape index: {}]
  %s3 = inlined_call_operand.vmem [shape: f32[2,1,128], index: 3, kind: input, shape index: {}]
  %s4 = inlined_call_operand.vmem [shape: f32[2,16,128], index: 4, kind: output, shape index: {}]
  %s5 = sld [smem:[#allocation0]]
  $region49: #{phase1.29} parent=0
    _
  %s7 = ssub.s32 1, %s5
  %s8 = scalar_select 0, %s7, %s5
  loop: start=0, step=1, limit=4
  $region2: #{phase1.29} parent=0 // loop_pre_header
    _
  $region3: #{phase1.29} parent=0 // loop_header
    %s10 = sphi 0, %s14
    %p11 = scmp.ge.s32.totalorder %s10, 4
    %s20 = sphi 0, %s22
    %s23 = sphi 0, %s20
    %s24 = sphi 0, %s23
    %s40 = sphi 0, %s24
    %s44 = sphi 0, %s44
    %s46 = sphi 0, %s44
    %s47 = sphi 0, %s46
    %s61 = sphi 0, %s47
    %s65 = sphi 0, %s65
    %s67 = sphi 0, %s65
    %s68 = sphi 0, %s67
    %s82 = sphi 0, %s68
    %s88 = sphi 0, %s90
    %s91 = sphi 0, %s88
    %s92 = sphi 0, %s91
    %s108 = sphi 0, %s92
    %s114 = sphi 0, %s116
    %s117 = sphi 0, %s114
    %s118 = sphi 0, %s117
    %s134 = sphi 0, %s118
  $region4: #{phase1.29} parent=0 // loop_header_branch
    %13 = sbr.rel (%p11) target = $region8
  $region5: #{phase1.29} parent=0 // loop_body
    %s15 = ssub.s32 %s10, 1
    %s16 = ssub.s32 %s10, 2
    %s17 = sadd.s32 %s10, 1
    %s18 = ssub.s32 %s10, %s17
    %p19 = scmp.eq.s32.totalorder %s18, 0
    %s21 = sadd.s32 %s20, 1
    %s22 = scalar_select %p19, %s20, %s21
    %p25 = pneg %p19
    %p26 = scmp.eq.s32.totalorder %s10, 1
    %p27 = por %p25, %p26
    %p28 = scmp.ne.s32.totalorder %s20, %s23
    %p29 = scmp.eq.s32.totalorder %s10, 0
    %p30 = por %p28, %p29
    %p31 = scmp.ne.s32.totalorder %s20, %s23
    %p32 = scmp.eq.s32.totalorder %s15, 1
    %p33 = por %p31, %p32
    %p34 = scmp.ne.s32.totalorder %s23, %s24
    %p35 = scmp.eq.s32.totalorder %s15, 0
    %p36 = por %p34, %p35
    %p37 = scmp.ne.s32.totalorder %s23, %s24
    %p38 = scmp.eq.s32.totalorder %s16, 1
    %p39 = por %p37, %p38
    %p41 = scmp.ne.s32.totalorder %s24, %s40
    %p42 = scmp.eq.s32.totalorder %s16, 0
    %p43 = por %p41, %p42
    %s45 = sadd.s32 %s44, 1
    %p48 = scmp.eq.s32.totalorder %s10, 1
    %p49 = scmp.ne.s32.totalorder %s44, %s46
    %p50 = scmp.eq.s32.totalorder %s10, 0
    %p51 = por %p49, %p50
    %p52 = scmp.ne.s32.totalorder %s44, %s46
    %p53 = scmp.eq.s32.totalorder %s15, 1
    %p54 = por %p52, %p53
    %p55 = scmp.ne.s32.totalorder %s46, %s47
    %p56 = scmp.eq.s32.totalorder %s15, 0
    %p57 = por %p55, %p56
    %p58 = scmp.ne.s32.totalorder %s46, %s47
    %p59 = scmp.eq.s32.totalorder %s16, 1
    %p60 = por %p58, %p59
    %p62 = scmp.ne.s32.totalorder %s47, %s61
    %p63 = scmp.eq.s32.totalorder %s16, 0
    %p64 = por %p62, %p63
    %s66 = sadd.s32 %s65, 1
    %p69 = scmp.eq.s32.totalorder %s10, 1
    %p70 = scmp.ne.s32.totalorder %s65, %s67
    %p71 = scmp.eq.s32.totalorder %s10, 0
    %p72 = por %p70, %p71
    %p73 = scmp.ne.s32.totalorder %s65, %s67
    %p74 = scmp.eq.s32.totalorder %s15, 1
    %p75 = por %p73, %p74
    %p76 = scmp.ne.s32.totalorder %s67, %s68
    %p77 = scmp.eq.s32.totalorder %s15, 0
    %p78 = por %p76, %p77
    %p79 = scmp.ne.s32.totalorder %s67, %s68
    %p80 = scmp.eq.s32.totalorder %s16, 1
    %p81 = por %p79, %p80
    %p83 = scmp.ne.s32.totalorder %s68, %s82
    %p84 = scmp.eq.s32.totalorder %s16, 0
    %p85 = por %p83, %p84
    %s86 = ssub.s32 %s10, %s17
    %p87 = scmp.eq.s32.totalorder %s86, 0
    %s89 = sadd.s32 %s88, 1
    %s90 = scalar_select %p87, %s88, %s89
    %p93 = pneg %p87
    %p94 = scmp.eq.s32.totalorder %s10, 1
    %p95 = por %p93, %p94
    %p96 = scmp.ne.s32.totalorder %s88, %s91
    %p97 = scmp.eq.s32.totalorder %s10, 0
    %p98 = por %p96, %p97
    %p99 = scmp.ne.s32.totalorder %s88, %s91
    %p100 = scmp.eq.s32.totalorder %s15, 1
    %p101 = por %p99, %p100
    %p102 = scmp.ne.s32.totalorder %s91, %s92
    %p103 = scmp.eq.s32.totalorder %s15, 0
    %p104 = por %p102, %p103
    %p105 = scmp.ne.s32.totalorder %s91, %s92
    %p106 = scmp.eq.s32.totalorder %s16, 1
    %p107 = por %p105, %p106
    %p109 = scmp.ne.s32.totalorder %s92, %s108
    %p110 = scmp.eq.s32.totalorder %s16, 0
    %p111 = por %p109, %p110
    %s112 = ssub.s32 %s10, %s17
    %p113 = scmp.eq.s32.totalorder %s112, 0
    %s115 = sadd.s32 %s114, 1
    %s116 = scalar_select %p113, %s114, %s115
    %p119 = pneg %p113
    %p120 = scmp.eq.s32.totalorder %s10, 1
    %p121 = por %p119, %p120
    %p122 = scmp.ne.s32.totalorder %s114, %s117
    %p123 = scmp.eq.s32.totalorder %s10, 0
    %p124 = por %p122, %p123
    %p125 = scmp.ne.s32.totalorder %s114, %s117
    %p126 = scmp.eq.s32.totalorder %s15, 1
    %p127 = por %p125, %p126
    %p128 = scmp.ne.s32.totalorder %s117, %s118
    %p129 = scmp.eq.s32.totalorder %s15, 0
    %p130 = por %p128, %p129
    %p131 = scmp.ne.s32.totalorder %s117, %s118
    %p132 = scmp.eq.s32.totalorder %s16, 1
    %p133 = por %p131, %p132
    %p135 = scmp.ne.s32.totalorder %s118, %s134
    %p136 = scmp.eq.s32.totalorder %s16, 0
    %p137 = por %p135, %p136
    %p138 = scmp.le.s32.totalorder 1, %s10
    %p139 = scmp.lt.s32.totalorder %s10, 3
    %p140 = pnand %p138, %p139
    %p141 = pneg %p140
    // Predicated region
    $region9: #{phase1.29} parent=5 // pred_check
      _
    $region10: #{phase1.29} parent=5 // pred_check_branch
      %143 = sbr.rel (%p140) target = $region12
    $region11: #{phase1.29} parent=5 // pred_region
      %s144 = ssub.s32 %s10, 1
      // Predicated region
      $region13: #{phase1.29} parent=11 // pred_check
        %p145 = pneg %p57
      $region14: #{phase1.29} parent=11 // pred_check_branch
        %147 = sbr.rel (%p145) target = $region16
      $region15: #{phase1.29} parent=11 // pred_region
        _
      $region16: #{phase1.29} parent=11 // pred_fallthru
        _
      // Predicated region
      $region17: #{phase1.29} parent=11 // pred_check
        %p148 = pneg %p78
      $region18: #{phase1.29} parent=11 // pred_check_branch
        %150 = sbr.rel (%p148) target = $region20
      $region19: #{phase1.29} parent=11 // pred_region
        _
      $region20: #{phase1.29} parent=11 // pred_fallthru
        _
    $region12: #{phase1.29} parent=5 // pred_fallthru
      _
    %p151 = scmp.lt.s32.totalorder %s10, 2
    // Predicated region
    $region21: #{phase1.29} parent=5 // pred_check
      %p152 = pneg %p151
    $region22: #{phase1.29} parent=5 // pred_check_branch
      %154 = sbr.rel (%p152) target = $region24
    $region23: #{phase1.29} parent=5 // pred_region
      // Predicated region
      $region25: #{phase1.29} parent=23 // pred_check
        %p155 = pneg %p30
      $region26: #{phase1.29} parent=23 // pred_check_branch
        %157 = sbr.rel (%p155) target = $region28
      $region27: #{phase1.29} parent=23 // pred_region
        %p158 = scmp.lt.s32.totalorder %s10, 1
        %s159 = scalar_select %p158, %s10, 1
        %s160 = smul.addr %s159, 4
        %s161 = scalar_lea.vmem %s0, %s160
      $region28: #{phase1.29} parent=23 // pred_fallthru
        _
      // Predicated region
      $region29: #{phase1.29} parent=23 // pred_check
        %p162 = pneg %p98
      $region30: #{phase1.29} parent=23 // pred_check_branch
        %164 = sbr.rel (%p162) target = $region32
      $region31: #{phase1.29} parent=23 // pred_region
        %p165 = scmp.lt.s32.totalorder %s10, 1
        %s166 = scalar_select %p165, %s10, 1
        %s167 = scalar_lea.vmem %s3, %s166
      $region32: #{phase1.29} parent=23 // pred_fallthru
        _
    $region24: #{phase1.29} parent=5 // pred_fallthru
      _
    %p168 = scmp.le.s32.totalorder 1, %s10
    %p169 = scmp.lt.s32.totalorder %s10, 3
    %p170 = pnand %p168, %p169
    %p171 = pneg %p170
    // Predicated region
    $region33: #{phase1.29} parent=5 // pred_check
      _
    $region34: #{phase1.29} parent=5 // pred_check_branch
      %173 = sbr.rel (%p170) target = $region36
    $region35: #{phase1.29} parent=5 // pred_region
      %s174 = ssub.s32 %s10, 1
      %p175 = scmp.lt.s32.totalorder %s15, 1
      %s176 = scalar_select %p175, %s15, 1
      %s177 = smul.addr %s176, 4
      %s178 = scalar_lea.vmem %s0, %s177
      %p179 = pneg %p36
      %p180 = pneg %p33
      %p181 = pneg %p57
      %p182 = pneg %p54
      %p183 = pneg %p78
      %p184 = pneg %p75
      %p185 = scmp.lt.s32.totalorder %s15, 1
      %s186 = scalar_select %p185, %s15, 1
      %s187 = scalar_lea.vmem %s3, %s186
      %p188 = pneg %p104
      %p189 = pneg %p101
      %p190 = pneg %p130
      %p191 = pneg %p127
      %p192 = scmp.lt.s32.totalorder %s15, 1
      %s193 = scalar_select %p192, %s15, 1
      %s194 = smul.addr %s193, 2
      %s195 = smul.addr %s194, 8
      %s196 = scalar_lea.vmem %s4, %s195
      %p197 = scmp.lt.s32.totalorder %s15, 1
      %s198 = scalar_select %p197, %s15, 1
      %s199 = smul.addr %s198, 4
      %s200 = scalar_lea.vmem %s0, %s199
      %p201 = scmp.lt.s32.totalorder %s15, 1
      %s202 = scalar_select %p201, %s15, 1
      %s203 = scalar_lea.vmem %s3, %s202
      %p204 = scmp.lt.s32.totalorder %s15, 1
      %s205 = scalar_select %p204, %s15, 1
      %s206 = smul.addr %s205, 2
      %s207 = smul.addr %s206, 8
      %s208 = scalar_lea.vmem %s4, %s207
      %v210 = vld [vmem:[%s200] sm:$0xf]
      %v211 = vlaneseq
      %v212 = vand.u32 %v211, 127
      %vm213 = vcmp.lt.s32.totalorder %v212, 16
      %v214 = vsel %vm213, %v210, 0.0
      %v215 = vpack.c.bf16 %v214, %v214
      %v216 = vld [vmem:[%s1] sm:$0xf]
      %v217 = vld [vmem:[%s1 + $0x4] sm:$0xf]
      %v218 = vld [vmem:[%s2] sm:$0xff]
      %v219 = vld [vmem:[%s2 + $0x8] sm:$0xff]
      %221 = vset.pattern.permute.xlu0 0
      %222 = vperm.xlu0 %221, %v218
      %v223 = vpop.permute.xlu0 %222
      %226 = vset.pattern.permute.xlu0 0
      %227 = vperm.xlu0 %226, %v219
      %v228 = vpop.permute.xlu0 %227
      %v232 = vunpack.c.l.b16 %v216
      %v233 = vunpack.c.l.b16 %v217
      %v234 = vpack.c.b16 %v233, %v232
      %vm235 = vcmask 31744
      %v237 = vsel %vm235, %v234, 0
      %vm239 = vcmask 1041408
      %v241 = vsel %vm239, %v215, 0
      %243 = vmatprep.subr.bf16.mxu0 0
      %244 = vmatpush1.bf16.msra.mxu0 0
      %245 = vmatprep.subr.bf16.mxu0 0
      %246 = vmatpush1.bf16.msra.mxu0 0
      %247 = vmatprep.subr.bf16.mxu0 0
      %248 = vmatpush1.bf16.msra.mxu0 0
      %249 = vmatprep.subr.bf16.mxu0 0
      %250 = vmatpush1.bf16.msra.mxu0 0
      %251 = vmatprep.subr.bf16.mxu0 0
      %252 = vmatpush1.bf16.msra.mxu0 0
      %253 = vmatprep.subr.bf16.mxu0 0
      %254 = vmatpush1.bf16.msra.mxu0 0
      %255 = vmatprep.subr.bf16.mxu0 0
      %256 = vmatpush1.bf16.msra.mxu0 0
      %257 = vmatprep.subr.bf16.mxu0 0
      %258 = vmatpush1.bf16.msra.mxu0 %v241
      %259 = vmatprep.subr.bf16.mxu0 0
      %260 = vmatpush2.bf16.msra.mxu0 0
      %261 = vmatprep.subr.bf16.mxu0 0
      %262 = vmatpush2.bf16.msra.mxu0 0
      %263 = vmatprep.subr.bf16.mxu0 0
      %264 = vmatpush2.bf16.msra.mxu0 0
      %265 = vmatprep.subr.bf16.mxu0 0
      %266 = vmatpush2.bf16.msra.mxu0 0
      %267 = vmatprep.subr.bf16.mxu0 0
      %268 = vmatpush2.bf16.msra.mxu0 0
      %269 = vmatprep.subr.bf16.mxu0 0
      %270 = vmatpush2.bf16.msra.mxu0 0
      %271 = vmatprep.subr.bf16.mxu0 0
      %272 = vmatpush2.bf16.msra.mxu0 0
      %273 = vmatprep.subr.bf16.mxu0 0
      %274 = vmatpush2.bf16.msra.mxu0 0
      %275 = vmatprep.mubr.bf16.mxu0 0
      %276 = vmatmul.mubr.bf16.gmra.mxu0 %v237
      %v277 = vpop.f32.mrf.mxu0
      %v278 = vadd.f32 %v223, %v277
      %v279 = vpop.f32.mrf.mxu0
      %v280 = vpop.f32.mrf.mxu0
      %v281 = vadd.f32 %v228, %v280
      %v282 = vpop.f32.mrf.mxu0
      %283 = vdwg.mxu0
      %v284 = vld [vmem:[%s203] sm:$0x1]
      %v286 = vlaneseq
      %v287 = vshrl.u32 %v286, 7
      %v288 = vsub.s32 0, %v287
      %v289 = vrot.slane %v284, %v288
      %v291 = vmul.f32 %v278, %v289
      %v292 = vmul.f32 %v281, %v289
      %293 = vst [vmem:[%s208] sm:$0xff] %v291
      %294 = vst [vmem:[%s208 + $0x8] sm:$0xff] %v292
      %p295 = scmp.lt.s32.totalorder %s15, 1
      %s296 = scalar_select %p295, %s15, 1
      %s297 = smul.addr %s296, 2
      %s298 = smul.addr %s297, 8
      %s299 = scalar_lea.vmem %s4, %s298
      // Predicated region
      $region37: #{phase1.29} parent=35 // pred_check
        %p300 = pneg %p127
      $region38: #{phase1.29} parent=35 // pred_check_branch
        %302 = sbr.rel (%p300) target = $region40
      $region39: #{phase1.29} parent=35 // pred_region
        _
      $region40: #{phase1.29} parent=35 // pred_fallthru
        _
    $region36: #{phase1.29} parent=5 // pred_fallthru
      _
    %p303 = scmp.le.s32.totalorder 2, %s10
    // Predicated region
    $region41: #{phase1.29} parent=5 // pred_check
      %p304 = pneg %p303
    $region42: #{phase1.29} parent=5 // pred_check_branch
      %306 = sbr.rel (%p304) target = $region44
    $region43: #{phase1.29} parent=5 // pred_region
      %s307 = ssub.s32 %s10, 2
      // Predicated region
      $region45: #{phase1.29} parent=43 // pred_check
        %p308 = pneg %p133
      $region46: #{phase1.29} parent=43 // pred_check_branch
        %310 = sbr.rel (%p308) target = $region48
      $region47: #{phase1.29} parent=43 // pred_region
        %p311 = scmp.lt.s32.totalorder %s16, 1
        %s312 = scalar_select %p311, %s16, 1
        %s313 = smul.addr %s312, 2
        %s314 = smul.addr %s313, 8
        %s315 = scalar_lea.vmem %s4, %s314
      $region48: #{phase1.29} parent=43 // pred_fallthru
        _
    $region44: #{phase1.29} parent=5 // pred_fallthru
      _
  $region6: #{phase1.29} parent=0 // loop_footer
    %s14 = sadd.s32 1, %s10
  $region7: #{phase1.29} parent=0 // loop_footer_branch
    %9 = sbr.rel target = $region3
  $region8: #{phase1.29} parent=0 // loop_exit
    _

// kernel: phase1.27
$region0: #{phase1.27}
  #allocation0 [shape = 'u32[]', space=smem, size = 0x4, offset = 0x4, fixed_abs, tag = 'smem constant byte address 0x4 - core index']
  #allocation1 [shape = 'u32[144,128]{1,0:T(1,128)}', space=vmem, size = 0x12000, scoped, tag = 'internal scratch']
  %s0 = inlined_call_operand.vmem [shape: f32[2,16,128], index: 0, kind: input, shape index: {}]
  %s1 = inlined_call_operand.vmem [shape: f32[2,1,128], index: 1, kind: input, shape index: {}]
  %s2 = inlined_call_operand.vmem [shape: bf16[80,32,16], index: 2, kind: input, shape index: {}]
  %s3 = inlined_call_operand.hbm [shape: f32[16,32,1], index: 3, kind: input, shape index: {}]
  %s4 = inlined_call_operand.vmem [shape: bf16[16,32,16], index: 4, kind: input, shape index: {}]
  %s5 = inlined_call_operand.hbm [shape: f32[16,32,1], index: 5, kind: input, shape index: {}]
  %s6 = inlined_call_operand.vmem [shape: f32[2,16,128], index: 6, kind: output, shape index: {}]
  %s7 = sld [smem:[#allocation0]]
  $region72: #{phase1.27} parent=0
    _
  %s9 = ssub.s32 1, %s7
  %s10 = scalar_select 0, %s9, %s7
  $region1: #{phase1.27} parent=0
    #allocation2 [shape = 'u8[262144]{0}', space=vmem, size = 0x40000, scoped, tag = 'input window, operand 3, single buffered']
    #allocation3 [shape = 's32[2]{0}', space=sflag, size = 0x8, scoped, tag = 'scoped memory for phase1.27']
    #allocation4 [shape = 'u8[262144]{0}', space=vmem, size = 0x40000, scoped, tag = 'input window, operand 5, single buffered']
    #allocation5 [shape = 's32[1]{0}', space=sflag, size = 0x4, scoped, tag = 'scoped memory for phase1.27']
    %11 = vsyncpa [#allocation3], 0
    %12 = vsyncpa [#allocation5], 0
    loop: start=0, step=1, limit=4
    $region2: #{phase1.27} parent=1 // loop_pre_header
      _
    $region3: #{phase1.27} parent=1 // loop_header
      %s14 = sphi 0, %s18
      %p15 = scmp.ge.s32.totalorder %s14, 4
      %s24 = sphi 0, %s26
      %s27 = sphi 0, %s24
      %s28 = sphi 0, %s27
      %s44 = sphi 0, %s28
      %s50 = sphi 0, %s52
      %s53 = sphi 0, %s50
      %s54 = sphi 0, %s53
      %s70 = sphi 0, %s54
      %s74 = sphi 0, %s74
      %s76 = sphi 0, %s74
      %s77 = sphi 0, %s76
      %s91 = sphi 0, %s77
      %s95 = sphi 0, %s95
      %s97 = sphi 0, %s95
      %s98 = sphi 0, %s97
      %s112 = sphi 0, %s98
      %s116 = sphi 0, %s116
      %s118 = sphi 0, %s116
      %s119 = sphi 0, %s118
      %s133 = sphi 0, %s119
      %s137 = sphi 0, %s137
      %s139 = sphi 0, %s137
      %s140 = sphi 0, %s139
      %s154 = sphi 0, %s140
      %s160 = sphi 0, %s162
      %s163 = sphi 0, %s160
      %s164 = sphi 0, %s163
      %s180 = sphi 0, %s164
    $region4: #{phase1.27} parent=1 // loop_header_branch
      %17 = sbr.rel (%p15) target = $region8
    $region5: #{phase1.27} parent=1 // loop_body
      %s19 = ssub.s32 %s14, 1
      %s20 = ssub.s32 %s14, 2
      %s21 = sadd.s32 %s14, 1
      %s22 = ssub.s32 %s14, %s21
      %p23 = scmp.eq.s32.totalorder %s22, 0
      %s25 = sadd.s32 %s24, 1
      %s26 = scalar_select %p23, %s24, %s25
      %p29 = pneg %p23
      %p30 = scmp.eq.s32.totalorder %s14, 1
      %p31 = por %p29, %p30
      %p32 = scmp.ne.s32.totalorder %s24, %s27
      %p33 = scmp.eq.s32.totalorder %s14, 0
      %p34 = por %p32, %p33
      %p35 = scmp.ne.s32.totalorder %s24, %s27
      %p36 = scmp.eq.s32.totalorder %s19, 1
      %p37 = por %p35, %p36
      %p38 = scmp.ne.s32.totalorder %s27, %s28
      %p39 = scmp.eq.s32.totalorder %s19, 0
      %p40 = por %p38, %p39
      %p41 = scmp.ne.s32.totalorder %s27, %s28
      %p42 = scmp.eq.s32.totalorder %s20, 1
      %p43 = por %p41, %p42
      %p45 = scmp.ne.s32.totalorder %s28, %s44
      %p46 = scmp.eq.s32.totalorder %s20, 0
      %p47 = por %p45, %p46
      %s48 = ssub.s32 %s14, %s21
      %p49 = scmp.eq.s32.totalorder %s48, 0
      %s51 = sadd.s32 %s50, 1
      %s52 = scalar_select %p49, %s50, %s51
      %p55 = pneg %p49
      %p56 = scmp.eq.s32.totalorder %s14, 1
      %p57 = por %p55, %p56
      %p58 = scmp.ne.s32.totalorder %s50, %s53
      %p59 = scmp.eq.s32.totalorder %s14, 0
      %p60 = por %p58, %p59
      %p61 = scmp.ne.s32.totalorder %s50, %s53
      %p62 = scmp.eq.s32.totalorder %s19, 1
      %p63 = por %p61, %p62
      %p64 = scmp.ne.s32.totalorder %s53, %s54
      %p65 = scmp.eq.s32.totalorder %s19, 0
      %p66 = por %p64, %p65
      %p67 = scmp.ne.s32.totalorder %s53, %s54
      %p68 = scmp.eq.s32.totalorder %s20, 1
      %p69 = por %p67, %p68
      %p71 = scmp.ne.s32.totalorder %s54, %s70
      %p72 = scmp.eq.s32.totalorder %s20, 0
      %p73 = por %p71, %p72
      %s75 = sadd.s32 %s74, 1
      %p78 = scmp.eq.s32.totalorder %s14, 1
      %p79 = scmp.ne.s32.totalorder %s74, %s76
      %p80 = scmp.eq.s32.totalorder %s14, 0
      %p81 = por %p79, %p80
      %p82 = scmp.ne.s32.totalorder %s74, %s76
      %p83 = scmp.eq.s32.totalorder %s19, 1
      %p84 = por %p82, %p83
      %p85 = scmp.ne.s32.totalorder %s76, %s77
      %p86 = scmp.eq.s32.totalorder %s19, 0
      %p87 = por %p85, %p86
      %p88 = scmp.ne.s32.totalorder %s76, %s77
      %p89 = scmp.eq.s32.totalorder %s20, 1
      %p90 = por %p88, %p89
      %p92 = scmp.ne.s32.totalorder %s77, %s91
      %p93 = scmp.eq.s32.totalorder %s20, 0
      %p94 = por %p92, %p93
      %s96 = sadd.s32 %s95, 1
      %p99 = scmp.eq.s32.totalorder %s14, 1
      %p100 = scmp.ne.s32.totalorder %s95, %s97
      %p101 = scmp.eq.s32.totalorder %s14, 0
      %p102 = por %p100, %p101
      %p103 = scmp.ne.s32.totalorder %s95, %s97
      %p104 = scmp.eq.s32.totalorder %s19, 1
      %p105 = por %p103, %p104
      %p106 = scmp.ne.s32.totalorder %s97, %s98
      %p107 = scmp.eq.s32.totalorder %s19, 0
      %p108 = por %p106, %p107
      %p109 = scmp.ne.s32.totalorder %s97, %s98
      %p110 = scmp.eq.s32.totalorder %s20, 1
      %p111 = por %p109, %p110
      %p113 = scmp.ne.s32.totalorder %s98, %s112
      %p114 = scmp.eq.s32.totalorder %s20, 0
      %p115 = por %p113, %p114
      %s117 = sadd.s32 %s116, 1
      %p120 = scmp.eq.s32.totalorder %s14, 1
      %p121 = scmp.ne.s32.totalorder %s116, %s118
      %p122 = scmp.eq.s32.totalorder %s14, 0
      %p123 = por %p121, %p122
      %p124 = scmp.ne.s32.totalorder %s116, %s118
      %p125 = scmp.eq.s32.totalorder %s19, 1
      %p126 = por %p124, %p125
      %p127 = scmp.ne.s32.totalorder %s118, %s119
      %p128 = scmp.eq.s32.totalorder %s19, 0
      %p129 = por %p127, %p128
      %p130 = scmp.ne.s32.totalorder %s118, %s119
      %p131 = scmp.eq.s32.totalorder %s20, 1
      %p132 = por %p130, %p131
      %p134 = scmp.ne.s32.totalorder %s119, %s133
      %p135 = scmp.eq.s32.totalorder %s20, 0
      %p136 = por %p134, %p135
      %s138 = sadd.s32 %s137, 1
      %p141 = scmp.eq.s32.totalorder %s14, 1
      %p142 = scmp.ne.s32.totalorder %s137, %s139
      %p143 = scmp.eq.s32.totalorder %s14, 0
      %p144 = por %p142, %p143
      %p145 = scmp.ne.s32.totalorder %s137, %s139
      %p146 = scmp.eq.s32.totalorder %s19, 1
      %p147 = por %p145, %p146
      %p148 = scmp.ne.s32.totalorder %s139, %s140
      %p149 = scmp.eq.s32.totalorder %s19, 0
      %p150 = por %p148, %p149
      %p151 = scmp.ne.s32.totalorder %s139, %s140
      %p152 = scmp.eq.s32.totalorder %s20, 1
      %p153 = por %p151, %p152
      %p155 = scmp.ne.s32.totalorder %s140, %s154
      %p156 = scmp.eq.s32.totalorder %s20, 0
      %p157 = por %p155, %p156
      %s158 = ssub.s32 %s14, %s21
      %p159 = scmp.eq.s32.totalorder %s158, 0
      %s161 = sadd.s32 %s160, 1
      %s162 = scalar_select %p159, %s160, %s161
      %p165 = pneg %p159
      %p166 = scmp.eq.s32.totalorder %s14, 1
      %p167 = por %p165, %p166
      %p168 = scmp.ne.s32.totalorder %s160, %s163
      %p169 = scmp.eq.s32.totalorder %s14, 0
      %p170 = por %p168, %p169
      %p171 = scmp.ne.s32.totalorder %s160, %s163
      %p172 = scmp.eq.s32.totalorder %s19, 1
      %p173 = por %p171, %p172
      %p174 = scmp.ne.s32.totalorder %s163, %s164
      %p175 = scmp.eq.s32.totalorder %s19, 0
      %p176 = por %p174, %p175
      %p177 = scmp.ne.s32.totalorder %s163, %s164
      %p178 = scmp.eq.s32.totalorder %s20, 1
      %p179 = por %p177, %p178
      %p181 = scmp.ne.s32.totalorder %s164, %s180
      %p182 = scmp.eq.s32.totalorder %s20, 0
      %p183 = por %p181, %p182
      %p184 = scmp.le.s32.totalorder 1, %s14
      %p185 = scmp.lt.s32.totalorder %s14, 3
      %p186 = pnand %p184, %p185
      %p187 = pneg %p186
      // Predicated region
      $region9: #{phase1.27} parent=5 // pred_check
        _
      $region10: #{phase1.27} parent=5 // pred_check_branch
        %189 = sbr.rel (%p186) target = $region12
      $region11: #{phase1.27} parent=5 // pred_region
        %s190 = ssub.s32 %s14, 1
        // Predicated region
        $region13: #{phase1.27} parent=11 // pred_check
          %p191 = pneg %p87
        $region14: #{phase1.27} parent=11 // pred_check_branch
          %193 = sbr.rel (%p191) target = $region16
        $region15: #{phase1.27} parent=11 // pred_region
          _
        $region16: #{phase1.27} parent=11 // pred_fallthru
          _
        // Predicated region
        $region17: #{phase1.27} parent=11 // pred_check
          %p194 = pneg %p108
        $region18: #{phase1.27} parent=11 // pred_check_branch
          %196 = sbr.rel (%p194) target = $region20
        $region19: #{phase1.27} parent=11 // pred_region
          %s198 = ssub.s32 8192, 8192
          %199 = vsyncadd [#allocation3], %s198
          %s200 = sshll.u32 [#allocation2], 4
          %s201 = int_to_ptr.vmem [resolvable:$true] %s200
          %206 = dma.hbm_to_vmem [thread:$0]  %s3, 8192, %s201, [#allocation3], 128, 128, 8
        $region20: #{phase1.27} parent=11 // pred_fallthru
          _
        // Predicated region
        $region21: #{phase1.27} parent=11 // pred_check
          %p207 = pneg %p129
        $region22: #{phase1.27} parent=11 // pred_check_branch
          %209 = sbr.rel (%p207) target = $region24
        $region23: #{phase1.27} parent=11 // pred_region
          _
        $region24: #{phase1.27} parent=11 // pred_fallthru
          _
        // Predicated region
        $region25: #{phase1.27} parent=11 // pred_check
          %p210 = pneg %p150
        $region26: #{phase1.27} parent=11 // pred_check_branch
          %212 = sbr.rel (%p210) target = $region28
        $region27: #{phase1.27} parent=11 // pred_region
          %s214 = ssub.s32 8192, 8192
          %215 = vsyncadd [#allocation5], %s214
          %s216 = sshll.u32 [#allocation4], 4
          %s217 = int_to_ptr.vmem [resolvable:$true] %s216
          %222 = dma.hbm_to_vmem [thread:$0]  %s5, 8192, %s217, [#allocation5], 128, 128, 8
        $region28: #{phase1.27} parent=11 // pred_fallthru
          _
      $region12: #{phase1.27} parent=5 // pred_fallthru
        _
      %p223 = scmp.lt.s32.totalorder %s14, 2
      // Predicated region
      $region29: #{phase1.27} parent=5 // pred_check
        %p224 = pneg %p223
      $region30: #{phase1.27} parent=5 // pred_check_branch
        %226 = sbr.rel (%p224) target = $region32
      $region31: #{phase1.27} parent=5 // pred_region
        // Predicated region
        $region33: #{phase1.27} parent=31 // pred_check
          %p227 = pneg %p34
        $region34: #{phase1.27} parent=31 // pred_check_branch
          %229 = sbr.rel (%p227) target = $region36
        $region35: #{phase1.27} parent=31 // pred_region
          %p230 = scmp.lt.s32.totalorder %s14, 1
          %s231 = scalar_select %p230, %s14, 1
          %s232 = smul.addr %s231, 2
          %s233 = smul.addr %s232, 8
          %s234 = scalar_lea.vmem %s0, %s233
        $region36: #{phase1.27} parent=31 // pred_fallthru
          _
        // Predicated region
        $region37: #{phase1.27} parent=31 // pred_check
          %p235 = pneg %p60
        $region38: #{phase1.27} parent=31 // pred_check_branch
          %237 = sbr.rel (%p235) target = $region40
        $region39: #{phase1.27} parent=31 // pred_region
          %p238 = scmp.lt.s32.totalorder %s14, 1
          %s239 = scalar_select %p238, %s14, 1
          %s240 = scalar_lea.vmem %s1, %s239
        $region40: #{phase1.27} parent=31 // pred_fallthru
          _
      $region32: #{phase1.27} parent=5 // pred_fallthru
        _
      %p241 = scmp.le.s32.totalorder 1, %s14
      %p242 = scmp.lt.s32.totalorder %s14, 3
      %p243 = pnand %p241, %p242
      %p244 = pneg %p243
      // Predicated region
      $region41: #{phase1.27} parent=5 // pred_check
        _
      $region42: #{phase1.27} parent=5 // pred_check_branch
        %246 = sbr.rel (%p243) target = $region44
      $region43: #{phase1.27} parent=5 // pred_region
        %s247 = ssub.s32 %s14, 1
        // Predicated region
        $region45: #{phase1.27} parent=43 // pred_check
          %p248 = pneg %p108
        $region46: #{phase1.27} parent=43 // pred_check_branch
          %250 = sbr.rel (%p248) target = $region48
        $region47: #{phase1.27} parent=43 // pred_region
          %251 = dma.done [#allocation3], 8192
        $region48: #{phase1.27} parent=43 // pred_fallthru
          _
        // Predicated region
        $region49: #{phase1.27} parent=43 // pred_check
          %p252 = pneg %p150
        $region50: #{phase1.27} parent=43 // pred_check_branch
          %254 = sbr.rel (%p252) target = $region52
        $region51: #{phase1.27} parent=43 // pred_region
          %255 = dma.done [#allocation5], 8192
        $region52: #{phase1.27} parent=43 // pred_fallthru
          _
        %p256 = scmp.lt.s32.totalorder %s19, 1
        %s257 = scalar_select %p256, %s19, 1
        %s258 = smul.addr %s257, 2
        %s259 = smul.addr %s258, 8
        %s260 = scalar_lea.vmem %s0, %s259
        %p261 = pneg %p40
        %p262 = pneg %p37
        %p263 = scmp.lt.s32.totalorder %s19, 1
        %s264 = scalar_select %p263, %s19, 1
        %s265 = scalar_lea.vmem %s1, %s264
        %p266 = pneg %p66
        %p267 = pneg %p63
        %p268 = pneg %p87
        %p269 = pneg %p84
        %p270 = pneg %p108
        %p271 = pneg %p105
        %p272 = pneg %p129
        %p273 = pneg %p126
        %p274 = pneg %p150
        %p275 = pneg %p147
        %p276 = pneg %p176
        %p277 = pneg %p173
        %p278 = scmp.lt.s32.totalorder %s19, 1
        %s279 = scalar_select %p278, %s19, 1
        %s280 = smul.addr %s279, 2
        %s281 = smul.addr %s280, 8
        %s282 = scalar_lea.vmem %s6, %s281
        %p283 = scmp.lt.s32.totalorder %s19, 1
        %s284 = scalar_select %p283, %s19, 1
        %s285 = smul.addr %s284, 2
        %s286 = smul.addr %s285, 8
        %s287 = scalar_lea.vmem %s0, %s286
        %p288 = scmp.lt.s32.totalorder %s19, 1
        %s289 = scalar_select %p288, %s19, 1
        %s290 = scalar_lea.vmem %s1, %s289
        %p291 = scmp.lt.s32.totalorder %s19, 1
        %s292 = scalar_select %p291, %s19, 1
        %s293 = smul.addr %s292, 2
        %s294 = smul.addr %s293, 8
        %s295 = scalar_lea.vmem %s6, %s294
        %v297 = vld [vmem:[%s290] sm:$0x1]
        %v298 = vld [vmem:[%s287] sm:$0xff]
        %v299 = vld [vmem:[%s287 + $0x8] sm:$0xff]
        loop: start=0, step=1, limit=16
        $region53: #{phase1.27} parent=43 // loop_pre_header
          _
        $region54: #{phase1.27} parent=43 // loop_header
          %s301 = sphi 0, %s305
          %p302 = scmp.ge.s32.totalorder %s301, 16
          %v306 = vphi %v298, %v880
          %v307 = vphi %v299, %v881
          %v308 = vphi 0.0, %v882
          %v309 = vphi 0.0, %v883
        $region55: #{phase1.27} parent=43 // loop_header_branch
          %304 = sbr.rel (%p302) target = $region59
        $region56: #{phase1.27} parent=43 // loop_body
          %v310 = vpack.c.bf16 %v307, %v306
          %312 = vrot.lane.b32.xlu0 %v310, 2
          %v313 = vpop.permute.xlu0 %312
          %vm314 = vcmask 15360
          %v317 = vsel %vm314, 0, %v313
          %v319 = vsel %vm314, %v313, 0
          %s320 = smul.u32 %s301, 5
          %s321 = smul.u32 %s320, 4
          %s322 = smul.addr %s321, 4
          %s323 = scalar_lea.vmem %s2, %s322
          %v324 = vld [vmem:[%s323] sm:$0xf]
          %v325 = vld [vmem:[%s323 + $0x4] sm:$0xf]
          %v326 = vld [vmem:[%s323 + $0x8] sm:$0xf]
          %v327 = vld [vmem:[%s323 + $0xc] sm:$0xf]
          %s328 = sadd.s32 %s320, 1
          %s329 = smul.u32 %s328, 4
          %s330 = smul.addr %s329, 4
          %s331 = scalar_lea.vmem %s2, %s330
          %v332 = vld [vmem:[%s331] sm:$0xf]
          %v333 = vld [vmem:[%s331 + $0x4] sm:$0xf]
          %v334 = vld [vmem:[%s331 + $0x8] sm:$0xf]
          %v335 = vld [vmem:[%s331 + $0xc] sm:$0xf]
          %v340 = vunpack.c.l.b16 %v332
          %v341 = vunpack.c.l.b16 %v333
          %v342 = vunpack.c.l.b16 %v334
          %v343 = vunpack.c.l.b16 %v335
          %v344 = vpack.c.b16 %v341, %v340
          %v345 = vpack.c.b16 %v343, %v342
          %348 = vrot.lane.b32.xlu0 %v317, 127
          %v349 = vpop.permute.xlu0 %348
          %350 = vrot.lane.b32.xlu0 %v319, 127
          %v351 = vpop.permute.xlu0 %350
          %vm352 = vcmask 1039360
          %v353 = vsel %vm352, %v349, %v351
          %vm355 = vcmask 130048
          %v357 = vsel %vm355, %v344, 0
          %v360 = vsel %vm355, %v345, 0
          %362 = vmatprep.subr.bf16.mxu0 0
          %363 = vmatpush1.bf16.msra.mxu0 0
          %364 = vmatprep.subr.bf16.mxu0 0
          %365 = vmatpush1.bf16.msra.mxu0 0
          %366 = vmatprep.subr.bf16.mxu0 0
          %367 = vmatpush1.bf16.msra.mxu0 0
          %368 = vmatprep.subr.bf16.mxu0 0
          %369 = vmatpush1.bf16.msra.mxu0 0
          %370 = vmatprep.subr.bf16.mxu0 0
          %371 = vmatpush1.bf16.msra.mxu0 0
          %372 = vmatprep.subr.bf16.mxu0 0
          %373 = vmatpush1.bf16.msra.mxu0 0
          %374 = vmatprep.subr.bf16.mxu0 0
          %375 = vmatpush1.bf16.msra.mxu0 0
          %376 = vmatprep.subr.bf16.mxu0 0
          %377 = vmatpush1.bf16.msra.mxu0 %v353
          %378 = vmatprep.subr.bf16.mxu0 0
          %379 = vmatpush2.bf16.msra.mxu0 0
          %380 = vmatprep.subr.bf16.mxu0 0
          %381 = vmatpush2.bf16.msra.mxu0 0
          %382 = vmatprep.subr.bf16.mxu0 0
          %383 = vmatpush2.bf16.msra.mxu0 0
          %384 = vmatprep.subr.bf16.mxu0 0
          %385 = vmatpush2.bf16.msra.mxu0 0
          %386 = vmatprep.subr.bf16.mxu0 0
          %387 = vmatpush2.bf16.msra.mxu0 0
          %388 = vmatprep.subr.bf16.mxu0 0
          %389 = vmatpush2.bf16.msra.mxu0 0
          %390 = vmatprep.subr.bf16.mxu0 0
          %391 = vmatpush2.bf16.msra.mxu0 0
          %392 = vmatprep.subr.bf16.mxu0 0
          %393 = vmatpush2.bf16.msra.mxu0 0
          %394 = vmatprep.mubr.bf16.mxu0 0
          %395 = vmatmul.mubr.bf16.gmra.mxu0 %v357
          %v396 = vpop.f32.mrf.mxu0
          %v397 = vadd.f32 0.0, %v396
          %v398 = vpop.f32.mrf.mxu0
          %v399 = vpop.f32.mrf.mxu0
          %v400 = vadd.f32 0.0, %v399
          %v401 = vpop.f32.mrf.mxu0
          %402 = vmatprep.mubr.bf16.mxu0 0
          %403 = vmatmul.mubr.bf16.gmra.mxu0 %v360
          %v404 = vpop.f32.mrf.mxu0
          %v405 = vadd.f32 0.0, %v404
          %v406 = vpop.f32.mrf.mxu0
          %v407 = vpop.f32.mrf.mxu0
          %v408 = vadd.f32 0.0, %v407
          %v409 = vpop.f32.mrf.mxu0
          %410 = vdwg.mxu0
          %v415 = vunpack.c.l.b16 %v324
          %v416 = vunpack.c.l.b16 %v325
          %v417 = vunpack.c.l.b16 %v326
          %v418 = vunpack.c.l.b16 %v327
          %v419 = vpack.c.b16 %v416, %v415
          %v420 = vpack.c.b16 %v418, %v417
          %v422 = vsel %vm355, %v419, 0
          %v425 = vsel %vm355, %v420, 0
          %427 = vmatprep.subr.bf16.mxu0 0
          %428 = vmatpush1.bf16.msra.mxu0 0
          %429 = vmatprep.subr.bf16.mxu0 0
          %430 = vmatpush1.bf16.msra.mxu0 0
          %431 = vmatprep.subr.bf16.mxu0 0
          %432 = vmatpush1.bf16.msra.mxu0 0
          %433 = vmatprep.subr.bf16.mxu0 0
          %434 = vmatpush1.bf16.msra.mxu0 0
          %435 = vmatprep.subr.bf16.mxu0 0
          %436 = vmatpush1.bf16.msra.mxu0 0
          %437 = vmatprep.subr.bf16.mxu0 0
          %438 = vmatpush1.bf16.msra.mxu0 0
          %439 = vmatprep.subr.bf16.mxu0 0
          %440 = vmatpush1.bf16.msra.mxu0 0
          %441 = vmatprep.subr.bf16.mxu0 0
          %442 = vmatpush1.bf16.msra.mxu0 %v317
          %443 = vmatprep.subr.bf16.mxu0 0
          %444 = vmatpush2.bf16.msra.mxu0 0
          %445 = vmatprep.subr.bf16.mxu0 0
          %446 = vmatpush2.bf16.msra.mxu0 0
          %447 = vmatprep.subr.bf16.mxu0 0
          %448 = vmatpush2.bf16.msra.mxu0 0
          %449 = vmatprep.subr.bf16.mxu0 0
          %450 = vmatpush2.bf16.msra.mxu0 0
          %451 = vmatprep.subr.bf16.mxu0 0
          %452 = vmatpush2.bf16.msra.mxu0 0
          %453 = vmatprep.subr.bf16.mxu0 0
          %454 = vmatpush2.bf16.msra.mxu0 0
          %455 = vmatprep.subr.bf16.mxu0 0
          %456 = vmatpush2.bf16.msra.mxu0 0
          %457 = vmatprep.subr.bf16.mxu0 0
          %458 = vmatpush2.bf16.msra.mxu0 0
          %459 = vmatprep.mubr.bf16.mxu0 0
          %460 = vmatmul.mubr.bf16.gmra.mxu0 %v422
          %v461 = vpop.f32.mrf.mxu0
          %v462 = vadd.f32 %v397, %v461
          %v463 = vpop.f32.mrf.mxu0
          %v464 = vpop.f32.mrf.mxu0
          %v465 = vadd.f32 %v400, %v464
          %v466 = vpop.f32.mrf.mxu0
          %467 = vmatprep.mubr.bf16.mxu0 0
          %468 = vmatmul.mubr.bf16.gmra.mxu0 %v425
          %v469 = vpop.f32.mrf.mxu0
          %v470 = vadd.f32 %v405, %v469
          %v471 = vpop.f32.mrf.mxu0
          %v472 = vpop.f32.mrf.mxu0
          %v473 = vadd.f32 %v408, %v472
          %v474 = vpop.f32.mrf.mxu0
          %475 = vdwg.mxu0
          %s476 = sadd.s32 %s320, 2
          %s477 = smul.u32 %s476, 4
          %s478 = smul.addr %s477, 4
          %s479 = scalar_lea.vmem %s2, %s478
          %v480 = vld [vmem:[%s479] sm:$0xf]
          %v481 = vld [vmem:[%s479 + $0x4] sm:$0xf]
          %v482 = vld [vmem:[%s479 + $0x8] sm:$0xf]
          %v483 = vld [vmem:[%s479 + $0xc] sm:$0xf]
          %v488 = vunpack.c.l.b16 %v480
          %v489 = vunpack.c.l.b16 %v481
          %v490 = vunpack.c.l.b16 %v482
          %v491 = vunpack.c.l.b16 %v483
          %v492 = vpack.c.b16 %v489, %v488
          %v493 = vpack.c.b16 %v491, %v490
          %494 = vrot.lane.b32.xlu0 %v317, 126
          %v495 = vpop.permute.xlu0 %494
          %496 = vrot.lane.b32.xlu0 %v319, 126
          %v497 = vpop.permute.xlu0 %496
          %vm498 = vcmask 1031168
          %v499 = vsel %vm498, %v495, %v497
          %v502 = vsel %vm355, %v492, 0
          %v505 = vsel %vm355, %v493, 0
          %507 = vmatprep.subr.bf16.mxu0 0
          %508 = vmatpush1.bf16.msra.mxu0 0
          %509 = vmatprep.subr.bf16.mxu0 0
          %510 = vmatpush1.bf16.msra.mxu0 0
          %511 = vmatprep.subr.bf16.mxu0 0
          %512 = vmatpush1.bf16.msra.mxu0 0
          %513 = vmatprep.subr.bf16.mxu0 0
          %514 = vmatpush1.bf16.msra.mxu0 0
          %515 = vmatprep.subr.bf16.mxu0 0
          %516 = vmatpush1.bf16.msra.mxu0 0
          %517 = vmatprep.subr.bf16.mxu0 0
          %518 = vmatpush1.bf16.msra.mxu0 0
          %519 = vmatprep.subr.bf16.mxu0 0
          %520 = vmatpush1.bf16.msra.mxu0 0
          %521 = vmatprep.subr.bf16.mxu0 0
          %522 = vmatpush1.bf16.msra.mxu0 %v499
          %523 = vmatprep.subr.bf16.mxu0 0
          %524 = vmatpush2.bf16.msra.mxu0 0
          %525 = vmatprep.subr.bf16.mxu0 0
          %526 = vmatpush2.bf16.msra.mxu0 0
          %527 = vmatprep.subr.bf16.mxu0 0
          %528 = vmatpush2.bf16.msra.mxu0 0
          %529 = vmatprep.subr.bf16.mxu0 0
          %530 = vmatpush2.bf16.msra.mxu0 0
          %531 = vmatprep.subr.bf16.mxu0 0
          %532 = vmatpush2.bf16.msra.mxu0 0
          %533 = vmatprep.subr.bf16.mxu0 0
          %534 = vmatpush2.bf16.msra.mxu0 0
          %535 = vmatprep.subr.bf16.mxu0 0
          %536 = vmatpush2.bf16.msra.mxu0 0
          %537 = vmatprep.subr.bf16.mxu0 0
          %538 = vmatpush2.bf16.msra.mxu0 0
          %539 = vmatprep.mubr.bf16.mxu0 0
          %540 = vmatmul.mubr.bf16.gmra.mxu0 %v502
          %v541 = vpop.f32.mrf.mxu0
          %v542 = vadd.f32 0.0, %v541
          %v543 = vpop.f32.mrf.mxu0
          %v544 = vpop.f32.mrf.mxu0
          %v545 = vadd.f32 0.0, %v544
          %v546 = vpop.f32.mrf.mxu0
          %547 = vmatprep.mubr.bf16.mxu0 0
          %548 = vmatmul.mubr.bf16.gmra.mxu0 %v505
          %v549 = vpop.f32.mrf.mxu0
          %v550 = vadd.f32 0.0, %v549
          %v551 = vpop.f32.mrf.mxu0
          %v552 = vpop.f32.mrf.mxu0
          %v553 = vadd.f32 0.0, %v552
          %v554 = vpop.f32.mrf.mxu0
          %555 = vdwg.mxu0
          %v556 = vadd.f32 %v462, %v542
          %v557 = vadd.f32 %v465, %v545
          %v558 = vadd.f32 %v470, %v550
          %v559 = vadd.f32 %v473, %v553
          %s560 = sadd.s32 %s320, 3
          %s561 = smul.u32 %s560, 4
          %s562 = smul.addr %s561, 4
          %s563 = scalar_lea.vmem %s2, %s562
          %v564 = vld [vmem:[%s563] sm:$0xf]
          %v565 = vld [vmem:[%s563 + $0x4] sm:$0xf]
          %v566 = vld [vmem:[%s563 + $0x8] sm:$0xf]
          %v567 = vld [vmem:[%s563 + $0xc] sm:$0xf]
          %v572 = vunpack.c.l.b16 %v564
          %v573 = vunpack.c.l.b16 %v565
          %v574 = vunpack.c.l.b16 %v566
          %v575 = vunpack.c.l.b16 %v567
          %v576 = vpack.c.b16 %v573, %v572
          %v577 = vpack.c.b16 %v575, %v574
          %578 = vrot.lane.b32.xlu0 %v317, 125
          %v579 = vpop.permute.xlu0 %578
          %580 = vrot.lane.b32.xlu0 %v319, 125
          %v581 = vpop.permute.xlu0 %580
          %vm582 = vcmask 1022976
          %v583 = vsel %vm582, %v579, %v581
          %v586 = vsel %vm355, %v576, 0
          %v589 = vsel %vm355, %v577, 0
          %591 = vmatprep.subr.bf16.mxu0 0
          %592 = vmatpush1.bf16.msra.mxu0 0
          %593 = vmatprep.subr.bf16.mxu0 0
          %594 = vmatpush1.bf16.msra.mxu0 0
          %595 = vmatprep.subr.bf16.mxu0 0
          %596 = vmatpush1.bf16.msra.mxu0 0
          %597 = vmatprep.subr.bf16.mxu0 0
          %598 = vmatpush1.bf16.msra.mxu0 0
          %599 = vmatprep.subr.bf16.mxu0 0
          %600 = vmatpush1.bf16.msra.mxu0 0
          %601 = vmatprep.subr.bf16.mxu0 0
          %602 = vmatpush1.bf16.msra.mxu0 0
          %603 = vmatprep.subr.bf16.mxu0 0
          %604 = vmatpush1.bf16.msra.mxu0 0
          %605 = vmatprep.subr.bf16.mxu0 0
          %606 = vmatpush1.bf16.msra.mxu0 %v583
          %607 = vmatprep.subr.bf16.mxu0 0
          %608 = vmatpush2.bf16.msra.mxu0 0
          %609 = vmatprep.subr.bf16.mxu0 0
          %610 = vmatpush2.bf16.msra.mxu0 0
          %611 = vmatprep.subr.bf16.mxu0 0
          %612 = vmatpush2.bf16.msra.mxu0 0
          %613 = vmatprep.subr.bf16.mxu0 0
          %614 = vmatpush2.bf16.msra.mxu0 0
          %615 = vmatprep.subr.bf16.mxu0 0
          %616 = vmatpush2.bf16.msra.mxu0 0
          %617 = vmatprep.subr.bf16.mxu0 0
          %618 = vmatpush2.bf16.msra.mxu0 0
          %619 = vmatprep.subr.bf16.mxu0 0
          %620 = vmatpush2.bf16.msra.mxu0 0
          %621 = vmatprep.subr.bf16.mxu0 0
          %622 = vmatpush2.bf16.msra.mxu0 0
          %623 = vmatprep.mubr.bf16.mxu0 0
          %624 = vmatmul.mubr.bf16.gmra.mxu0 %v586
          %v625 = vpop.f32.mrf.mxu0
          %v626 = vadd.f32 0.0, %v625
          %v627 = vpop.f32.mrf.mxu0
          %v628 = vpop.f32.mrf.mxu0
          %v629 = vadd.f32 0.0, %v628
          %v630 = vpop.f32.mrf.mxu0
          %631 = vmatprep.mubr.bf16.mxu0 0
          %632 = vmatmul.mubr.bf16.gmra.mxu0 %v589
          %v633 = vpop.f32.mrf.mxu0
          %v634 = vadd.f32 0.0, %v633
          %v635 = vpop.f32.mrf.mxu0
          %v636 = vpop.f32.mrf.mxu0
          %v637 = vadd.f32 0.0, %v636
          %v638 = vpop.f32.mrf.mxu0
          %639 = vdwg.mxu0
          %v640 = vadd.f32 %v556, %v626
          %v641 = vadd.f32 %v557, %v629
          %v642 = vadd.f32 %v558, %v634
          %v643 = vadd.f32 %v559, %v637
          %s644 = sadd.s32 %s320, 4
          %s645 = smul.u32 %s644, 4
          %s646 = smul.addr %s645, 4
          %s647 = scalar_lea.vmem %s2, %s646
          %v648 = vld [vmem:[%s647] sm:$0xf]
          %v649 = vld [vmem:[%s647 + $0x4] sm:$0xf]
          %v650 = vld [vmem:[%s647 + $0x8] sm:$0xf]
          %v651 = vld [vmem:[%s647 + $0xc] sm:$0xf]
          %v656 = vunpack.c.l.b16 %v648
          %v657 = vunpack.c.l.b16 %v649
          %v658 = vunpack.c.l.b16 %v650
          %v659 = vunpack.c.l.b16 %v651
          %v660 = vpack.c.b16 %v657, %v656
          %v661 = vpack.c.b16 %v659, %v658
          %662 = vrot.lane.b32.xlu0 %v317, 124
          %v663 = vpop.permute.xlu0 %662
          %664 = vrot.lane.b32.xlu0 %v319, 124
          %v665 = vpop.permute.xlu0 %664
          %vm666 = vcmask 1014784
          %v667 = vsel %vm666, %v663, %v665
          %v670 = vsel %vm355, %v660, 0
          %v673 = vsel %vm355, %v661, 0
          %675 = vmatprep.subr.bf16.mxu0 0
          %676 = vmatpush1.bf16.msra.mxu0 0
          %677 = vmatprep.subr.bf16.mxu0 0
          %678 = vmatpush1.bf16.msra.mxu0 0
          %679 = vmatprep.subr.bf16.mxu0 0
          %680 = vmatpush1.bf16.msra.mxu0 0
          %681 = vmatprep.subr.bf16.mxu0 0
          %682 = vmatpush1.bf16.msra.mxu0 0
          %683 = vmatprep.subr.bf16.mxu0 0
          %684 = vmatpush1.bf16.msra.mxu0 0
          %685 = vmatprep.subr.bf16.mxu0 0
          %686 = vmatpush1.bf16.msra.mxu0 0
          %687 = vmatprep.subr.bf16.mxu0 0
          %688 = vmatpush1.bf16.msra.mxu0 0
          %689 = vmatprep.subr.bf16.mxu0 0
          %690 = vmatpush1.bf16.msra.mxu0 %v667
          %691 = vmatprep.subr.bf16.mxu0 0
          %692 = vmatpush2.bf16.msra.mxu0 0
          %693 = vmatprep.subr.bf16.mxu0 0
          %694 = vmatpush2.bf16.msra.mxu0 0
          %695 = vmatprep.subr.bf16.mxu0 0
          %696 = vmatpush2.bf16.msra.mxu0 0
          %697 = vmatprep.subr.bf16.mxu0 0
          %698 = vmatpush2.bf16.msra.mxu0 0
          %699 = vmatprep.subr.bf16.mxu0 0
          %700 = vmatpush2.bf16.msra.mxu0 0
          %701 = vmatprep.subr.bf16.mxu0 0
          %702 = vmatpush2.bf16.msra.mxu0 0
          %703 = vmatprep.subr.bf16.mxu0 0
          %704 = vmatpush2.bf16.msra.mxu0 0
          %705 = vmatprep.subr.bf16.mxu0 0
          %706 = vmatpush2.bf16.msra.mxu0 0
          %707 = vmatprep.mubr.bf16.mxu0 0
          %708 = vmatmul.mubr.bf16.gmra.mxu0 %v670
          %v709 = vpop.f32.mrf.mxu0
          %v710 = vadd.f32 0.0, %v709
          %v711 = vpop.f32.mrf.mxu0
          %v712 = vpop.f32.mrf.mxu0
          %v713 = vadd.f32 0.0, %v712
          %v714 = vpop.f32.mrf.mxu0
          %715 = vmatprep.mubr.bf16.mxu0 0
          %716 = vmatmul.mubr.bf16.gmra.mxu0 %v673
          %v717 = vpop.f32.mrf.mxu0
          %v718 = vadd.f32 0.0, %v717
          %v719 = vpop.f32.mrf.mxu0
          %v720 = vpop.f32.mrf.mxu0
          %v721 = vadd.f32 0.0, %v720
          %v722 = vpop.f32.mrf.mxu0
          %723 = vdwg.mxu0
          %v724 = vadd.f32 %v640, %v710
          %v725 = vadd.f32 %v641, %v713
          %v726 = vadd.f32 %v642, %v718
          %v727 = vadd.f32 %v643, %v721
          %s728 = smul.u32 %s301, 32
          %s729 = scalar_lea.vmem [#allocation2], %s728
          %v730 = vld [vmem:[%s729] sm:$0xff]
          %v731 = vld [vmem:[%s729 + $0x8] sm:$0xff]
          %v732 = vld [vmem:[%s729 + $0x10] sm:$0xff]
          %v733 = vld [vmem:[%s729 + $0x18] sm:$0xff]
          %735 = vset.pattern.permute.xlu0 0
          %736 = vperm.xlu0 %735, %v730
          %v737 = vpop.permute.xlu0 %736
          %740 = vset.pattern.permute.xlu0 0
          %741 = vperm.xlu0 %740, %v731
          %v742 = vpop.permute.xlu0 %741
          %745 = vset.pattern.permute.xlu0 0
          %746 = vperm.xlu0 %745, %v732
          %v747 = vpop.permute.xlu0 %746
          %750 = vset.pattern.permute.xlu0 0
          %751 = vperm.xlu0 %750, %v733
          %v752 = vpop.permute.xlu0 %751
          %v754 = vadd.f32 %v724, %v737
          %v755 = vadd.f32 %v725, %v742
          %v756 = vadd.f32 %v726, %v747
          %v757 = vadd.f32 %v727, %v752
          %v758 = vtanh.pop %v754
          %v759 = vtanh.pop %v755
          %v760 = vxor.u32 %v756, 2147483648
          %v761 = vxor.u32 %v757, 2147483648
          %v762 = vmul.f32 %v760, 1.442695
          %v763 = vpow.pop %v762
          %v764 = vmul.f32 %v761, 1.442695
          %v765 = vpow.pop %v764
          %v766 = vadd.f32 %v763, 1.0
          %v767 = vadd.f32 %v765, 1.0
          %v768 = vrcp.pop %v766
          %v769 = vmul.f32 1.0, %v768
          %v770 = vrcp.pop %v767
          %v771 = vmul.f32 1.0, %v770
          %v772 = vmul.f32 %v758, %v769
          %v773 = vmul.f32 %v759, %v771
          %s774 = smul.u32 %s301, 4
          %s775 = smul.addr %s774, 4
          %s776 = scalar_lea.vmem %s4, %s775
          %v777 = vld [vmem:[%s776] sm:$0xf]
          %v778 = vld [vmem:[%s776 + $0x4] sm:$0xf]
          %v779 = vld [vmem:[%s776 + $0x8] sm:$0xf]
          %v780 = vld [vmem:[%s776 + $0xc] sm:$0xf]
          %v781 = vpack.c.bf16 %v773, %v772
          %s782 = scalar_lea.vmem [#allocation4], %s728
          %v783 = vld [vmem:[%s782] sm:$0xff]
          %v784 = vld [vmem:[%s782 + $0x8] sm:$0xff]
          %v785 = vld [vmem:[%s782 + $0x10] sm:$0xff]
          %v786 = vld [vmem:[%s782 + $0x18] sm:$0xff]
          %788 = vset.pattern.permute.xlu0 0
          %789 = vperm.xlu0 %788, %v783
          %v790 = vpop.permute.xlu0 %789
          %793 = vset.pattern.permute.xlu0 0
          %794 = vperm.xlu0 %793, %v784
          %v795 = vpop.permute.xlu0 %794
          %798 = vset.pattern.permute.xlu0 0
          %799 = vperm.xlu0 %798, %v785
          %v800 = vpop.permute.xlu0 %799
          %803 = vset.pattern.permute.xlu0 0
          %804 = vperm.xlu0 %803, %v786
          %v805 = vpop.permute.xlu0 %804
          %v811 = vunpack.c.l.b16 %v777
          %v812 = vunpack.c.l.b16 %v778
          %v813 = vunpack.c.l.b16 %v779
          %v814 = vunpack.c.l.b16 %v780
          %v815 = vpack.c.b16 %v812, %v811
          %v816 = vpack.c.b16 %v814, %v813
          %v818 = vsel %vm355, %v815, 0
          %v821 = vsel %vm355, %v816, 0
          %823 = vmatprep.subr.bf16.mxu0 0
          %824 = vmatpush1.bf16.msra.mxu0 0
          %825 = vmatprep.subr.bf16.mxu0 0
          %826 = vmatpush1.bf16.msra.mxu0 0
          %827 = vmatprep.subr.bf16.mxu0 0
          %828 = vmatpush1.bf16.msra.mxu0 0
          %829 = vmatprep.subr.bf16.mxu0 0
          %830 = vmatpush1.bf16.msra.mxu0 0
          %831 = vmatprep.subr.bf16.mxu0 0
          %832 = vmatpush1.bf16.msra.mxu0 0
          %833 = vmatprep.subr.bf16.mxu0 0
          %834 = vmatpush1.bf16.msra.mxu0 0
          %835 = vmatprep.subr.bf16.mxu0 0
          %836 = vmatpush1.bf16.msra.mxu0 0
          %837 = vmatprep.subr.bf16.mxu0 0
          %838 = vmatpush1.bf16.msra.mxu0 %v781
          %839 = vmatprep.subr.bf16.mxu0 0
          %840 = vmatpush2.bf16.msra.mxu0 0
          %841 = vmatprep.subr.bf16.mxu0 0
          %842 = vmatpush2.bf16.msra.mxu0 0
          %843 = vmatprep.subr.bf16.mxu0 0
          %844 = vmatpush2.bf16.msra.mxu0 0
          %845 = vmatprep.subr.bf16.mxu0 0
          %846 = vmatpush2.bf16.msra.mxu0 0
          %847 = vmatprep.subr.bf16.mxu0 0
          %848 = vmatpush2.bf16.msra.mxu0 0
          %849 = vmatprep.subr.bf16.mxu0 0
          %850 = vmatpush2.bf16.msra.mxu0 0
          %851 = vmatprep.subr.bf16.mxu0 0
          %852 = vmatpush2.bf16.msra.mxu0 0
          %853 = vmatprep.subr.bf16.mxu0 0
          %854 = vmatpush2.bf16.msra.mxu0 0
          %855 = vmatprep.mubr.bf16.mxu0 0
          %856 = vmatmul.mubr.bf16.gmra.mxu0 %v818
          %v857 = vpop.f32.mrf.mxu0
          %v858 = vadd.f32 %v790, %v857
          %v859 = vpop.f32.mrf.mxu0
          %v860 = vpop.f32.mrf.mxu0
          %v861 = vadd.f32 %v795, %v860
          %v862 = vpop.f32.mrf.mxu0
          %863 = vmatprep.mubr.bf16.mxu0 0
          %864 = vmatmul.mubr.bf16.gmra.mxu0 %v821
          %v865 = vpop.f32.mrf.mxu0
          %v866 = vadd.f32 %v800, %v865
          %v867 = vpop.f32.mrf.mxu0
          %v868 = vpop.f32.mrf.mxu0
          %v869 = vadd.f32 %v805, %v868
          %v870 = vpop.f32.mrf.mxu0
          %871 = vdwg.mxu0
          %v872 = vadd.f32 %v306, %v858
          %v873 = vadd.f32 %v307, %v861
          %v875 = vlaneseq
          %v876 = vshrl.u32 %v875, 7
          %v877 = vsub.s32 0, %v876
          %v878 = vrot.slane %v297, %v877
          %v880 = vmul.f32 %v872, %v878
          %v881 = vmul.f32 %v873, %v878
          %v882 = vadd.f32 %v308, %v866
          %v883 = vadd.f32 %v309, %v869
        $region57: #{phase1.27} parent=43 // loop_footer
          %s305 = sadd.s32 1, %s301
        $region58: #{phase1.27} parent=43 // loop_footer_branch
          %300 = sbr.rel target = $region54
        $region59: #{phase1.27} parent=43 // loop_exit
          _
        %v885 = vlaneseq
        %v886 = vshrl.u32 %v885, 7
        %v887 = vsub.s32 0, %v886
        %v888 = vrot.slane %v297, %v887
        %v890 = vmul.f32 %v308, %v888
        %v891 = vmul.f32 %v309, %v888
        %892 = vst [vmem:[%s295] sm:$0xff] %v890
        %893 = vst [vmem:[%s295 + $0x8] sm:$0xff] %v891
        %p894 = scmp.lt.s32.totalorder %s19, 1
        %s895 = scalar_select %p894, %s19, 1
        %s896 = smul.addr %s895, 2
        %s897 = smul.addr %s896, 8
        %s898 = scalar_lea.vmem %s6, %s897
        // Predicated region
        $region60: #{phase1.27} parent=43 // pred_check
          %p899 = pneg %p173
        $region61: #{phase1.27} parent=43 // pred_check_branch
          %901 = sbr.rel (%p899) target = $region63
        $region62: #{phase1.27} parent=43 // pred_region
          _
        $region63: #{phase1.27} parent=43 // pred_fallthru
          _
      $region44: #{phase1.27} parent=5 // pred_fallthru
        _
      %p902 = scmp.le.s32.totalorder 2, %s14
      // Predicated region
      $region64: #{phase1.27} parent=5 // pred_check
        %p903 = pneg %p902
      $region65: #{phase1.27} parent=5 // pred_check_branch
        %905 = sbr.rel (%p903) target = $region67
      $region66: #{phase1.27} parent=5 // pred_region
        %s906 = ssub.s32 %s14, 2
        // Predicated region
        $region68: #{phase1.27} parent=66 // pred_check
          %p907 = pneg %p179
        $region69: #{phase1.27} parent=66 // pred_check_branch
          %909 = sbr.rel (%p907) target = $region71
        $region70: #{phase1.27} parent=66 // pred_region
          %p910 = scmp.lt.s32.totalorder %s20, 1
          %s911 = scalar_select %p910, %s20, 1
          %s912 = smul.addr %s911, 2
          %s913 = smul.addr %s912, 8
          %s914 = scalar_lea.vmem %s6, %s913
        $region71: #{phase1.27} parent=66 // pred_fallthru
          _
      $region67: #{phase1.27} parent=5 // pred_fallthru
        _
    $region6: #{phase1.27} parent=1 // loop_footer
      %s18 = sadd.s32 1, %s14
    $region7: #{phase1.27} parent=1 // loop_footer_branch
      %13 = sbr.rel target = $region3
    $region8: #{phase1.27} parent=1 // loop_exit
      _
    %915 = vsyncpa [#allocation3], 1
    %s916 = scalar_lea.sflag [#allocation3], 1
    %917 = vsyncpa %s916, 1
    %918 = vsyncpa [#allocation5], 1

// kernel: phase1.26
$region0: #{phase1.26}
  #allocation0 [shape = 'u32[]', space=smem, size = 0x4, offset = 0x4, fixed_abs, tag = 'smem constant byte address 0x4 - core index']
  #allocation1 [shape = 'u32[144,128]{1,0:T(1,128)}', space=vmem, size = 0x12000, scoped, tag = 'internal scratch']
  %s0 = inlined_call_operand.vmem [shape: f32[2,16,128], index: 0, kind: input, shape index: {}]
  %s1 = inlined_call_operand.vmem [shape: bf16[1,16,16], index: 1, kind: input, shape index: {}]
  %s2 = inlined_call_operand.vmem [shape: f32[16,1], index: 2, kind: input, shape index: {}]
  %s3 = inlined_call_operand.vmem [shape: f32[2,1,128], index: 3, kind: input, shape index: {}]
  %s4 = inlined_call_operand.vmem [shape: f32[2,16,128], index: 4, kind: output, shape index: {}]
  %s5 = sld [smem:[#allocation0]]
  $region49: #{phase1.26} parent=0
    _
  %s7 = ssub.s32 1, %s5
  %s8 = scalar_select 0, %s7, %s5
  loop: start=0, step=1, limit=4
  $region2: #{phase1.26} parent=0 // loop_pre_header
    _
  $region3: #{phase1.26} parent=0 // loop_header
    %s10 = sphi 0, %s14
    %p11 = scmp.ge.s32.totalorder %s10, 4
    %s20 = sphi 0, %s22
    %s23 = sphi 0, %s20
    %s24 = sphi 0, %s23
    %s40 = sphi 0, %s24
    %s44 = sphi 0, %s44
    %s46 = sphi 0, %s44
    %s47 = sphi 0, %s46
    %s61 = sphi 0, %s47
    %s65 = sphi 0, %s65
    %s67 = sphi 0, %s65
    %s68 = sphi 0, %s67
    %s82 = sphi 0, %s68
    %s88 = sphi 0, %s90
    %s91 = sphi 0, %s88
    %s92 = sphi 0, %s91
    %s108 = sphi 0, %s92
    %s114 = sphi 0, %s116
    %s117 = sphi 0, %s114
    %s118 = sphi 0, %s117
    %s134 = sphi 0, %s118
  $region4: #{phase1.26} parent=0 // loop_header_branch
    %13 = sbr.rel (%p11) target = $region8
  $region5: #{phase1.26} parent=0 // loop_body
    %s15 = ssub.s32 %s10, 1
    %s16 = ssub.s32 %s10, 2
    %s17 = sadd.s32 %s10, 1
    %s18 = ssub.s32 %s10, %s17
    %p19 = scmp.eq.s32.totalorder %s18, 0
    %s21 = sadd.s32 %s20, 1
    %s22 = scalar_select %p19, %s20, %s21
    %p25 = pneg %p19
    %p26 = scmp.eq.s32.totalorder %s10, 1
    %p27 = por %p25, %p26
    %p28 = scmp.ne.s32.totalorder %s20, %s23
    %p29 = scmp.eq.s32.totalorder %s10, 0
    %p30 = por %p28, %p29
    %p31 = scmp.ne.s32.totalorder %s20, %s23
    %p32 = scmp.eq.s32.totalorder %s15, 1
    %p33 = por %p31, %p32
    %p34 = scmp.ne.s32.totalorder %s23, %s24
    %p35 = scmp.eq.s32.totalorder %s15, 0
    %p36 = por %p34, %p35
    %p37 = scmp.ne.s32.totalorder %s23, %s24
    %p38 = scmp.eq.s32.totalorder %s16, 1
    %p39 = por %p37, %p38
    %p41 = scmp.ne.s32.totalorder %s24, %s40
    %p42 = scmp.eq.s32.totalorder %s16, 0
    %p43 = por %p41, %p42
    %s45 = sadd.s32 %s44, 1
    %p48 = scmp.eq.s32.totalorder %s10, 1
    %p49 = scmp.ne.s32.totalorder %s44, %s46
    %p50 = scmp.eq.s32.totalorder %s10, 0
    %p51 = por %p49, %p50
    %p52 = scmp.ne.s32.totalorder %s44, %s46
    %p53 = scmp.eq.s32.totalorder %s15, 1
    %p54 = por %p52, %p53
    %p55 = scmp.ne.s32.totalorder %s46, %s47
    %p56 = scmp.eq.s32.totalorder %s15, 0
    %p57 = por %p55, %p56
    %p58 = scmp.ne.s32.totalorder %s46, %s47
    %p59 = scmp.eq.s32.totalorder %s16, 1
    %p60 = por %p58, %p59
    %p62 = scmp.ne.s32.totalorder %s47, %s61
    %p63 = scmp.eq.s32.totalorder %s16, 0
    %p64 = por %p62, %p63
    %s66 = sadd.s32 %s65, 1
    %p69 = scmp.eq.s32.totalorder %s10, 1
    %p70 = scmp.ne.s32.totalorder %s65, %s67
    %p71 = scmp.eq.s32.totalorder %s10, 0
    %p72 = por %p70, %p71
    %p73 = scmp.ne.s32.totalorder %s65, %s67
    %p74 = scmp.eq.s32.totalorder %s15, 1
    %p75 = por %p73, %p74
    %p76 = scmp.ne.s32.totalorder %s67, %s68
    %p77 = scmp.eq.s32.totalorder %s15, 0
    %p78 = por %p76, %p77
    %p79 = scmp.ne.s32.totalorder %s67, %s68
    %p80 = scmp.eq.s32.totalorder %s16, 1
    %p81 = por %p79, %p80
    %p83 = scmp.ne.s32.totalorder %s68, %s82
    %p84 = scmp.eq.s32.totalorder %s16, 0
    %p85 = por %p83, %p84
    %s86 = ssub.s32 %s10, %s17
    %p87 = scmp.eq.s32.totalorder %s86, 0
    %s89 = sadd.s32 %s88, 1
    %s90 = scalar_select %p87, %s88, %s89
    %p93 = pneg %p87
    %p94 = scmp.eq.s32.totalorder %s10, 1
    %p95 = por %p93, %p94
    %p96 = scmp.ne.s32.totalorder %s88, %s91
    %p97 = scmp.eq.s32.totalorder %s10, 0
    %p98 = por %p96, %p97
    %p99 = scmp.ne.s32.totalorder %s88, %s91
    %p100 = scmp.eq.s32.totalorder %s15, 1
    %p101 = por %p99, %p100
    %p102 = scmp.ne.s32.totalorder %s91, %s92
    %p103 = scmp.eq.s32.totalorder %s15, 0
    %p104 = por %p102, %p103
    %p105 = scmp.ne.s32.totalorder %s91, %s92
    %p106 = scmp.eq.s32.totalorder %s16, 1
    %p107 = por %p105, %p106
    %p109 = scmp.ne.s32.totalorder %s92, %s108
    %p110 = scmp.eq.s32.totalorder %s16, 0
    %p111 = por %p109, %p110
    %s112 = ssub.s32 %s10, %s17
    %p113 = scmp.eq.s32.totalorder %s112, 0
    %s115 = sadd.s32 %s114, 1
    %s116 = scalar_select %p113, %s114, %s115
    %p119 = pneg %p113
    %p120 = scmp.eq.s32.totalorder %s10, 1
    %p121 = por %p119, %p120
    %p122 = scmp.ne.s32.totalorder %s114, %s117
    %p123 = scmp.eq.s32.totalorder %s10, 0
    %p124 = por %p122, %p123
    %p125 = scmp.ne.s32.totalorder %s114, %s117
    %p126 = scmp.eq.s32.totalorder %s15, 1
    %p127 = por %p125, %p126
    %p128 = scmp.ne.s32.totalorder %s117, %s118
    %p129 = scmp.eq.s32.totalorder %s15, 0
    %p130 = por %p128, %p129
    %p131 = scmp.ne.s32.totalorder %s117, %s118
    %p132 = scmp.eq.s32.totalorder %s16, 1
    %p133 = por %p131, %p132
    %p135 = scmp.ne.s32.totalorder %s118, %s134
    %p136 = scmp.eq.s32.totalorder %s16, 0
    %p137 = por %p135, %p136
    %p138 = scmp.le.s32.totalorder 1, %s10
    %p139 = scmp.lt.s32.totalorder %s10, 3
    %p140 = pnand %p138, %p139
    %p141 = pneg %p140
    // Predicated region
    $region9: #{phase1.26} parent=5 // pred_check
      _
    $region10: #{phase1.26} parent=5 // pred_check_branch
      %143 = sbr.rel (%p140) target = $region12
    $region11: #{phase1.26} parent=5 // pred_region
      %s144 = ssub.s32 %s10, 1
      // Predicated region
      $region13: #{phase1.26} parent=11 // pred_check
        %p145 = pneg %p57
      $region14: #{phase1.26} parent=11 // pred_check_branch
        %147 = sbr.rel (%p145) target = $region16
      $region15: #{phase1.26} parent=11 // pred_region
        _
      $region16: #{phase1.26} parent=11 // pred_fallthru
        _
      // Predicated region
      $region17: #{phase1.26} parent=11 // pred_check
        %p148 = pneg %p78
      $region18: #{phase1.26} parent=11 // pred_check_branch
        %150 = sbr.rel (%p148) target = $region20
      $region19: #{phase1.26} parent=11 // pred_region
        _
      $region20: #{phase1.26} parent=11 // pred_fallthru
        _
    $region12: #{phase1.26} parent=5 // pred_fallthru
      _
    %p151 = scmp.lt.s32.totalorder %s10, 2
    // Predicated region
    $region21: #{phase1.26} parent=5 // pred_check
      %p152 = pneg %p151
    $region22: #{phase1.26} parent=5 // pred_check_branch
      %154 = sbr.rel (%p152) target = $region24
    $region23: #{phase1.26} parent=5 // pred_region
      // Predicated region
      $region25: #{phase1.26} parent=23 // pred_check
        %p155 = pneg %p30
      $region26: #{phase1.26} parent=23 // pred_check_branch
        %157 = sbr.rel (%p155) target = $region28
      $region27: #{phase1.26} parent=23 // pred_region
        %p158 = scmp.lt.s32.totalorder %s10, 1
        %s159 = scalar_select %p158, %s10, 1
        %s160 = smul.addr %s159, 2
        %s161 = smul.addr %s160, 8
        %s162 = scalar_lea.vmem %s0, %s161
      $region28: #{phase1.26} parent=23 // pred_fallthru
        _
      // Predicated region
      $region29: #{phase1.26} parent=23 // pred_check
        %p163 = pneg %p98
      $region30: #{phase1.26} parent=23 // pred_check_branch
        %165 = sbr.rel (%p163) target = $region32
      $region31: #{phase1.26} parent=23 // pred_region
        %p166 = scmp.lt.s32.totalorder %s10, 1
        %s167 = scalar_select %p166, %s10, 1
        %s168 = scalar_lea.vmem %s3, %s167
      $region32: #{phase1.26} parent=23 // pred_fallthru
        _
    $region24: #{phase1.26} parent=5 // pred_fallthru
      _
    %p169 = scmp.le.s32.totalorder 1, %s10
    %p170 = scmp.lt.s32.totalorder %s10, 3
    %p171 = pnand %p169, %p170
    %p172 = pneg %p171
    // Predicated region
    $region33: #{phase1.26} parent=5 // pred_check
      _
    $region34: #{phase1.26} parent=5 // pred_check_branch
      %174 = sbr.rel (%p171) target = $region36
    $region35: #{phase1.26} parent=5 // pred_region
      %s175 = ssub.s32 %s10, 1
      %p176 = scmp.lt.s32.totalorder %s15, 1
      %s177 = scalar_select %p176, %s15, 1
      %s178 = smul.addr %s177, 2
      %s179 = smul.addr %s178, 8
      %s180 = scalar_lea.vmem %s0, %s179
      %p181 = pneg %p36
      %p182 = pneg %p33
      %p183 = pneg %p57
      %p184 = pneg %p54
      %p185 = pneg %p78
      %p186 = pneg %p75
      %p187 = scmp.lt.s32.totalorder %s15, 1
      %s188 = scalar_select %p187, %s15, 1
      %s189 = scalar_lea.vmem %s3, %s188
      %p190 = pneg %p104
      %p191 = pneg %p101
      %p192 = pneg %p130
      %p193 = pneg %p127
      %p194 = scmp.lt.s32.totalorder %s15, 1
      %s195 = scalar_select %p194, %s15, 1
      %s196 = smul.addr %s195, 2
      %s197 = smul.addr %s196, 8
      %s198 = scalar_lea.vmem %s4, %s197
      %p199 = scmp.lt.s32.totalorder %s15, 1
      %s200 = scalar_select %p199, %s15, 1
      %s201 = smul.addr %s200, 2
      %s202 = smul.addr %s201, 8
      %s203 = scalar_lea.vmem %s0, %s202
      %p204 = scmp.lt.s32.totalorder %s15, 1
      %s205 = scalar_select %p204, %s15, 1
      %s206 = scalar_lea.vmem %s3, %s205
      %p207 = scmp.lt.s32.totalorder %s15, 1
      %s208 = scalar_select %p207, %s15, 1
      %s209 = smul.addr %s208, 2
      %s210 = smul.addr %s209, 8
      %s211 = scalar_lea.vmem %s4, %s210
      %v213 = vld [vmem:[%s203] sm:$0xff]
      %v214 = vld [vmem:[%s203 + $0x8] sm:$0xff]
      %v215 = vlaneseq
      %v216 = vand.u32 %v215, 127
      %vm217 = vcmp.lt.s32.totalorder %v216, 16
      %v218 = vsel %vm217, %v213, 0.0
      %v219 = vsel %vm217, %v214, 0.0
      %v220 = vpack.c.bf16 %v219, %v218
      %v221 = vld [vmem:[%s1] sm:$0xf]
      %v222 = vld [vmem:[%s1 + $0x4] sm:$0xf]
      %v223 = vld [vmem:[%s2] sm:$0xff]
      %v224 = vld [vmem:[%s2 + $0x8] sm:$0xff]
      %226 = vset.pattern.permute.xlu0 0
      %227 = vperm.xlu0 %226, %v223
      %v228 = vpop.permute.xlu0 %227
      %231 = vset.pattern.permute.xlu0 0
      %232 = vperm.xlu0 %231, %v224
      %v233 = vpop.permute.xlu0 %232
      %v237 = vunpack.c.l.b16 %v221
      %v238 = vunpack.c.l.b16 %v222
      %v239 = vpack.c.b16 %v238, %v237
      %vm240 = vcmask 130048
      %v242 = vsel %vm240, %v239, 0
      %244 = vmatprep.subr.bf16.mxu0 0
      %245 = vmatpush1.bf16.msra.mxu0 0
      %246 = vmatprep.subr.bf16.mxu0 0
      %247 = vmatpush1.bf16.msra.mxu0 0
      %248 = vmatprep.subr.bf16.mxu0 0
      %249 = vmatpush1.bf16.msra.mxu0 0
      %250 = vmatprep.subr.bf16.mxu0 0
      %251 = vmatpush1.bf16.msra.mxu0 0
      %252 = vmatprep.subr.bf16.mxu0 0
      %253 = vmatpush1.bf16.msra.mxu0 0
      %254 = vmatprep.subr.bf16.mxu0 0
      %255 = vmatpush1.bf16.msra.mxu0 0
      %256 = vmatprep.subr.bf16.mxu0 0
      %257 = vmatpush1.bf16.msra.mxu0 0
      %258 = vmatprep.subr.bf16.mxu0 0
      %259 = vmatpush1.bf16.msra.mxu0 %v220
      %260 = vmatprep.subr.bf16.mxu0 0
      %261 = vmatpush2.bf16.msra.mxu0 0
      %262 = vmatprep.subr.bf16.mxu0 0
      %263 = vmatpush2.bf16.msra.mxu0 0
      %264 = vmatprep.subr.bf16.mxu0 0
      %265 = vmatpush2.bf16.msra.mxu0 0
      %266 = vmatprep.subr.bf16.mxu0 0
      %267 = vmatpush2.bf16.msra.mxu0 0
      %268 = vmatprep.subr.bf16.mxu0 0
      %269 = vmatpush2.bf16.msra.mxu0 0
      %270 = vmatprep.subr.bf16.mxu0 0
      %271 = vmatpush2.bf16.msra.mxu0 0
      %272 = vmatprep.subr.bf16.mxu0 0
      %273 = vmatpush2.bf16.msra.mxu0 0
      %274 = vmatprep.subr.bf16.mxu0 0
      %275 = vmatpush2.bf16.msra.mxu0 0
      %276 = vmatprep.mubr.bf16.mxu0 0
      %277 = vmatmul.mubr.bf16.gmra.mxu0 %v242
      %v278 = vpop.f32.mrf.mxu0
      %v279 = vadd.f32 %v228, %v278
      %v280 = vpop.f32.mrf.mxu0
      %v281 = vpop.f32.mrf.mxu0
      %v282 = vadd.f32 %v233, %v281
      %v283 = vpop.f32.mrf.mxu0
      %284 = vdwg.mxu0
      %v285 = vld [vmem:[%s206] sm:$0x1]
      %v287 = vlaneseq
      %v288 = vshrl.u32 %v287, 7
      %v289 = vsub.s32 0, %v288
      %v290 = vrot.slane %v285, %v289
      %v292 = vmul.f32 %v279, %v290
      %v293 = vmul.f32 %v282, %v290
      %294 = vst [vmem:[%s211] sm:$0xff] %v292
      %295 = vst [vmem:[%s211 + $0x8] sm:$0xff] %v293
      %p296 = scmp.lt.s32.totalorder %s15, 1
      %s297 = scalar_select %p296, %s15, 1
      %s298 = smul.addr %s297, 2
      %s299 = smul.addr %s298, 8
      %s300 = scalar_lea.vmem %s4, %s299
      // Predicated region
      $region37: #{phase1.26} parent=35 // pred_check
        %p301 = pneg %p127
      $region38: #{phase1.26} parent=35 // pred_check_branch
        %303 = sbr.rel (%p301) target = $region40
      $region39: #{phase1.26} parent=35 // pred_region
        _
      $region40: #{phase1.26} parent=35 // pred_fallthru
        _
    $region36: #{phase1.26} parent=5 // pred_fallthru
      _
    %p304 = scmp.le.s32.totalorder 2, %s10
    // Predicated region
    $region41: #{phase1.26} parent=5 // pred_check
      %p305 = pneg %p304
    $region42: #{phase1.26} parent=5 // pred_check_branch
      %307 = sbr.rel (%p305) target = $region44
    $region43: #{phase1.26} parent=5 // pred_region
      %s308 = ssub.s32 %s10, 2
      // Predicated region
      $region45: #{phase1.26} parent=43 // pred_check
        %p309 = pneg %p133
      $region46: #{phase1.26} parent=43 // pred_check_branch
        %311 = sbr.rel (%p309) target = $region48
      $region47: #{phase1.26} parent=43 // pred_region
        %p312 = scmp.lt.s32.totalorder %s16, 1
        %s313 = scalar_select %p312, %s16, 1
        %s314 = smul.addr %s313, 2
        %s315 = smul.addr %s314, 8
        %s316 = scalar_lea.vmem %s4, %s315
      $region48: #{phase1.26} parent=43 // pred_fallthru
        _
    $region44: #{phase1.26} parent=5 // pred_fallthru
      _
  $region6: #{phase1.26} parent=0 // loop_footer
    %s14 = sadd.s32 1, %s10
  $region7: #{phase1.26} parent=0 // loop_footer_branch
    %9 = sbr.rel target = $region3
  $region8: #{phase1.26} parent=0 // loop_exit
    _

// kernel: phase1.30
$region0: #{phase1.30}
  #allocation0 [shape = 'u32[]', space=smem, size = 0x4, offset = 0x4, fixed_abs, tag = 'smem constant byte address 0x4 - core index']
  #allocation1 [shape = 'u32[144,128]{1,0:T(1,128)}', space=vmem, size = 0x12000, scoped, tag = 'internal scratch']
  %s0 = inlined_call_operand.vmem [shape: f32[2,16,128], index: 0, kind: input, shape index: {}]
  %s1 = inlined_call_operand.vmem [shape: f32[2,1,128], index: 1, kind: input, shape index: {}]
  %s2 = inlined_call_operand.vmem [shape: bf16[20,32,16], index: 2, kind: input, shape index: {}]
  %s3 = inlined_call_operand.vmem [shape: f32[4,32,1], index: 3, kind: input, shape index: {}]
  %s4 = inlined_call_operand.vmem [shape: bf16[4,32,16], index: 4, kind: input, shape index: {}]
  %s5 = inlined_call_operand.vmem [shape: f32[4,32,1], index: 5, kind: input, shape index: {}]
  %s6 = inlined_call_operand.vmem [shape: f32[2,16,128], index: 6, kind: output, shape index: {}]
  %s7 = sld [smem:[#allocation0]]
  $region64: #{phase1.30} parent=0
    _
  %s9 = ssub.s32 1, %s7
  %s10 = scalar_select 0, %s9, %s7
  loop: start=0, step=1, limit=4
  $region2: #{phase1.30} parent=0 // loop_pre_header
    _
  $region3: #{phase1.30} parent=0 // loop_header
    %s12 = sphi 0, %s16
    %p13 = scmp.ge.s32.totalorder %s12, 4
    %s22 = sphi 0, %s24
    %s25 = sphi 0, %s22
    %s26 = sphi 0, %s25
    %s42 = sphi 0, %s26
    %s48 = sphi 0, %s50
    %s51 = sphi 0, %s48
    %s52 = sphi 0, %s51
    %s68 = sphi 0, %s52
    %s72 = sphi 0, %s72
    %s74 = sphi 0, %s72
    %s75 = sphi 0, %s74
    %s89 = sphi 0, %s75
    %s93 = sphi 0, %s93
    %s95 = sphi 0, %s93
    %s96 = sphi 0, %s95
    %s110 = sphi 0, %s96
    %s114 = sphi 0, %s114
    %s116 = sphi 0, %s114
    %s117 = sphi 0, %s116
    %s131 = sphi 0, %s117
    %s135 = sphi 0, %s135
    %s137 = sphi 0, %s135
    %s138 = sphi 0, %s137
    %s152 = sphi 0, %s138
    %s158 = sphi 0, %s160
    %s161 = sphi 0, %s158
    %s162 = sphi 0, %s161
    %s178 = sphi 0, %s162
  $region4: #{phase1.30} parent=0 // loop_header_branch
    %15 = sbr.rel (%p13) target = $region8
  $region5: #{phase1.30} parent=0 // loop_body
    %s17 = ssub.s32 %s12, 1
    %s18 = ssub.s32 %s12, 2
    %s19 = sadd.s32 %s12, 1
    %s20 = ssub.s32 %s12, %s19
    %p21 = scmp.eq.s32.totalorder %s20, 0
    %s23 = sadd.s32 %s22, 1
    %s24 = scalar_select %p21, %s22, %s23
    %p27 = pneg %p21
    %p28 = scmp.eq.s32.totalorder %s12, 1
    %p29 = por %p27, %p28
    %p30 = scmp.ne.s32.totalorder %s22, %s25
    %p31 = scmp.eq.s32.totalorder %s12, 0
    %p32 = por %p30, %p31
    %p33 = scmp.ne.s32.totalorder %s22, %s25
    %p34 = scmp.eq.s32.totalorder %s17, 1
    %p35 = por %p33, %p34
    %p36 = scmp.ne.s32.totalorder %s25, %s26
    %p37 = scmp.eq.s32.totalorder %s17, 0
    %p38 = por %p36, %p37
    %p39 = scmp.ne.s32.totalorder %s25, %s26
    %p40 = scmp.eq.s32.totalorder %s18, 1
    %p41 = por %p39, %p40
    %p43 = scmp.ne.s32.totalorder %s26, %s42
    %p44 = scmp.eq.s32.totalorder %s18, 0
    %p45 = por %p43, %p44
    %s46 = ssub.s32 %s12, %s19
    %p47 = scmp.eq.s32.totalorder %s46, 0
    %s49 = sadd.s32 %s48, 1
    %s50 = scalar_select %p47, %s48, %s49
    %p53 = pneg %p47
    %p54 = scmp.eq.s32.totalorder %s12, 1
    %p55 = por %p53, %p54
    %p56 = scmp.ne.s32.totalorder %s48, %s51
    %p57 = scmp.eq.s32.totalorder %s12, 0
    %p58 = por %p56, %p57
    %p59 = scmp.ne.s32.totalorder %s48, %s51
    %p60 = scmp.eq.s32.totalorder %s17, 1
    %p61 = por %p59, %p60
    %p62 = scmp.ne.s32.totalorder %s51, %s52
    %p63 = scmp.eq.s32.totalorder %s17, 0
    %p64 = por %p62, %p63
    %p65 = scmp.ne.s32.totalorder %s51, %s52
    %p66 = scmp.eq.s32.totalorder %s18, 1
    %p67 = por %p65, %p66
    %p69 = scmp.ne.s32.totalorder %s52, %s68
    %p70 = scmp.eq.s32.totalorder %s18, 0
    %p71 = por %p69, %p70
    %s73 = sadd.s32 %s72, 1
    %p76 = scmp.eq.s32.totalorder %s12, 1
    %p77 = scmp.ne.s32.totalorder %s72, %s74
    %p78 = scmp.eq.s32.totalorder %s12, 0
    %p79 = por %p77, %p78
    %p80 = scmp.ne.s32.totalorder %s72, %s74
    %p81 = scmp.eq.s32.totalorder %s17, 1
    %p82 = por %p80, %p81
    %p83 = scmp.ne.s32.totalorder %s74, %s75
    %p84 = scmp.eq.s32.totalorder %s17, 0
    %p85 = por %p83, %p84
    %p86 = scmp.ne.s32.totalorder %s74, %s75
    %p87 = scmp.eq.s32.totalorder %s18, 1
    %p88 = por %p86, %p87
    %p90 = scmp.ne.s32.totalorder %s75, %s89
    %p91 = scmp.eq.s32.totalorder %s18, 0
    %p92 = por %p90, %p91
    %s94 = sadd.s32 %s93, 1
    %p97 = scmp.eq.s32.totalorder %s12, 1
    %p98 = scmp.ne.s32.totalorder %s93, %s95
    %p99 = scmp.eq.s32.totalorder %s12, 0
    %p100 = por %p98, %p99
    %p101 = scmp.ne.s32.totalorder %s93, %s95
    %p102 = scmp.eq.s32.totalorder %s17, 1
    %p103 = por %p101, %p102
    %p104 = scmp.ne.s32.totalorder %s95, %s96
    %p105 = scmp.eq.s32.totalorder %s17, 0
    %p106 = por %p104, %p105
    %p107 = scmp.ne.s32.totalorder %s95, %s96
    %p108 = scmp.eq.s32.totalorder %s18, 1
    %p109 = por %p107, %p108
    %p111 = scmp.ne.s32.totalorder %s96, %s110
    %p112 = scmp.eq.s32.totalorder %s18, 0
    %p113 = por %p111, %p112
    %s115 = sadd.s32 %s114, 1
    %p118 = scmp.eq.s32.totalorder %s12, 1
    %p119 = scmp.ne.s32.totalorder %s114, %s116
    %p120 = scmp.eq.s32.totalorder %s12, 0
    %p121 = por %p119, %p120
    %p122 = scmp.ne.s32.totalorder %s114, %s116
    %p123 = scmp.eq.s32.totalorder %s17, 1
    %p124 = por %p122, %p123
    %p125 = scmp.ne.s32.totalorder %s116, %s117
    %p126 = scmp.eq.s32.totalorder %s17, 0
    %p127 = por %p125, %p126
    %p128 = scmp.ne.s32.totalorder %s116, %s117
    %p129 = scmp.eq.s32.totalorder %s18, 1
    %p130 = por %p128, %p129
    %p132 = scmp.ne.s32.totalorder %s117, %s131
    %p133 = scmp.eq.s32.totalorder %s18, 0
    %p134 = por %p132, %p133
    %s136 = sadd.s32 %s135, 1
    %p139 = scmp.eq.s32.totalorder %s12, 1
    %p140 = scmp.ne.s32.totalorder %s135, %s137
    %p141 = scmp.eq.s32.totalorder %s12, 0
    %p142 = por %p140, %p141
    %p143 = scmp.ne.s32.totalorder %s135, %s137
    %p144 = scmp.eq.s32.totalorder %s17, 1
    %p145 = por %p143, %p144
    %p146 = scmp.ne.s32.totalorder %s137, %s138
    %p147 = scmp.eq.s32.totalorder %s17, 0
    %p148 = por %p146, %p147
    %p149 = scmp.ne.s32.totalorder %s137, %s138
    %p150 = scmp.eq.s32.totalorder %s18, 1
    %p151 = por %p149, %p150
    %p153 = scmp.ne.s32.totalorder %s138, %s152
    %p154 = scmp.eq.s32.totalorder %s18, 0
    %p155 = por %p153, %p154
    %s156 = ssub.s32 %s12, %s19
    %p157 = scmp.eq.s32.totalorder %s156, 0
    %s159 = sadd.s32 %s158, 1
    %s160 = scalar_select %p157, %s158, %s159
    %p163 = pneg %p157
    %p164 = scmp.eq.s32.totalorder %s12, 1
    %p165 = por %p163, %p164
    %p166 = scmp.ne.s32.totalorder %s158, %s161
    %p167 = scmp.eq.s32.totalorder %s12, 0
    %p168 = por %p166, %p167
    %p169 = scmp.ne.s32.totalorder %s158, %s161
    %p170 = scmp.eq.s32.totalorder %s17, 1
    %p171 = por %p169, %p170
    %p172 = scmp.ne.s32.totalorder %s161, %s162
    %p173 = scmp.eq.s32.totalorder %s17, 0
    %p174 = por %p172, %p173
    %p175 = scmp.ne.s32.totalorder %s161, %s162
    %p176 = scmp.eq.s32.totalorder %s18, 1
    %p177 = por %p175, %p176
    %p179 = scmp.ne.s32.totalorder %s162, %s178
    %p180 = scmp.eq.s32.totalorder %s18, 0
    %p181 = por %p179, %p180
    %p182 = scmp.le.s32.totalorder 1, %s12
    %p183 = scmp.lt.s32.totalorder %s12, 3
    %p184 = pnand %p182, %p183
    %p185 = pneg %p184
    // Predicated region
    $region9: #{phase1.30} parent=5 // pred_check
      _
    $region10: #{phase1.30} parent=5 // pred_check_branch
      %187 = sbr.rel (%p184) target = $region12
    $region11: #{phase1.30} parent=5 // pred_region
      %s188 = ssub.s32 %s12, 1
      // Predicated region
      $region13: #{phase1.30} parent=11 // pred_check
        %p189 = pneg %p85
      $region14: #{phase1.30} parent=11 // pred_check_branch
        %191 = sbr.rel (%p189) target = $region16
      $region15: #{phase1.30} parent=11 // pred_region
        _
      $region16: #{phase1.30} parent=11 // pred_fallthru
        _
      // Predicated region
      $region17: #{phase1.30} parent=11 // pred_check
        %p192 = pneg %p106
      $region18: #{phase1.30} parent=11 // pred_check_branch
        %194 = sbr.rel (%p192) target = $region20
      $region19: #{phase1.30} parent=11 // pred_region
        _
      $region20: #{phase1.30} parent=11 // pred_fallthru
        _
      // Predicated region
      $region21: #{phase1.30} parent=11 // pred_check
        %p195 = pneg %p127
      $region22: #{phase1.30} parent=11 // pred_check_branch
        %197 = sbr.rel (%p195) target = $region24
      $region23: #{phase1.30} parent=11 // pred_region
        _
      $region24: #{phase1.30} parent=11 // pred_fallthru
        _
      // Predicated region
      $region25: #{phase1.30} parent=11 // pred_check
        %p198 = pneg %p148
      $region26: #{phase1.30} parent=11 // pred_check_branch
        %200 = sbr.rel (%p198) target = $region28
      $region27: #{phase1.30} parent=11 // pred_region
        _
      $region28: #{phase1.30} parent=11 // pred_fallthru
        _
    $region12: #{phase1.30} parent=5 // pred_fallthru
      _
    %p201 = scmp.lt.s32.totalorder %s12, 2
    // Predicated region
    $region29: #{phase1.30} parent=5 // pred_check
      %p202 = pneg %p201
    $region30: #{phase1.30} parent=5 // pred_check_branch
      %204 = sbr.rel (%p202) target = $region32
    $region31: #{phase1.30} parent=5 // pred_region
      // Predicated region
      $region33: #{phase1.30} parent=31 // pred_check
        %p205 = pneg %p32
      $region34: #{phase1.30} parent=31 // pred_check_branch
        %207 = sbr.rel (%p205) target = $region36
      $region35: #{phase1.30} parent=31 // pred_region
        %p208 = scmp.lt.s32.totalorder %s12, 1
        %s209 = scalar_select %p208, %s12, 1
        %s210 = smul.addr %s209, 2
        %s211 = smul.addr %s210, 8
        %s212 = scalar_lea.vmem %s0, %s211
      $region36: #{phase1.30} parent=31 // pred_fallthru
        _
      // Predicated region
      $region37: #{phase1.30} parent=31 // pred_check
        %p213 = pneg %p58
      $region38: #{phase1.30} parent=31 // pred_check_branch
        %215 = sbr.rel (%p213) target = $region40
      $region39: #{phase1.30} parent=31 // pred_region
        %p216 = scmp.lt.s32.totalorder %s12, 1
        %s217 = scalar_select %p216, %s12, 1
        %s218 = scalar_lea.vmem %s1, %s217
      $region40: #{phase1.30} parent=31 // pred_fallthru
        _
    $region32: #{phase1.30} parent=5 // pred_fallthru
      _
    %p219 = scmp.le.s32.totalorder 1, %s12
    %p220 = scmp.lt.s32.totalorder %s12, 3
    %p221 = pnand %p219, %p220
    %p222 = pneg %p221
    // Predicated region
    $region41: #{phase1.30} parent=5 // pred_check
      _
    $region42: #{phase1.30} parent=5 // pred_check_branch
      %224 = sbr.rel (%p221) target = $region44
    $region43: #{phase1.30} parent=5 // pred_region
      %s225 = ssub.s32 %s12, 1
      %p226 = scmp.lt.s32.totalorder %s17, 1
      %s227 = scalar_select %p226, %s17, 1
      %s228 = smul.addr %s227, 2
      %s229 = smul.addr %s228, 8
      %s230 = scalar_lea.vmem %s0, %s229
      %p231 = pneg %p38
      %p232 = pneg %p35
      %p233 = scmp.lt.s32.totalorder %s17, 1
      %s234 = scalar_select %p233, %s17, 1
      %s235 = scalar_lea.vmem %s1, %s234
      %p236 = pneg %p64
      %p237 = pneg %p61
      %p238 = pneg %p85
      %p239 = pneg %p82
      %p240 = pneg %p106
      %p241 = pneg %p103
      %p242 = pneg %p127
      %p243 = pneg %p124
      %p244 = pneg %p148
      %p245 = pneg %p145
      %p246 = pneg %p174
      %p247 = pneg %p171
      %p248 = scmp.lt.s32.totalorder %s17, 1
      %s249 = scalar_select %p248, %s17, 1
      %s250 = smul.addr %s249, 2
      %s251 = smul.addr %s250, 8
      %s252 = scalar_lea.vmem %s6, %s251
      %p253 = scmp.lt.s32.totalorder %s17, 1
      %s254 = scalar_select %p253, %s17, 1
      %s255 = smul.addr %s254, 2
      %s256 = smul.addr %s255, 8
      %s257 = scalar_lea.vmem %s0, %s256
      %p258 = scmp.lt.s32.totalorder %s17, 1
      %s259 = scalar_select %p258, %s17, 1
      %s260 = scalar_lea.vmem %s1, %s259
      %p261 = scmp.lt.s32.totalorder %s17, 1
      %s262 = scalar_select %p261, %s17, 1
      %s263 = smul.addr %s262, 2
      %s264 = smul.addr %s263, 8
      %s265 = scalar_lea.vmem %s6, %s264
      %v267 = vld [vmem:[%s260] sm:$0x1]
      %v268 = vld [vmem:[%s257] sm:$0xff]
      %v269 = vld [vmem:[%s257 + $0x8] sm:$0xff]
      loop: start=0, step=1, limit=4
      $region45: #{phase1.30} parent=43 // loop_pre_header
        _
      $region46: #{phase1.30} parent=43 // loop_header
        %s271 = sphi 0, %s275
        %p272 = scmp.ge.s32.totalorder %s271, 4
        %v276 = vphi %v268, %v850
        %v277 = vphi %v269, %v851
        %v278 = vphi 0.0, %v852
        %v279 = vphi 0.0, %v853
      $region47: #{phase1.30} parent=43 // loop_header_branch
        %274 = sbr.rel (%p272) target = $region51
      $region48: #{phase1.30} parent=43 // loop_body
        %v280 = vpack.c.bf16 %v277, %v276
        %282 = vrot.lane.b32.xlu0 %v280, 2
        %v283 = vpop.permute.xlu0 %282
        %vm284 = vcmask 15360
        %v287 = vsel %vm284, 0, %v283
        %v289 = vsel %vm284, %v283, 0
        %s290 = smul.u32 %s271, 5
        %s291 = smul.u32 %s290, 4
        %s292 = smul.addr %s291, 4
        %s293 = scalar_lea.vmem %s2, %s292
        %v294 = vld [vmem:[%s293] sm:$0xf]
        %v295 = vld [vmem:[%s293 + $0x4] sm:$0xf]
        %v296 = vld [vmem:[%s293 + $0x8] sm:$0xf]
        %v297 = vld [vmem:[%s293 + $0xc] sm:$0xf]
        %s298 = sadd.s32 %s290, 1
        %s299 = smul.u32 %s298, 4
        %s300 = smul.addr %s299, 4
        %s301 = scalar_lea.vmem %s2, %s300
        %v302 = vld [vmem:[%s301] sm:$0xf]
        %v303 = vld [vmem:[%s301 + $0x4] sm:$0xf]
        %v304 = vld [vmem:[%s301 + $0x8] sm:$0xf]
        %v305 = vld [vmem:[%s301 + $0xc] sm:$0xf]
        %v310 = vunpack.c.l.b16 %v302
        %v311 = vunpack.c.l.b16 %v303
        %v312 = vunpack.c.l.b16 %v304
        %v313 = vunpack.c.l.b16 %v305
        %v314 = vpack.c.b16 %v311, %v310
        %v315 = vpack.c.b16 %v313, %v312
        %318 = vrot.lane.b32.xlu0 %v287, 127
        %v319 = vpop.permute.xlu0 %318
        %320 = vrot.lane.b32.xlu0 %v289, 127
        %v321 = vpop.permute.xlu0 %320
        %vm322 = vcmask 1039360
        %v323 = vsel %vm322, %v319, %v321
        %vm325 = vcmask 130048
        %v327 = vsel %vm325, %v314, 0
        %v330 = vsel %vm325, %v315, 0
        %332 = vmatprep.subr.bf16.mxu0 0
        %333 = vmatpush1.bf16.msra.mxu0 0
        %334 = vmatprep.subr.bf16.mxu0 0
        %335 = vmatpush1.bf16.msra.mxu0 0
        %336 = vmatprep.subr.bf16.mxu0 0
        %337 = vmatpush1.bf16.msra.mxu0 0
        %338 = vmatprep.subr.bf16.mxu0 0
        %339 = vmatpush1.bf16.msra.mxu0 0
        %340 = vmatprep.subr.bf16.mxu0 0
        %341 = vmatpush1.bf16.msra.mxu0 0
        %342 = vmatprep.subr.bf16.mxu0 0
        %343 = vmatpush1.bf16.msra.mxu0 0
        %344 = vmatprep.subr.bf16.mxu0 0
        %345 = vmatpush1.bf16.msra.mxu0 0
        %346 = vmatprep.subr.bf16.mxu0 0
        %347 = vmatpush1.bf16.msra.mxu0 %v323
        %348 = vmatprep.subr.bf16.mxu0 0
        %349 = vmatpush2.bf16.msra.mxu0 0
        %350 = vmatprep.subr.bf16.mxu0 0
        %351 = vmatpush2.bf16.msra.mxu0 0
        %352 = vmatprep.subr.bf16.mxu0 0
        %353 = vmatpush2.bf16.msra.mxu0 0
        %354 = vmatprep.subr.bf16.mxu0 0
        %355 = vmatpush2.bf16.msra.mxu0 0
        %356 = vmatprep.subr.bf16.mxu0 0
        %357 = vmatpush2.bf16.msra.mxu0 0
        %358 = vmatprep.subr.bf16.mxu0 0
        %359 = vmatpush2.bf16.msra.mxu0 0
        %360 = vmatprep.subr.bf16.mxu0 0
        %361 = vmatpush2.bf16.msra.mxu0 0
        %362 = vmatprep.subr.bf16.mxu0 0
        %363 = vmatpush2.bf16.msra.mxu0 0
        %364 = vmatprep.mubr.bf16.mxu0 0
        %365 = vmatmul.mubr.bf16.gmra.mxu0 %v327
        %v366 = vpop.f32.mrf.mxu0
        %v367 = vadd.f32 0.0, %v366
        %v368 = vpop.f32.mrf.mxu0
        %v369 = vpop.f32.mrf.mxu0
        %v370 = vadd.f32 0.0, %v369
        %v371 = vpop.f32.mrf.mxu0
        %372 = vmatprep.mubr.bf16.mxu0 0
        %373 = vmatmul.mubr.bf16.gmra.mxu0 %v330
        %v374 = vpop.f32.mrf.mxu0
        %v375 = vadd.f32 0.0, %v374
        %v376 = vpop.f32.mrf.mxu0
        %v377 = vpop.f32.mrf.mxu0
        %v378 = vadd.f32 0.0, %v377
        %v379 = vpop.f32.mrf.mxu0
        %380 = vdwg.mxu0
        %v385 = vunpack.c.l.b16 %v294
        %v386 = vunpack.c.l.b16 %v295
        %v387 = vunpack.c.l.b16 %v296
        %v388 = vunpack.c.l.b16 %v297
        %v389 = vpack.c.b16 %v386, %v385
        %v390 = vpack.c.b16 %v388, %v387
        %v392 = vsel %vm325, %v389, 0
        %v395 = vsel %vm325, %v390, 0
        %397 = vmatprep.subr.bf16.mxu0 0
        %398 = vmatpush1.bf16.msra.mxu0 0
        %399 = vmatprep.subr.bf16.mxu0 0
        %400 = vmatpush1.bf16.msra.mxu0 0
        %401 = vmatprep.subr.bf16.mxu0 0
        %402 = vmatpush1.bf16.msra.mxu0 0
        %403 = vmatprep.subr.bf16.mxu0 0
        %404 = vmatpush1.bf16.msra.mxu0 0
        %405 = vmatprep.subr.bf16.mxu0 0
        %406 = vmatpush1.bf16.msra.mxu0 0
        %407 = vmatprep.subr.bf16.mxu0 0
        %408 = vmatpush1.bf16.msra.mxu0 0
        %409 = vmatprep.subr.bf16.mxu0 0
        %410 = vmatpush1.bf16.msra.mxu0 0
        %411 = vmatprep.subr.bf16.mxu0 0
        %412 = vmatpush1.bf16.msra.mxu0 %v287
        %413 = vmatprep.subr.bf16.mxu0 0
        %414 = vmatpush2.bf16.msra.mxu0 0
        %415 = vmatprep.subr.bf16.mxu0 0
        %416 = vmatpush2.bf16.msra.mxu0 0
        %417 = vmatprep.subr.bf16.mxu0 0
        %418 = vmatpush2.bf16.msra.mxu0 0
        %419 = vmatprep.subr.bf16.mxu0 0
        %420 = vmatpush2.bf16.msra.mxu0 0
        %421 = vmatprep.subr.bf16.mxu0 0
        %422 = vmatpush2.bf16.msra.mxu0 0
        %423 = vmatprep.subr.bf16.mxu0 0
        %424 = vmatpush2.bf16.msra.mxu0 0
        %425 = vmatprep.subr.bf16.mxu0 0
        %426 = vmatpush2.bf16.msra.mxu0 0
        %427 = vmatprep.subr.bf16.mxu0 0
        %428 = vmatpush2.bf16.msra.mxu0 0
        %429 = vmatprep.mubr.bf16.mxu0 0
        %430 = vmatmul.mubr.bf16.gmra.mxu0 %v392
        %v431 = vpop.f32.mrf.mxu0
        %v432 = vadd.f32 %v367, %v431
        %v433 = vpop.f32.mrf.mxu0
        %v434 = vpop.f32.mrf.mxu0
        %v435 = vadd.f32 %v370, %v434
        %v436 = vpop.f32.mrf.mxu0
        %437 = vmatprep.mubr.bf16.mxu0 0
        %438 = vmatmul.mubr.bf16.gmra.mxu0 %v395
        %v439 = vpop.f32.mrf.mxu0
        %v440 = vadd.f32 %v375, %v439
        %v441 = vpop.f32.mrf.mxu0
        %v442 = vpop.f32.mrf.mxu0
        %v443 = vadd.f32 %v378, %v442
        %v444 = vpop.f32.mrf.mxu0
        %445 = vdwg.mxu0
        %s446 = sadd.s32 %s290, 2
        %s447 = smul.u32 %s446, 4
        %s448 = smul.addr %s447, 4
        %s449 = scalar_lea.vmem %s2, %s448
        %v450 = vld [vmem:[%s449] sm:$0xf]
        %v451 = vld [vmem:[%s449 + $0x4] sm:$0xf]
        %v452 = vld [vmem:[%s449 + $0x8] sm:$0xf]
        %v453 = vld [vmem:[%s449 + $0xc] sm:$0xf]
        %v458 = vunpack.c.l.b16 %v450
        %v459 = vunpack.c.l.b16 %v451
        %v460 = vunpack.c.l.b16 %v452
        %v461 = vunpack.c.l.b16 %v453
        %v462 = vpack.c.b16 %v459, %v458
        %v463 = vpack.c.b16 %v461, %v460
        %464 = vrot.lane.b32.xlu0 %v287, 126
        %v465 = vpop.permute.xlu0 %464
        %466 = vrot.lane.b32.xlu0 %v289, 126
        %v467 = vpop.permute.xlu0 %466
        %vm468 = vcmask 1031168
        %v469 = vsel %vm468, %v465, %v467
        %v472 = vsel %vm325, %v462, 0
        %v475 = vsel %vm325, %v463, 0
        %477 = vmatprep.subr.bf16.mxu0 0
        %478 = vmatpush1.bf16.msra.mxu0 0
        %479 = vmatprep.subr.bf16.mxu0 0
        %480 = vmatpush1.bf16.msra.mxu0 0
        %481 = vmatprep.subr.bf16.mxu0 0
        %482 = vmatpush1.bf16.msra.mxu0 0
        %483 = vmatprep.subr.bf16.mxu0 0
        %484 = vmatpush1.bf16.msra.mxu0 0
        %485 = vmatprep.subr.bf16.mxu0 0
        %486 = vmatpush1.bf16.msra.mxu0 0
        %487 = vmatprep.subr.bf16.mxu0 0
        %488 = vmatpush1.bf16.msra.mxu0 0
        %489 = vmatprep.subr.bf16.mxu0 0
        %490 = vmatpush1.bf16.msra.mxu0 0
        %491 = vmatprep.subr.bf16.mxu0 0
        %492 = vmatpush1.bf16.msra.mxu0 %v469
        %493 = vmatprep.subr.bf16.mxu0 0
        %494 = vmatpush2.bf16.msra.mxu0 0
        %495 = vmatprep.subr.bf16.mxu0 0
        %496 = vmatpush2.bf16.msra.mxu0 0
        %497 = vmatprep.subr.bf16.mxu0 0
        %498 = vmatpush2.bf16.msra.mxu0 0
        %499 = vmatprep.subr.bf16.mxu0 0
        %500 = vmatpush2.bf16.msra.mxu0 0
        %501 = vmatprep.subr.bf16.mxu0 0
        %502 = vmatpush2.bf16.msra.mxu0 0
        %503 = vmatprep.subr.bf16.mxu0 0
        %504 = vmatpush2.bf16.msra.mxu0 0
        %505 = vmatprep.subr.bf16.mxu0 0
        %506 = vmatpush2.bf16.msra.mxu0 0
        %507 = vmatprep.subr.bf16.mxu0 0
        %508 = vmatpush2.bf16.msra.mxu0 0
        %509 = vmatprep.mubr.bf16.mxu0 0
        %510 = vmatmul.mubr.bf16.gmra.mxu0 %v472
        %v511 = vpop.f32.mrf.mxu0
        %v512 = vadd.f32 0.0, %v511
        %v513 = vpop.f32.mrf.mxu0
        %v514 = vpop.f32.mrf.mxu0
        %v515 = vadd.f32 0.0, %v514
        %v516 = vpop.f32.mrf.mxu0
        %517 = vmatprep.mubr.bf16.mxu0 0
        %518 = vmatmul.mubr.bf16.gmra.mxu0 %v475
        %v519 = vpop.f32.mrf.mxu0
        %v520 = vadd.f32 0.0, %v519
        %v521 = vpop.f32.mrf.mxu0
        %v522 = vpop.f32.mrf.mxu0
        %v523 = vadd.f32 0.0, %v522
        %v524 = vpop.f32.mrf.mxu0
        %525 = vdwg.mxu0
        %v526 = vadd.f32 %v432, %v512
        %v527 = vadd.f32 %v435, %v515
        %v528 = vadd.f32 %v440, %v520
        %v529 = vadd.f32 %v443, %v523
        %s530 = sadd.s32 %s290, 3
        %s531 = smul.u32 %s530, 4
        %s532 = smul.addr %s531, 4
        %s533 = scalar_lea.vmem %s2, %s532
        %v534 = vld [vmem:[%s533] sm:$0xf]
        %v535 = vld [vmem:[%s533 + $0x4] sm:$0xf]
        %v536 = vld [vmem:[%s533 + $0x8] sm:$0xf]
        %v537 = vld [vmem:[%s533 + $0xc] sm:$0xf]
        %v542 = vunpack.c.l.b16 %v534
        %v543 = vunpack.c.l.b16 %v535
        %v544 = vunpack.c.l.b16 %v536
        %v545 = vunpack.c.l.b16 %v537
        %v546 = vpack.c.b16 %v543, %v542
        %v547 = vpack.c.b16 %v545, %v544
        %548 = vrot.lane.b32.xlu0 %v287, 125
        %v549 = vpop.permute.xlu0 %548
        %550 = vrot.lane.b32.xlu0 %v289, 125
        %v551 = vpop.permute.xlu0 %550
        %vm552 = vcmask 1022976
        %v553 = vsel %vm552, %v549, %v551
        %v556 = vsel %vm325, %v546, 0
        %v559 = vsel %vm325, %v547, 0
        %561 = vmatprep.subr.bf16.mxu0 0
        %562 = vmatpush1.bf16.msra.mxu0 0
        %563 = vmatprep.subr.bf16.mxu0 0
        %564 = vmatpush1.bf16.msra.mxu0 0
        %565 = vmatprep.subr.bf16.mxu0 0
        %566 = vmatpush1.bf16.msra.mxu0 0
        %567 = vmatprep.subr.bf16.mxu0 0
        %568 = vmatpush1.bf16.msra.mxu0 0
        %569 = vmatprep.subr.bf16.mxu0 0
        %570 = vmatpush1.bf16.msra.mxu0 0
        %571 = vmatprep.subr.bf16.mxu0 0
        %572 = vmatpush1.bf16.msra.mxu0 0
        %573 = vmatprep.subr.bf16.mxu0 0
        %574 = vmatpush1.bf16.msra.mxu0 0
        %575 = vmatprep.subr.bf16.mxu0 0
        %576 = vmatpush1.bf16.msra.mxu0 %v553
        %577 = vmatprep.subr.bf16.mxu0 0
        %578 = vmatpush2.bf16.msra.mxu0 0
        %579 = vmatprep.subr.bf16.mxu0 0
        %580 = vmatpush2.bf16.msra.mxu0 0
        %581 = vmatprep.subr.bf16.mxu0 0
        %582 = vmatpush2.bf16.msra.mxu0 0
        %583 = vmatprep.subr.bf16.mxu0 0
        %584 = vmatpush2.bf16.msra.mxu0 0
        %585 = vmatprep.subr.bf16.mxu0 0
        %586 = vmatpush2.bf16.msra.mxu0 0
        %587 = vmatprep.subr.bf16.mxu0 0
        %588 = vmatpush2.bf16.msra.mxu0 0
        %589 = vmatprep.subr.bf16.mxu0 0
        %590 = vmatpush2.bf16.msra.mxu0 0
        %591 = vmatprep.subr.bf16.mxu0 0
        %592 = vmatpush2.bf16.msra.mxu0 0
        %593 = vmatprep.mubr.bf16.mxu0 0
        %594 = vmatmul.mubr.bf16.gmra.mxu0 %v556
        %v595 = vpop.f32.mrf.mxu0
        %v596 = vadd.f32 0.0, %v595
        %v597 = vpop.f32.mrf.mxu0
        %v598 = vpop.f32.mrf.mxu0
        %v599 = vadd.f32 0.0, %v598
        %v600 = vpop.f32.mrf.mxu0
        %601 = vmatprep.mubr.bf16.mxu0 0
        %602 = vmatmul.mubr.bf16.gmra.mxu0 %v559
        %v603 = vpop.f32.mrf.mxu0
        %v604 = vadd.f32 0.0, %v603
        %v605 = vpop.f32.mrf.mxu0
        %v606 = vpop.f32.mrf.mxu0
        %v607 = vadd.f32 0.0, %v606
        %v608 = vpop.f32.mrf.mxu0
        %609 = vdwg.mxu0
        %v610 = vadd.f32 %v526, %v596
        %v611 = vadd.f32 %v527, %v599
        %v612 = vadd.f32 %v528, %v604
        %v613 = vadd.f32 %v529, %v607
        %s614 = sadd.s32 %s290, 4
        %s615 = smul.u32 %s614, 4
        %s616 = smul.addr %s615, 4
        %s617 = scalar_lea.vmem %s2, %s616
        %v618 = vld [vmem:[%s617] sm:$0xf]
        %v619 = vld [vmem:[%s617 + $0x4] sm:$0xf]
        %v620 = vld [vmem:[%s617 + $0x8] sm:$0xf]
        %v621 = vld [vmem:[%s617 + $0xc] sm:$0xf]
        %v626 = vunpack.c.l.b16 %v618
        %v627 = vunpack.c.l.b16 %v619
        %v628 = vunpack.c.l.b16 %v620
        %v629 = vunpack.c.l.b16 %v621
        %v630 = vpack.c.b16 %v627, %v626
        %v631 = vpack.c.b16 %v629, %v628
        %632 = vrot.lane.b32.xlu0 %v287, 124
        %v633 = vpop.permute.xlu0 %632
        %634 = vrot.lane.b32.xlu0 %v289, 124
        %v635 = vpop.permute.xlu0 %634
        %vm636 = vcmask 1014784
        %v637 = vsel %vm636, %v633, %v635
        %v640 = vsel %vm325, %v630, 0
        %v643 = vsel %vm325, %v631, 0
        %645 = vmatprep.subr.bf16.mxu0 0
        %646 = vmatpush1.bf16.msra.mxu0 0
        %647 = vmatprep.subr.bf16.mxu0 0
        %648 = vmatpush1.bf16.msra.mxu0 0
        %649 = vmatprep.subr.bf16.mxu0 0
        %650 = vmatpush1.bf16.msra.mxu0 0
        %651 = vmatprep.subr.bf16.mxu0 0
        %652 = vmatpush1.bf16.msra.mxu0 0
        %653 = vmatprep.subr.bf16.mxu0 0
        %654 = vmatpush1.bf16.msra.mxu0 0
        %655 = vmatprep.subr.bf16.mxu0 0
        %656 = vmatpush1.bf16.msra.mxu0 0
        %657 = vmatprep.subr.bf16.mxu0 0
        %658 = vmatpush1.bf16.msra.mxu0 0
        %659 = vmatprep.subr.bf16.mxu0 0
        %660 = vmatpush1.bf16.msra.mxu0 %v637
        %661 = vmatprep.subr.bf16.mxu0 0
        %662 = vmatpush2.bf16.msra.mxu0 0
        %663 = vmatprep.subr.bf16.mxu0 0
        %664 = vmatpush2.bf16.msra.mxu0 0
        %665 = vmatprep.subr.bf16.mxu0 0
        %666 = vmatpush2.bf16.msra.mxu0 0
        %667 = vmatprep.subr.bf16.mxu0 0
        %668 = vmatpush2.bf16.msra.mxu0 0
        %669 = vmatprep.subr.bf16.mxu0 0
        %670 = vmatpush2.bf16.msra.mxu0 0
        %671 = vmatprep.subr.bf16.mxu0 0
        %672 = vmatpush2.bf16.msra.mxu0 0
        %673 = vmatprep.subr.bf16.mxu0 0
        %674 = vmatpush2.bf16.msra.mxu0 0
        %675 = vmatprep.subr.bf16.mxu0 0
        %676 = vmatpush2.bf16.msra.mxu0 0
        %677 = vmatprep.mubr.bf16.mxu0 0
        %678 = vmatmul.mubr.bf16.gmra.mxu0 %v640
        %v679 = vpop.f32.mrf.mxu0
        %v680 = vadd.f32 0.0, %v679
        %v681 = vpop.f32.mrf.mxu0
        %v682 = vpop.f32.mrf.mxu0
        %v683 = vadd.f32 0.0, %v682
        %v684 = vpop.f32.mrf.mxu0
        %685 = vmatprep.mubr.bf16.mxu0 0
        %686 = vmatmul.mubr.bf16.gmra.mxu0 %v643
        %v687 = vpop.f32.mrf.mxu0
        %v688 = vadd.f32 0.0, %v687
        %v689 = vpop.f32.mrf.mxu0
        %v690 = vpop.f32.mrf.mxu0
        %v691 = vadd.f32 0.0, %v690
        %v692 = vpop.f32.mrf.mxu0
        %693 = vdwg.mxu0
        %v694 = vadd.f32 %v610, %v680
        %v695 = vadd.f32 %v611, %v683
        %v696 = vadd.f32 %v612, %v688
        %v697 = vadd.f32 %v613, %v691
        %s698 = smul.u32 %s271, 32
        %s699 = scalar_lea.vmem %s3, %s698
        %v700 = vld [vmem:[%s699] sm:$0xff]
        %v701 = vld [vmem:[%s699 + $0x8] sm:$0xff]
        %v702 = vld [vmem:[%s699 + $0x10] sm:$0xff]
        %v703 = vld [vmem:[%s699 + $0x18] sm:$0xff]
        %705 = vset.pattern.permute.xlu0 0
        %706 = vperm.xlu0 %705, %v700
        %v707 = vpop.permute.xlu0 %706
        %710 = vset.pattern.permute.xlu0 0
        %711 = vperm.xlu0 %710, %v701
        %v712 = vpop.permute.xlu0 %711
        %715 = vset.pattern.permute.xlu0 0
        %716 = vperm.xlu0 %715, %v702
        %v717 = vpop.permute.xlu0 %716
        %720 = vset.pattern.permute.xlu0 0
        %721 = vperm.xlu0 %720, %v703
        %v722 = vpop.permute.xlu0 %721
        %v724 = vadd.f32 %v694, %v707
        %v725 = vadd.f32 %v695, %v712
        %v726 = vadd.f32 %v696, %v717
        %v727 = vadd.f32 %v697, %v722
        %v728 = vtanh.pop %v724
        %v729 = vtanh.pop %v725
        %v730 = vxor.u32 %v726, 2147483648
        %v731 = vxor.u32 %v727, 2147483648
        %v732 = vmul.f32 %v730, 1.442695
        %v733 = vpow.pop %v732
        %v734 = vmul.f32 %v731, 1.442695
        %v735 = vpow.pop %v734
        %v736 = vadd.f32 %v733, 1.0
        %v737 = vadd.f32 %v735, 1.0
        %v738 = vrcp.pop %v736
        %v739 = vmul.f32 1.0, %v738
        %v740 = vrcp.pop %v737
        %v741 = vmul.f32 1.0, %v740
        %v742 = vmul.f32 %v728, %v739
        %v743 = vmul.f32 %v729, %v741
        %s744 = smul.u32 %s271, 4
        %s745 = smul.addr %s744, 4
        %s746 = scalar_lea.vmem %s4, %s745
        %v747 = vld [vmem:[%s746] sm:$0xf]
        %v748 = vld [vmem:[%s746 + $0x4] sm:$0xf]
        %v749 = vld [vmem:[%s746 + $0x8] sm:$0xf]
        %v750 = vld [vmem:[%s746 + $0xc] sm:$0xf]
        %v751 = vpack.c.bf16 %v743, %v742
        %s752 = scalar_lea.vmem %s5, %s698
        %v753 = vld [vmem:[%s752] sm:$0xff]
        %v754 = vld [vmem:[%s752 + $0x8] sm:$0xff]
        %v755 = vld [vmem:[%s752 + $0x10] sm:$0xff]
        %v756 = vld [vmem:[%s752 + $0x18] sm:$0xff]
        %758 = vset.pattern.permute.xlu0 0
        %759 = vperm.xlu0 %758, %v753
        %v760 = vpop.permute.xlu0 %759
        %763 = vset.pattern.permute.xlu0 0
        %764 = vperm.xlu0 %763, %v754
        %v765 = vpop.permute.xlu0 %764
        %768 = vset.pattern.permute.xlu0 0
        %769 = vperm.xlu0 %768, %v755
        %v770 = vpop.permute.xlu0 %769
        %773 = vset.pattern.permute.xlu0 0
        %774 = vperm.xlu0 %773, %v756
        %v775 = vpop.permute.xlu0 %774
        %v781 = vunpack.c.l.b16 %v747
        %v782 = vunpack.c.l.b16 %v748
        %v783 = vunpack.c.l.b16 %v749
        %v784 = vunpack.c.l.b16 %v750
        %v785 = vpack.c.b16 %v782, %v781
        %v786 = vpack.c.b16 %v784, %v783
        %v788 = vsel %vm325, %v785, 0
        %v791 = vsel %vm325, %v786, 0
        %793 = vmatprep.subr.bf16.mxu0 0
        %794 = vmatpush1.bf16.msra.mxu0 0
        %795 = vmatprep.subr.bf16.mxu0 0
        %796 = vmatpush1.bf16.msra.mxu0 0
        %797 = vmatprep.subr.bf16.mxu0 0
        %798 = vmatpush1.bf16.msra.mxu0 0
        %799 = vmatprep.subr.bf16.mxu0 0
        %800 = vmatpush1.bf16.msra.mxu0 0
        %801 = vmatprep.subr.bf16.mxu0 0
        %802 = vmatpush1.bf16.msra.mxu0 0
        %803 = vmatprep.subr.bf16.mxu0 0
        %804 = vmatpush1.bf16.msra.mxu0 0
        %805 = vmatprep.subr.bf16.mxu0 0
        %806 = vmatpush1.bf16.msra.mxu0 0
        %807 = vmatprep.subr.bf16.mxu0 0
        %808 = vmatpush1.bf16.msra.mxu0 %v751
        %809 = vmatprep.subr.bf16.mxu0 0
        %810 = vmatpush2.bf16.msra.mxu0 0
        %811 = vmatprep.subr.bf16.mxu0 0
        %812 = vmatpush2.bf16.msra.mxu0 0
        %813 = vmatprep.subr.bf16.mxu0 0
        %814 = vmatpush2.bf16.msra.mxu0 0
        %815 = vmatprep.subr.bf16.mxu0 0
        %816 = vmatpush2.bf16.msra.mxu0 0
        %817 = vmatprep.subr.bf16.mxu0 0
        %818 = vmatpush2.bf16.msra.mxu0 0
        %819 = vmatprep.subr.bf16.mxu0 0
        %820 = vmatpush2.bf16.msra.mxu0 0
        %821 = vmatprep.subr.bf16.mxu0 0
        %822 = vmatpush2.bf16.msra.mxu0 0
        %823 = vmatprep.subr.bf16.mxu0 0
        %824 = vmatpush2.bf16.msra.mxu0 0
        %825 = vmatprep.mubr.bf16.mxu0 0
        %826 = vmatmul.mubr.bf16.gmra.mxu0 %v788
        %v827 = vpop.f32.mrf.mxu0
        %v828 = vadd.f32 %v760, %v827
        %v829 = vpop.f32.mrf.mxu0
        %v830 = vpop.f32.mrf.mxu0
        %v831 = vadd.f32 %v765, %v830
        %v832 = vpop.f32.mrf.mxu0
        %833 = vmatprep.mubr.bf16.mxu0 0
        %834 = vmatmul.mubr.bf16.gmra.mxu0 %v791
        %v835 = vpop.f32.mrf.mxu0
        %v836 = vadd.f32 %v770, %v835
        %v837 = vpop.f32.mrf.mxu0
        %v838 = vpop.f32.mrf.mxu0
        %v839 = vadd.f32 %v775, %v838
        %v840 = vpop.f32.mrf.mxu0
        %841 = vdwg.mxu0
        %v842 = vadd.f32 %v276, %v828
        %v843 = vadd.f32 %v277, %v831
        %v845 = vlaneseq
        %v846 = vshrl.u32 %v845, 7
        %v847 = vsub.s32 0, %v846
        %v848 = vrot.slane %v267, %v847
        %v850 = vmul.f32 %v842, %v848
        %v851 = vmul.f32 %v843, %v848
        %v852 = vadd.f32 %v278, %v836
        %v853 = vadd.f32 %v279, %v839
      $region49: #{phase1.30} parent=43 // loop_footer
        %s275 = sadd.s32 1, %s271
      $region50: #{phase1.30} parent=43 // loop_footer_branch
        %270 = sbr.rel target = $region46
      $region51: #{phase1.30} parent=43 // loop_exit
        _
      %v855 = vlaneseq
      %v856 = vshrl.u32 %v855, 7
      %v857 = vsub.s32 0, %v856
      %v858 = vrot.slane %v267, %v857
      %v860 = vmul.f32 %v278, %v858
      %v861 = vmul.f32 %v279, %v858
      %862 = vst [vmem:[%s265] sm:$0xff] %v860
      %863 = vst [vmem:[%s265 + $0x8] sm:$0xff] %v861
      %p864 = scmp.lt.s32.totalorder %s17, 1
      %s865 = scalar_select %p864, %s17, 1
      %s866 = smul.addr %s865, 2
      %s867 = smul.addr %s866, 8
      %s868 = scalar_lea.vmem %s6, %s867
      // Predicated region
      $region52: #{phase1.30} parent=43 // pred_check
        %p869 = pneg %p171
      $region53: #{phase1.30} parent=43 // pred_check_branch
        %871 = sbr.rel (%p869) target = $region55
      $region54: #{phase1.30} parent=43 // pred_region
        _
      $region55: #{phase1.30} parent=43 // pred_fallthru
        _
    $region44: #{phase1.30} parent=5 // pred_fallthru
      _
    %p872 = scmp.le.s32.totalorder 2, %s12
    // Predicated region
    $region56: #{phase1.30} parent=5 // pred_check
      %p873 = pneg %p872
    $region57: #{phase1.30} parent=5 // pred_check_branch
      %875 = sbr.rel (%p873) target = $region59
    $region58: #{phase1.30} parent=5 // pred_region
      %s876 = ssub.s32 %s12, 2
      // Predicated region
      $region60: #{phase1.30} parent=58 // pred_check
        %p877 = pneg %p177
      $region61: #{phase1.30} parent=58 // pred_check_branch
        %879 = sbr.rel (%p877) target = $region63
      $region62: #{phase1.30} parent=58 // pred_region
        %p880 = scmp.lt.s32.totalorder %s18, 1
        %s881 = scalar_select %p880, %s18, 1
        %s882 = smul.addr %s881, 2
        %s883 = smul.addr %s882, 8
        %s884 = scalar_lea.vmem %s6, %s883
      $region63: #{phase1.30} parent=58 // pred_fallthru
        _
    $region59: #{phase1.30} parent=5 // pred_fallthru
      _
  $region6: #{phase1.30} parent=0 // loop_footer
    %s16 = sadd.s32 1, %s12
  $region7: #{phase1.30} parent=0 // loop_footer_branch
    %11 = sbr.rel target = $region3
  $region8: #{phase1.30} parent=0 // loop_exit
    _

// kernel: phase1.31
$region0: #{phase1.31}
  #allocation0 [shape = 'u32[]', space=smem, size = 0x4, offset = 0x4, fixed_abs, tag = 'smem constant byte address 0x4 - core index']
  #allocation1 [shape = 'u32[144,128]{1,0:T(1,128)}', space=vmem, size = 0x12000, scoped, tag = 'internal scratch']
  %s0 = inlined_call_operand.vmem [shape: f32[2,16,128], index: 0, kind: input, shape index: {}]
  %s1 = inlined_call_operand.vmem [shape: bf16[1,4,16], index: 1, kind: input, shape index: {}]
  %s2 = inlined_call_operand.vmem [shape: f32[4,1], index: 2, kind: input, shape index: {}]
  %s3 = inlined_call_operand.vmem [shape: f32[2,4,128], index: 3, kind: input, shape index: {}]
  %s4 = inlined_call_operand.vmem [shape: f32[2,1,128], index: 4, kind: input, shape index: {}]
  %s5 = inlined_call_operand.vmem [shape: f32[2,4,128], index: 5, kind: output, shape index: {}]
  %s6 = sld [smem:[#allocation0]]
  $region53: #{phase1.31} parent=0
    _
  %s8 = ssub.s32 1, %s6
  %s9 = scalar_select 0, %s8, %s6
  loop: start=0, step=1, limit=4
  $region2: #{phase1.31} parent=0 // loop_pre_header
    _
  $region3: #{phase1.31} parent=0 // loop_header
    %s11 = sphi 0, %s15
    %p12 = scmp.ge.s32.totalorder %s11, 4
    %s21 = sphi 0, %s23
    %s24 = sphi 0, %s21
    %s25 = sphi 0, %s24
    %s41 = sphi 0, %s25
    %s45 = sphi 0, %s45
    %s47 = sphi 0, %s45
    %s48 = sphi 0, %s47
    %s62 = sphi 0, %s48
    %s66 = sphi 0, %s66
    %s68 = sphi 0, %s66
    %s69 = sphi 0, %s68
    %s83 = sphi 0, %s69
    %s89 = sphi 0, %s91
    %s92 = sphi 0, %s89
    %s93 = sphi 0, %s92
    %s109 = sphi 0, %s93
    %s115 = sphi 0, %s117
    %s118 = sphi 0, %s115
    %s119 = sphi 0, %s118
    %s135 = sphi 0, %s119
    %s141 = sphi 0, %s143
    %s144 = sphi 0, %s141
    %s145 = sphi 0, %s144
    %s161 = sphi 0, %s145
  $region4: #{phase1.31} parent=0 // loop_header_branch
    %14 = sbr.rel (%p12) target = $region8
  $region5: #{phase1.31} parent=0 // loop_body
    %s16 = ssub.s32 %s11, 1
    %s17 = ssub.s32 %s11, 2
    %s18 = sadd.s32 %s11, 1
    %s19 = ssub.s32 %s11, %s18
    %p20 = scmp.eq.s32.totalorder %s19, 0
    %s22 = sadd.s32 %s21, 1
    %s23 = scalar_select %p20, %s21, %s22
    %p26 = pneg %p20
    %p27 = scmp.eq.s32.totalorder %s11, 1
    %p28 = por %p26, %p27
    %p29 = scmp.ne.s32.totalorder %s21, %s24
    %p30 = scmp.eq.s32.totalorder %s11, 0
    %p31 = por %p29, %p30
    %p32 = scmp.ne.s32.totalorder %s21, %s24
    %p33 = scmp.eq.s32.totalorder %s16, 1
    %p34 = por %p32, %p33
    %p35 = scmp.ne.s32.totalorder %s24, %s25
    %p36 = scmp.eq.s32.totalorder %s16, 0
    %p37 = por %p35, %p36
    %p38 = scmp.ne.s32.totalorder %s24, %s25
    %p39 = scmp.eq.s32.totalorder %s17, 1
    %p40 = por %p38, %p39
    %p42 = scmp.ne.s32.totalorder %s25, %s41
    %p43 = scmp.eq.s32.totalorder %s17, 0
    %p44 = por %p42, %p43
    %s46 = sadd.s32 %s45, 1
    %p49 = scmp.eq.s32.totalorder %s11, 1
    %p50 = scmp.ne.s32.totalorder %s45, %s47
    %p51 = scmp.eq.s32.totalorder %s11, 0
    %p52 = por %p50, %p51
    %p53 = scmp.ne.s32.totalorder %s45, %s47
    %p54 = scmp.eq.s32.totalorder %s16, 1
    %p55 = por %p53, %p54
    %p56 = scmp.ne.s32.totalorder %s47, %s48
    %p57 = scmp.eq.s32.totalorder %s16, 0
    %p58 = por %p56, %p57
    %p59 = scmp.ne.s32.totalorder %s47, %s48
    %p60 = scmp.eq.s32.totalorder %s17, 1
    %p61 = por %p59, %p60
    %p63 = scmp.ne.s32.totalorder %s48, %s62
    %p64 = scmp.eq.s32.totalorder %s17, 0
    %p65 = por %p63, %p64
    %s67 = sadd.s32 %s66, 1
    %p70 = scmp.eq.s32.totalorder %s11, 1
    %p71 = scmp.ne.s32.totalorder %s66, %s68
    %p72 = scmp.eq.s32.totalorder %s11, 0
    %p73 = por %p71, %p72
    %p74 = scmp.ne.s32.totalorder %s66, %s68
    %p75 = scmp.eq.s32.totalorder %s16, 1
    %p76 = por %p74, %p75
    %p77 = scmp.ne.s32.totalorder %s68, %s69
    %p78 = scmp.eq.s32.totalorder %s16, 0
    %p79 = por %p77, %p78
    %p80 = scmp.ne.s32.totalorder %s68, %s69
    %p81 = scmp.eq.s32.totalorder %s17, 1
    %p82 = por %p80, %p81
    %p84 = scmp.ne.s32.totalorder %s69, %s83
    %p85 = scmp.eq.s32.totalorder %s17, 0
    %p86 = por %p84, %p85
    %s87 = ssub.s32 %s11, %s18
    %p88 = scmp.eq.s32.totalorder %s87, 0
    %s90 = sadd.s32 %s89, 1
    %s91 = scalar_select %p88, %s89, %s90
    %p94 = pneg %p88
    %p95 = scmp.eq.s32.totalorder %s11, 1
    %p96 = por %p94, %p95
    %p97 = scmp.ne.s32.totalorder %s89, %s92
    %p98 = scmp.eq.s32.totalorder %s11, 0
    %p99 = por %p97, %p98
    %p100 = scmp.ne.s32.totalorder %s89, %s92
    %p101 = scmp.eq.s32.totalorder %s16, 1
    %p102 = por %p100, %p101
    %p103 = scmp.ne.s32.totalorder %s92, %s93
    %p104 = scmp.eq.s32.totalorder %s16, 0
    %p105 = por %p103, %p104
    %p106 = scmp.ne.s32.totalorder %s92, %s93
    %p107 = scmp.eq.s32.totalorder %s17, 1
    %p108 = por %p106, %p107
    %p110 = scmp.ne.s32.totalorder %s93, %s109
    %p111 = scmp.eq.s32.totalorder %s17, 0
    %p112 = por %p110, %p111
    %s113 = ssub.s32 %s11, %s18
    %p114 = scmp.eq.s32.totalorder %s113, 0
    %s116 = sadd.s32 %s115, 1
    %s117 = scalar_select %p114, %s115, %s116
    %p120 = pneg %p114
    %p121 = scmp.eq.s32.totalorder %s11, 1
    %p122 = por %p120, %p121
    %p123 = scmp.ne.s32.totalorder %s115, %s118
    %p124 = scmp.eq.s32.totalorder %s11, 0
    %p125 = por %p123, %p124
    %p126 = scmp.ne.s32.totalorder %s115, %s118
    %p127 = scmp.eq.s32.totalorder %s16, 1
    %p128 = por %p126, %p127
    %p129 = scmp.ne.s32.totalorder %s118, %s119
    %p130 = scmp.eq.s32.totalorder %s16, 0
    %p131 = por %p129, %p130
    %p132 = scmp.ne.s32.totalorder %s118, %s119
    %p133 = scmp.eq.s32.totalorder %s17, 1
    %p134 = por %p132, %p133
    %p136 = scmp.ne.s32.totalorder %s119, %s135
    %p137 = scmp.eq.s32.totalorder %s17, 0
    %p138 = por %p136, %p137
    %s139 = ssub.s32 %s11, %s18
    %p140 = scmp.eq.s32.totalorder %s139, 0
    %s142 = sadd.s32 %s141, 1
    %s143 = scalar_select %p140, %s141, %s142
    %p146 = pneg %p140
    %p147 = scmp.eq.s32.totalorder %s11, 1
    %p148 = por %p146, %p147
    %p149 = scmp.ne.s32.totalorder %s141, %s144
    %p150 = scmp.eq.s32.totalorder %s11, 0
    %p151 = por %p149, %p150
    %p152 = scmp.ne.s32.totalorder %s141, %s144
    %p153 = scmp.eq.s32.totalorder %s16, 1
    %p154 = por %p152, %p153
    %p155 = scmp.ne.s32.totalorder %s144, %s145
    %p156 = scmp.eq.s32.totalorder %s16, 0
    %p157 = por %p155, %p156
    %p158 = scmp.ne.s32.totalorder %s144, %s145
    %p159 = scmp.eq.s32.totalorder %s17, 1
    %p160 = por %p158, %p159
    %p162 = scmp.ne.s32.totalorder %s145, %s161
    %p163 = scmp.eq.s32.totalorder %s17, 0
    %p164 = por %p162, %p163
    %p165 = scmp.le.s32.totalorder 1, %s11
    %p166 = scmp.lt.s32.totalorder %s11, 3
    %p167 = pnand %p165, %p166
    %p168 = pneg %p167
    // Predicated region
    $region9: #{phase1.31} parent=5 // pred_check
      _
    $region10: #{phase1.31} parent=5 // pred_check_branch
      %170 = sbr.rel (%p167) target = $region12
    $region11: #{phase1.31} parent=5 // pred_region
      %s171 = ssub.s32 %s11, 1
      // Predicated region
      $region13: #{phase1.31} parent=11 // pred_check
        %p172 = pneg %p58
      $region14: #{phase1.31} parent=11 // pred_check_branch
        %174 = sbr.rel (%p172) target = $region16
      $region15: #{phase1.31} parent=11 // pred_region
        _
      $region16: #{phase1.31} parent=11 // pred_fallthru
        _
      // Predicated region
      $region17: #{phase1.31} parent=11 // pred_check
        %p175 = pneg %p79
      $region18: #{phase1.31} parent=11 // pred_check_branch
        %177 = sbr.rel (%p175) target = $region20
      $region19: #{phase1.31} parent=11 // pred_region
        _
      $region20: #{phase1.31} parent=11 // pred_fallthru
        _
    $region12: #{phase1.31} parent=5 // pred_fallthru
      _
    %p178 = scmp.lt.s32.totalorder %s11, 2
    // Predicated region
    $region21: #{phase1.31} parent=5 // pred_check
      %p179 = pneg %p178
    $region22: #{phase1.31} parent=5 // pred_check_branch
      %181 = sbr.rel (%p179) target = $region24
    $region23: #{phase1.31} parent=5 // pred_region
      // Predicated region
      $region25: #{phase1.31} parent=23 // pred_check
        %p182 = pneg %p31
      $region26: #{phase1.31} parent=23 // pred_check_branch
        %184 = sbr.rel (%p182) target = $region28
      $region27: #{phase1.31} parent=23 // pred_region
        %p185 = scmp.lt.s32.totalorder %s11, 1
        %s186 = scalar_select %p185, %s11, 1
        %s187 = smul.addr %s186, 2
        %s188 = smul.addr %s187, 8
        %s189 = scalar_lea.vmem %s0, %s188
      $region28: #{phase1.31} parent=23 // pred_fallthru
        _
      // Predicated region
      $region29: #{phase1.31} parent=23 // pred_check
        %p190 = pneg %p99
      $region30: #{phase1.31} parent=23 // pred_check_branch
        %192 = sbr.rel (%p190) target = $region32
      $region31: #{phase1.31} parent=23 // pred_region
        %p193 = scmp.lt.s32.totalorder %s11, 1
        %s194 = scalar_select %p193, %s11, 1
        %s195 = smul.addr %s194, 4
        %s196 = scalar_lea.vmem %s3, %s195
      $region32: #{phase1.31} parent=23 // pred_fallthru
        _
      // Predicated region
      $region33: #{phase1.31} parent=23 // pred_check
        %p197 = pneg %p125
      $region34: #{phase1.31} parent=23 // pred_check_branch
        %199 = sbr.rel (%p197) target = $region36
      $region35: #{phase1.31} parent=23 // pred_region
        %p200 = scmp.lt.s32.totalorder %s11, 1
        %s201 = scalar_select %p200, %s11, 1
        %s202 = scalar_lea.vmem %s4, %s201
      $region36: #{phase1.31} parent=23 // pred_fallthru
        _
    $region24: #{phase1.31} parent=5 // pred_fallthru
      _
    %p203 = scmp.le.s32.totalorder 1, %s11
    %p204 = scmp.lt.s32.totalorder %s11, 3
    %p205 = pnand %p203, %p204
    %p206 = pneg %p205
    // Predicated region
    $region37: #{phase1.31} parent=5 // pred_check
      _
    $region38: #{phase1.31} parent=5 // pred_check_branch
      %208 = sbr.rel (%p205) target = $region40
    $region39: #{phase1.31} parent=5 // pred_region
      %s209 = ssub.s32 %s11, 1
      %p210 = scmp.lt.s32.totalorder %s16, 1
      %s211 = scalar_select %p210, %s16, 1
      %s212 = smul.addr %s211, 2
      %s213 = smul.addr %s212, 8
      %s214 = scalar_lea.vmem %s0, %s213
      %p215 = pneg %p37
      %p216 = pneg %p34
      %p217 = pneg %p58
      %p218 = pneg %p55
      %p219 = pneg %p79
      %p220 = pneg %p76
      %p221 = scmp.lt.s32.totalorder %s16, 1
      %s222 = scalar_select %p221, %s16, 1
      %s223 = smul.addr %s222, 4
      %s224 = scalar_lea.vmem %s3, %s223
      %p225 = pneg %p105
      %p226 = pneg %p102
      %p227 = scmp.lt.s32.totalorder %s16, 1
      %s228 = scalar_select %p227, %s16, 1
      %s229 = scalar_lea.vmem %s4, %s228
      %p230 = pneg %p131
      %p231 = pneg %p128
      %p232 = pneg %p157
      %p233 = pneg %p154
      %p234 = scmp.lt.s32.totalorder %s16, 1
      %s235 = scalar_select %p234, %s16, 1
      %s236 = smul.addr %s235, 4
      %s237 = scalar_lea.vmem %s5, %s236
      %p238 = scmp.lt.s32.totalorder %s16, 1
      %s239 = scalar_select %p238, %s16, 1
      %s240 = smul.addr %s239, 2
      %s241 = smul.addr %s240, 8
      %s242 = scalar_lea.vmem %s0, %s241
      %p243 = scmp.lt.s32.totalorder %s16, 1
      %s244 = scalar_select %p243, %s16, 1
      %s245 = smul.addr %s244, 4
      %s246 = scalar_lea.vmem %s3, %s245
      %p247 = scmp.lt.s32.totalorder %s16, 1
      %s248 = scalar_select %p247, %s16, 1
      %s249 = scalar_lea.vmem %s4, %s248
      %p250 = scmp.lt.s32.totalorder %s16, 1
      %s251 = scalar_select %p250, %s16, 1
      %s252 = smul.addr %s251, 4
      %s253 = scalar_lea.vmem %s5, %s252
      %v255 = vld [vmem:[%s242] sm:$0xff]
      %v256 = vld [vmem:[%s242 + $0x8] sm:$0xff]
      %v257 = vlaneseq
      %v258 = vand.u32 %v257, 127
      %vm259 = vcmp.lt.s32.totalorder %v258, 16
      %v260 = vsel %vm259, %v255, 0.0
      %v261 = vsel %vm259, %v256, 0.0
      %v262 = vpack.c.bf16 %v261, %v260
      %v263 = vld [vmem:[%s1] sm:$0x3]
      %v264 = vld [vmem:[%s2] sm:$0xf]
      %266 = vset.pattern.permute.xlu0 0
      %267 = vperm.xlu0 %266, %v264
      %v268 = vpop.permute.xlu0 %267
      %vm270 = vcmask 130048
      %v272 = vsel %vm270, %v263, 0
      %274 = vmatprep.subr.bf16.mxu0 0
      %275 = vmatpush1.bf16.msra.mxu0 0
      %276 = vmatprep.subr.bf16.mxu0 0
      %277 = vmatpush1.bf16.msra.mxu0 0
      %278 = vmatprep.subr.bf16.mxu0 0
      %279 = vmatpush1.bf16.msra.mxu0 0
      %280 = vmatprep.subr.bf16.mxu0 0
      %281 = vmatpush1.bf16.msra.mxu0 0
      %282 = vmatprep.subr.bf16.mxu0 0
      %283 = vmatpush1.bf16.msra.mxu0 0
      %284 = vmatprep.subr.bf16.mxu0 0
      %285 = vmatpush1.bf16.msra.mxu0 0
      %286 = vmatprep.subr.bf16.mxu0 0
      %287 = vmatpush1.bf16.msra.mxu0 0
      %288 = vmatprep.subr.bf16.mxu0 0
      %289 = vmatpush1.bf16.msra.mxu0 %v262
      %290 = vmatprep.subr.bf16.mxu0 0
      %291 = vmatpush2.bf16.msra.mxu0 0
      %292 = vmatprep.subr.bf16.mxu0 0
      %293 = vmatpush2.bf16.msra.mxu0 0
      %294 = vmatprep.subr.bf16.mxu0 0
      %295 = vmatpush2.bf16.msra.mxu0 0
      %296 = vmatprep.subr.bf16.mxu0 0
      %297 = vmatpush2.bf16.msra.mxu0 0
      %298 = vmatprep.subr.bf16.mxu0 0
      %299 = vmatpush2.bf16.msra.mxu0 0
      %300 = vmatprep.subr.bf16.mxu0 0
      %301 = vmatpush2.bf16.msra.mxu0 0
      %302 = vmatprep.subr.bf16.mxu0 0
      %303 = vmatpush2.bf16.msra.mxu0 0
      %304 = vmatprep.subr.bf16.mxu0 0
      %305 = vmatpush2.bf16.msra.mxu0 0
      %306 = vmatprep.mubr.bf16.mxu0 0
      %307 = vmatmul.mubr.bf16.gmra.mxu0 %v272
      %v308 = vpop.f32.mrf.mxu0
      %v309 = vadd.f32 %v268, %v308
      %v310 = vpop.f32.mrf.mxu0
      %v311 = vpop.f32.mrf.mxu0
      %v312 = vpop.f32.mrf.mxu0
      %313 = vdwg.mxu0
      %v314 = vld [vmem:[%s246] sm:$0xf]
      %v315 = vadd.f32 %v309, %v314
      %v316 = vld [vmem:[%s249] sm:$0x1]
      %v318 = vlaneseq
      %v319 = vshrl.u32 %v318, 7
      %v320 = vsub.s32 0, %v319
      %v321 = vrot.slane %v316, %v320
      %v323 = vmul.f32 %v315, %v321
      %324 = vst [vmem:[%s253] sm:$0xf] %v323
      %p325 = scmp.lt.s32.totalorder %s16, 1
      %s326 = scalar_select %p325, %s16, 1
      %s327 = smul.addr %s326, 4
      %s328 = scalar_lea.vmem %s5, %s327
      // Predicated region
      $region41: #{phase1.31} parent=39 // pred_check
        %p329 = pneg %p154
      $region42: #{phase1.31} parent=39 // pred_check_branch
        %331 = sbr.rel (%p329) target = $region44
      $region43: #{phase1.31} parent=39 // pred_region
        _
      $region44: #{phase1.31} parent=39 // pred_fallthru
        _
    $region40: #{phase1.31} parent=5 // pred_fallthru
      _
    %p332 = scmp.le.s32.totalorder 2, %s11
    // Predicated region
    $region45: #{phase1.31} parent=5 // pred_check
      %p333 = pneg %p332
    $region46: #{phase1.31} parent=5 // pred_check_branch
      %335 = sbr.rel (%p333) target = $region48
    $region47: #{phase1.31} parent=5 // pred_region
      %s336 = ssub.s32 %s11, 2
      // Predicated region
      $region49: #{phase1.31} parent=47 // pred_check
        %p337 = pneg %p160
      $region50: #{phase1.31} parent=47 // pred_check_branch
        %339 = sbr.rel (%p337) target = $region52
      $region51: #{phase1.31} parent=47 // pred_region
        %p340 = scmp.lt.s32.totalorder %s17, 1
        %s341 = scalar_select %p340, %s17, 1
        %s342 = smul.addr %s341, 4
        %s343 = scalar_lea.vmem %s5, %s342
      $region52: #{phase1.31} parent=47 // pred_fallthru
        _
    $region48: #{phase1.31} parent=5 // pred_fallthru
      _
  $region6: #{phase1.31} parent=0 // loop_footer
    %s15 = sadd.s32 1, %s11
  $region7: #{phase1.31} parent=0 // loop_footer_branch
    %10 = sbr.rel target = $region3
  $region8: #{phase1.31} parent=0 // loop_exit
    _

// kernel: phase1.41
$region0: #{phase1.41}
  #allocation0 [shape = 'u32[]', space=smem, size = 0x4, offset = 0x4, fixed_abs, tag = 'smem constant byte address 0x4 - core index']
  #allocation1 [shape = 'u32[144,128]{1,0:T(1,128)}', space=vmem, size = 0x12000, scoped, tag = 'internal scratch']
  %s0 = inlined_call_operand.vmem [shape: f32[2,8,128], index: 0, kind: input, shape index: {}]
  %s1 = inlined_call_operand.vmem [shape: f32[2,8,128], index: 1, kind: input, shape index: {}]
  %s2 = inlined_call_operand.vmem [shape: f32[2,8,128], index: 2, kind: input, shape index: {}]
  %s3 = inlined_call_operand.hbm [shape: f32[2,128,128], index: 3, kind: output, shape index: {}]
  %s4 = sld [smem:[#allocation0]]
  $region45: #{phase1.41} parent=0
    _
  %s6 = ssub.s32 1, %s4
  %s7 = scalar_select 0, %s6, %s4
  $region1: #{phase1.41} parent=0
    #allocation2 [shape = 'u8[131072]{0}', space=vmem, size = 0x20000, scoped, tag = 'output window, operand 0']
    #allocation3 [shape = 's32[2]{0}', space=sflag, size = 0x8, scoped, tag = 'scoped memory for phase1.41']
    %8 = vsyncpa [#allocation3], 0
    %s9 = scalar_lea.sflag [#allocation3], 1
    %10 = vsyncpa %s9, 0
    loop: start=0, step=1, limit=4
    $region2: #{phase1.41} parent=1 // loop_pre_header
      _
    $region3: #{phase1.41} parent=1 // loop_header
      %s12 = sphi 0, %s16
      %p13 = scmp.ge.s32.totalorder %s12, 4
      %s22 = sphi 0, %s24
      %s25 = sphi 0, %s22
      %s26 = sphi 0, %s25
      %s42 = sphi 0, %s26
      %s48 = sphi 0, %s50
      %s51 = sphi 0, %s48
      %s52 = sphi 0, %s51
      %s68 = sphi 0, %s52
      %s74 = sphi 0, %s76
      %s77 = sphi 0, %s74
      %s78 = sphi 0, %s77
      %s94 = sphi 0, %s78
      %s100 = sphi 0, %s102
      %s103 = sphi 0, %s100
      %s104 = sphi 0, %s103
      %s120 = sphi 0, %s104
    $region4: #{phase1.41} parent=1 // loop_header_branch
      %15 = sbr.rel (%p13) target = $region8
    $region5: #{phase1.41} parent=1 // loop_body
      %s17 = ssub.s32 %s12, 1
      %s18 = ssub.s32 %s12, 2
      %s19 = sadd.s32 %s12, 1
      %s20 = ssub.s32 %s12, %s19
      %p21 = scmp.eq.s32.totalorder %s20, 0
      %s23 = sadd.s32 %s22, 1
      %s24 = scalar_select %p21, %s22, %s23
      %p27 = pneg %p21
      %p28 = scmp.eq.s32.totalorder %s12, 1
      %p29 = por %p27, %p28
      %p30 = scmp.ne.s32.totalorder %s22, %s25
      %p31 = scmp.eq.s32.totalorder %s12, 0
      %p32 = por %p30, %p31
      %p33 = scmp.ne.s32.totalorder %s22, %s25
      %p34 = scmp.eq.s32.totalorder %s17, 1
      %p35 = por %p33, %p34
      %p36 = scmp.ne.s32.totalorder %s25, %s26
      %p37 = scmp.eq.s32.totalorder %s17, 0
      %p38 = por %p36, %p37
      %p39 = scmp.ne.s32.totalorder %s25, %s26
      %p40 = scmp.eq.s32.totalorder %s18, 1
      %p41 = por %p39, %p40
      %p43 = scmp.ne.s32.totalorder %s26, %s42
      %p44 = scmp.eq.s32.totalorder %s18, 0
      %p45 = por %p43, %p44
      %s46 = ssub.s32 %s12, %s19
      %p47 = scmp.eq.s32.totalorder %s46, 0
      %s49 = sadd.s32 %s48, 1
      %s50 = scalar_select %p47, %s48, %s49
      %p53 = pneg %p47
      %p54 = scmp.eq.s32.totalorder %s12, 1
      %p55 = por %p53, %p54
      %p56 = scmp.ne.s32.totalorder %s48, %s51
      %p57 = scmp.eq.s32.totalorder %s12, 0
      %p58 = por %p56, %p57
      %p59 = scmp.ne.s32.totalorder %s48, %s51
      %p60 = scmp.eq.s32.totalorder %s17, 1
      %p61 = por %p59, %p60
      %p62 = scmp.ne.s32.totalorder %s51, %s52
      %p63 = scmp.eq.s32.totalorder %s17, 0
      %p64 = por %p62, %p63
      %p65 = scmp.ne.s32.totalorder %s51, %s52
      %p66 = scmp.eq.s32.totalorder %s18, 1
      %p67 = por %p65, %p66
      %p69 = scmp.ne.s32.totalorder %s52, %s68
      %p70 = scmp.eq.s32.totalorder %s18, 0
      %p71 = por %p69, %p70
      %s72 = ssub.s32 %s12, %s19
      %p73 = scmp.eq.s32.totalorder %s72, 0
      %s75 = sadd.s32 %s74, 1
      %s76 = scalar_select %p73, %s74, %s75
      %p79 = pneg %p73
      %p80 = scmp.eq.s32.totalorder %s12, 1
      %p81 = por %p79, %p80
      %p82 = scmp.ne.s32.totalorder %s74, %s77
      %p83 = scmp.eq.s32.totalorder %s12, 0
      %p84 = por %p82, %p83
      %p85 = scmp.ne.s32.totalorder %s74, %s77
      %p86 = scmp.eq.s32.totalorder %s17, 1
      %p87 = por %p85, %p86
      %p88 = scmp.ne.s32.totalorder %s77, %s78
      %p89 = scmp.eq.s32.totalorder %s17, 0
      %p90 = por %p88, %p89
      %p91 = scmp.ne.s32.totalorder %s77, %s78
      %p92 = scmp.eq.s32.totalorder %s18, 1
      %p93 = por %p91, %p92
      %p95 = scmp.ne.s32.totalorder %s78, %s94
      %p96 = scmp.eq.s32.totalorder %s18, 0
      %p97 = por %p95, %p96
      %s98 = ssub.s32 %s12, %s19
      %p99 = scmp.eq.s32.totalorder %s98, 0
      %s101 = sadd.s32 %s100, 1
      %s102 = scalar_select %p99, %s100, %s101
      %p105 = pneg %p99
      %p106 = scmp.eq.s32.totalorder %s12, 1
      %p107 = por %p105, %p106
      %p108 = scmp.ne.s32.totalorder %s100, %s103
      %p109 = scmp.eq.s32.totalorder %s12, 0
      %p110 = por %p108, %p109
      %p111 = scmp.ne.s32.totalorder %s100, %s103
      %p112 = scmp.eq.s32.totalorder %s17, 1
      %p113 = por %p111, %p112
      %p114 = scmp.ne.s32.totalorder %s103, %s104
      %p115 = scmp.eq.s32.totalorder %s17, 0
      %p116 = por %p114, %p115
      %p117 = scmp.ne.s32.totalorder %s103, %s104
      %p118 = scmp.eq.s32.totalorder %s18, 1
      %p119 = por %p117, %p118
      %p121 = scmp.ne.s32.totalorder %s104, %s120
      %p122 = scmp.eq.s32.totalorder %s18, 0
      %p123 = por %p121, %p122
      %p124 = scmp.le.s32.totalorder 1, %s12
      %p125 = scmp.lt.s32.totalorder %s12, 3
      %p126 = pnand %p124, %p125
      %p127 = pneg %p126
      // Predicated region
      $region9: #{phase1.41} parent=5 // pred_check
        _
      $region10: #{phase1.41} parent=5 // pred_check_branch
        %129 = sbr.rel (%p126) target = $region12
      $region11: #{phase1.41} parent=5 // pred_region
        %s130 = ssub.s32 %s12, 1
      $region12: #{phase1.41} parent=5 // pred_fallthru
        _
      %p131 = scmp.lt.s32.totalorder %s12, 2
      // Predicated region
      $region13: #{phase1.41} parent=5 // pred_check
        %p132 = pneg %p131
      $region14: #{phase1.41} parent=5 // pred_check_branch
        %134 = sbr.rel (%p132) target = $region16
      $region15: #{phase1.41} parent=5 // pred_region
        // Predicated region
        $region17: #{phase1.41} parent=15 // pred_check
          %p135 = pneg %p32
        $region18: #{phase1.41} parent=15 // pred_check_branch
          %137 = sbr.rel (%p135) target = $region20
        $region19: #{phase1.41} parent=15 // pred_region
          %p138 = scmp.lt.s32.totalorder %s12, 1
          %s139 = scalar_select %p138, %s12, 1
          %s140 = smul.addr %s139, 8
          %s141 = scalar_lea.vmem %s0, %s140
        $region20: #{phase1.41} parent=15 // pred_fallthru
          _
        // Predicated region
        $region21: #{phase1.41} parent=15 // pred_check
          %p142 = pneg %p58
        $region22: #{phase1.41} parent=15 // pred_check_branch
          %144 = sbr.rel (%p142) target = $region24
        $region23: #{phase1.41} parent=15 // pred_region
          %p145 = scmp.lt.s32.totalorder %s12, 1
          %s146 = scalar_select %p145, %s12, 1
          %s147 = smul.addr %s146, 8
          %s148 = scalar_lea.vmem %s1, %s147
        $region24: #{phase1.41} parent=15 // pred_fallthru
          _
        // Predicated region
        $region25: #{phase1.41} parent=15 // pred_check
          %p149 = pneg %p84
        $region26: #{phase1.41} parent=15 // pred_check_branch
          %151 = sbr.rel (%p149) target = $region28
        $region27: #{phase1.41} parent=15 // pred_region
          %p152 = scmp.lt.s32.totalorder %s12, 1
          %s153 = scalar_select %p152, %s12, 1
          %s154 = smul.addr %s153, 8
          %s155 = scalar_lea.vmem %s2, %s154
        $region28: #{phase1.41} parent=15 // pred_fallthru
          _
      $region16: #{phase1.41} parent=5 // pred_fallthru
        _
      %p156 = scmp.le.s32.totalorder 1, %s12
      %p157 = scmp.lt.s32.totalorder %s12, 3
      %p158 = pnand %p156, %p157
      %p159 = pneg %p158
      // Predicated region
      $region29: #{phase1.41} parent=5 // pred_check
        _
      $region30: #{phase1.41} parent=5 // pred_check_branch
        %161 = sbr.rel (%p158) target = $region32
      $region31: #{phase1.41} parent=5 // pred_region
        %s162 = ssub.s32 %s12, 1
        %p163 = scmp.lt.s32.totalorder %s17, 1
        %s164 = scalar_select %p163, %s17, 1
        %s165 = smul.addr %s164, 8
        %s166 = scalar_lea.vmem %s0, %s165
        %p167 = pneg %p38
        %p168 = pneg %p35
        %p169 = scmp.lt.s32.totalorder %s17, 1
        %s170 = scalar_select %p169, %s17, 1
        %s171 = smul.addr %s170, 8
        %s172 = scalar_lea.vmem %s1, %s171
        %p173 = pneg %p64
        %p174 = pneg %p61
        %p175 = scmp.lt.s32.totalorder %s17, 1
        %s176 = scalar_select %p175, %s17, 1
        %s177 = smul.addr %s176, 8
        %s178 = scalar_lea.vmem %s2, %s177
        %p179 = pneg %p90
        %p180 = pneg %p87
        %p181 = pneg %p116
        %p182 = pneg %p113
        %s183 = sand.u32 %s103, 1
        %s184 = scalar_lea.sflag [#allocation3], %s183
        %s185 = sand.u32 %s103, 1
        %s186 = smul.addr %s185, 128
        %s187 = scalar_lea.vmem [#allocation2], %s186
        %p188 = scmp.lt.s32.totalorder %s17, 1
        %s189 = scalar_select %p188, %s17, 1
        %s190 = smul.addr %s189, 8
        %s191 = scalar_lea.vmem %s0, %s190
        %p192 = scmp.lt.s32.totalorder %s17, 1
        %s193 = scalar_select %p192, %s17, 1
        %s194 = smul.addr %s193, 8
        %s195 = scalar_lea.vmem %s1, %s194
        %p196 = scmp.lt.s32.totalorder %s17, 1
        %s197 = scalar_select %p196, %s17, 1
        %s198 = smul.addr %s197, 8
        %s199 = scalar_lea.vmem %s2, %s198
        %v200 = vld [vmem:[%s191] sm:$0xff]
        %v201 = vld [vmem:[%s195] sm:$0xff]
        %v202 = vld [vmem:[%s199] sm:$0xff]
        %v203 = vmul.f32 %v201, -2.0
        %v204 = vmul.f32 %v203, 1.442695
        %v205 = vpow.pop %v204
        %v206 = vsub.f32 -0.9189385, %v201
        %v207 = vrot.slane %v206, 4
        %v208 = vadd.f32 %v206, %v207
        %v209 = vrot.slane %v208, 2
        %v210 = vadd.f32 %v208, %v209
        %v211 = vrot.slane %v210, 1
        %v212 = vadd.f32 %v210, %v211
        %v213 = vmul.f32 %v200, -0.5
        %v214 = vmul.f32 %v213, %v200
        %v215 = vmul.f32 %v214, %v205
        %v216 = vrot.slane %v215, 4
        %v217 = vadd.f32 %v215, %v216
        %v218 = vrot.slane %v217, 2
        %v219 = vadd.f32 %v217, %v218
        %v220 = vrot.slane %v219, 1
        %v221 = vadd.f32 %v219, %v220
        %v222 = vmul.f32 %v202, -0.5
        %v223 = vmul.f32 %v222, %v202
        %224 = vxpose.xlu0.b32.start [1/16] %v223, 128
        %225 = vxpose.xlu0.b32.cont [2/16] 0.0, 128
        %226 = vxpose.xlu0.b32.cont [3/16] 0.0, 128
        %227 = vxpose.xlu0.b32.cont [4/16] 0.0, 128
        %228 = vxpose.xlu0.b32.cont [5/16] 0.0, 128
        %229 = vxpose.xlu0.b32.cont [6/16] 0.0, 128
        %230 = vxpose.xlu0.b32.cont [7/16] 0.0, 128
        %231 = vxpose.xlu0.b32.cont [8/16] 0.0, 128
        %232 = vxpose.xlu0.b32.cont [9/16] 0.0, 128
        %233 = vxpose.xlu0.b32.cont [10/16] 0.0, 128
        %234 = vxpose.xlu0.b32.cont [11/16] 0.0, 128
        %235 = vxpose.xlu0.b32.cont [12/16] 0.0, 128
        %236 = vxpose.xlu0.b32.cont [13/16] 0.0, 128
        %237 = vxpose.xlu0.b32.cont [14/16] 0.0, 128
        %238 = vxpose.xlu0.b32.cont [15/16] 0.0, 128
        %239 = vxpose.xlu0.b32.end [16/16] 0.0, 128
        %v240 = vpop.trf.xlu0
        %v241 = vpop.trf.xlu0
        %v242 = vpop.trf.xlu0
        %v243 = vpop.trf.xlu0
        %v244 = vpop.trf.xlu0
        %v245 = vpop.trf.xlu0
        %v246 = vpop.trf.xlu0
        %v247 = vpop.trf.xlu0
        %v248 = vpop.trf.xlu0
        %v249 = vpop.trf.xlu0
        %v250 = vpop.trf.xlu0
        %v251 = vpop.trf.xlu0
        %v252 = vpop.trf.xlu0
        %v253 = vpop.trf.xlu0
        %v254 = vpop.trf.xlu0
        %v255 = vpop.trf.xlu0
        %vm256 = vcmask 64512
        %v258 = vsel %vm256, %v240, 0
        %v261 = vsel %vm256, %v241, 0
        %v264 = vsel %vm256, %v242, 0
        %v267 = vsel %vm256, %v243, 0
        %v270 = vsel %vm256, %v244, 0
        %v273 = vsel %vm256, %v245, 0
        %v276 = vsel %vm256, %v246, 0
        %v279 = vsel %vm256, %v247, 0
        %v282 = vsel %vm256, %v248, 0
        %v285 = vsel %vm256, %v249, 0
        %v288 = vsel %vm256, %v250, 0
        %v291 = vsel %vm256, %v251, 0
        %v294 = vsel %vm256, %v252, 0
        %v297 = vsel %vm256, %v253, 0
        %v300 = vsel %vm256, %v254, 0
        %v303 = vsel %vm256, %v255, 0
        %305 = vmatprep.subr.mxu0 0.0
        %306 = vmatpush1.msra.mxu0 0.0
        %307 = vmatprep.subr.mxu0 0.0
        %308 = vmatpush1.msra.mxu0 0.0
        %309 = vmatprep.subr.mxu0 0.0
        %310 = vmatpush1.msra.mxu0 0.0
        %311 = vmatprep.subr.mxu0 0.0
        %312 = vmatpush1.msra.mxu0 0.0
        %313 = vmatprep.subr.mxu0 0.0
        %314 = vmatpush1.msra.mxu0 0.0
        %315 = vmatprep.subr.mxu0 0.0
        %316 = vmatpush1.msra.mxu0 0.0
        %317 = vmatprep.subr.mxu0 0.0
        %318 = vmatpush1.msra.mxu0 0.0
        %319 = vmatprep.subr.mxu0 0.0
        %320 = vmatpush1.msra.mxu0 0.0
        %321 = vmatprep.subr.mxu0 0.0
        %322 = vmatpush1.msra.mxu0 0.0
        %323 = vmatprep.subr.mxu0 0.0
        %324 = vmatpush1.msra.mxu0 0.0
        %325 = vmatprep.subr.mxu0 0.0
        %326 = vmatpush1.msra.mxu0 0.0
        %327 = vmatprep.subr.mxu0 0.0
        %328 = vmatpush1.msra.mxu0 0.0
        %329 = vmatprep.subr.mxu0 0.0
        %330 = vmatpush1.msra.mxu0 0.0
        %331 = vmatprep.subr.mxu0 0.0
        %332 = vmatpush1.msra.mxu0 0.0
        %333 = vmatprep.subr.mxu0 0.0
        %334 = vmatpush1.msra.mxu0 0.0
        %335 = vmatprep.subr.mxu0 0.0
        %336 = vmatpush1.msra.mxu0 %v205
        %337 = vmatprep.subr.mxu0 0.0
        %338 = vmatpush2.msra.mxu0 0.0
        %339 = vmatprep.subr.mxu0 0.0
        %340 = vmatpush2.msra.mxu0 0.0
        %341 = vmatprep.subr.mxu0 0.0
        %342 = vmatpush2.msra.mxu0 0.0
        %343 = vmatprep.subr.mxu0 0.0
        %344 = vmatpush2.msra.mxu0 0.0
        %345 = vmatprep.subr.mxu0 0.0
        %346 = vmatpush2.msra.mxu0 0.0
        %347 = vmatprep.subr.mxu0 0.0
        %348 = vmatpush2.msra.mxu0 0.0
        %349 = vmatprep.subr.mxu0 0.0
        %350 = vmatpush2.msra.mxu0 0.0
        %351 = vmatprep.subr.mxu0 0.0
        %352 = vmatpush2.msra.mxu0 0.0
        %353 = vmatprep.subr.mxu0 0.0
        %354 = vmatpush2.msra.mxu0 0.0
        %355 = vmatprep.subr.mxu0 0.0
        %356 = vmatpush2.msra.mxu0 0.0
        %357 = vmatprep.subr.mxu0 0.0
        %358 = vmatpush2.msra.mxu0 0.0
        %359 = vmatprep.subr.mxu0 0.0
        %360 = vmatpush2.msra.mxu0 0.0
        %361 = vmatprep.subr.mxu0 0.0
        %362 = vmatpush2.msra.mxu0 0.0
        %363 = vmatprep.subr.mxu0 0.0
        %364 = vmatpush2.msra.mxu0 0.0
        %365 = vmatprep.subr.mxu0 0.0
        %366 = vmatpush2.msra.mxu0 0.0
        %367 = vmatprep.subr.mxu0 0.0
        %368 = vmatpush2.msra.mxu0 0.0
        %369 = vmatprep.mubr.f32.mxu0 0.0
        %370 = vmatmul.mubr.f32.gmra.mxu0 %v258
        %v371 = vpop.f32.mrf.mxu0
        %v372 = vadd.f32 0.0, %v371
        %v373 = vpop.f32.mrf.mxu0
        %374 = vmatprep.mubr.f32.mxu0 0.0
        %375 = vmatmul.mubr.f32.gmra.mxu0 %v261
        %v376 = vpop.f32.mrf.mxu0
        %v377 = vadd.f32 0.0, %v376
        %v378 = vpop.f32.mrf.mxu0
        %379 = vmatprep.mubr.f32.mxu0 0.0
        %380 = vmatmul.mubr.f32.gmra.mxu0 %v264
        %v381 = vpop.f32.mrf.mxu0
        %v382 = vadd.f32 0.0, %v381
        %v383 = vpop.f32.mrf.mxu0
        %384 = vmatprep.mubr.f32.mxu0 0.0
        %385 = vmatmul.mubr.f32.gmra.mxu0 %v267
        %v386 = vpop.f32.mrf.mxu0
        %v387 = vadd.f32 0.0, %v386
        %v388 = vpop.f32.mrf.mxu0
        %389 = vmatprep.mubr.f32.mxu0 0.0
        %390 = vmatmul.mubr.f32.gmra.mxu0 %v270
        %v391 = vpop.f32.mrf.mxu0
        %v392 = vadd.f32 0.0, %v391
        %v393 = vpop.f32.mrf.mxu0
        %394 = vmatprep.mubr.f32.mxu0 0.0
        %395 = vmatmul.mubr.f32.gmra.mxu0 %v273
        %v396 = vpop.f32.mrf.mxu0
        %v397 = vadd.f32 0.0, %v396
        %v398 = vpop.f32.mrf.mxu0
        %399 = vmatprep.mubr.f32.mxu0 0.0
        %400 = vmatmul.mubr.f32.gmra.mxu0 %v276
        %v401 = vpop.f32.mrf.mxu0
        %v402 = vadd.f32 0.0, %v401
        %v403 = vpop.f32.mrf.mxu0
        %404 = vmatprep.mubr.f32.mxu0 0.0
        %405 = vmatmul.mubr.f32.gmra.mxu0 %v279
        %v406 = vpop.f32.mrf.mxu0
        %v407 = vadd.f32 0.0, %v406
        %v408 = vpop.f32.mrf.mxu0
        %409 = vmatprep.mubr.f32.mxu0 0.0
        %410 = vmatmul.mubr.f32.gmra.mxu0 %v282
        %v411 = vpop.f32.mrf.mxu0
        %v412 = vadd.f32 0.0, %v411
        %v413 = vpop.f32.mrf.mxu0
        %414 = vmatprep.mubr.f32.mxu0 0.0
        %415 = vmatmul.mubr.f32.gmra.mxu0 %v285
        %v416 = vpop.f32.mrf.mxu0
        %v417 = vadd.f32 0.0, %v416
        %v418 = vpop.f32.mrf.mxu0
        %419 = vmatprep.mubr.f32.mxu0 0.0
        %420 = vmatmul.mubr.f32.gmra.mxu0 %v288
        %v421 = vpop.f32.mrf.mxu0
        %v422 = vadd.f32 0.0, %v421
        %v423 = vpop.f32.mrf.mxu0
        %424 = vmatprep.mubr.f32.mxu0 0.0
        %425 = vmatmul.mubr.f32.gmra.mxu0 %v291
        %v426 = vpop.f32.mrf.mxu0
        %v427 = vadd.f32 0.0, %v426
        %v428 = vpop.f32.mrf.mxu0
        %429 = vmatprep.mubr.f32.mxu0 0.0
        %430 = vmatmul.mubr.f32.gmra.mxu0 %v294
        %v431 = vpop.f32.mrf.mxu0
        %v432 = vadd.f32 0.0, %v431
        %v433 = vpop.f32.mrf.mxu0
        %434 = vmatprep.mubr.f32.mxu0 0.0
        %435 = vmatmul.mubr.f32.gmra.mxu0 %v297
        %v436 = vpop.f32.mrf.mxu0
        %v437 = vadd.f32 0.0, %v436
        %v438 = vpop.f32.mrf.mxu0
        %439 = vmatprep.mubr.f32.mxu0 0.0
        %440 = vmatmul.mubr.f32.gmra.mxu0 %v300
        %v441 = vpop.f32.mrf.mxu0
        %v442 = vadd.f32 0.0, %v441
        %v443 = vpop.f32.mrf.mxu0
        %444 = vmatprep.mubr.f32.mxu0 0.0
        %445 = vmatmul.mubr.f32.gmra.mxu0 %v303
        %v446 = vpop.f32.mrf.mxu0
        %v447 = vadd.f32 0.0, %v446
        %v448 = vpop.f32.mrf.mxu0
        %449 = vdwg.mxu0
        %v450 = vmul.f32 %v200, %v205
        %451 = vxpose.xlu0.b32.start [1/16] %v202, 128
        %452 = vxpose.xlu0.b32.cont [2/16] 0.0, 128
        %453 = vxpose.xlu0.b32.cont [3/16] 0.0, 128
        %454 = vxpose.xlu0.b32.cont [4/16] 0.0, 128
        %455 = vxpose.xlu0.b32.cont [5/16] 0.0, 128
        %456 = vxpose.xlu0.b32.cont [6/16] 0.0, 128
        %457 = vxpose.xlu0.b32.cont [7/16] 0.0, 128
        %458 = vxpose.xlu0.b32.cont [8/16] 0.0, 128
        %459 = vxpose.xlu0.b32.cont [9/16] 0.0, 128
        %460 = vxpose.xlu0.b32.cont [10/16] 0.0, 128
        %461 = vxpose.xlu0.b32.cont [11/16] 0.0, 128
        %462 = vxpose.xlu0.b32.cont [12/16] 0.0, 128
        %463 = vxpose.xlu0.b32.cont [13/16] 0.0, 128
        %464 = vxpose.xlu0.b32.cont [14/16] 0.0, 128
        %465 = vxpose.xlu0.b32.cont [15/16] 0.0, 128
        %466 = vxpose.xlu0.b32.end [16/16] 0.0, 128
        %v467 = vpop.trf.xlu0
        %v468 = vpop.trf.xlu0
        %v469 = vpop.trf.xlu0
        %v470 = vpop.trf.xlu0
        %v471 = vpop.trf.xlu0
        %v472 = vpop.trf.xlu0
        %v473 = vpop.trf.xlu0
        %v474 = vpop.trf.xlu0
        %v475 = vpop.trf.xlu0
        %v476 = vpop.trf.xlu0
        %v477 = vpop.trf.xlu0
        %v478 = vpop.trf.xlu0
        %v479 = vpop.trf.xlu0
        %v480 = vpop.trf.xlu0
        %v481 = vpop.trf.xlu0
        %v482 = vpop.trf.xlu0
        %v484 = vsel %vm256, %v467, 0
        %v487 = vsel %vm256, %v468, 0
        %v490 = vsel %vm256, %v469, 0
        %v493 = vsel %vm256, %v470, 0
        %v496 = vsel %vm256, %v471, 0
        %v499 = vsel %vm256, %v472, 0
        %v502 = vsel %vm256, %v473, 0
        %v505 = vsel %vm256, %v474, 0
        %v508 = vsel %vm256, %v475, 0
        %v511 = vsel %vm256, %v476, 0
        %v514 = vsel %vm256, %v477, 0
        %v517 = vsel %vm256, %v478, 0
        %v520 = vsel %vm256, %v479, 0
        %v523 = vsel %vm256, %v480, 0
        %v526 = vsel %vm256, %v481, 0
        %v529 = vsel %vm256, %v482, 0
        %531 = vmatprep.subr.mxu0 0.0
        %532 = vmatpush1.msra.mxu0 0.0
        %533 = vmatprep.subr.mxu0 0.0
        %534 = vmatpush1.msra.mxu0 0.0
        %535 = vmatprep.subr.mxu0 0.0
        %536 = vmatpush1.msra.mxu0 0.0
        %537 = vmatprep.subr.mxu0 0.0
        %538 = vmatpush1.msra.mxu0 0.0
        %539 = vmatprep.subr.mxu0 0.0
        %540 = vmatpush1.msra.mxu0 0.0
        %541 = vmatprep.subr.mxu0 0.0
        %542 = vmatpush1.msra.mxu0 0.0
        %543 = vmatprep.subr.mxu0 0.0
        %544 = vmatpush1.msra.mxu0 0.0
        %545 = vmatprep.subr.mxu0 0.0
        %546 = vmatpush1.msra.mxu0 0.0
        %547 = vmatprep.subr.mxu0 0.0
        %548 = vmatpush1.msra.mxu0 0.0
        %549 = vmatprep.subr.mxu0 0.0
        %550 = vmatpush1.msra.mxu0 0.0
        %551 = vmatprep.subr.mxu0 0.0
        %552 = vmatpush1.msra.mxu0 0.0
        %553 = vmatprep.subr.mxu0 0.0
        %554 = vmatpush1.msra.mxu0 0.0
        %555 = vmatprep.subr.mxu0 0.0
        %556 = vmatpush1.msra.mxu0 0.0
        %557 = vmatprep.subr.mxu0 0.0
        %558 = vmatpush1.msra.mxu0 0.0
        %559 = vmatprep.subr.mxu0 0.0
        %560 = vmatpush1.msra.mxu0 0.0
        %561 = vmatprep.subr.mxu0 0.0
        %562 = vmatpush1.msra.mxu0 %v450
        %563 = vmatprep.subr.mxu0 0.0
        %564 = vmatpush2.msra.mxu0 0.0
        %565 = vmatprep.subr.mxu0 0.0
        %566 = vmatpush2.msra.mxu0 0.0
        %567 = vmatprep.subr.mxu0 0.0
        %568 = vmatpush2.msra.mxu0 0.0
        %569 = vmatprep.subr.mxu0 0.0
        %570 = vmatpush2.msra.mxu0 0.0
        %571 = vmatprep.subr.mxu0 0.0
        %572 = vmatpush2.msra.mxu0 0.0
        %573 = vmatprep.subr.mxu0 0.0
        %574 = vmatpush2.msra.mxu0 0.0
        %575 = vmatprep.subr.mxu0 0.0
        %576 = vmatpush2.msra.mxu0 0.0
        %577 = vmatprep.subr.mxu0 0.0
        %578 = vmatpush2.msra.mxu0 0.0
        %579 = vmatprep.subr.mxu0 0.0
        %580 = vmatpush2.msra.mxu0 0.0
        %581 = vmatprep.subr.mxu0 0.0
        %582 = vmatpush2.msra.mxu0 0.0
        %583 = vmatprep.subr.mxu0 0.0
        %584 = vmatpush2.msra.mxu0 0.0
        %585 = vmatprep.subr.mxu0 0.0
        %586 = vmatpush2.msra.mxu0 0.0
        %587 = vmatprep.subr.mxu0 0.0
        %588 = vmatpush2.msra.mxu0 0.0
        %589 = vmatprep.subr.mxu0 0.0
        %590 = vmatpush2.msra.mxu0 0.0
        %591 = vmatprep.subr.mxu0 0.0
        %592 = vmatpush2.msra.mxu0 0.0
        %593 = vmatprep.subr.mxu0 0.0
        %594 = vmatpush2.msra.mxu0 0.0
        %595 = vmatprep.mubr.f32.mxu0 0.0
        %596 = vmatmul.mubr.f32.gmra.mxu0 %v484
        %v597 = vpop.f32.mrf.mxu0
        %v598 = vadd.f32 0.0, %v597
        %v599 = vpop.f32.mrf.mxu0
        %600 = vmatprep.mubr.f32.mxu0 0.0
        %601 = vmatmul.mubr.f32.gmra.mxu0 %v487
        %v602 = vpop.f32.mrf.mxu0
        %v603 = vadd.f32 0.0, %v602
        %v604 = vpop.f32.mrf.mxu0
        %605 = vmatprep.mubr.f32.mxu0 0.0
        %606 = vmatmul.mubr.f32.gmra.mxu0 %v490
        %v607 = vpop.f32.mrf.mxu0
        %v608 = vadd.f32 0.0, %v607
        %v609 = vpop.f32.mrf.mxu0
        %610 = vmatprep.mubr.f32.mxu0 0.0
        %611 = vmatmul.mubr.f32.gmra.mxu0 %v493
        %v612 = vpop.f32.mrf.mxu0
        %v613 = vadd.f32 0.0, %v612
        %v614 = vpop.f32.mrf.mxu0
        %615 = vmatprep.mubr.f32.mxu0 0.0
        %616 = vmatmul.mubr.f32.gmra.mxu0 %v496
        %v617 = vpop.f32.mrf.mxu0
        %v618 = vadd.f32 0.0, %v617
        %v619 = vpop.f32.mrf.mxu0
        %620 = vmatprep.mubr.f32.mxu0 0.0
        %621 = vmatmul.mubr.f32.gmra.mxu0 %v499
        %v622 = vpop.f32.mrf.mxu0
        %v623 = vadd.f32 0.0, %v622
        %v624 = vpop.f32.mrf.mxu0
        %625 = vmatprep.mubr.f32.mxu0 0.0
        %626 = vmatmul.mubr.f32.gmra.mxu0 %v502
        %v627 = vpop.f32.mrf.mxu0
        %v628 = vadd.f32 0.0, %v627
        %v629 = vpop.f32.mrf.mxu0
        %630 = vmatprep.mubr.f32.mxu0 0.0
        %631 = vmatmul.mubr.f32.gmra.mxu0 %v505
        %v632 = vpop.f32.mrf.mxu0
        %v633 = vadd.f32 0.0, %v632
        %v634 = vpop.f32.mrf.mxu0
        %635 = vmatprep.mubr.f32.mxu0 0.0
        %636 = vmatmul.mubr.f32.gmra.mxu0 %v508
        %v637 = vpop.f32.mrf.mxu0
        %v638 = vadd.f32 0.0, %v637
        %v639 = vpop.f32.mrf.mxu0
        %640 = vmatprep.mubr.f32.mxu0 0.0
        %641 = vmatmul.mubr.f32.gmra.mxu0 %v511
        %v642 = vpop.f32.mrf.mxu0
        %v643 = vadd.f32 0.0, %v642
        %v644 = vpop.f32.mrf.mxu0
        %645 = vmatprep.mubr.f32.mxu0 0.0
        %646 = vmatmul.mubr.f32.gmra.mxu0 %v514
        %v647 = vpop.f32.mrf.mxu0
        %v648 = vadd.f32 0.0, %v647
        %v649 = vpop.f32.mrf.mxu0
        %650 = vmatprep.mubr.f32.mxu0 0.0
        %651 = vmatmul.mubr.f32.gmra.mxu0 %v517
        %v652 = vpop.f32.mrf.mxu0
        %v653 = vadd.f32 0.0, %v652
        %v654 = vpop.f32.mrf.mxu0
        %655 = vmatprep.mubr.f32.mxu0 0.0
        %656 = vmatmul.mubr.f32.gmra.mxu0 %v520
        %v657 = vpop.f32.mrf.mxu0
        %v658 = vadd.f32 0.0, %v657
        %v659 = vpop.f32.mrf.mxu0
        %660 = vmatprep.mubr.f32.mxu0 0.0
        %661 = vmatmul.mubr.f32.gmra.mxu0 %v523
        %v662 = vpop.f32.mrf.mxu0
        %v663 = vadd.f32 0.0, %v662
        %v664 = vpop.f32.mrf.mxu0
        %665 = vmatprep.mubr.f32.mxu0 0.0
        %666 = vmatmul.mubr.f32.gmra.mxu0 %v526
        %v667 = vpop.f32.mrf.mxu0
        %v668 = vadd.f32 0.0, %v667
        %v669 = vpop.f32.mrf.mxu0
        %670 = vmatprep.mubr.f32.mxu0 0.0
        %671 = vmatmul.mubr.f32.gmra.mxu0 %v529
        %v672 = vpop.f32.mrf.mxu0
        %v673 = vadd.f32 0.0, %v672
        %v674 = vpop.f32.mrf.mxu0
        %675 = vdwg.mxu0
        %v676 = vadd.f32 %v212, %v372
        %v677 = vadd.f32 %v212, %v377
        %v678 = vadd.f32 %v212, %v382
        %v679 = vadd.f32 %v212, %v387
        %v680 = vadd.f32 %v212, %v392
        %v681 = vadd.f32 %v212, %v397
        %v682 = vadd.f32 %v212, %v402
        %v683 = vadd.f32 %v212, %v407
        %v684 = vadd.f32 %v212, %v412
        %v685 = vadd.f32 %v212, %v417
        %v686 = vadd.f32 %v212, %v422
        %v687 = vadd.f32 %v212, %v427
        %v688 = vadd.f32 %v212, %v432
        %v689 = vadd.f32 %v212, %v437
        %v690 = vadd.f32 %v212, %v442
        %v691 = vadd.f32 %v212, %v447
        %v692 = vadd.f32 %v676, %v598
        %v693 = vadd.f32 %v677, %v603
        %v694 = vadd.f32 %v678, %v608
        %v695 = vadd.f32 %v679, %v613
        %v696 = vadd.f32 %v680, %v618
        %v697 = vadd.f32 %v681, %v623
        %v698 = vadd.f32 %v682, %v628
        %v699 = vadd.f32 %v683, %v633
        %v700 = vadd.f32 %v684, %v638
        %v701 = vadd.f32 %v685, %v643
        %v702 = vadd.f32 %v686, %v648
        %v703 = vadd.f32 %v687, %v653
        %v704 = vadd.f32 %v688, %v658
        %v705 = vadd.f32 %v689, %v663
        %v706 = vadd.f32 %v690, %v668
        %v707 = vadd.f32 %v691, %v673
        %v708 = vadd.f32 %v692, %v221
        %v709 = vadd.f32 %v693, %v221
        %v710 = vadd.f32 %v694, %v221
        %v711 = vadd.f32 %v695, %v221
        %v712 = vadd.f32 %v696, %v221
        %v713 = vadd.f32 %v697, %v221
        %v714 = vadd.f32 %v698, %v221
        %v715 = vadd.f32 %v699, %v221
        %v716 = vadd.f32 %v700, %v221
        %v717 = vadd.f32 %v701, %v221
        %v718 = vadd.f32 %v702, %v221
        %v719 = vadd.f32 %v703, %v221
        %v720 = vadd.f32 %v704, %v221
        %v721 = vadd.f32 %v705, %v221
        %v722 = vadd.f32 %v706, %v221
        %v723 = vadd.f32 %v707, %v221
        %724 = vst [vmem:[%s187] sm:$0xff] %v708
        %725 = vst [vmem:[%s187 + $0x8] sm:$0xff] %v709
        %726 = vst [vmem:[%s187 + $0x10] sm:$0xff] %v710
        %727 = vst [vmem:[%s187 + $0x18] sm:$0xff] %v711
        %728 = vst [vmem:[%s187 + $0x20] sm:$0xff] %v712
        %729 = vst [vmem:[%s187 + $0x28] sm:$0xff] %v713
        %730 = vst [vmem:[%s187 + $0x30] sm:$0xff] %v714
        %731 = vst [vmem:[%s187 + $0x38] sm:$0xff] %v715
        %732 = vst [vmem:[%s187 + $0x40] sm:$0xff] %v716
        %733 = vst [vmem:[%s187 + $0x48] sm:$0xff] %v717
        %734 = vst [vmem:[%s187 + $0x50] sm:$0xff] %v718
        %735 = vst [vmem:[%s187 + $0x58] sm:$0xff] %v719
        %736 = vst [vmem:[%s187 + $0x60] sm:$0xff] %v720
        %737 = vst [vmem:[%s187 + $0x68] sm:$0xff] %v721
        %738 = vst [vmem:[%s187 + $0x70] sm:$0xff] %v722
        %739 = vst [vmem:[%s187 + $0x78] sm:$0xff] %v723
        %s740 = sand.u32 %s103, 1
        %s741 = scalar_lea.sflag [#allocation3], %s740
        %s742 = sand.u32 %s103, 1
        %s743 = smul.addr %s742, 128
        %s744 = scalar_lea.vmem [#allocation2], %s743
        // Predicated region
        $region33: #{phase1.41} parent=31 // pred_check
          %p745 = pneg %p113
        $region34: #{phase1.41} parent=31 // pred_check_branch
          %747 = sbr.rel (%p745) target = $region36
        $region35: #{phase1.41} parent=31 // pred_region
          %s749 = ssub.s32 2048, 2048
          %750 = vsyncadd %s741, %s749
          %s751 = smul.addr %s17, 16
          %s752 = smul.addr %s751, 128
          %s753 = scalar_lea.hbm %s3, %s752
          %s754 = sshll.u32 %s744, 4
          %s755 = int_to_ptr.vmem [resolvable:$true] %s754
          %760 = dma.vmem_to_hbm [thread:$0]  %s755, 2048, %s753, %s741, 128, 128, 8
        $region36: #{phase1.41} parent=31 // pred_fallthru
          _
      $region32: #{phase1.41} parent=5 // pred_fallthru
        _
      %p761 = scmp.le.s32.totalorder 2, %s12
      // Predicated region
      $region37: #{phase1.41} parent=5 // pred_check
        %p762 = pneg %p761
      $region38: #{phase1.41} parent=5 // pred_check_branch
        %764 = sbr.rel (%p762) target = $region40
      $region39: #{phase1.41} parent=5 // pred_region
        %s765 = ssub.s32 %s12, 2
        // Predicated region
        $region41: #{phase1.41} parent=39 // pred_check
          %p766 = pneg %p119
        $region42: #{phase1.41} parent=39 // pred_check_branch
          %768 = sbr.rel (%p766) target = $region44
        $region43: #{phase1.41} parent=39 // pred_region
          %s769 = sand.u32 %s104, 1
          %s770 = scalar_lea.sflag [#allocation3], %s769
          %s771 = sand.u32 %s104, 1
          %s772 = smul.addr %s771, 128
          %s773 = scalar_lea.vmem [#allocation2], %s772
          %774 = dma.done %s770, 2048
        $region44: #{phase1.41} parent=39 // pred_fallthru
          _
      $region40: #{phase1.41} parent=5 // pred_fallthru
        _
    $region6: #{phase1.41} parent=1 // loop_footer
      %s16 = sadd.s32 1, %s12
    $region7: #{phase1.41} parent=1 // loop_footer_branch
      %11 = sbr.rel target = $region3
    $region8: #{phase1.41} parent=1 // loop_exit
      _
    %775 = vsyncpa [#allocation3], 1
    %s776 = scalar_lea.sflag [#allocation3], 1
    %777 = vsyncpa %s776, 1

</llo_original>
